<compile_context>
chip_gen: v6e
topology: v6e:2x2x1
jax: 0.10.0
libtpu: 0.0.40
codegen_flags: <defaults>
</compile_context>

<pallas_src>
import functools

import jax
import jax.numpy as jnp
from jax.experimental import pallas as pl
from jax.experimental.pallas import tpu as pltpu

EPS = 1e-5
_VMEM_LIMIT = 32 * 1024 * 1024
_DOT_DTYPE = jnp.bfloat16  # MXU-native; epilogue stays f32


# ----------------------------- Pallas kernels ------------------------------

def _up_kernel(x_ref, w_ref, shift_ref, o_ref, *, lin):
    """Conv1d(Cin->Cout, k=2, 'same') + BatchNorm + ReLU + x2 nearest upsample.

    x_ref:     (M, Cin)      f32, M = B*lin (batch folded into rows)
    w_ref:     (2*Cin, Cout) bf16, BN scale folded in; rows [0:Cin] = tap x[l],
               rows [Cin:2Cin] = tap x[l+1]
    shift_ref: (1, Cout)     f32, BN shift with conv bias folded in
    o_ref:     (M, 2*Cout)   bf16, [y | y]; free reshape to (2M, Cout) = upsample
    """
    M, Cin = x_ref.shape
    x = x_ref[...]
    # x[l+1] within each per-batch row group; zero at the last row of each group
    # (PyTorch 'same' padding for k=2 pads right only).  pltpu.roll == jnp.roll.
    nxt = pltpu.roll(x, M - 1, axis=0)
    rows = jax.lax.broadcasted_iota(jnp.int32, (M, Cin), 0)
    nxt = jnp.where(rows % lin == lin - 1, 0.0, nxt)
    x_cat = jnp.concatenate([x, nxt], axis=-1).astype(_DOT_DTYPE)
    y = jnp.dot(x_cat, w_ref[...], preferred_element_type=jnp.float32)
    y = jnp.maximum(y + shift_ref[...], 0.0).astype(o_ref.dtype)
    o_ref[...] = jnp.concatenate([y, y], axis=-1)


def _ur_kernel(bs_ref, ts_ref, tbl_ref, w1_ref, w2_ref, w3_ref, ws_ref, p2_ref,
               o_ref, *, lout):
    """URBlock (UP-mode Bottleneck + pair-sum residual) + FishBody outer BatchNorm.

    bs_ref: (M, C) bf16   ts_ref: (M, C) f32   (M = B*lout; concat never materialized)
    tbl_ref: (16, C) f32 packed per-channel rows:
      0:s1|bs 1:t1|bs 2:s1|ts 3:t1|ts 4:ss|bs 5:ts|bs 6:ss|ts 7:ts|ts
      8:[t2+b1*s2 | t3+b2*s3] 9:so 10:to+b3*so
    w1_ref: (2C, Cmid)      conv1 weight * s2 (bs rows then ts rows)
    w2_ref: (3*Cmid, Cmid)  conv2 weight * s3 (taps l-1, l, l+1 stacked on K)
    w3_ref: (Cmid, C)       conv3 weight * so
    ws_ref: (2C, C)         shortcut weight * so
    p2_ref: (C, Cmid)       0/1 pair-sum matrix shared by both halves
    """
    f32 = jnp.float32
    M, C = bs_ref.shape
    Cmid = C // 2

    xb16 = bs_ref[...]
    xb = xb16.astype(f32)
    xt = ts_ref[...]
    tbl = tbl_ref[...]

    # --- bn1 + relu on cat(bs, ts), then conv1 (1x1) as one lane-concatenated dot ---
    ab = jnp.maximum(xb * tbl[0:1] + tbl[1:2], 0.0)
    at = jnp.maximum(xt * tbl[2:3] + tbl[3:4], 0.0)
    a1 = jnp.concatenate([ab, at], axis=-1).astype(_DOT_DTYPE)
    h1 = jnp.dot(a1, w1_ref[...], preferred_element_type=f32)        # s2 folded in

    # --- bn2 + relu, conv2 (k=3, 'same') as one dot over lane-concatenated taps ---
    a2 = jnp.maximum(h1 + tbl[8:9, 0:Cmid], 0.0)
    rows = jax.lax.broadcasted_iota(jnp.int32, (M, Cmid), 0)
    prv = jnp.where(rows % lout == 0, 0.0, pltpu.roll(a2, 1, axis=0))          # a2[l-1]
    nxt = jnp.where(rows % lout == lout - 1, 0.0, pltpu.roll(a2, M - 1, axis=0))  # a2[l+1]
    a2c = jnp.concatenate([prv, a2, nxt], axis=-1).astype(_DOT_DTYPE)
    h2 = jnp.dot(a2c, w2_ref[...], preferred_element_type=f32)       # s3 folded in

    # --- bn3 + relu + conv3 (1x1) ---
    a3 = jnp.maximum(h2 + tbl[8:9, Cmid:C], 0.0).astype(_DOT_DTYPE)
    acc = jnp.dot(a3, w3_ref[...], preferred_element_type=f32)       # so folded in

    # --- UP-mode shortcut: bns + relu + 1x1 conv (no bias) ---
    sb = jnp.maximum(xb * tbl[4:5] + tbl[5:6], 0.0)
    st = jnp.maximum(xt * tbl[6:7] + tbl[7:8], 0.0)
    a_s = jnp.concatenate([sb, st], axis=-1).astype(_DOT_DTYPE)
    acc = acc + jnp.dot(a_s, ws_ref[...], preferred_element_type=f32)  # so folded in

    # --- r = cat(bs, ts).view(B, C, 2, L).sum(2): channel pair-sum within each half ---
    p2 = p2_ref[...]
    r = jnp.concatenate(
        [jnp.dot(xb16, p2, preferred_element_type=f32),
         jnp.dot(xt.astype(_DOT_DTYPE), p2, preferred_element_type=f32)], axis=-1)

    # (bottleneck + shortcut + r) * so + to   (so already folded into w3 / ws)
    o_ref[...] = acc + r * tbl[9:10] + tbl[10:11]


# ------------------------------ wrappers ------------------------------------

def _params():
    return pltpu.CompilerParams(dimension_semantics=("arbitrary",),
                                vmem_limit_bytes=_VMEM_LIMIT)


def _full(shape):
    zeros = (0,) * len(shape)
    return pl.BlockSpec(shape, lambda i: zeros)


def up_stage(x, p, lin):
    """x: (B*lin, Cin) f32 -> (B*2*lin, Cout) bf16 (conv k=2 + BN + ReLU + x2 upsample)."""
    M, Cin = x.shape
    w = p['w']                                             # (2, Cin, Cout) f32
    Cout = w.shape[2]
    s, t = p['bn']
    w_eff = (w * s[None, None, :]).reshape(2 * Cin, Cout).astype(_DOT_DTYPE)
    shift = (t + p['b'] * s).reshape(1, Cout).astype(jnp.float32)   # fold conv bias

    out = pl.pallas_call(
        functools.partial(_up_kernel, lin=lin),
        grid=(1,),
        in_specs=[_full((M, Cin)), _full((2 * Cin, Cout)), _full((1, Cout))],
        out_specs=_full((M, 2 * Cout)),
        out_shape=jax.ShapeDtypeStruct((M, 2 * Cout), jnp.bfloat16),
        compiler_params=_params(),
    )(x, w_eff, shift)
    # (M, 2*Cout) -> (2M, Cout) is a contiguous (free) reshape == nearest x2 upsample.
    return out.reshape(2 * M, Cout)


def ur_stage(bs, ts, p, bn_out, lout):
    """URBlock(in_chans=C, k=2) followed by the FishBody outer BatchNorm.

    bs: (B*lout, C) bf16, ts: (B*lout, C) f32 -> (B*lout, C) f32.
    """
    M, C = bs.shape
    Cmid = C // 2
    s1, t1 = p['bn1']; s2, t2 = p['bn2']; s3, t3 = p['bn3']; ss, tsh = p['bns']
    so, to = bn_out

    # fold BN scales into conv weights, conv biases into the following shift
    w1 = (p['w1'] * s2[None, :]).astype(_DOT_DTYPE)                        # (2C, Cmid)
    w2 = (p['w2'] * s3[None, None, :]).reshape(3 * Cmid, Cmid).astype(_DOT_DTYPE)
    w3 = (p['w3'] * so[None, :]).astype(_DOT_DTYPE)                        # (Cmid, C)
    ws = (p['ws'] * so[None, :]).astype(_DOT_DTYPE)                        # (2C, C)

    tbl = jnp.zeros((16, C), jnp.float32)
    rows = [s1[:C], t1[:C], s1[C:], t1[C:], ss[:C], tsh[:C], ss[C:], tsh[C:],
            jnp.concatenate([t2 + p['b1'] * s2, t3 + p['b2'] * s3]),
            so, to + p['b3'] * so]
    tbl = tbl.at[:len(rows)].set(jnp.stack(rows))

    # shared 0/1 pair-sum matrix: (x @ p2)[:, j] = x[:, 2j] + x[:, 2j+1]
    p2 = jnp.repeat(jnp.eye(Cmid, dtype=jnp.float32), 2, axis=0).astype(_DOT_DTYPE)

    return pl.pallas_call(
        functools.partial(_ur_kernel, lout=lout),
        grid=(1,),
        in_specs=[_full((M, C)), _full((M, C)), _full((16, C)),
                  _full((2 * C, Cmid)), _full((3 * Cmid, Cmid)),
                  _full((Cmid, C)), _full((2 * C, C)), _full((C, Cmid))],
        out_specs=_full((M, C)),
        out_shape=jax.ShapeDtypeStruct((M, C), jnp.float32),
        compiler_params=_params(),
    )(bs, ts, tbl, w1, w2, w3, ws, p2)


# ---------------------------- parameter factory ------------------------------

def key_stream(seed=0):
    key = jax.random.PRNGKey(seed)
    while True:
        key, sub = jax.random.split(key)
        yield sub


def make_conv(key, cin, cout, k, bias=True):
    # xavier_uniform_-style init; weights kept f32 in (k, Cin, Cout) layout
    # (PyTorch stores (Cout, Cin, k) -- transpose when porting real checkpoints).
    bound = (6.0 / ((cin + cout) * k)) ** 0.5
    w = jax.random.uniform(key, (k, cin, cout), jnp.float32, -bound, bound)
    b = jnp.zeros((cout,), jnp.float32) if bias else None
    return w, b


def make_bn(c):
    # eval-mode BN with PyTorch defaults: gamma=1, beta=0, mean=0, var=1
    scale = jnp.full((c,), 1.0 / (1.0 + EPS) ** 0.5, jnp.float32)
    shift = jnp.zeros((c,), jnp.float32)
    return scale, shift


def init_bottleneck_up(ks, C):
    Cmid = C // 2
    p = {}
    p['bn1'] = make_bn(2 * C)
    w, b = make_conv(next(ks), 2 * C, Cmid, 1); p['w1'] = w[0]; p['b1'] = b
    p['bn2'] = make_bn(Cmid)
    w, b = make_conv(next(ks), Cmid, Cmid, 3);  p['w2'] = w;    p['b2'] = b
    p['bn3'] = make_bn(Cmid)
    w, b = make_conv(next(ks), Cmid, C, 1);     p['w3'] = w[0]; p['b3'] = b
    p['bns'] = make_bn(2 * C)
    w, _ = make_conv(next(ks), 2 * C, C, 1, bias=False); p['ws'] = w[0]
    return p


def init_fishbody(seed=0):
    ks = key_stream(seed)
    P = {}
    for name, cin, cout in (('up3', 512, 256), ('up2', 256, 128), ('up1', 128, 64)):
        w, b = make_conv(next(ks), cin, cout, 2)
        P[name] = dict(w=w, b=b, bn=make_bn(cout))
    P['ur3'] = init_bottleneck_up(ks, 256)
    P['ur2'] = init_bottleneck_up(ks, 128)
    P['ur1'] = init_bottleneck_up(ks, 64)
    P['bn3'] = make_bn(256)
    P['bn2'] = make_bn(128)
    P['bn1'] = make_bn(64)
    return P


# ------------------------------ forward --------------------------------------

def fishbody_fwd(P, t1, t2, t3, t4, b4):
    """FishBody.forward(t1, t2, t3, t4, b4) -> (b1, b2, b3), all NCW like PyTorch."""
    del t4  # present in the PyTorch signature but unused by FishBody.forward
    B, _, L4 = b4.shape

    def to_flat(x):                   # (B, C, L) NCW -> (B*L, C) channels-last
        _, C, L = x.shape
        return jnp.transpose(x, (0, 2, 1)).reshape(B * L, C).astype(jnp.float32)

    def to_ncw(xf, L):                # (B*L, C) -> (B, C, L)
        C = xf.shape[1]
        return jnp.transpose(xf.reshape(B, L, C), (0, 2, 1))

    t1f, t2f, t3f, b4f = map(to_flat, (t1, t2, t3, b4))

    b3 = ur_stage(up_stage(b4f, P['up3'], lin=L4),     t3f, P['ur3'], P['bn3'], lout=2 * L4)
    b2 = ur_stage(up_stage(b3,  P['up2'], lin=2 * L4), t2f, P['ur2'], P['bn2'], lout=4 * L4)
    b1 = ur_stage(up_stage(b2,  P['up1'], lin=4 * L4), t1f, P['ur1'], P['bn1'], lout=8 * L4)

    return to_ncw(b1, 8 * L4), to_ncw(b2, 4 * L4), to_ncw(b3, 2 * L4)


# ---------------------------------- main --------------------------------------

if __name__ == "__main__":
    P = init_fishbody(seed=0)

    B, L4 = 2, 8  # b4 length L4; t3 = 2*L4, t2 = 4*L4, t1 = 8*L4
    k1, k2, k3, k4, k5 = jax.random.split(jax.random.PRNGKey(0), 5)
    t1 = jax.random.normal(k1, (B, 64, 8 * L4), jnp.float32)
    t2 = jax.random.normal(k2, (B, 128, 4 * L4), jnp.float32)
    t3 = jax.random.normal(k3, (B, 256, 2 * L4), jnp.float32)
    t4 = jax.random.normal(k4, (B, 512, L4), jnp.float32)
    b4 = jax.random.normal(k5, (B, 512, L4), jnp.float32)

    fwd = jax.jit(lambda a, b, c, d, e: fishbody_fwd(P, a, b, c, d, e))
    b1, b2, b3 = jax.block_until_ready(fwd(t1, t2, t3, t4, b4))

    assert b1.shape == (B, 64, 8 * L4)
    assert b2.shape == (B, 128, 4 * L4)
    assert b3.shape == (B, 256, 2 * L4)
    assert all(bool(jnp.all(jnp.isfinite(x))) for x in (b1, b2, b3))
    print("KERNEL_OK")
</pallas_src>

<mosaic_0001>
module attributes {stable_mosaic.version = 11 : i64} {
  func.func @_up_kernel(%arg0: i32, %arg1: memref<16x512xf32, #tpu.memory_space<vmem>>, %arg2: memref<1024x256xbf16, #tpu.memory_space<vmem>>, %arg3: memref<1x256xf32, #tpu.memory_space<vmem>>, %arg4: memref<16x512xbf16, #tpu.memory_space<vmem>>) attributes {dimension_semantics = [#tpu.dimension_semantics<arbitrary>], iteration_bounds = array<i64: 1>, scalar_prefetch = 0 : i64, scratch_operands = 0 : i64, tpu.core_type = #tpu.core_type<tc>, window_params = [{pipeline_mode = #tpu.pipeline_mode<synchronous>, transform_indices = @transform_0, window_bounds = array<i64: 16, 512>}, {pipeline_mode = #tpu.pipeline_mode<synchronous>, transform_indices = @transform_1, window_bounds = array<i64: 1024, 256>}, {pipeline_mode = #tpu.pipeline_mode<synchronous>, transform_indices = @transform_2, window_bounds = array<i64: 1, 256>}, {pipeline_mode = #tpu.pipeline_mode<synchronous>, transform_indices = @transform_3, window_bounds = array<i64: 16, 512>}]} {
    %c0 = arith.constant 0 : index
    %c0_0 = arith.constant 0 : index
    %0 = vector.load %arg1[%c0, %c0_0] : memref<16x512xf32, #tpu.memory_space<vmem>>, vector<16x512xf32>
    %c15_i32 = arith.constant 15 : i32
    %1 = tpu.dynamic_rotate %0 by %c15_i32 dim 0 : vector<16x512xf32>, i32 -> vector<16x512xf32>
    %2 = tpu.iota {dimensions = array<i32: 0>} : vector<16x512xi32>
    %c8_i32 = arith.constant 8 : i32
    %c0_i32 = arith.constant 0 : i32
    %3 = arith.cmpi eq, %c8_i32, %c0_i32 : i32
    %c1_i32 = arith.constant 1 : i32
    %4 = arith.select %3, %c1_i32, %c8_i32 : i32
    %5 = vector.broadcast %4 : i32 to vector<16x512xi32>
    %6 = arith.remsi %2, %5 : vector<16x512xi32>
    %c0_i32_1 = arith.constant 0 : i32
    %7 = vector.broadcast %c0_i32_1 : i32 to vector<16x512xi32>
    %8 = arith.cmpi ne, %6, %7 : vector<16x512xi32>
    %c0_i32_2 = arith.constant 0 : i32
    %9 = vector.broadcast %c0_i32_2 : i32 to vector<16x512xi32>
    %10 = arith.cmpi slt, %6, %9 : vector<16x512xi32>
    %c0_i32_3 = arith.constant 0 : i32
    %11 = arith.cmpi slt, %4, %c0_i32_3 : i32
    %12 = vector.broadcast %11 : i1 to vector<16x512xi1>
    %13 = vector.broadcast %12 : vector<16x512xi1> to vector<16x512xi1>
    %14 = arith.xori %10, %13 : vector<16x512xi1>
    %15 = arith.andi %14, %8 : vector<16x512xi1>
    %16 = vector.broadcast %4 : i32 to vector<16x512xi32>
    %17 = arith.addi %6, %16 : vector<16x512xi32>
    %18 = arith.select %15, %17, %6 : vector<16x512xi1>, vector<16x512xi32>
    %c7_i32 = arith.constant 7 : i32
    %19 = vector.broadcast %c7_i32 : i32 to vector<16x512xi32>
    %20 = arith.cmpi eq, %18, %19 : vector<16x512xi32>
    %cst = arith.constant 0.000000e+00 : f32
    %21 = vector.broadcast %cst : f32 to vector<16x512xf32>
    %22 = arith.select %20, %21, %1 : vector<16x512xi1>, vector<16x512xf32>
    %23 = tpu.concatenate %0, %22 in 1 : vector<16x512xf32>, vector<16x512xf32> -> vector<16x1024xf32>
    %24 = arith.truncf %23 : vector<16x1024xf32> to vector<16x1024xbf16>
    %c0_4 = arith.constant 0 : index
    %c0_5 = arith.constant 0 : index
    %25 = vector.load %arg2[%c0_4, %c0_5] : memref<1024x256xbf16, #tpu.memory_space<vmem>>, vector<1024x256xbf16>
    %cst_6 = arith.constant dense<0.000000e+00> : vector<16x256xf32>
    %26 = tpu.matmul %24, %25, %cst_6 {dimension_numbers = #tpu.dot_dimension_numbers<[1], [0], [0], [1], [0, 0, 1, 1], [], []>} : vector<16x1024xbf16>, vector<1024x256xbf16>, vector<16x256xf32> -> vector<16x256xf32>
    %c0_7 = arith.constant 0 : index
    %c0_8 = arith.constant 0 : index
    %27 = vector.load %arg3[%c0_7, %c0_8] : memref<1x256xf32, #tpu.memory_space<vmem>>, vector<1x256xf32>
    %28 = vector.broadcast %27 : vector<1x256xf32> to vector<16x256xf32>
    %29 = arith.addf %26, %28 : vector<16x256xf32>
    %cst_9 = arith.constant 0.000000e+00 : f32
    %30 = vector.broadcast %cst_9 : f32 to vector<16x256xf32>
    %31 = arith.maximumf %29, %30 : vector<16x256xf32>
    %32 = arith.truncf %31 : vector<16x256xf32> to vector<16x256xbf16>
    %33 = tpu.concatenate %32, %32 in 1 : vector<16x256xbf16>, vector<16x256xbf16> -> vector<16x512xbf16>
    %c0_10 = arith.constant 0 : index
    %c0_11 = arith.constant 0 : index
    %34 = vector.load %arg4[%c0_10, %c0_11] : memref<16x512xbf16, #tpu.memory_space<vmem>>, vector<16x512xbf16>
    tpu.vector_store %arg4[%c0_10, %c0_11], %33 {strides = array<i32>} : memref<16x512xbf16, #tpu.memory_space<vmem>>, vector<16x512xbf16>,
    return
  }
  func.func @transform_0(%arg0: i32) -> (i32, i32) {
    %c0_i32 = arith.constant 0 : i32
    %c0_i32_0 = arith.constant 0 : i32
    %c0_i32_1 = arith.constant 0 : i32
    return %c0_i32, %c0_i32_0 : i32, i32
  }
  func.func @transform_1(%arg0: i32) -> (i32, i32) {
    %c0_i32 = arith.constant 0 : i32
    %c0_i32_0 = arith.constant 0 : i32
    %c0_i32_1 = arith.constant 0 : i32
    return %c0_i32, %c0_i32_0 : i32, i32
  }
  func.func @transform_2(%arg0: i32) -> (i32, i32) {
    %c0_i32 = arith.constant 0 : i32
    %c0_i32_0 = arith.constant 0 : i32
    %c0_i32_1 = arith.constant 0 : i32
    return %c0_i32, %c0_i32_0 : i32, i32
  }
  func.func @transform_3(%arg0: i32) -> (i32, i32) {
    %c0_i32 = arith.constant 0 : i32
    %c0_i32_0 = arith.constant 0 : i32
    %c0_i32_1 = arith.constant 0 : i32
    return %c0_i32, %c0_i32_0 : i32, i32
  }
}

module attributes {stable_mosaic.version = 11 : i64} {
  func.func @_ur_kernel(%arg0: i32, %arg1: memref<32x256xbf16, #tpu.memory_space<vmem>>, %arg2: memref<32x256xf32, #tpu.memory_space<vmem>>, %arg3: memref<16x256xf32, #tpu.memory_space<vmem>>, %arg4: memref<512x128xbf16, #tpu.memory_space<vmem>>, %arg5: memref<384x128xbf16, #tpu.memory_space<vmem>>, %arg6: memref<128x256xbf16, #tpu.memory_space<vmem>>, %arg7: memref<512x256xbf16, #tpu.memory_space<vmem>>, %arg8: memref<256x128xbf16, #tpu.memory_space<vmem>>, %arg9: memref<32x256xf32, #tpu.memory_space<vmem>>) attributes {dimension_semantics = [#tpu.dimension_semantics<arbitrary>], iteration_bounds = array<i64: 1>, scalar_prefetch = 0 : i64, scratch_operands = 0 : i64, tpu.core_type = #tpu.core_type<tc>, window_params = [{pipeline_mode = #tpu.pipeline_mode<synchronous>, transform_indices = @transform_0, window_bounds = array<i64: 32, 256>}, {pipeline_mode = #tpu.pipeline_mode<synchronous>, transform_indices = @transform_1, window_bounds = array<i64: 32, 256>}, {pipeline_mode = #tpu.pipeline_mode<synchronous>, transform_indices = @transform_2, window_bounds = array<i64: 16, 256>}, {pipeline_mode = #tpu.pipeline_mode<synchronous>, transform_indices = @transform_3, window_bounds = array<i64: 512, 128>}, {pipeline_mode = #tpu.pipeline_mode<synchronous>, transform_indices = @transform_4, window_bounds = array<i64: 384, 128>}, {pipeline_mode = #tpu.pipeline_mode<synchronous>, transform_indices = @transform_5, window_bounds = array<i64: 128, 256>}, {pipeline_mode = #tpu.pipeline_mode<synchronous>, transform_indices = @transform_6, window_bounds = array<i64: 512, 256>}, {pipeline_mode = #tpu.pipeline_mode<synchronous>, transform_indices = @transform_7, window_bounds = array<i64: 256, 128>}, {pipeline_mode = #tpu.pipeline_mode<synchronous>, transform_indices = @transform_8, window_bounds = array<i64: 32, 256>}]} {
    %c0 = arith.constant 0 : index
    %c0_0 = arith.constant 0 : index
    %0 = vector.load %arg1[%c0, %c0_0] : memref<32x256xbf16, #tpu.memory_space<vmem>>, vector<32x256xbf16>
    %1 = arith.extf %0 : vector<32x256xbf16> to vector<32x256xf32>
    %c0_1 = arith.constant 0 : index
    %c0_2 = arith.constant 0 : index
    %2 = vector.load %arg2[%c0_1, %c0_2] : memref<32x256xf32, #tpu.memory_space<vmem>>, vector<32x256xf32>
    %c0_3 = arith.constant 0 : index
    %c0_4 = arith.constant 0 : index
    %3 = vector.load %arg3[%c0_3, %c0_4] : memref<16x256xf32, #tpu.memory_space<vmem>>, vector<16x256xf32>
    %4 = vector.extract_strided_slice %3 {offsets = [0, 0], sizes = [1, 256], strides = [1, 1]} : vector<16x256xf32> to vector<1x256xf32>
    %5 = vector.broadcast %4 : vector<1x256xf32> to vector<32x256xf32>
    %6 = arith.mulf %1, %5 : vector<32x256xf32>
    %7 = vector.extract_strided_slice %3 {offsets = [1, 0], sizes = [1, 256], strides = [1, 1]} : vector<16x256xf32> to vector<1x256xf32>
    %8 = vector.broadcast %7 : vector<1x256xf32> to vector<32x256xf32>
    %9 = arith.addf %6, %8 : vector<32x256xf32>
    %cst = arith.constant 0.000000e+00 : f32
    %10 = vector.broadcast %cst : f32 to vector<32x256xf32>
    %11 = arith.maximumf %9, %10 : vector<32x256xf32>
    %12 = vector.extract_strided_slice %3 {offsets = [2, 0], sizes = [1, 256], strides = [1, 1]} : vector<16x256xf32> to vector<1x256xf32>
    %13 = vector.broadcast %12 : vector<1x256xf32> to vector<32x256xf32>
    %14 = arith.mulf %2, %13 : vector<32x256xf32>
    %15 = vector.extract_strided_slice %3 {offsets = [3, 0], sizes = [1, 256], strides = [1, 1]} : vector<16x256xf32> to vector<1x256xf32>
    %16 = vector.broadcast %15 : vector<1x256xf32> to vector<32x256xf32>
    %17 = arith.addf %14, %16 : vector<32x256xf32>
    %cst_5 = arith.constant 0.000000e+00 : f32
    %18 = vector.broadcast %cst_5 : f32 to vector<32x256xf32>
    %19 = arith.maximumf %17, %18 : vector<32x256xf32>
    %20 = tpu.concatenate %11, %19 in 1 : vector<32x256xf32>, vector<32x256xf32> -> vector<32x512xf32>
    %21 = arith.truncf %20 : vector<32x512xf32> to vector<32x512xbf16>
    %c0_6 = arith.constant 0 : index
    %c0_7 = arith.constant 0 : index
    %22 = vector.load %arg4[%c0_6, %c0_7] : memref<512x128xbf16, #tpu.memory_space<vmem>>, vector<512x128xbf16>
    %cst_8 = arith.constant dense<0.000000e+00> : vector<32x128xf32>
    %23 = tpu.matmul %21, %22, %cst_8 {dimension_numbers = #tpu.dot_dimension_numbers<[1], [0], [0], [1], [0, 0, 1, 1], [], []>} : vector<32x512xbf16>, vector<512x128xbf16>, vector<32x128xf32> -> vector<32x128xf32>
    %24 = vector.extract_strided_slice %3 {offsets = [8, 0], sizes = [1, 128], strides = [1, 1]} : vector<16x256xf32> to vector<1x128xf32>
    %25 = vector.broadcast %24 : vector<1x128xf32> to vector<32x128xf32>
    %26 = arith.addf %23, %25 : vector<32x128xf32>
    %cst_9 = arith.constant 0.000000e+00 : f32
    %27 = vector.broadcast %cst_9 : f32 to vector<32x128xf32>
    %28 = arith.maximumf %26, %27 : vector<32x128xf32>
    %29 = tpu.iota {dimensions = array<i32: 0>} : vector<32x128xi32>
    %c16_i32 = arith.constant 16 : i32
    %c0_i32 = arith.constant 0 : i32
    %30 = arith.cmpi eq, %c16_i32, %c0_i32 : i32
    %c1_i32 = arith.constant 1 : i32
    %31 = arith.select %30, %c1_i32, %c16_i32 : i32
    %32 = vector.broadcast %31 : i32 to vector<32x128xi32>
    %33 = arith.remsi %29, %32 : vector<32x128xi32>
    %c0_i32_10 = arith.constant 0 : i32
    %34 = vector.broadcast %c0_i32_10 : i32 to vector<32x128xi32>
    %35 = arith.cmpi ne, %33, %34 : vector<32x128xi32>
    %c0_i32_11 = arith.constant 0 : i32
    %36 = vector.broadcast %c0_i32_11 : i32 to vector<32x128xi32>
    %37 = arith.cmpi slt, %33, %36 : vector<32x128xi32>
    %c0_i32_12 = arith.constant 0 : i32
    %38 = arith.cmpi slt, %31, %c0_i32_12 : i32
    %39 = vector.broadcast %38 : i1 to vector<32x128xi1>
    %40 = vector.broadcast %39 : vector<32x128xi1> to vector<32x128xi1>
    %41 = arith.xori %37, %40 : vector<32x128xi1>
    %42 = arith.andi %41, %35 : vector<32x128xi1>
    %43 = vector.broadcast %31 : i32 to vector<32x128xi32>
    %44 = arith.addi %33, %43 : vector<32x128xi32>
    %45 = arith.select %42, %44, %33 : vector<32x128xi1>, vector<32x128xi32>
    %c0_i32_13 = arith.constant 0 : i32
    %46 = vector.broadcast %c0_i32_13 : i32 to vector<32x128xi32>
    %47 = arith.cmpi eq, %45, %46 : vector<32x128xi32>
    %c1_i32_14 = arith.constant 1 : i32
    %48 = tpu.dynamic_rotate %28 by %c1_i32_14 dim 0 : vector<32x128xf32>, i32 -> vector<32x128xf32>
    %cst_15 = arith.constant 0.000000e+00 : f32
    %49 = vector.broadcast %cst_15 : f32 to vector<32x128xf32>
    %50 = arith.select %47, %49, %48 : vector<32x128xi1>, vector<32x128xf32>
    %c16_i32_16 = arith.constant 16 : i32
    %c0_i32_17 = arith.constant 0 : i32
    %51 = arith.cmpi eq, %c16_i32_16, %c0_i32_17 : i32
    %c1_i32_18 = arith.constant 1 : i32
    %52 = arith.select %51, %c1_i32_18, %c16_i32_16 : i32
    %53 = vector.broadcast %52 : i32 to vector<32x128xi32>
    %54 = arith.remsi %29, %53 : vector<32x128xi32>
    %c0_i32_19 = arith.constant 0 : i32
    %55 = vector.broadcast %c0_i32_19 : i32 to vector<32x128xi32>
    %56 = arith.cmpi ne, %54, %55 : vector<32x128xi32>
    %c0_i32_20 = arith.constant 0 : i32
    %57 = vector.broadcast %c0_i32_20 : i32 to vector<32x128xi32>
    %58 = arith.cmpi slt, %54, %57 : vector<32x128xi32>
    %c0_i32_21 = arith.constant 0 : i32
    %59 = arith.cmpi slt, %52, %c0_i32_21 : i32
    %60 = vector.broadcast %59 : i1 to vector<32x128xi1>
    %61 = vector.broadcast %60 : vector<32x128xi1> to vector<32x128xi1>
    %62 = arith.xori %58, %61 : vector<32x128xi1>
    %63 = arith.andi %62, %56 : vector<32x128xi1>
    %64 = vector.broadcast %52 : i32 to vector<32x128xi32>
    %65 = arith.addi %54, %64 : vector<32x128xi32>
    %66 = arith.select %63, %65, %54 : vector<32x128xi1>, vector<32x128xi32>
    %c15_i32 = arith.constant 15 : i32
    %67 = vector.broadcast %c15_i32 : i32 to vector<32x128xi32>
    %68 = arith.cmpi eq, %66, %67 : vector<32x128xi32>
    %c31_i32 = arith.constant 31 : i32
    %69 = tpu.dynamic_rotate %28 by %c31_i32 dim 0 : vector<32x128xf32>, i32 -> vector<32x128xf32>
    %cst_22 = arith.constant 0.000000e+00 : f32
    %70 = vector.broadcast %cst_22 : f32 to vector<32x128xf32>
    %71 = arith.select %68, %70, %69 : vector<32x128xi1>, vector<32x128xf32>
    %72 = tpu.concatenate %50, %28, %71 in 1 : vector<32x128xf32>, vector<32x128xf32>, vector<32x128xf32> -> vector<32x384xf32>
    %73 = arith.truncf %72 : vector<32x384xf32> to vector<32x384xbf16>
    %c0_23 = arith.constant 0 : index
    %c0_24 = arith.constant 0 : index
    %74 = vector.load %arg5[%c0_23, %c0_24] : memref<384x128xbf16, #tpu.memory_space<vmem>>, vector<384x128xbf16>
    %cst_25 = arith.constant dense<0.000000e+00> : vector<32x128xf32>
    %75 = tpu.matmul %73, %74, %cst_25 {dimension_numbers = #tpu.dot_dimension_numbers<[1], [0], [0], [1], [0, 0, 1, 1], [], []>} : vector<32x384xbf16>, vector<384x128xbf16>, vector<32x128xf32> -> vector<32x128xf32>
    %76 = vector.extract_strided_slice %3 {offsets = [8, 128], sizes = [1, 128], strides = [1, 1]} : vector<16x256xf32> to vector<1x128xf32>
    %77 = vector.broadcast %76 : vector<1x128xf32> to vector<32x128xf32>
    %78 = arith.addf %75, %77 : vector<32x128xf32>
    %cst_26 = arith.constant 0.000000e+00 : f32
    %79 = vector.broadcast %cst_26 : f32 to vector<32x128xf32>
    %80 = arith.maximumf %78, %79 : vector<32x128xf32>
    %81 = arith.truncf %80 : vector<32x128xf32> to vector<32x128xbf16>
    %c0_27 = arith.constant 0 : index
    %c0_28 = arith.constant 0 : index
    %82 = vector.load %arg6[%c0_27, %c0_28] : memref<128x256xbf16, #tpu.memory_space<vmem>>, vector<128x256xbf16>
    %cst_29 = arith.constant dense<0.000000e+00> : vector<32x256xf32>
    %83 = tpu.matmul %81, %82, %cst_29 {dimension_numbers = #tpu.dot_dimension_numbers<[1], [0], [0], [1], [0, 0, 1, 1], [], []>} : vector<32x128xbf16>, vector<128x256xbf16>, vector<32x256xf32> -> vector<32x256xf32>
    %84 = vector.extract_strided_slice %3 {offsets = [4, 0], sizes = [1, 256], strides = [1, 1]} : vector<16x256xf32> to vector<1x256xf32>
    %85 = vector.broadcast %84 : vector<1x256xf32> to vector<32x256xf32>
    %86 = arith.mulf %1, %85 : vector<32x256xf32>
    %87 = vector.extract_strided_slice %3 {offsets = [5, 0], sizes = [1, 256], strides = [1, 1]} : vector<16x256xf32> to vector<1x256xf32>
    %88 = vector.broadcast %87 : vector<1x256xf32> to vector<32x256xf32>
    %89 = arith.addf %86, %88 : vector<32x256xf32>
    %cst_30 = arith.constant 0.000000e+00 : f32
    %90 = vector.broadcast %cst_30 : f32 to vector<32x256xf32>
    %91 = arith.maximumf %89, %90 : vector<32x256xf32>
    %92 = vector.extract_strided_slice %3 {offsets = [6, 0], sizes = [1, 256], strides = [1, 1]} : vector<16x256xf32> to vector<1x256xf32>
    %93 = vector.broadcast %92 : vector<1x256xf32> to vector<32x256xf32>
    %94 = arith.mulf %2, %93 : vector<32x256xf32>
    %95 = vector.extract_strided_slice %3 {offsets = [7, 0], sizes = [1, 256], strides = [1, 1]} : vector<16x256xf32> to vector<1x256xf32>
    %96 = vector.broadcast %95 : vector<1x256xf32> to vector<32x256xf32>
    %97 = arith.addf %94, %96 : vector<32x256xf32>
    %cst_31 = arith.constant 0.000000e+00 : f32
    %98 = vector.broadcast %cst_31 : f32 to vector<32x256xf32>
    %99 = arith.maximumf %97, %98 : vector<32x256xf32>
    %100 = tpu.concatenate %91, %99 in 1 : vector<32x256xf32>, vector<32x256xf32> -> vector<32x512xf32>
    %101 = arith.truncf %100 : vector<32x512xf32> to vector<32x512xbf16>
    %c0_32 = arith.constant 0 : index
    %c0_33 = arith.constant 0 : index
    %102 = vector.load %arg7[%c0_32, %c0_33] : memref<512x256xbf16, #tpu.memory_space<vmem>>, vector<512x256xbf16>
    %cst_34 = arith.constant dense<0.000000e+00> : vector<32x256xf32>
    %103 = tpu.matmul %101, %102, %cst_34 {dimension_numbers = #tpu.dot_dimension_numbers<[1], [0], [0], [1], [0, 0, 1, 1], [], []>} : vector<32x512xbf16>, vector<512x256xbf16>, vector<32x256xf32> -> vector<32x256xf32>
    %104 = arith.addf %83, %103 : vector<32x256xf32>
    %c0_35 = arith.constant 0 : index
    %c0_36 = arith.constant 0 : index
    %105 = vector.load %arg8[%c0_35, %c0_36] : memref<256x128xbf16, #tpu.memory_space<vmem>>, vector<256x128xbf16>
    %cst_37 = arith.constant dense<0.000000e+00> : vector<32x128xf32>
    %106 = tpu.matmul %0, %105, %cst_37 {dimension_numbers = #tpu.dot_dimension_numbers<[1], [0], [0], [1], [0, 0, 1, 1], [], []>} : vector<32x256xbf16>, vector<256x128xbf16>, vector<32x128xf32> -> vector<32x128xf32>
    %107 = arith.truncf %2 : vector<32x256xf32> to vector<32x256xbf16>
    %cst_38 = arith.constant dense<0.000000e+00> : vector<32x128xf32>
    %108 = tpu.matmul %107, %105, %cst_38 {dimension_numbers = #tpu.dot_dimension_numbers<[1], [0], [0], [1], [0, 0, 1, 1], [], []>} : vector<32x256xbf16>, vector<256x128xbf16>, vector<32x128xf32> -> vector<32x128xf32>
    %109 = tpu.concatenate %106, %108 in 1 : vector<32x128xf32>, vector<32x128xf32> -> vector<32x256xf32>
    %110 = vector.extract_strided_slice %3 {offsets = [9, 0], sizes = [1, 256], strides = [1, 1]} : vector<16x256xf32> to vector<1x256xf32>
    %111 = vector.broadcast %110 : vector<1x256xf32> to vector<32x256xf32>
    %112 = arith.mulf %109, %111 : vector<32x256xf32>
    %113 = arith.addf %104, %112 : vector<32x256xf32>
    %114 = vector.extract_strided_slice %3 {offsets = [10, 0], sizes = [1, 256], strides = [1, 1]} : vector<16x256xf32> to vector<1x256xf32>
    %115 = vector.broadcast %114 : vector<1x256xf32> to vector<32x256xf32>
    %116 = arith.addf %113, %115 : vector<32x256xf32>
    %c0_39 = arith.constant 0 : index
    %c0_40 = arith.constant 0 : index
    %117 = vector.load %arg9[%c0_39, %c0_40] : memref<32x256xf32, #tpu.memory_space<vmem>>, vector<32x256xf32>
    tpu.vector_store %arg9[%c0_39, %c0_40], %116 {strides = array<i32>} : memref<32x256xf32, #tpu.memory_space<vmem>>, vector<32x256xf32>,
    return
  }
  func.func @transform_0(%arg0: i32) -> (i32, i32) {
    %c0_i32 = arith.constant 0 : i32
    %c0_i32_0 = arith.constant 0 : i32
    %c0_i32_1 = arith.constant 0 : i32
    return %c0_i32, %c0_i32_0 : i32, i32
  }
  func.func @transform_1(%arg0: i32) -> (i32, i32) {
    %c0_i32 = arith.constant 0 : i32
    %c0_i32_0 = arith.constant 0 : i32
    %c0_i32_1 = arith.constant 0 : i32
    return %c0_i32, %c0_i32_0 : i32, i32
  }
  func.func @transform_2(%arg0: i32) -> (i32, i32) {
    %c0_i32 = arith.constant 0 : i32
    %c0_i32_0 = arith.constant 0 : i32
    %c0_i32_1 = arith.constant 0 : i32
    return %c0_i32, %c0_i32_0 : i32, i32
  }
  func.func @transform_3(%arg0: i32) -> (i32, i32) {
    %c0_i32 = arith.constant 0 : i32
    %c0_i32_0 = arith.constant 0 : i32
    %c0_i32_1 = arith.constant 0 : i32
    return %c0_i32, %c0_i32_0 : i32, i32
  }
  func.func @transform_4(%arg0: i32) -> (i32, i32) {
    %c0_i32 = arith.constant 0 : i32
    %c0_i32_0 = arith.constant 0 : i32
    %c0_i32_1 = arith.constant 0 : i32
    return %c0_i32, %c0_i32_0 : i32, i32
  }
  func.func @transform_5(%arg0: i32) -> (i32, i32) {
    %c0_i32 = arith.constant 0 : i32
    %c0_i32_0 = arith.constant 0 : i32
    %c0_i32_1 = arith.constant 0 : i32
    return %c0_i32, %c0_i32_0 : i32, i32
  }
  func.func @transform_6(%arg0: i32) -> (i32, i32) {
    %c0_i32 = arith.constant 0 : i32
    %c0_i32_0 = arith.constant 0 : i32
    %c0_i32_1 = arith.constant 0 : i32
    return %c0_i32, %c0_i32_0 : i32, i32
  }
  func.func @transform_7(%arg0: i32) -> (i32, i32) {
    %c0_i32 = arith.constant 0 : i32
    %c0_i32_0 = arith.constant 0 : i32
    %c0_i32_1 = arith.constant 0 : i32
    return %c0_i32, %c0_i32_0 : i32, i32
  }
  func.func @transform_8(%arg0: i32) -> (i32, i32) {
    %c0_i32 = arith.constant 0 : i32
    %c0_i32_0 = arith.constant 0 : i32
    %c0_i32_1 = arith.constant 0 : i32
    return %c0_i32, %c0_i32_0 : i32, i32
  }
}

module attributes {stable_mosaic.version = 11 : i64} {
  func.func @_up_kernel(%arg0: i32, %arg1: memref<32x256xf32, #tpu.memory_space<vmem>>, %arg2: memref<512x128xbf16, #tpu.memory_space<vmem>>, %arg3: memref<1x128xf32, #tpu.memory_space<vmem>>, %arg4: memref<32x256xbf16, #tpu.memory_space<vmem>>) attributes {dimension_semantics = [#tpu.dimension_semantics<arbitrary>], iteration_bounds = array<i64: 1>, scalar_prefetch = 0 : i64, scratch_operands = 0 : i64, tpu.core_type = #tpu.core_type<tc>, window_params = [{pipeline_mode = #tpu.pipeline_mode<synchronous>, transform_indices = @transform_0, window_bounds = array<i64: 32, 256>}, {pipeline_mode = #tpu.pipeline_mode<synchronous>, transform_indices = @transform_1, window_bounds = array<i64: 512, 128>}, {pipeline_mode = #tpu.pipeline_mode<synchronous>, transform_indices = @transform_2, window_bounds = array<i64: 1, 128>}, {pipeline_mode = #tpu.pipeline_mode<synchronous>, transform_indices = @transform_3, window_bounds = array<i64: 32, 256>}]} {
    %c0 = arith.constant 0 : index
    %c0_0 = arith.constant 0 : index
    %0 = vector.load %arg1[%c0, %c0_0] : memref<32x256xf32, #tpu.memory_space<vmem>>, vector<32x256xf32>
    %c31_i32 = arith.constant 31 : i32
    %1 = tpu.dynamic_rotate %0 by %c31_i32 dim 0 : vector<32x256xf32>, i32 -> vector<32x256xf32>
    %2 = tpu.iota {dimensions = array<i32: 0>} : vector<32x256xi32>
    %c16_i32 = arith.constant 16 : i32
    %c0_i32 = arith.constant 0 : i32
    %3 = arith.cmpi eq, %c16_i32, %c0_i32 : i32
    %c1_i32 = arith.constant 1 : i32
    %4 = arith.select %3, %c1_i32, %c16_i32 : i32
    %5 = vector.broadcast %4 : i32 to vector<32x256xi32>
    %6 = arith.remsi %2, %5 : vector<32x256xi32>
    %c0_i32_1 = arith.constant 0 : i32
    %7 = vector.broadcast %c0_i32_1 : i32 to vector<32x256xi32>
    %8 = arith.cmpi ne, %6, %7 : vector<32x256xi32>
    %c0_i32_2 = arith.constant 0 : i32
    %9 = vector.broadcast %c0_i32_2 : i32 to vector<32x256xi32>
    %10 = arith.cmpi slt, %6, %9 : vector<32x256xi32>
    %c0_i32_3 = arith.constant 0 : i32
    %11 = arith.cmpi slt, %4, %c0_i32_3 : i32
    %12 = vector.broadcast %11 : i1 to vector<32x256xi1>
    %13 = vector.broadcast %12 : vector<32x256xi1> to vector<32x256xi1>
    %14 = arith.xori %10, %13 : vector<32x256xi1>
    %15 = arith.andi %14, %8 : vector<32x256xi1>
    %16 = vector.broadcast %4 : i32 to vector<32x256xi32>
    %17 = arith.addi %6, %16 : vector<32x256xi32>
    %18 = arith.select %15, %17, %6 : vector<32x256xi1>, vector<32x256xi32>
    %c15_i32 = arith.constant 15 : i32
    %19 = vector.broadcast %c15_i32 : i32 to vector<32x256xi32>
    %20 = arith.cmpi eq, %18, %19 : vector<32x256xi32>
    %cst = arith.constant 0.000000e+00 : f32
    %21 = vector.broadcast %cst : f32 to vector<32x256xf32>
    %22 = arith.select %20, %21, %1 : vector<32x256xi1>, vector<32x256xf32>
    %23 = tpu.concatenate %0, %22 in 1 : vector<32x256xf32>, vector<32x256xf32> -> vector<32x512xf32>
    %24 = arith.truncf %23 : vector<32x512xf32> to vector<32x512xbf16>
    %c0_4 = arith.constant 0 : index
    %c0_5 = arith.constant 0 : index
    %25 = vector.load %arg2[%c0_4, %c0_5] : memref<512x128xbf16, #tpu.memory_space<vmem>>, vector<512x128xbf16>
    %cst_6 = arith.constant dense<0.000000e+00> : vector<32x128xf32>
    %26 = tpu.matmul %24, %25, %cst_6 {dimension_numbers = #tpu.dot_dimension_numbers<[1], [0], [0], [1], [0, 0, 1, 1], [], []>} : vector<32x512xbf16>, vector<512x128xbf16>, vector<32x128xf32> -> vector<32x128xf32>
    %c0_7 = arith.constant 0 : index
    %c0_8 = arith.constant 0 : index
    %27 = vector.load %arg3[%c0_7, %c0_8] : memref<1x128xf32, #tpu.memory_space<vmem>>, vector<1x128xf32>
    %28 = vector.broadcast %27 : vector<1x128xf32> to vector<32x128xf32>
    %29 = arith.addf %26, %28 : vector<32x128xf32>
    %cst_9 = arith.constant 0.000000e+00 : f32
    %30 = vector.broadcast %cst_9 : f32 to vector<32x128xf32>
    %31 = arith.maximumf %29, %30 : vector<32x128xf32>
    %32 = arith.truncf %31 : vector<32x128xf32> to vector<32x128xbf16>
    %33 = tpu.concatenate %32, %32 in 1 : vector<32x128xbf16>, vector<32x128xbf16> -> vector<32x256xbf16>
    %c0_10 = arith.constant 0 : index
    %c0_11 = arith.constant 0 : index
    %34 = vector.load %arg4[%c0_10, %c0_11] : memref<32x256xbf16, #tpu.memory_space<vmem>>, vector<32x256xbf16>
    tpu.vector_store %arg4[%c0_10, %c0_11], %33 {strides = array<i32>} : memref<32x256xbf16, #tpu.memory_space<vmem>>, vector<32x256xbf16>,
    return
  }
  func.func @transform_0(%arg0: i32) -> (i32, i32) {
    %c0_i32 = arith.constant 0 : i32
    %c0_i32_0 = arith.constant 0 : i32
    %c0_i32_1 = arith.constant 0 : i32
    return %c0_i32, %c0_i32_0 : i32, i32
  }
  func.func @transform_1(%arg0: i32) -> (i32, i32) {
    %c0_i32 = arith.constant 0 : i32
    %c0_i32_0 = arith.constant 0 : i32
    %c0_i32_1 = arith.constant 0 : i32
    return %c0_i32, %c0_i32_0 : i32, i32
  }
  func.func @transform_2(%arg0: i32) -> (i32, i32) {
    %c0_i32 = arith.constant 0 : i32
    %c0_i32_0 = arith.constant 0 : i32
    %c0_i32_1 = arith.constant 0 : i32
    return %c0_i32, %c0_i32_0 : i32, i32
  }
  func.func @transform_3(%arg0: i32) -> (i32, i32) {
    %c0_i32 = arith.constant 0 : i32
    %c0_i32_0 = arith.constant 0 : i32
    %c0_i32_1 = arith.constant 0 : i32
    return %c0_i32, %c0_i32_0 : i32, i32
  }
}

module attributes {stable_mosaic.version = 11 : i64} {
  func.func @_ur_kernel(%arg0: i32, %arg1: memref<64x128xbf16, #tpu.memory_space<vmem>>, %arg2: memref<64x128xf32, #tpu.memory_space<vmem>>, %arg3: memref<16x128xf32, #tpu.memory_space<vmem>>, %arg4: memref<256x64xbf16, #tpu.memory_space<vmem>>, %arg5: memref<192x64xbf16, #tpu.memory_space<vmem>>, %arg6: memref<64x128xbf16, #tpu.memory_space<vmem>>, %arg7: memref<256x128xbf16, #tpu.memory_space<vmem>>, %arg8: memref<128x64xbf16, #tpu.memory_space<vmem>>, %arg9: memref<64x128xf32, #tpu.memory_space<vmem>>) attributes {dimension_semantics = [#tpu.dimension_semantics<arbitrary>], iteration_bounds = array<i64: 1>, scalar_prefetch = 0 : i64, scratch_operands = 0 : i64, tpu.core_type = #tpu.core_type<tc>, window_params = [{pipeline_mode = #tpu.pipeline_mode<synchronous>, transform_indices = @transform_0, window_bounds = array<i64: 64, 128>}, {pipeline_mode = #tpu.pipeline_mode<synchronous>, transform_indices = @transform_1, window_bounds = array<i64: 64, 128>}, {pipeline_mode = #tpu.pipeline_mode<synchronous>, transform_indices = @transform_2, window_bounds = array<i64: 16, 128>}, {pipeline_mode = #tpu.pipeline_mode<synchronous>, transform_indices = @transform_3, window_bounds = array<i64: 256, 64>}, {pipeline_mode = #tpu.pipeline_mode<synchronous>, transform_indices = @transform_4, window_bounds = array<i64: 192, 64>}, {pipeline_mode = #tpu.pipeline_mode<synchronous>, transform_indices = @transform_5, window_bounds = array<i64: 64, 128>}, {pipeline_mode = #tpu.pipeline_mode<synchronous>, transform_indices = @transform_6, window_bounds = array<i64: 256, 128>}, {pipeline_mode = #tpu.pipeline_mode<synchronous>, transform_indices = @transform_7, window_bounds = array<i64: 128, 64>}, {pipeline_mode = #tpu.pipeline_mode<synchronous>, transform_indices = @transform_8, window_bounds = array<i64: 64, 128>}]} {
    %c0 = arith.constant 0 : index
    %c0_0 = arith.constant 0 : index
    %0 = vector.load %arg1[%c0, %c0_0] : memref<64x128xbf16, #tpu.memory_space<vmem>>, vector<64x128xbf16>
    %1 = arith.extf %0 : vector<64x128xbf16> to vector<64x128xf32>
    %c0_1 = arith.constant 0 : index
    %c0_2 = arith.constant 0 : index
    %2 = vector.load %arg2[%c0_1, %c0_2] : memref<64x128xf32, #tpu.memory_space<vmem>>, vector<64x128xf32>
    %c0_3 = arith.constant 0 : index
    %c0_4 = arith.constant 0 : index
    %3 = vector.load %arg3[%c0_3, %c0_4] : memref<16x128xf32, #tpu.memory_space<vmem>>, vector<16x128xf32>
    %4 = vector.extract_strided_slice %3 {offsets = [0, 0], sizes = [1, 128], strides = [1, 1]} : vector<16x128xf32> to vector<1x128xf32>
    %5 = vector.broadcast %4 : vector<1x128xf32> to vector<64x128xf32>
    %6 = arith.mulf %1, %5 : vector<64x128xf32>
    %7 = vector.extract_strided_slice %3 {offsets = [1, 0], sizes = [1, 128], strides = [1, 1]} : vector<16x128xf32> to vector<1x128xf32>
    %8 = vector.broadcast %7 : vector<1x128xf32> to vector<64x128xf32>
    %9 = arith.addf %6, %8 : vector<64x128xf32>
    %cst = arith.constant 0.000000e+00 : f32
    %10 = vector.broadcast %cst : f32 to vector<64x128xf32>
    %11 = arith.maximumf %9, %10 : vector<64x128xf32>
    %12 = vector.extract_strided_slice %3 {offsets = [2, 0], sizes = [1, 128], strides = [1, 1]} : vector<16x128xf32> to vector<1x128xf32>
    %13 = vector.broadcast %12 : vector<1x128xf32> to vector<64x128xf32>
    %14 = arith.mulf %2, %13 : vector<64x128xf32>
    %15 = vector.extract_strided_slice %3 {offsets = [3, 0], sizes = [1, 128], strides = [1, 1]} : vector<16x128xf32> to vector<1x128xf32>
    %16 = vector.broadcast %15 : vector<1x128xf32> to vector<64x128xf32>
    %17 = arith.addf %14, %16 : vector<64x128xf32>
    %cst_5 = arith.constant 0.000000e+00 : f32
    %18 = vector.broadcast %cst_5 : f32 to vector<64x128xf32>
    %19 = arith.maximumf %17, %18 : vector<64x128xf32>
    %20 = tpu.concatenate %11, %19 in 1 : vector<64x128xf32>, vector<64x128xf32> -> vector<64x256xf32>
    %21 = arith.truncf %20 : vector<64x256xf32> to vector<64x256xbf16>
    %c0_6 = arith.constant 0 : index
    %c0_7 = arith.constant 0 : index
    %22 = vector.load %arg4[%c0_6, %c0_7] : memref<256x64xbf16, #tpu.memory_space<vmem>>, vector<256x64xbf16>
    %cst_8 = arith.constant dense<0.000000e+00> : vector<64x64xf32>
    %23 = tpu.matmul %21, %22, %cst_8 {dimension_numbers = #tpu.dot_dimension_numbers<[1], [0], [0], [1], [0, 0, 1, 1], [], []>} : vector<64x256xbf16>, vector<256x64xbf16>, vector<64x64xf32> -> vector<64x64xf32>
    %24 = vector.extract_strided_slice %3 {offsets = [8, 0], sizes = [1, 64], strides = [1, 1]} : vector<16x128xf32> to vector<1x64xf32>
    %25 = vector.broadcast %24 : vector<1x64xf32> to vector<64x64xf32>
    %26 = arith.addf %23, %25 : vector<64x64xf32>
    %cst_9 = arith.constant 0.000000e+00 : f32
    %27 = vector.broadcast %cst_9 : f32 to vector<64x64xf32>
    %28 = arith.maximumf %26, %27 : vector<64x64xf32>
    %29 = tpu.iota {dimensions = array<i32: 0>} : vector<64x64xi32>
    %c32_i32 = arith.constant 32 : i32
    %c0_i32 = arith.constant 0 : i32
    %30 = arith.cmpi eq, %c32_i32, %c0_i32 : i32
    %c1_i32 = arith.constant 1 : i32
    %31 = arith.select %30, %c1_i32, %c32_i32 : i32
    %32 = vector.broadcast %31 : i32 to vector<64x64xi32>
    %33 = arith.remsi %29, %32 : vector<64x64xi32>
    %c0_i32_10 = arith.constant 0 : i32
    %34 = vector.broadcast %c0_i32_10 : i32 to vector<64x64xi32>
    %35 = arith.cmpi ne, %33, %34 : vector<64x64xi32>
    %c0_i32_11 = arith.constant 0 : i32
    %36 = vector.broadcast %c0_i32_11 : i32 to vector<64x64xi32>
    %37 = arith.cmpi slt, %33, %36 : vector<64x64xi32>
    %c0_i32_12 = arith.constant 0 : i32
    %38 = arith.cmpi slt, %31, %c0_i32_12 : i32
    %39 = vector.broadcast %38 : i1 to vector<64x64xi1>
    %40 = vector.broadcast %39 : vector<64x64xi1> to vector<64x64xi1>
    %41 = arith.xori %37, %40 : vector<64x64xi1>
    %42 = arith.andi %41, %35 : vector<64x64xi1>
    %43 = vector.broadcast %31 : i32 to vector<64x64xi32>
    %44 = arith.addi %33, %43 : vector<64x64xi32>
    %45 = arith.select %42, %44, %33 : vector<64x64xi1>, vector<64x64xi32>
    %c0_i32_13 = arith.constant 0 : i32
    %46 = vector.broadcast %c0_i32_13 : i32 to vector<64x64xi32>
    %47 = arith.cmpi eq, %45, %46 : vector<64x64xi32>
    %c1_i32_14 = arith.constant 1 : i32
    %48 = tpu.dynamic_rotate %28 by %c1_i32_14 dim 0 : vector<64x64xf32>, i32 -> vector<64x64xf32>
    %cst_15 = arith.constant 0.000000e+00 : f32
    %49 = vector.broadcast %cst_15 : f32 to vector<64x64xf32>
    %50 = arith.select %47, %49, %48 : vector<64x64xi1>, vector<64x64xf32>
    %c32_i32_16 = arith.constant 32 : i32
    %c0_i32_17 = arith.constant 0 : i32
    %51 = arith.cmpi eq, %c32_i32_16, %c0_i32_17 : i32
    %c1_i32_18 = arith.constant 1 : i32
    %52 = arith.select %51, %c1_i32_18, %c32_i32_16 : i32
    %53 = vector.broadcast %52 : i32 to vector<64x64xi32>
    %54 = arith.remsi %29, %53 : vector<64x64xi32>
    %c0_i32_19 = arith.constant 0 : i32
    %55 = vector.broadcast %c0_i32_19 : i32 to vector<64x64xi32>
    %56 = arith.cmpi ne, %54, %55 : vector<64x64xi32>
    %c0_i32_20 = arith.constant 0 : i32
    %57 = vector.broadcast %c0_i32_20 : i32 to vector<64x64xi32>
    %58 = arith.cmpi slt, %54, %57 : vector<64x64xi32>
    %c0_i32_21 = arith.constant 0 : i32
    %59 = arith.cmpi slt, %52, %c0_i32_21 : i32
    %60 = vector.broadcast %59 : i1 to vector<64x64xi1>
    %61 = vector.broadcast %60 : vector<64x64xi1> to vector<64x64xi1>
    %62 = arith.xori %58, %61 : vector<64x64xi1>
    %63 = arith.andi %62, %56 : vector<64x64xi1>
    %64 = vector.broadcast %52 : i32 to vector<64x64xi32>
    %65 = arith.addi %54, %64 : vector<64x64xi32>
    %66 = arith.select %63, %65, %54 : vector<64x64xi1>, vector<64x64xi32>
    %c31_i32 = arith.constant 31 : i32
    %67 = vector.broadcast %c31_i32 : i32 to vector<64x64xi32>
    %68 = arith.cmpi eq, %66, %67 : vector<64x64xi32>
    %c63_i32 = arith.constant 63 : i32
    %69 = tpu.dynamic_rotate %28 by %c63_i32 dim 0 : vector<64x64xf32>, i32 -> vector<64x64xf32>
    %cst_22 = arith.constant 0.000000e+00 : f32
    %70 = vector.broadcast %cst_22 : f32 to vector<64x64xf32>
    %71 = arith.select %68, %70, %69 : vector<64x64xi1>, vector<64x64xf32>
    %72 = tpu.concatenate %50, %28, %71 in 1 : vector<64x64xf32>, vector<64x64xf32>, vector<64x64xf32> -> vector<64x192xf32>
    %73 = arith.truncf %72 : vector<64x192xf32> to vector<64x192xbf16>
    %c0_23 = arith.constant 0 : index
    %c0_24 = arith.constant 0 : index
    %74 = vector.load %arg5[%c0_23, %c0_24] : memref<192x64xbf16, #tpu.memory_space<vmem>>, vector<192x64xbf16>
    %cst_25 = arith.constant dense<0.000000e+00> : vector<64x64xf32>
    %75 = tpu.matmul %73, %74, %cst_25 {dimension_numbers = #tpu.dot_dimension_numbers<[1], [0], [0], [1], [0, 0, 1, 1], [], []>} : vector<64x192xbf16>, vector<192x64xbf16>, vector<64x64xf32> -> vector<64x64xf32>
    %76 = vector.extract_strided_slice %3 {offsets = [8, 64], sizes = [1, 64], strides = [1, 1]} : vector<16x128xf32> to vector<1x64xf32>
    %77 = vector.broadcast %76 : vector<1x64xf32> to vector<64x64xf32>
    %78 = arith.addf %75, %77 : vector<64x64xf32>
    %cst_26 = arith.constant 0.000000e+00 : f32
    %79 = vector.broadcast %cst_26 : f32 to vector<64x64xf32>
    %80 = arith.maximumf %78, %79 : vector<64x64xf32>
    %81 = arith.truncf %80 : vector<64x64xf32> to vector<64x64xbf16>
    %c0_27 = arith.constant 0 : index
    %c0_28 = arith.constant 0 : index
    %82 = vector.load %arg6[%c0_27, %c0_28] : memref<64x128xbf16, #tpu.memory_space<vmem>>, vector<64x128xbf16>
    %cst_29 = arith.constant dense<0.000000e+00> : vector<64x128xf32>
    %83 = tpu.matmul %81, %82, %cst_29 {dimension_numbers = #tpu.dot_dimension_numbers<[1], [0], [0], [1], [0, 0, 1, 1], [], []>} : vector<64x64xbf16>, vector<64x128xbf16>, vector<64x128xf32> -> vector<64x128xf32>
    %84 = vector.extract_strided_slice %3 {offsets = [4, 0], sizes = [1, 128], strides = [1, 1]} : vector<16x128xf32> to vector<1x128xf32>
    %85 = vector.broadcast %84 : vector<1x128xf32> to vector<64x128xf32>
    %86 = arith.mulf %1, %85 : vector<64x128xf32>
    %87 = vector.extract_strided_slice %3 {offsets = [5, 0], sizes = [1, 128], strides = [1, 1]} : vector<16x128xf32> to vector<1x128xf32>
    %88 = vector.broadcast %87 : vector<1x128xf32> to vector<64x128xf32>
    %89 = arith.addf %86, %88 : vector<64x128xf32>
    %cst_30 = arith.constant 0.000000e+00 : f32
    %90 = vector.broadcast %cst_30 : f32 to vector<64x128xf32>
    %91 = arith.maximumf %89, %90 : vector<64x128xf32>
    %92 = vector.extract_strided_slice %3 {offsets = [6, 0], sizes = [1, 128], strides = [1, 1]} : vector<16x128xf32> to vector<1x128xf32>
    %93 = vector.broadcast %92 : vector<1x128xf32> to vector<64x128xf32>
    %94 = arith.mulf %2, %93 : vector<64x128xf32>
    %95 = vector.extract_strided_slice %3 {offsets = [7, 0], sizes = [1, 128], strides = [1, 1]} : vector<16x128xf32> to vector<1x128xf32>
    %96 = vector.broadcast %95 : vector<1x128xf32> to vector<64x128xf32>
    %97 = arith.addf %94, %96 : vector<64x128xf32>
    %cst_31 = arith.constant 0.000000e+00 : f32
    %98 = vector.broadcast %cst_31 : f32 to vector<64x128xf32>
    %99 = arith.maximumf %97, %98 : vector<64x128xf32>
    %100 = tpu.concatenate %91, %99 in 1 : vector<64x128xf32>, vector<64x128xf32> -> vector<64x256xf32>
    %101 = arith.truncf %100 : vector<64x256xf32> to vector<64x256xbf16>
    %c0_32 = arith.constant 0 : index
    %c0_33 = arith.constant 0 : index
    %102 = vector.load %arg7[%c0_32, %c0_33] : memref<256x128xbf16, #tpu.memory_space<vmem>>, vector<256x128xbf16>
    %cst_34 = arith.constant dense<0.000000e+00> : vector<64x128xf32>
    %103 = tpu.matmul %101, %102, %cst_34 {dimension_numbers = #tpu.dot_dimension_numbers<[1], [0], [0], [1], [0, 0, 1, 1], [], []>} : vector<64x256xbf16>, vector<256x128xbf16>, vector<64x128xf32> -> vector<64x128xf32>
    %104 = arith.addf %83, %103 : vector<64x128xf32>
    %c0_35 = arith.constant 0 : index
    %c0_36 = arith.constant 0 : index
    %105 = vector.load %arg8[%c0_35, %c0_36] : memref<128x64xbf16, #tpu.memory_space<vmem>>, vector<128x64xbf16>
    %cst_37 = arith.constant dense<0.000000e+00> : vector<64x64xf32>
    %106 = tpu.matmul %0, %105, %cst_37 {dimension_numbers = #tpu.dot_dimension_numbers<[1], [0], [0], [1], [0, 0, 1, 1], [], []>} : vector<64x128xbf16>, vector<128x64xbf16>, vector<64x64xf32> -> vector<64x64xf32>
    %107 = arith.truncf %2 : vector<64x128xf32> to vector<64x128xbf16>
    %cst_38 = arith.constant dense<0.000000e+00> : vector<64x64xf32>
    %108 = tpu.matmul %107, %105, %cst_38 {dimension_numbers = #tpu.dot_dimension_numbers<[1], [0], [0], [1], [0, 0, 1, 1], [], []>} : vector<64x128xbf16>, vector<128x64xbf16>, vector<64x64xf32> -> vector<64x64xf32>
    %109 = tpu.concatenate %106, %108 in 1 : vector<64x64xf32>, vector<64x64xf32> -> vector<64x128xf32>
    %110 = vector.extract_strided_slice %3 {offsets = [9, 0], sizes = [1, 128], strides = [1, 1]} : vector<16x128xf32> to vector<1x128xf32>
    %111 = vector.broadcast %110 : vector<1x128xf32> to vector<64x128xf32>
    %112 = arith.mulf %109, %111 : vector<64x128xf32>
    %113 = arith.addf %104, %112 : vector<64x128xf32>
    %114 = vector.extract_strided_slice %3 {offsets = [10, 0], sizes = [1, 128], strides = [1, 1]} : vector<16x128xf32> to vector<1x128xf32>
    %115 = vector.broadcast %114 : vector<1x128xf32> to vector<64x128xf32>
    %116 = arith.addf %113, %115 : vector<64x128xf32>
    %c0_39 = arith.constant 0 : index
    %c0_40 = arith.constant 0 : index
    %117 = vector.load %arg9[%c0_39, %c0_40] : memref<64x128xf32, #tpu.memory_space<vmem>>, vector<64x128xf32>
    tpu.vector_store %arg9[%c0_39, %c0_40], %116 {strides = array<i32>} : memref<64x128xf32, #tpu.memory_space<vmem>>, vector<64x128xf32>,
    return
  }
  func.func @transform_0(%arg0: i32) -> (i32, i32) {
    %c0_i32 = arith.constant 0 : i32
    %c0_i32_0 = arith.constant 0 : i32
    %c0_i32_1 = arith.constant 0 : i32
    return %c0_i32, %c0_i32_0 : i32, i32
  }
  func.func @transform_1(%arg0: i32) -> (i32, i32) {
    %c0_i32 = arith.constant 0 : i32
    %c0_i32_0 = arith.constant 0 : i32
    %c0_i32_1 = arith.constant 0 : i32
    return %c0_i32, %c0_i32_0 : i32, i32
  }
  func.func @transform_2(%arg0: i32) -> (i32, i32) {
    %c0_i32 = arith.constant 0 : i32
    %c0_i32_0 = arith.constant 0 : i32
    %c0_i32_1 = arith.constant 0 : i32
    return %c0_i32, %c0_i32_0 : i32, i32
  }
  func.func @transform_3(%arg0: i32) -> (i32, i32) {
    %c0_i32 = arith.constant 0 : i32
    %c0_i32_0 = arith.constant 0 : i32
    %c0_i32_1 = arith.constant 0 : i32
    return %c0_i32, %c0_i32_0 : i32, i32
  }
  func.func @transform_4(%arg0: i32) -> (i32, i32) {
    %c0_i32 = arith.constant 0 : i32
    %c0_i32_0 = arith.constant 0 : i32
    %c0_i32_1 = arith.constant 0 : i32
    return %c0_i32, %c0_i32_0 : i32, i32
  }
  func.func @transform_5(%arg0: i32) -> (i32, i32) {
    %c0_i32 = arith.constant 0 : i32
    %c0_i32_0 = arith.constant 0 : i32
    %c0_i32_1 = arith.constant 0 : i32
    return %c0_i32, %c0_i32_0 : i32, i32
  }
  func.func @transform_6(%arg0: i32) -> (i32, i32) {
    %c0_i32 = arith.constant 0 : i32
    %c0_i32_0 = arith.constant 0 : i32
    %c0_i32_1 = arith.constant 0 : i32
    return %c0_i32, %c0_i32_0 : i32, i32
  }
  func.func @transform_7(%arg0: i32) -> (i32, i32) {
    %c0_i32 = arith.constant 0 : i32
    %c0_i32_0 = arith.constant 0 : i32
    %c0_i32_1 = arith.constant 0 : i32
    return %c0_i32, %c0_i32_0 : i32, i32
  }
  func.func @transform_8(%arg0: i32) -> (i32, i32) {
    %c0_i32 = arith.constant 0 : i32
    %c0_i32_0 = arith.constant 0 : i32
    %c0_i32_1 = arith.constant 0 : i32
    return %c0_i32, %c0_i32_0 : i32, i32
  }
}

module attributes {stable_mosaic.version = 11 : i64} {
  func.func @_up_kernel(%arg0: i32, %arg1: memref<64x128xf32, #tpu.memory_space<vmem>>, %arg2: memref<256x64xbf16, #tpu.memory_space<vmem>>, %arg3: memref<1x64xf32, #tpu.memory_space<vmem>>, %arg4: memref<64x128xbf16, #tpu.memory_space<vmem>>) attributes {dimension_semantics = [#tpu.dimension_semantics<arbitrary>], iteration_bounds = array<i64: 1>, scalar_prefetch = 0 : i64, scratch_operands = 0 : i64, tpu.core_type = #tpu.core_type<tc>, window_params = [{pipeline_mode = #tpu.pipeline_mode<synchronous>, transform_indices = @transform_0, window_bounds = array<i64: 64, 128>}, {pipeline_mode = #tpu.pipeline_mode<synchronous>, transform_indices = @transform_1, window_bounds = array<i64: 256, 64>}, {pipeline_mode = #tpu.pipeline_mode<synchronous>, transform_indices = @transform_2, window_bounds = array<i64: 1, 64>}, {pipeline_mode = #tpu.pipeline_mode<synchronous>, transform_indices = @transform_3, window_bounds = array<i64: 64, 128>}]} {
    %c0 = arith.constant 0 : index
    %c0_0 = arith.constant 0 : index
    %0 = vector.load %arg1[%c0, %c0_0] : memref<64x128xf32, #tpu.memory_space<vmem>>, vector<64x128xf32>
    %c63_i32 = arith.constant 63 : i32
    %1 = tpu.dynamic_rotate %0 by %c63_i32 dim 0 : vector<64x128xf32>, i32 -> vector<64x128xf32>
    %2 = tpu.iota {dimensions = array<i32: 0>} : vector<64x128xi32>
    %c32_i32 = arith.constant 32 : i32
    %c0_i32 = arith.constant 0 : i32
    %3 = arith.cmpi eq, %c32_i32, %c0_i32 : i32
    %c1_i32 = arith.constant 1 : i32
    %4 = arith.select %3, %c1_i32, %c32_i32 : i32
    %5 = vector.broadcast %4 : i32 to vector<64x128xi32>
    %6 = arith.remsi %2, %5 : vector<64x128xi32>
    %c0_i32_1 = arith.constant 0 : i32
    %7 = vector.broadcast %c0_i32_1 : i32 to vector<64x128xi32>
    %8 = arith.cmpi ne, %6, %7 : vector<64x128xi32>
    %c0_i32_2 = arith.constant 0 : i32
    %9 = vector.broadcast %c0_i32_2 : i32 to vector<64x128xi32>
    %10 = arith.cmpi slt, %6, %9 : vector<64x128xi32>
    %c0_i32_3 = arith.constant 0 : i32
    %11 = arith.cmpi slt, %4, %c0_i32_3 : i32
    %12 = vector.broadcast %11 : i1 to vector<64x128xi1>
    %13 = vector.broadcast %12 : vector<64x128xi1> to vector<64x128xi1>
    %14 = arith.xori %10, %13 : vector<64x128xi1>
    %15 = arith.andi %14, %8 : vector<64x128xi1>
    %16 = vector.broadcast %4 : i32 to vector<64x128xi32>
    %17 = arith.addi %6, %16 : vector<64x128xi32>
    %18 = arith.select %15, %17, %6 : vector<64x128xi1>, vector<64x128xi32>
    %c31_i32 = arith.constant 31 : i32
    %19 = vector.broadcast %c31_i32 : i32 to vector<64x128xi32>
    %20 = arith.cmpi eq, %18, %19 : vector<64x128xi32>
    %cst = arith.constant 0.000000e+00 : f32
    %21 = vector.broadcast %cst : f32 to vector<64x128xf32>
    %22 = arith.select %20, %21, %1 : vector<64x128xi1>, vector<64x128xf32>
    %23 = tpu.concatenate %0, %22 in 1 : vector<64x128xf32>, vector<64x128xf32> -> vector<64x256xf32>
    %24 = arith.truncf %23 : vector<64x256xf32> to vector<64x256xbf16>
    %c0_4 = arith.constant 0 : index
    %c0_5 = arith.constant 0 : index
    %25 = vector.load %arg2[%c0_4, %c0_5] : memref<256x64xbf16, #tpu.memory_space<vmem>>, vector<256x64xbf16>
    %cst_6 = arith.constant dense<0.000000e+00> : vector<64x64xf32>
    %26 = tpu.matmul %24, %25, %cst_6 {dimension_numbers = #tpu.dot_dimension_numbers<[1], [0], [0], [1], [0, 0, 1, 1], [], []>} : vector<64x256xbf16>, vector<256x64xbf16>, vector<64x64xf32> -> vector<64x64xf32>
    %c0_7 = arith.constant 0 : index
    %c0_8 = arith.constant 0 : index
    %27 = vector.load %arg3[%c0_7, %c0_8] : memref<1x64xf32, #tpu.memory_space<vmem>>, vector<1x64xf32>
    %28 = vector.broadcast %27 : vector<1x64xf32> to vector<64x64xf32>
    %29 = arith.addf %26, %28 : vector<64x64xf32>
    %cst_9 = arith.constant 0.000000e+00 : f32
    %30 = vector.broadcast %cst_9 : f32 to vector<64x64xf32>
    %31 = arith.maximumf %29, %30 : vector<64x64xf32>
    %32 = arith.truncf %31 : vector<64x64xf32> to vector<64x64xbf16>
    %33 = tpu.concatenate %32, %32 in 1 : vector<64x64xbf16>, vector<64x64xbf16> -> vector<64x128xbf16>
    %c0_10 = arith.constant 0 : index
    %c0_11 = arith.constant 0 : index
    %34 = vector.load %arg4[%c0_10, %c0_11] : memref<64x128xbf16, #tpu.memory_space<vmem>>, vector<64x128xbf16>
    tpu.vector_store %arg4[%c0_10, %c0_11], %33 {strides = array<i32>} : memref<64x128xbf16, #tpu.memory_space<vmem>>, vector<64x128xbf16>,
    return
  }
  func.func @transform_0(%arg0: i32) -> (i32, i32) {
    %c0_i32 = arith.constant 0 : i32
    %c0_i32_0 = arith.constant 0 : i32
    %c0_i32_1 = arith.constant 0 : i32
    return %c0_i32, %c0_i32_0 : i32, i32
  }
  func.func @transform_1(%arg0: i32) -> (i32, i32) {
    %c0_i32 = arith.constant 0 : i32
    %c0_i32_0 = arith.constant 0 : i32
    %c0_i32_1 = arith.constant 0 : i32
    return %c0_i32, %c0_i32_0 : i32, i32
  }
  func.func @transform_2(%arg0: i32) -> (i32, i32) {
    %c0_i32 = arith.constant 0 : i32
    %c0_i32_0 = arith.constant 0 : i32
    %c0_i32_1 = arith.constant 0 : i32
    return %c0_i32, %c0_i32_0 : i32, i32
  }
  func.func @transform_3(%arg0: i32) -> (i32, i32) {
    %c0_i32 = arith.constant 0 : i32
    %c0_i32_0 = arith.constant 0 : i32
    %c0_i32_1 = arith.constant 0 : i32
    return %c0_i32, %c0_i32_0 : i32, i32
  }
}

module attributes {stable_mosaic.version = 11 : i64} {
  func.func @_ur_kernel(%arg0: i32, %arg1: memref<128x64xbf16, #tpu.memory_space<vmem>>, %arg2: memref<128x64xf32, #tpu.memory_space<vmem>>, %arg3: memref<16x64xf32, #tpu.memory_space<vmem>>, %arg4: memref<128x32xbf16, #tpu.memory_space<vmem>>, %arg5: memref<96x32xbf16, #tpu.memory_space<vmem>>, %arg6: memref<32x64xbf16, #tpu.memory_space<vmem>>, %arg7: memref<128x64xbf16, #tpu.memory_space<vmem>>, %arg8: memref<64x32xbf16, #tpu.memory_space<vmem>>, %arg9: memref<128x64xf32, #tpu.memory_space<vmem>>) attributes {dimension_semantics = [#tpu.dimension_semantics<arbitrary>], iteration_bounds = array<i64: 1>, scalar_prefetch = 0 : i64, scratch_operands = 0 : i64, tpu.core_type = #tpu.core_type<tc>, window_params = [{pipeline_mode = #tpu.pipeline_mode<synchronous>, transform_indices = @transform_0, window_bounds = array<i64: 128, 64>}, {pipeline_mode = #tpu.pipeline_mode<synchronous>, transform_indices = @transform_1, window_bounds = array<i64: 128, 64>}, {pipeline_mode = #tpu.pipeline_mode<synchronous>, transform_indices = @transform_2, window_bounds = array<i64: 16, 64>}, {pipeline_mode = #tpu.pipeline_mode<synchronous>, transform_indices = @transform_3, window_bounds = array<i64: 128, 32>}, {pipeline_mode = #tpu.pipeline_mode<synchronous>, transform_indices = @transform_4, window_bounds = array<i64: 96, 32>}, {pipeline_mode = #tpu.pipeline_mode<synchronous>, transform_indices = @transform_5, window_bounds = array<i64: 32, 64>}, {pipeline_mode = #tpu.pipeline_mode<synchronous>, transform_indices = @transform_6, window_bounds = array<i64: 128, 64>}, {pipeline_mode = #tpu.pipeline_mode<synchronous>, transform_indices = @transform_7, window_bounds = array<i64: 64, 32>}, {pipeline_mode = #tpu.pipeline_mode<synchronous>, transform_indices = @transform_8, window_bounds = array<i64: 128, 64>}]} {
    %c0 = arith.constant 0 : index
    %c0_0 = arith.constant 0 : index
    %0 = vector.load %arg1[%c0, %c0_0] : memref<128x64xbf16, #tpu.memory_space<vmem>>, vector<128x64xbf16>
    %1 = arith.extf %0 : vector<128x64xbf16> to vector<128x64xf32>
    %c0_1 = arith.constant 0 : index
    %c0_2 = arith.constant 0 : index
    %2 = vector.load %arg2[%c0_1, %c0_2] : memref<128x64xf32, #tpu.memory_space<vmem>>, vector<128x64xf32>
    %c0_3 = arith.constant 0 : index
    %c0_4 = arith.constant 0 : index
    %3 = vector.load %arg3[%c0_3, %c0_4] : memref<16x64xf32, #tpu.memory_space<vmem>>, vector<16x64xf32>
    %4 = vector.extract_strided_slice %3 {offsets = [0, 0], sizes = [1, 64], strides = [1, 1]} : vector<16x64xf32> to vector<1x64xf32>
    %5 = vector.broadcast %4 : vector<1x64xf32> to vector<128x64xf32>
    %6 = arith.mulf %1, %5 : vector<128x64xf32>
    %7 = vector.extract_strided_slice %3 {offsets = [1, 0], sizes = [1, 64], strides = [1, 1]} : vector<16x64xf32> to vector<1x64xf32>
    %8 = vector.broadcast %7 : vector<1x64xf32> to vector<128x64xf32>
    %9 = arith.addf %6, %8 : vector<128x64xf32>
    %cst = arith.constant 0.000000e+00 : f32
    %10 = vector.broadcast %cst : f32 to vector<128x64xf32>
    %11 = arith.maximumf %9, %10 : vector<128x64xf32>
    %12 = vector.extract_strided_slice %3 {offsets = [2, 0], sizes = [1, 64], strides = [1, 1]} : vector<16x64xf32> to vector<1x64xf32>
    %13 = vector.broadcast %12 : vector<1x64xf32> to vector<128x64xf32>
    %14 = arith.mulf %2, %13 : vector<128x64xf32>
    %15 = vector.extract_strided_slice %3 {offsets = [3, 0], sizes = [1, 64], strides = [1, 1]} : vector<16x64xf32> to vector<1x64xf32>
    %16 = vector.broadcast %15 : vector<1x64xf32> to vector<128x64xf32>
    %17 = arith.addf %14, %16 : vector<128x64xf32>
    %cst_5 = arith.constant 0.000000e+00 : f32
    %18 = vector.broadcast %cst_5 : f32 to vector<128x64xf32>
    %19 = arith.maximumf %17, %18 : vector<128x64xf32>
    %20 = tpu.concatenate %11, %19 in 1 : vector<128x64xf32>, vector<128x64xf32> -> vector<128x128xf32>
    %21 = arith.truncf %20 : vector<128x128xf32> to vector<128x128xbf16>
    %c0_6 = arith.constant 0 : index
    %c0_7 = arith.constant 0 : index
    %22 = vector.load %arg4[%c0_6, %c0_7] : memref<128x32xbf16, #tpu.memory_space<vmem>>, vector<128x32xbf16>
    %cst_8 = arith.constant dense<0.000000e+00> : vector<128x32xf32>
    %23 = tpu.matmul %21, %22, %cst_8 {dimension_numbers = #tpu.dot_dimension_numbers<[1], [0], [0], [1], [0, 0, 1, 1], [], []>} : vector<128x128xbf16>, vector<128x32xbf16>, vector<128x32xf32> -> vector<128x32xf32>
    %24 = vector.extract_strided_slice %3 {offsets = [8, 0], sizes = [1, 32], strides = [1, 1]} : vector<16x64xf32> to vector<1x32xf32>
    %25 = vector.broadcast %24 : vector<1x32xf32> to vector<128x32xf32>
    %26 = arith.addf %23, %25 : vector<128x32xf32>
    %cst_9 = arith.constant 0.000000e+00 : f32
    %27 = vector.broadcast %cst_9 : f32 to vector<128x32xf32>
    %28 = arith.maximumf %26, %27 : vector<128x32xf32>
    %29 = tpu.iota {dimensions = array<i32: 0>} : vector<128x32xi32>
    %c64_i32 = arith.constant 64 : i32
    %c0_i32 = arith.constant 0 : i32
    %30 = arith.cmpi eq, %c64_i32, %c0_i32 : i32
    %c1_i32 = arith.constant 1 : i32
    %31 = arith.select %30, %c1_i32, %c64_i32 : i32
    %32 = vector.broadcast %31 : i32 to vector<128x32xi32>
    %33 = arith.remsi %29, %32 : vector<128x32xi32>
    %c0_i32_10 = arith.constant 0 : i32
    %34 = vector.broadcast %c0_i32_10 : i32 to vector<128x32xi32>
    %35 = arith.cmpi ne, %33, %34 : vector<128x32xi32>
    %c0_i32_11 = arith.constant 0 : i32
    %36 = vector.broadcast %c0_i32_11 : i32 to vector<128x32xi32>
    %37 = arith.cmpi slt, %33, %36 : vector<128x32xi32>
    %c0_i32_12 = arith.constant 0 : i32
    %38 = arith.cmpi slt, %31, %c0_i32_12 : i32
    %39 = vector.broadcast %38 : i1 to vector<128x32xi1>
    %40 = vector.broadcast %39 : vector<128x32xi1> to vector<128x32xi1>
    %41 = arith.xori %37, %40 : vector<128x32xi1>
    %42 = arith.andi %41, %35 : vector<128x32xi1>
    %43 = vector.broadcast %31 : i32 to vector<128x32xi32>
    %44 = arith.addi %33, %43 : vector<128x32xi32>
    %45 = arith.select %42, %44, %33 : vector<128x32xi1>, vector<128x32xi32>
    %c0_i32_13 = arith.constant 0 : i32
    %46 = vector.broadcast %c0_i32_13 : i32 to vector<128x32xi32>
    %47 = arith.cmpi eq, %45, %46 : vector<128x32xi32>
    %c1_i32_14 = arith.constant 1 : i32
    %48 = tpu.dynamic_rotate %28 by %c1_i32_14 dim 0 : vector<128x32xf32>, i32 -> vector<128x32xf32>
    %cst_15 = arith.constant 0.000000e+00 : f32
    %49 = vector.broadcast %cst_15 : f32 to vector<128x32xf32>
    %50 = arith.select %47, %49, %48 : vector<128x32xi1>, vector<128x32xf32>
    %c64_i32_16 = arith.constant 64 : i32
    %c0_i32_17 = arith.constant 0 : i32
    %51 = arith.cmpi eq, %c64_i32_16, %c0_i32_17 : i32
    %c1_i32_18 = arith.constant 1 : i32
    %52 = arith.select %51, %c1_i32_18, %c64_i32_16 : i32
    %53 = vector.broadcast %52 : i32 to vector<128x32xi32>
    %54 = arith.remsi %29, %53 : vector<128x32xi32>
    %c0_i32_19 = arith.constant 0 : i32
    %55 = vector.broadcast %c0_i32_19 : i32 to vector<128x32xi32>
    %56 = arith.cmpi ne, %54, %55 : vector<128x32xi32>
    %c0_i32_20 = arith.constant 0 : i32
    %57 = vector.broadcast %c0_i32_20 : i32 to vector<128x32xi32>
    %58 = arith.cmpi slt, %54, %57 : vector<128x32xi32>
    %c0_i32_21 = arith.constant 0 : i32
    %59 = arith.cmpi slt, %52, %c0_i32_21 : i32
    %60 = vector.broadcast %59 : i1 to vector<128x32xi1>
    %61 = vector.broadcast %60 : vector<128x32xi1> to vector<128x32xi1>
    %62 = arith.xori %58, %61 : vector<128x32xi1>
    %63 = arith.andi %62, %56 : vector<128x32xi1>
    %64 = vector.broadcast %52 : i32 to vector<128x32xi32>
    %65 = arith.addi %54, %64 : vector<128x32xi32>
    %66 = arith.select %63, %65, %54 : vector<128x32xi1>, vector<128x32xi32>
    %c63_i32 = arith.constant 63 : i32
    %67 = vector.broadcast %c63_i32 : i32 to vector<128x32xi32>
    %68 = arith.cmpi eq, %66, %67 : vector<128x32xi32>
    %c127_i32 = arith.constant 127 : i32
    %69 = tpu.dynamic_rotate %28 by %c127_i32 dim 0 : vector<128x32xf32>, i32 -> vector<128x32xf32>
    %cst_22 = arith.constant 0.000000e+00 : f32
    %70 = vector.broadcast %cst_22 : f32 to vector<128x32xf32>
    %71 = arith.select %68, %70, %69 : vector<128x32xi1>, vector<128x32xf32>
    %72 = tpu.concatenate %50, %28, %71 in 1 : vector<128x32xf32>, vector<128x32xf32>, vector<128x32xf32> -> vector<128x96xf32>
    %73 = arith.truncf %72 : vector<128x96xf32> to vector<128x96xbf16>
    %c0_23 = arith.constant 0 : index
    %c0_24 = arith.constant 0 : index
    %74 = vector.load %arg5[%c0_23, %c0_24] : memref<96x32xbf16, #tpu.memory_space<vmem>>, vector<96x32xbf16>
    %cst_25 = arith.constant dense<0.000000e+00> : vector<128x32xf32>
    %75 = tpu.matmul %73, %74, %cst_25 {dimension_numbers = #tpu.dot_dimension_numbers<[1], [0], [0], [1], [0, 0, 1, 1], [], []>} : vector<128x96xbf16>, vector<96x32xbf16>, vector<128x32xf32> -> vector<128x32xf32>
    %76 = vector.extract_strided_slice %3 {offsets = [8, 32], sizes = [1, 32], strides = [1, 1]} : vector<16x64xf32> to vector<1x32xf32>
    %77 = vector.broadcast %76 : vector<1x32xf32> to vector<128x32xf32>
    %78 = arith.addf %75, %77 : vector<128x32xf32>
    %cst_26 = arith.constant 0.000000e+00 : f32
    %79 = vector.broadcast %cst_26 : f32 to vector<128x32xf32>
    %80 = arith.maximumf %78, %79 : vector<128x32xf32>
    %81 = arith.truncf %80 : vector<128x32xf32> to vector<128x32xbf16>
    %c0_27 = arith.constant 0 : index
    %c0_28 = arith.constant 0 : index
    %82 = vector.load %arg6[%c0_27, %c0_28] : memref<32x64xbf16, #tpu.memory_space<vmem>>, vector<32x64xbf16>
    %cst_29 = arith.constant dense<0.000000e+00> : vector<128x64xf32>
    %83 = tpu.matmul %81, %82, %cst_29 {dimension_numbers = #tpu.dot_dimension_numbers<[1], [0], [0], [1], [0, 0, 1, 1], [], []>} : vector<128x32xbf16>, vector<32x64xbf16>, vector<128x64xf32> -> vector<128x64xf32>
    %84 = vector.extract_strided_slice %3 {offsets = [4, 0], sizes = [1, 64], strides = [1, 1]} : vector<16x64xf32> to vector<1x64xf32>
    %85 = vector.broadcast %84 : vector<1x64xf32> to vector<128x64xf32>
    %86 = arith.mulf %1, %85 : vector<128x64xf32>
    %87 = vector.extract_strided_slice %3 {offsets = [5, 0], sizes = [1, 64], strides = [1, 1]} : vector<16x64xf32> to vector<1x64xf32>
    %88 = vector.broadcast %87 : vector<1x64xf32> to vector<128x64xf32>
    %89 = arith.addf %86, %88 : vector<128x64xf32>
    %cst_30 = arith.constant 0.000000e+00 : f32
    %90 = vector.broadcast %cst_30 : f32 to vector<128x64xf32>
    %91 = arith.maximumf %89, %90 : vector<128x64xf32>
    %92 = vector.extract_strided_slice %3 {offsets = [6, 0], sizes = [1, 64], strides = [1, 1]} : vector<16x64xf32> to vector<1x64xf32>
    %93 = vector.broadcast %92 : vector<1x64xf32> to vector<128x64xf32>
    %94 = arith.mulf %2, %93 : vector<128x64xf32>
    %95 = vector.extract_strided_slice %3 {offsets = [7, 0], sizes = [1, 64], strides = [1, 1]} : vector<16x64xf32> to vector<1x64xf32>
    %96 = vector.broadcast %95 : vector<1x64xf32> to vector<128x64xf32>
    %97 = arith.addf %94, %96 : vector<128x64xf32>
    %cst_31 = arith.constant 0.000000e+00 : f32
    %98 = vector.broadcast %cst_31 : f32 to vector<128x64xf32>
    %99 = arith.maximumf %97, %98 : vector<128x64xf32>
    %100 = tpu.concatenate %91, %99 in 1 : vector<128x64xf32>, vector<128x64xf32> -> vector<128x128xf32>
    %101 = arith.truncf %100 : vector<128x128xf32> to vector<128x128xbf16>
    %c0_32 = arith.constant 0 : index
    %c0_33 = arith.constant 0 : index
    %102 = vector.load %arg7[%c0_32, %c0_33] : memref<128x64xbf16, #tpu.memory_space<vmem>>, vector<128x64xbf16>
    %cst_34 = arith.constant dense<0.000000e+00> : vector<128x64xf32>
    %103 = tpu.matmul %101, %102, %cst_34 {dimension_numbers = #tpu.dot_dimension_numbers<[1], [0], [0], [1], [0, 0, 1, 1], [], []>} : vector<128x128xbf16>, vector<128x64xbf16>, vector<128x64xf32> -> vector<128x64xf32>
    %104 = arith.addf %83, %103 : vector<128x64xf32>
    %c0_35 = arith.constant 0 : index
    %c0_36 = arith.constant 0 : index
    %105 = vector.load %arg8[%c0_35, %c0_36] : memref<64x32xbf16, #tpu.memory_space<vmem>>, vector<64x32xbf16>
    %cst_37 = arith.constant dense<0.000000e+00> : vector<128x32xf32>
    %106 = tpu.matmul %0, %105, %cst_37 {dimension_numbers = #tpu.dot_dimension_numbers<[1], [0], [0], [1], [0, 0, 1, 1], [], []>} : vector<128x64xbf16>, vector<64x32xbf16>, vector<128x32xf32> -> vector<128x32xf32>
    %107 = arith.truncf %2 : vector<128x64xf32> to vector<128x64xbf16>
    %cst_38 = arith.constant dense<0.000000e+00> : vector<128x32xf32>
    %108 = tpu.matmul %107, %105, %cst_38 {dimension_numbers = #tpu.dot_dimension_numbers<[1], [0], [0], [1], [0, 0, 1, 1], [], []>} : vector<128x64xbf16>, vector<64x32xbf16>, vector<128x32xf32> -> vector<128x32xf32>
    %109 = tpu.concatenate %106, %108 in 1 : vector<128x32xf32>, vector<128x32xf32> -> vector<128x64xf32>
    %110 = vector.extract_strided_slice %3 {offsets = [9, 0], sizes = [1, 64], strides = [1, 1]} : vector<16x64xf32> to vector<1x64xf32>
    %111 = vector.broadcast %110 : vector<1x64xf32> to vector<128x64xf32>
    %112 = arith.mulf %109, %111 : vector<128x64xf32>
    %113 = arith.addf %104, %112 : vector<128x64xf32>
    %114 = vector.extract_strided_slice %3 {offsets = [10, 0], sizes = [1, 64], strides = [1, 1]} : vector<16x64xf32> to vector<1x64xf32>
    %115 = vector.broadcast %114 : vector<1x64xf32> to vector<128x64xf32>
    %116 = arith.addf %113, %115 : vector<128x64xf32>
    %c0_39 = arith.constant 0 : index
    %c0_40 = arith.constant 0 : index
    %117 = vector.load %arg9[%c0_39, %c0_40] : memref<128x64xf32, #tpu.memory_space<vmem>>, vector<128x64xf32>
    tpu.vector_store %arg9[%c0_39, %c0_40], %116 {strides = array<i32>} : memref<128x64xf32, #tpu.memory_space<vmem>>, vector<128x64xf32>,
    return
  }
  func.func @transform_0(%arg0: i32) -> (i32, i32) {
    %c0_i32 = arith.constant 0 : i32
    %c0_i32_0 = arith.constant 0 : i32
    %c0_i32_1 = arith.constant 0 : i32
    return %c0_i32, %c0_i32_0 : i32, i32
  }
  func.func @transform_1(%arg0: i32) -> (i32, i32) {
    %c0_i32 = arith.constant 0 : i32
    %c0_i32_0 = arith.constant 0 : i32
    %c0_i32_1 = arith.constant 0 : i32
    return %c0_i32, %c0_i32_0 : i32, i32
  }
  func.func @transform_2(%arg0: i32) -> (i32, i32) {
    %c0_i32 = arith.constant 0 : i32
    %c0_i32_0 = arith.constant 0 : i32
    %c0_i32_1 = arith.constant 0 : i32
    return %c0_i32, %c0_i32_0 : i32, i32
  }
  func.func @transform_3(%arg0: i32) -> (i32, i32) {
    %c0_i32 = arith.constant 0 : i32
    %c0_i32_0 = arith.constant 0 : i32
    %c0_i32_1 = arith.constant 0 : i32
    return %c0_i32, %c0_i32_0 : i32, i32
  }
  func.func @transform_4(%arg0: i32) -> (i32, i32) {
    %c0_i32 = arith.constant 0 : i32
    %c0_i32_0 = arith.constant 0 : i32
    %c0_i32_1 = arith.constant 0 : i32
    return %c0_i32, %c0_i32_0 : i32, i32
  }
  func.func @transform_5(%arg0: i32) -> (i32, i32) {
    %c0_i32 = arith.constant 0 : i32
    %c0_i32_0 = arith.constant 0 : i32
    %c0_i32_1 = arith.constant 0 : i32
    return %c0_i32, %c0_i32_0 : i32, i32
  }
  func.func @transform_6(%arg0: i32) -> (i32, i32) {
    %c0_i32 = arith.constant 0 : i32
    %c0_i32_0 = arith.constant 0 : i32
    %c0_i32_1 = arith.constant 0 : i32
    return %c0_i32, %c0_i32_0 : i32, i32
  }
  func.func @transform_7(%arg0: i32) -> (i32, i32) {
    %c0_i32 = arith.constant 0 : i32
    %c0_i32_0 = arith.constant 0 : i32
    %c0_i32_1 = arith.constant 0 : i32
    return %c0_i32, %c0_i32_0 : i32, i32
  }
  func.func @transform_8(%arg0: i32) -> (i32, i32) {
    %c0_i32 = arith.constant 0 : i32
    %c0_i32_0 = arith.constant 0 : i32
    %c0_i32_1 = arith.constant 0 : i32
    return %c0_i32, %c0_i32_0 : i32, i32
  }
}

</mosaic_0001>

<llo_original>
// kernel: _lambda_.6
$region0: #{_lambda_.6}
  #allocation0 [shape = 'u32[]', space=smem, size = 0x4, offset = 0x4, fixed_abs, tag = 'smem constant byte address 0x4 - core index']
  #allocation1 [shape = 'u32[144,128]{1,0:T(1,128)}', space=vmem, size = 0x12000, scoped, tag = 'internal scratch']
  %s0 = inlined_call_operand.vmem [shape: f32[16,512], index: 0, kind: input, shape index: {}]
  %s1 = inlined_call_operand.hbm [shape: bf16[1024,256], index: 1, kind: input, shape index: {}]
  %s2 = inlined_call_operand.vmem [shape: f32[1,256], index: 2, kind: input, shape index: {}]
  %s3 = inlined_call_operand.vmem [shape: bf16[16,512], index: 3, kind: output, shape index: {}]
  %s4 = sld [smem:[#allocation0]]
  $region26: #{_lambda_.6} parent=0
    _
  %s6 = ssub.s32 1, %s4
  %s7 = scalar_select 0, %s6, %s4
  $region1: #{_lambda_.6} parent=0
    #allocation2 [shape = 'u8[524288]{0}', space=vmem, size = 0x80000, scoped, tag = 'input window, operand 1, single buffered']
    #allocation3 [shape = 's32[1]{0}', space=sflag, size = 0x4, scoped, tag = 'scoped memory for _lambda_.6']
    %8 = vsyncpa [#allocation3], 0
    // Predicated region
    $region2: #{_lambda_.6} parent=1 // pred_check
      _
    $region3: #{_lambda_.6} parent=1 // pred_check_branch
      %10 = sbr.rel (0) target = $region5
    $region4: #{_lambda_.6} parent=1 // pred_region
      _
    $region5: #{_lambda_.6} parent=1 // pred_fallthru
      _
    // Predicated region
    $region6: #{_lambda_.6} parent=1 // pred_check
      _
    $region7: #{_lambda_.6} parent=1 // pred_check_branch
      %12 = sbr.rel (0) target = $region9
    $region8: #{_lambda_.6} parent=1 // pred_region
      %s14 = ssub.s32 16384, 16384
      %15 = vsyncadd [#allocation3], %s14
      %s16 = sshll.u32 [#allocation2], 4
      %s17 = int_to_ptr.vmem [resolvable:$true] %s16
      %22 = dma.hbm_to_vmem [thread:$0]  %s1, 16384, %s17, [#allocation3], 128, 128, 8
    $region9: #{_lambda_.6} parent=1 // pred_fallthru
      _
    // Predicated region
    $region10: #{_lambda_.6} parent=1 // pred_check
      _
    $region11: #{_lambda_.6} parent=1 // pred_check_branch
      %24 = sbr.rel (0) target = $region13
    $region12: #{_lambda_.6} parent=1 // pred_region
      _
    $region13: #{_lambda_.6} parent=1 // pred_fallthru
      _
    // Predicated region
    $region14: #{_lambda_.6} parent=1 // pred_check
      _
    $region15: #{_lambda_.6} parent=1 // pred_check_branch
      %26 = sbr.rel (0) target = $region17
    $region16: #{_lambda_.6} parent=1 // pred_region
      %27 = dma.done [#allocation3], 16384
    $region17: #{_lambda_.6} parent=1 // pred_fallthru
      _
    %v28 = vld [vmem:[%s0] sm:$0xff]
    %v29 = vld [vmem:[%s0 + $0x8] sm:$0xff]
    %v30 = vld [vmem:[%s0 + $0x10] sm:$0xff]
    %v31 = vld [vmem:[%s0 + $0x18] sm:$0xff]
    %v32 = vld [vmem:[%s0 + $0x20] sm:$0xff]
    %v33 = vld [vmem:[%s0 + $0x28] sm:$0xff]
    %v34 = vld [vmem:[%s0 + $0x30] sm:$0xff]
    %v35 = vld [vmem:[%s0 + $0x38] sm:$0xff]
    %v36 = vrot.slane %v28, 1
    %v37 = vrot.slane %v29, 1
    %v38 = vrot.slane %v30, 1
    %v39 = vrot.slane %v31, 1
    %v40 = vrot.slane %v32, 1
    %v41 = vrot.slane %v33, 1
    %v42 = vrot.slane %v34, 1
    %v43 = vrot.slane %v35, 1
    %v44 = vlaneseq
    %v45 = vshrl.u32 %v44, 7
    %vm46 = vcmp.lt.s32.totalorder %v45, 7
    %v47 = vsel %vm46, %v36, %v40
    %v48 = vsel %vm46, %v37, %v41
    %v49 = vsel %vm46, %v38, %v42
    %v50 = vsel %vm46, %v39, %v43
    %v51 = vsel %vm46, %v40, %v36
    %v52 = vsel %vm46, %v41, %v37
    %v53 = vsel %vm46, %v42, %v38
    %v54 = vsel %vm46, %v43, %v39
    %v55 = vadd.s32 %v45, 8
    %vm56 = vcmp.lt.s32.totalorder %v45, 0
    %v57 = vsub.s32 0, %v45
    %v58 = vsel %vm56, %v57, %v45
    %v59 = vshrl.u32 %v58, 3
    %v60 = vand.u32 %v58, 7
    %v61 = vsub.s32 0, %v60
    %v62 = vsel %vm56, %v61, %v60
    %vm63 = vcmp.lt.s32.totalorder %v55, 0
    %v64 = vsub.s32 0, %v55
    %v65 = vsel %vm63, %v64, %v55
    %v66 = vshrl.u32 %v65, 3
    %v67 = vand.u32 %v65, 7
    %v68 = vsub.s32 0, %v67
    %v69 = vsel %vm63, %v68, %v67
    %vm70 = vcmp.ne.s32.totalorder %v62, 0
    %vm71 = vcmp.ne.s32.totalorder %v69, 0
    %vm72 = vcmp.lt.s32.totalorder %v62, 0
    %vm73 = vcmp.lt.s32.totalorder %v69, 0
    %vm74 = vmand %vm72, %vm70
    %vm75 = vmand %vm73, %vm71
    %v76 = vadd.s32 %v62, 8
    %v77 = vadd.s32 %v69, 8
    %v78 = vsel %vm74, %v76, %v62
    %v79 = vsel %vm75, %v77, %v69
    %vm80 = vcmp.eq.s32.totalorder %v78, 7
    %vm81 = vcmp.eq.s32.totalorder %v79, 7
    %v82 = vsel %vm80, 0.0, %v47
    %v83 = vsel %vm80, 0.0, %v48
    %v84 = vsel %vm80, 0.0, %v49
    %v85 = vsel %vm80, 0.0, %v50
    %v86 = vsel %vm81, 0.0, %v51
    %v87 = vsel %vm81, 0.0, %v52
    %v88 = vsel %vm81, 0.0, %v53
    %v89 = vsel %vm81, 0.0, %v54
    %v90 = vpack.c.bf16 %v32, %v28
    %v91 = vpack.c.bf16 %v33, %v29
    %v92 = vpack.c.bf16 %v34, %v30
    %v93 = vpack.c.bf16 %v35, %v31
    %v94 = vpack.c.bf16 %v86, %v82
    %v95 = vpack.c.bf16 %v87, %v83
    %v96 = vpack.c.bf16 %v88, %v84
    %v97 = vpack.c.bf16 %v89, %v85
    %v98 = vld [vmem:[#allocation2] sm:$0xff]
    %v99 = vld [vmem:[#allocation2 + $0x8] sm:$0xff]
    %v100 = vld [vmem:[#allocation2 + $0x10] sm:$0xff]
    %v101 = vld [vmem:[#allocation2 + $0x18] sm:$0xff]
    %v102 = vld [vmem:[#allocation2 + $0x20] sm:$0xff]
    %v103 = vld [vmem:[#allocation2 + $0x28] sm:$0xff]
    %v104 = vld [vmem:[#allocation2 + $0x30] sm:$0xff]
    %v105 = vld [vmem:[#allocation2 + $0x38] sm:$0xff]
    %v106 = vld [vmem:[#allocation2 + $0x40] sm:$0xff]
    %v107 = vld [vmem:[#allocation2 + $0x48] sm:$0xff]
    %v108 = vld [vmem:[#allocation2 + $0x50] sm:$0xff]
    %v109 = vld [vmem:[#allocation2 + $0x58] sm:$0xff]
    %v110 = vld [vmem:[#allocation2 + $0x60] sm:$0xff]
    %v111 = vld [vmem:[#allocation2 + $0x68] sm:$0xff]
    %v112 = vld [vmem:[#allocation2 + $0x70] sm:$0xff]
    %v113 = vld [vmem:[#allocation2 + $0x78] sm:$0xff]
    %v114 = vld [vmem:[#allocation2 + $0x80] sm:$0xff]
    %v115 = vld [vmem:[#allocation2 + $0x88] sm:$0xff]
    %v116 = vld [vmem:[#allocation2 + $0x90] sm:$0xff]
    %v117 = vld [vmem:[#allocation2 + $0x98] sm:$0xff]
    %v118 = vld [vmem:[#allocation2 + $0xa0] sm:$0xff]
    %v119 = vld [vmem:[#allocation2 + $0xa8] sm:$0xff]
    %v120 = vld [vmem:[#allocation2 + $0xb0] sm:$0xff]
    %v121 = vld [vmem:[#allocation2 + $0xb8] sm:$0xff]
    %v122 = vld [vmem:[#allocation2 + $0xc0] sm:$0xff]
    %v123 = vld [vmem:[#allocation2 + $0xc8] sm:$0xff]
    %v124 = vld [vmem:[#allocation2 + $0xd0] sm:$0xff]
    %v125 = vld [vmem:[#allocation2 + $0xd8] sm:$0xff]
    %v126 = vld [vmem:[#allocation2 + $0xe0] sm:$0xff]
    %v127 = vld [vmem:[#allocation2 + $0xe8] sm:$0xff]
    %v128 = vld [vmem:[#allocation2 + $0xf0] sm:$0xff]
    %v129 = vld [vmem:[#allocation2 + $0xf8] sm:$0xff]
    %v130 = vld [vmem:[#allocation2 + $0x100] sm:$0xff]
    %v131 = vld [vmem:[#allocation2 + $0x108] sm:$0xff]
    %v132 = vld [vmem:[#allocation2 + $0x110] sm:$0xff]
    %v133 = vld [vmem:[#allocation2 + $0x118] sm:$0xff]
    %v134 = vld [vmem:[#allocation2 + $0x120] sm:$0xff]
    %v135 = vld [vmem:[#allocation2 + $0x128] sm:$0xff]
    %v136 = vld [vmem:[#allocation2 + $0x130] sm:$0xff]
    %v137 = vld [vmem:[#allocation2 + $0x138] sm:$0xff]
    %v138 = vld [vmem:[#allocation2 + $0x140] sm:$0xff]
    %v139 = vld [vmem:[#allocation2 + $0x148] sm:$0xff]
    %v140 = vld [vmem:[#allocation2 + $0x150] sm:$0xff]
    %v141 = vld [vmem:[#allocation2 + $0x158] sm:$0xff]
    %v142 = vld [vmem:[#allocation2 + $0x160] sm:$0xff]
    %v143 = vld [vmem:[#allocation2 + $0x168] sm:$0xff]
    %v144 = vld [vmem:[#allocation2 + $0x170] sm:$0xff]
    %v145 = vld [vmem:[#allocation2 + $0x178] sm:$0xff]
    %v146 = vld [vmem:[#allocation2 + $0x180] sm:$0xff]
    %v147 = vld [vmem:[#allocation2 + $0x188] sm:$0xff]
    %v148 = vld [vmem:[#allocation2 + $0x190] sm:$0xff]
    %v149 = vld [vmem:[#allocation2 + $0x198] sm:$0xff]
    %v150 = vld [vmem:[#allocation2 + $0x1a0] sm:$0xff]
    %v151 = vld [vmem:[#allocation2 + $0x1a8] sm:$0xff]
    %v152 = vld [vmem:[#allocation2 + $0x1b0] sm:$0xff]
    %v153 = vld [vmem:[#allocation2 + $0x1b8] sm:$0xff]
    %v154 = vld [vmem:[#allocation2 + $0x1c0] sm:$0xff]
    %v155 = vld [vmem:[#allocation2 + $0x1c8] sm:$0xff]
    %v156 = vld [vmem:[#allocation2 + $0x1d0] sm:$0xff]
    %v157 = vld [vmem:[#allocation2 + $0x1d8] sm:$0xff]
    %v158 = vld [vmem:[#allocation2 + $0x1e0] sm:$0xff]
    %v159 = vld [vmem:[#allocation2 + $0x1e8] sm:$0xff]
    %v160 = vld [vmem:[#allocation2 + $0x1f0] sm:$0xff]
    %v161 = vld [vmem:[#allocation2 + $0x1f8] sm:$0xff]
    %v162 = vld [vmem:[#allocation2 + $0x200] sm:$0xff]
    %v163 = vld [vmem:[#allocation2 + $0x208] sm:$0xff]
    %v164 = vld [vmem:[#allocation2 + $0x210] sm:$0xff]
    %v165 = vld [vmem:[#allocation2 + $0x218] sm:$0xff]
    %v166 = vld [vmem:[#allocation2 + $0x220] sm:$0xff]
    %v167 = vld [vmem:[#allocation2 + $0x228] sm:$0xff]
    %v168 = vld [vmem:[#allocation2 + $0x230] sm:$0xff]
    %v169 = vld [vmem:[#allocation2 + $0x238] sm:$0xff]
    %v170 = vld [vmem:[#allocation2 + $0x240] sm:$0xff]
    %v171 = vld [vmem:[#allocation2 + $0x248] sm:$0xff]
    %v172 = vld [vmem:[#allocation2 + $0x250] sm:$0xff]
    %v173 = vld [vmem:[#allocation2 + $0x258] sm:$0xff]
    %v174 = vld [vmem:[#allocation2 + $0x260] sm:$0xff]
    %v175 = vld [vmem:[#allocation2 + $0x268] sm:$0xff]
    %v176 = vld [vmem:[#allocation2 + $0x270] sm:$0xff]
    %v177 = vld [vmem:[#allocation2 + $0x278] sm:$0xff]
    %v178 = vld [vmem:[#allocation2 + $0x280] sm:$0xff]
    %v179 = vld [vmem:[#allocation2 + $0x288] sm:$0xff]
    %v180 = vld [vmem:[#allocation2 + $0x290] sm:$0xff]
    %v181 = vld [vmem:[#allocation2 + $0x298] sm:$0xff]
    %v182 = vld [vmem:[#allocation2 + $0x2a0] sm:$0xff]
    %v183 = vld [vmem:[#allocation2 + $0x2a8] sm:$0xff]
    %v184 = vld [vmem:[#allocation2 + $0x2b0] sm:$0xff]
    %v185 = vld [vmem:[#allocation2 + $0x2b8] sm:$0xff]
    %v186 = vld [vmem:[#allocation2 + $0x2c0] sm:$0xff]
    %v187 = vld [vmem:[#allocation2 + $0x2c8] sm:$0xff]
    %v188 = vld [vmem:[#allocation2 + $0x2d0] sm:$0xff]
    %v189 = vld [vmem:[#allocation2 + $0x2d8] sm:$0xff]
    %v190 = vld [vmem:[#allocation2 + $0x2e0] sm:$0xff]
    %v191 = vld [vmem:[#allocation2 + $0x2e8] sm:$0xff]
    %v192 = vld [vmem:[#allocation2 + $0x2f0] sm:$0xff]
    %v193 = vld [vmem:[#allocation2 + $0x2f8] sm:$0xff]
    %v194 = vld [vmem:[#allocation2 + $0x300] sm:$0xff]
    %v195 = vld [vmem:[#allocation2 + $0x308] sm:$0xff]
    %v196 = vld [vmem:[#allocation2 + $0x310] sm:$0xff]
    %v197 = vld [vmem:[#allocation2 + $0x318] sm:$0xff]
    %v198 = vld [vmem:[#allocation2 + $0x320] sm:$0xff]
    %v199 = vld [vmem:[#allocation2 + $0x328] sm:$0xff]
    %v200 = vld [vmem:[#allocation2 + $0x330] sm:$0xff]
    %v201 = vld [vmem:[#allocation2 + $0x338] sm:$0xff]
    %v202 = vld [vmem:[#allocation2 + $0x340] sm:$0xff]
    %v203 = vld [vmem:[#allocation2 + $0x348] sm:$0xff]
    %v204 = vld [vmem:[#allocation2 + $0x350] sm:$0xff]
    %v205 = vld [vmem:[#allocation2 + $0x358] sm:$0xff]
    %v206 = vld [vmem:[#allocation2 + $0x360] sm:$0xff]
    %v207 = vld [vmem:[#allocation2 + $0x368] sm:$0xff]
    %v208 = vld [vmem:[#allocation2 + $0x370] sm:$0xff]
    %v209 = vld [vmem:[#allocation2 + $0x378] sm:$0xff]
    %v210 = vld [vmem:[#allocation2 + $0x380] sm:$0xff]
    %v211 = vld [vmem:[#allocation2 + $0x388] sm:$0xff]
    %v212 = vld [vmem:[#allocation2 + $0x390] sm:$0xff]
    %v213 = vld [vmem:[#allocation2 + $0x398] sm:$0xff]
    %v214 = vld [vmem:[#allocation2 + $0x3a0] sm:$0xff]
    %v215 = vld [vmem:[#allocation2 + $0x3a8] sm:$0xff]
    %v216 = vld [vmem:[#allocation2 + $0x3b0] sm:$0xff]
    %v217 = vld [vmem:[#allocation2 + $0x3b8] sm:$0xff]
    %v218 = vld [vmem:[#allocation2 + $0x3c0] sm:$0xff]
    %v219 = vld [vmem:[#allocation2 + $0x3c8] sm:$0xff]
    %v220 = vld [vmem:[#allocation2 + $0x3d0] sm:$0xff]
    %v221 = vld [vmem:[#allocation2 + $0x3d8] sm:$0xff]
    %v222 = vld [vmem:[#allocation2 + $0x3e0] sm:$0xff]
    %v223 = vld [vmem:[#allocation2 + $0x3e8] sm:$0xff]
    %v224 = vld [vmem:[#allocation2 + $0x3f0] sm:$0xff]
    %v225 = vld [vmem:[#allocation2 + $0x3f8] sm:$0xff]
    %v226 = vld [vmem:[%s2] sm:$0x3]
    %v228 = vlaneseq
    %v229 = vshrl.u32 %v228, 7
    %v230 = vsub.s32 0, %v229
    %v231 = vrot.slane %v226, %v230
    %v232 = vlaneseq
    %v233 = vshrl.u32 %v232, 7
    %v234 = vsub.s32 1, %v233
    %v235 = vrot.slane %v226, %v234
    %v366 = vunpack.c.l.b16 %v98
    %v367 = vunpack.c.h.b16 %v98
    %v368 = vunpack.c.l.b16 %v99
    %v369 = vunpack.c.h.b16 %v99
    %v370 = vunpack.c.l.b16 %v100
    %v371 = vunpack.c.h.b16 %v100
    %v372 = vunpack.c.l.b16 %v101
    %v373 = vunpack.c.h.b16 %v101
    %v374 = vunpack.c.l.b16 %v102
    %v375 = vunpack.c.h.b16 %v102
    %v376 = vunpack.c.l.b16 %v103
    %v377 = vunpack.c.h.b16 %v103
    %v378 = vunpack.c.l.b16 %v104
    %v379 = vunpack.c.h.b16 %v104
    %v380 = vunpack.c.l.b16 %v105
    %v381 = vunpack.c.h.b16 %v105
    %v382 = vunpack.c.l.b16 %v106
    %v383 = vunpack.c.h.b16 %v106
    %v384 = vunpack.c.l.b16 %v107
    %v385 = vunpack.c.h.b16 %v107
    %v386 = vunpack.c.l.b16 %v108
    %v387 = vunpack.c.h.b16 %v108
    %v388 = vunpack.c.l.b16 %v109
    %v389 = vunpack.c.h.b16 %v109
    %v390 = vunpack.c.l.b16 %v110
    %v391 = vunpack.c.h.b16 %v110
    %v392 = vunpack.c.l.b16 %v111
    %v393 = vunpack.c.h.b16 %v111
    %v394 = vunpack.c.l.b16 %v112
    %v395 = vunpack.c.h.b16 %v112
    %v396 = vunpack.c.l.b16 %v113
    %v397 = vunpack.c.h.b16 %v113
    %v398 = vunpack.c.l.b16 %v114
    %v399 = vunpack.c.h.b16 %v114
    %v400 = vunpack.c.l.b16 %v115
    %v401 = vunpack.c.h.b16 %v115
    %v402 = vunpack.c.l.b16 %v116
    %v403 = vunpack.c.h.b16 %v116
    %v404 = vunpack.c.l.b16 %v117
    %v405 = vunpack.c.h.b16 %v117
    %v406 = vunpack.c.l.b16 %v118
    %v407 = vunpack.c.h.b16 %v118
    %v408 = vunpack.c.l.b16 %v119
    %v409 = vunpack.c.h.b16 %v119
    %v410 = vunpack.c.l.b16 %v120
    %v411 = vunpack.c.h.b16 %v120
    %v412 = vunpack.c.l.b16 %v121
    %v413 = vunpack.c.h.b16 %v121
    %v414 = vunpack.c.l.b16 %v122
    %v415 = vunpack.c.h.b16 %v122
    %v416 = vunpack.c.l.b16 %v123
    %v417 = vunpack.c.h.b16 %v123
    %v418 = vunpack.c.l.b16 %v124
    %v419 = vunpack.c.h.b16 %v124
    %v420 = vunpack.c.l.b16 %v125
    %v421 = vunpack.c.h.b16 %v125
    %v422 = vunpack.c.l.b16 %v126
    %v423 = vunpack.c.h.b16 %v126
    %v424 = vunpack.c.l.b16 %v127
    %v425 = vunpack.c.h.b16 %v127
    %v426 = vunpack.c.l.b16 %v128
    %v427 = vunpack.c.h.b16 %v128
    %v428 = vunpack.c.l.b16 %v129
    %v429 = vunpack.c.h.b16 %v129
    %v430 = vunpack.c.l.b16 %v130
    %v431 = vunpack.c.h.b16 %v130
    %v432 = vunpack.c.l.b16 %v131
    %v433 = vunpack.c.h.b16 %v131
    %v434 = vunpack.c.l.b16 %v132
    %v435 = vunpack.c.h.b16 %v132
    %v436 = vunpack.c.l.b16 %v133
    %v437 = vunpack.c.h.b16 %v133
    %v438 = vunpack.c.l.b16 %v134
    %v439 = vunpack.c.h.b16 %v134
    %v440 = vunpack.c.l.b16 %v135
    %v441 = vunpack.c.h.b16 %v135
    %v442 = vunpack.c.l.b16 %v136
    %v443 = vunpack.c.h.b16 %v136
    %v444 = vunpack.c.l.b16 %v137
    %v445 = vunpack.c.h.b16 %v137
    %v446 = vunpack.c.l.b16 %v138
    %v447 = vunpack.c.h.b16 %v138
    %v448 = vunpack.c.l.b16 %v139
    %v449 = vunpack.c.h.b16 %v139
    %v450 = vunpack.c.l.b16 %v140
    %v451 = vunpack.c.h.b16 %v140
    %v452 = vunpack.c.l.b16 %v141
    %v453 = vunpack.c.h.b16 %v141
    %v454 = vunpack.c.l.b16 %v142
    %v455 = vunpack.c.h.b16 %v142
    %v456 = vunpack.c.l.b16 %v143
    %v457 = vunpack.c.h.b16 %v143
    %v458 = vunpack.c.l.b16 %v144
    %v459 = vunpack.c.h.b16 %v144
    %v460 = vunpack.c.l.b16 %v145
    %v461 = vunpack.c.h.b16 %v145
    %v462 = vunpack.c.l.b16 %v146
    %v463 = vunpack.c.h.b16 %v146
    %v464 = vunpack.c.l.b16 %v147
    %v465 = vunpack.c.h.b16 %v147
    %v466 = vunpack.c.l.b16 %v148
    %v467 = vunpack.c.h.b16 %v148
    %v468 = vunpack.c.l.b16 %v149
    %v469 = vunpack.c.h.b16 %v149
    %v470 = vunpack.c.l.b16 %v150
    %v471 = vunpack.c.h.b16 %v150
    %v472 = vunpack.c.l.b16 %v151
    %v473 = vunpack.c.h.b16 %v151
    %v474 = vunpack.c.l.b16 %v152
    %v475 = vunpack.c.h.b16 %v152
    %v476 = vunpack.c.l.b16 %v153
    %v477 = vunpack.c.h.b16 %v153
    %v478 = vunpack.c.l.b16 %v154
    %v479 = vunpack.c.h.b16 %v154
    %v480 = vunpack.c.l.b16 %v155
    %v481 = vunpack.c.h.b16 %v155
    %v482 = vunpack.c.l.b16 %v156
    %v483 = vunpack.c.h.b16 %v156
    %v484 = vunpack.c.l.b16 %v157
    %v485 = vunpack.c.h.b16 %v157
    %v486 = vunpack.c.l.b16 %v158
    %v487 = vunpack.c.h.b16 %v158
    %v488 = vunpack.c.l.b16 %v159
    %v489 = vunpack.c.h.b16 %v159
    %v490 = vunpack.c.l.b16 %v160
    %v491 = vunpack.c.h.b16 %v160
    %v492 = vunpack.c.l.b16 %v161
    %v493 = vunpack.c.h.b16 %v161
    %v494 = vunpack.c.l.b16 %v162
    %v495 = vunpack.c.h.b16 %v162
    %v496 = vunpack.c.l.b16 %v163
    %v497 = vunpack.c.h.b16 %v163
    %v498 = vunpack.c.l.b16 %v164
    %v499 = vunpack.c.h.b16 %v164
    %v500 = vunpack.c.l.b16 %v165
    %v501 = vunpack.c.h.b16 %v165
    %v502 = vunpack.c.l.b16 %v166
    %v503 = vunpack.c.h.b16 %v166
    %v504 = vunpack.c.l.b16 %v167
    %v505 = vunpack.c.h.b16 %v167
    %v506 = vunpack.c.l.b16 %v168
    %v507 = vunpack.c.h.b16 %v168
    %v508 = vunpack.c.l.b16 %v169
    %v509 = vunpack.c.h.b16 %v169
    %v510 = vunpack.c.l.b16 %v170
    %v511 = vunpack.c.h.b16 %v170
    %v512 = vunpack.c.l.b16 %v171
    %v513 = vunpack.c.h.b16 %v171
    %v514 = vunpack.c.l.b16 %v172
    %v515 = vunpack.c.h.b16 %v172
    %v516 = vunpack.c.l.b16 %v173
    %v517 = vunpack.c.h.b16 %v173
    %v518 = vunpack.c.l.b16 %v174
    %v519 = vunpack.c.h.b16 %v174
    %v520 = vunpack.c.l.b16 %v175
    %v521 = vunpack.c.h.b16 %v175
    %v522 = vunpack.c.l.b16 %v176
    %v523 = vunpack.c.h.b16 %v176
    %v524 = vunpack.c.l.b16 %v177
    %v525 = vunpack.c.h.b16 %v177
    %v526 = vunpack.c.l.b16 %v178
    %v527 = vunpack.c.h.b16 %v178
    %v528 = vunpack.c.l.b16 %v179
    %v529 = vunpack.c.h.b16 %v179
    %v530 = vunpack.c.l.b16 %v180
    %v531 = vunpack.c.h.b16 %v180
    %v532 = vunpack.c.l.b16 %v181
    %v533 = vunpack.c.h.b16 %v181
    %v534 = vunpack.c.l.b16 %v182
    %v535 = vunpack.c.h.b16 %v182
    %v536 = vunpack.c.l.b16 %v183
    %v537 = vunpack.c.h.b16 %v183
    %v538 = vunpack.c.l.b16 %v184
    %v539 = vunpack.c.h.b16 %v184
    %v540 = vunpack.c.l.b16 %v185
    %v541 = vunpack.c.h.b16 %v185
    %v542 = vunpack.c.l.b16 %v186
    %v543 = vunpack.c.h.b16 %v186
    %v544 = vunpack.c.l.b16 %v187
    %v545 = vunpack.c.h.b16 %v187
    %v546 = vunpack.c.l.b16 %v188
    %v547 = vunpack.c.h.b16 %v188
    %v548 = vunpack.c.l.b16 %v189
    %v549 = vunpack.c.h.b16 %v189
    %v550 = vunpack.c.l.b16 %v190
    %v551 = vunpack.c.h.b16 %v190
    %v552 = vunpack.c.l.b16 %v191
    %v553 = vunpack.c.h.b16 %v191
    %v554 = vunpack.c.l.b16 %v192
    %v555 = vunpack.c.h.b16 %v192
    %v556 = vunpack.c.l.b16 %v193
    %v557 = vunpack.c.h.b16 %v193
    %v558 = vunpack.c.l.b16 %v194
    %v559 = vunpack.c.h.b16 %v194
    %v560 = vunpack.c.l.b16 %v195
    %v561 = vunpack.c.h.b16 %v195
    %v562 = vunpack.c.l.b16 %v196
    %v563 = vunpack.c.h.b16 %v196
    %v564 = vunpack.c.l.b16 %v197
    %v565 = vunpack.c.h.b16 %v197
    %v566 = vunpack.c.l.b16 %v198
    %v567 = vunpack.c.h.b16 %v198
    %v568 = vunpack.c.l.b16 %v199
    %v569 = vunpack.c.h.b16 %v199
    %v570 = vunpack.c.l.b16 %v200
    %v571 = vunpack.c.h.b16 %v200
    %v572 = vunpack.c.l.b16 %v201
    %v573 = vunpack.c.h.b16 %v201
    %v574 = vunpack.c.l.b16 %v202
    %v575 = vunpack.c.h.b16 %v202
    %v576 = vunpack.c.l.b16 %v203
    %v577 = vunpack.c.h.b16 %v203
    %v578 = vunpack.c.l.b16 %v204
    %v579 = vunpack.c.h.b16 %v204
    %v580 = vunpack.c.l.b16 %v205
    %v581 = vunpack.c.h.b16 %v205
    %v582 = vunpack.c.l.b16 %v206
    %v583 = vunpack.c.h.b16 %v206
    %v584 = vunpack.c.l.b16 %v207
    %v585 = vunpack.c.h.b16 %v207
    %v586 = vunpack.c.l.b16 %v208
    %v587 = vunpack.c.h.b16 %v208
    %v588 = vunpack.c.l.b16 %v209
    %v589 = vunpack.c.h.b16 %v209
    %v590 = vunpack.c.l.b16 %v210
    %v591 = vunpack.c.h.b16 %v210
    %v592 = vunpack.c.l.b16 %v211
    %v593 = vunpack.c.h.b16 %v211
    %v594 = vunpack.c.l.b16 %v212
    %v595 = vunpack.c.h.b16 %v212
    %v596 = vunpack.c.l.b16 %v213
    %v597 = vunpack.c.h.b16 %v213
    %v598 = vunpack.c.l.b16 %v214
    %v599 = vunpack.c.h.b16 %v214
    %v600 = vunpack.c.l.b16 %v215
    %v601 = vunpack.c.h.b16 %v215
    %v602 = vunpack.c.l.b16 %v216
    %v603 = vunpack.c.h.b16 %v216
    %v604 = vunpack.c.l.b16 %v217
    %v605 = vunpack.c.h.b16 %v217
    %v606 = vunpack.c.l.b16 %v218
    %v607 = vunpack.c.h.b16 %v218
    %v608 = vunpack.c.l.b16 %v219
    %v609 = vunpack.c.h.b16 %v219
    %v610 = vunpack.c.l.b16 %v220
    %v611 = vunpack.c.h.b16 %v220
    %v612 = vunpack.c.l.b16 %v221
    %v613 = vunpack.c.h.b16 %v221
    %v614 = vunpack.c.l.b16 %v222
    %v615 = vunpack.c.h.b16 %v222
    %v616 = vunpack.c.l.b16 %v223
    %v617 = vunpack.c.h.b16 %v223
    %v618 = vunpack.c.l.b16 %v224
    %v619 = vunpack.c.h.b16 %v224
    %v620 = vunpack.c.l.b16 %v225
    %v621 = vunpack.c.h.b16 %v225
    %v622 = vpack.c.b16 %v368, %v366
    %v623 = vpack.c.b16 %v369, %v367
    %v624 = vpack.c.b16 %v372, %v370
    %v625 = vpack.c.b16 %v373, %v371
    %v626 = vpack.c.b16 %v376, %v374
    %v627 = vpack.c.b16 %v377, %v375
    %v628 = vpack.c.b16 %v380, %v378
    %v629 = vpack.c.b16 %v381, %v379
    %v630 = vpack.c.b16 %v384, %v382
    %v631 = vpack.c.b16 %v385, %v383
    %v632 = vpack.c.b16 %v388, %v386
    %v633 = vpack.c.b16 %v389, %v387
    %v634 = vpack.c.b16 %v392, %v390
    %v635 = vpack.c.b16 %v393, %v391
    %v636 = vpack.c.b16 %v396, %v394
    %v637 = vpack.c.b16 %v397, %v395
    %v638 = vpack.c.b16 %v400, %v398
    %v639 = vpack.c.b16 %v401, %v399
    %v640 = vpack.c.b16 %v404, %v402
    %v641 = vpack.c.b16 %v405, %v403
    %v642 = vpack.c.b16 %v408, %v406
    %v643 = vpack.c.b16 %v409, %v407
    %v644 = vpack.c.b16 %v412, %v410
    %v645 = vpack.c.b16 %v413, %v411
    %v646 = vpack.c.b16 %v416, %v414
    %v647 = vpack.c.b16 %v417, %v415
    %v648 = vpack.c.b16 %v420, %v418
    %v649 = vpack.c.b16 %v421, %v419
    %v650 = vpack.c.b16 %v424, %v422
    %v651 = vpack.c.b16 %v425, %v423
    %v652 = vpack.c.b16 %v428, %v426
    %v653 = vpack.c.b16 %v429, %v427
    %v654 = vpack.c.b16 %v432, %v430
    %v655 = vpack.c.b16 %v433, %v431
    %v656 = vpack.c.b16 %v436, %v434
    %v657 = vpack.c.b16 %v437, %v435
    %v658 = vpack.c.b16 %v440, %v438
    %v659 = vpack.c.b16 %v441, %v439
    %v660 = vpack.c.b16 %v444, %v442
    %v661 = vpack.c.b16 %v445, %v443
    %v662 = vpack.c.b16 %v448, %v446
    %v663 = vpack.c.b16 %v449, %v447
    %v664 = vpack.c.b16 %v452, %v450
    %v665 = vpack.c.b16 %v453, %v451
    %v666 = vpack.c.b16 %v456, %v454
    %v667 = vpack.c.b16 %v457, %v455
    %v668 = vpack.c.b16 %v460, %v458
    %v669 = vpack.c.b16 %v461, %v459
    %v670 = vpack.c.b16 %v464, %v462
    %v671 = vpack.c.b16 %v465, %v463
    %v672 = vpack.c.b16 %v468, %v466
    %v673 = vpack.c.b16 %v469, %v467
    %v674 = vpack.c.b16 %v472, %v470
    %v675 = vpack.c.b16 %v473, %v471
    %v676 = vpack.c.b16 %v476, %v474
    %v677 = vpack.c.b16 %v477, %v475
    %v678 = vpack.c.b16 %v480, %v478
    %v679 = vpack.c.b16 %v481, %v479
    %v680 = vpack.c.b16 %v484, %v482
    %v681 = vpack.c.b16 %v485, %v483
    %v682 = vpack.c.b16 %v488, %v486
    %v683 = vpack.c.b16 %v489, %v487
    %v684 = vpack.c.b16 %v492, %v490
    %v685 = vpack.c.b16 %v493, %v491
    %v686 = vpack.c.b16 %v496, %v494
    %v687 = vpack.c.b16 %v497, %v495
    %v688 = vpack.c.b16 %v500, %v498
    %v689 = vpack.c.b16 %v501, %v499
    %v690 = vpack.c.b16 %v504, %v502
    %v691 = vpack.c.b16 %v505, %v503
    %v692 = vpack.c.b16 %v508, %v506
    %v693 = vpack.c.b16 %v509, %v507
    %v694 = vpack.c.b16 %v512, %v510
    %v695 = vpack.c.b16 %v513, %v511
    %v696 = vpack.c.b16 %v516, %v514
    %v697 = vpack.c.b16 %v517, %v515
    %v698 = vpack.c.b16 %v520, %v518
    %v699 = vpack.c.b16 %v521, %v519
    %v700 = vpack.c.b16 %v524, %v522
    %v701 = vpack.c.b16 %v525, %v523
    %v702 = vpack.c.b16 %v528, %v526
    %v703 = vpack.c.b16 %v529, %v527
    %v704 = vpack.c.b16 %v532, %v530
    %v705 = vpack.c.b16 %v533, %v531
    %v706 = vpack.c.b16 %v536, %v534
    %v707 = vpack.c.b16 %v537, %v535
    %v708 = vpack.c.b16 %v540, %v538
    %v709 = vpack.c.b16 %v541, %v539
    %v710 = vpack.c.b16 %v544, %v542
    %v711 = vpack.c.b16 %v545, %v543
    %v712 = vpack.c.b16 %v548, %v546
    %v713 = vpack.c.b16 %v549, %v547
    %v714 = vpack.c.b16 %v552, %v550
    %v715 = vpack.c.b16 %v553, %v551
    %v716 = vpack.c.b16 %v556, %v554
    %v717 = vpack.c.b16 %v557, %v555
    %v718 = vpack.c.b16 %v560, %v558
    %v719 = vpack.c.b16 %v561, %v559
    %v720 = vpack.c.b16 %v564, %v562
    %v721 = vpack.c.b16 %v565, %v563
    %v722 = vpack.c.b16 %v568, %v566
    %v723 = vpack.c.b16 %v569, %v567
    %v724 = vpack.c.b16 %v572, %v570
    %v725 = vpack.c.b16 %v573, %v571
    %v726 = vpack.c.b16 %v576, %v574
    %v727 = vpack.c.b16 %v577, %v575
    %v728 = vpack.c.b16 %v580, %v578
    %v729 = vpack.c.b16 %v581, %v579
    %v730 = vpack.c.b16 %v584, %v582
    %v731 = vpack.c.b16 %v585, %v583
    %v732 = vpack.c.b16 %v588, %v586
    %v733 = vpack.c.b16 %v589, %v587
    %v734 = vpack.c.b16 %v592, %v590
    %v735 = vpack.c.b16 %v593, %v591
    %v736 = vpack.c.b16 %v596, %v594
    %v737 = vpack.c.b16 %v597, %v595
    %v738 = vpack.c.b16 %v600, %v598
    %v739 = vpack.c.b16 %v601, %v599
    %v740 = vpack.c.b16 %v604, %v602
    %v741 = vpack.c.b16 %v605, %v603
    %v742 = vpack.c.b16 %v608, %v606
    %v743 = vpack.c.b16 %v609, %v607
    %v744 = vpack.c.b16 %v612, %v610
    %v745 = vpack.c.b16 %v613, %v611
    %v746 = vpack.c.b16 %v616, %v614
    %v747 = vpack.c.b16 %v617, %v615
    %v748 = vpack.c.b16 %v620, %v618
    %v749 = vpack.c.b16 %v621, %v619
    %878 = vmatprep.subr.bf16.mxu0 %v637
    %879 = vmatpush1.bf16.msra.mxu0 %v636
    %880 = vmatprep.subr.bf16.mxu0 %v635
    %881 = vmatpush1.bf16.msra.mxu0 %v634
    %882 = vmatprep.subr.bf16.mxu0 %v633
    %883 = vmatpush1.bf16.msra.mxu0 %v632
    %884 = vmatprep.subr.bf16.mxu0 %v631
    %885 = vmatpush1.bf16.msra.mxu0 %v630
    %886 = vmatprep.subr.bf16.mxu0 %v629
    %887 = vmatpush1.bf16.msra.mxu0 %v628
    %888 = vmatprep.subr.bf16.mxu0 %v627
    %889 = vmatpush1.bf16.msra.mxu0 %v626
    %890 = vmatprep.subr.bf16.mxu0 %v625
    %891 = vmatpush1.bf16.msra.mxu0 %v624
    %892 = vmatprep.subr.bf16.mxu0 %v623
    %893 = vmatpush1.bf16.msra.mxu0 %v622
    %894 = vmatprep.subr.bf16.mxu0 %v653
    %895 = vmatpush2.bf16.msra.mxu0 %v652
    %896 = vmatprep.subr.bf16.mxu0 %v651
    %897 = vmatpush2.bf16.msra.mxu0 %v650
    %898 = vmatprep.subr.bf16.mxu0 %v649
    %899 = vmatpush2.bf16.msra.mxu0 %v648
    %900 = vmatprep.subr.bf16.mxu0 %v647
    %901 = vmatpush2.bf16.msra.mxu0 %v646
    %902 = vmatprep.subr.bf16.mxu0 %v645
    %903 = vmatpush2.bf16.msra.mxu0 %v644
    %904 = vmatprep.subr.bf16.mxu0 %v643
    %905 = vmatpush2.bf16.msra.mxu0 %v642
    %906 = vmatprep.subr.bf16.mxu0 %v641
    %907 = vmatpush2.bf16.msra.mxu0 %v640
    %908 = vmatprep.subr.bf16.mxu0 %v639
    %909 = vmatpush2.bf16.msra.mxu0 %v638
    %910 = vmatprep.mubr.bf16.mxu0 %v91
    %911 = vmatmul.mubr.bf16.gmra.mxu0 %v90
    %v912 = vpop.f32.mrf.mxu0
    %v913 = vadd.f32 %v231, %v912
    %v914 = vpop.f32.mrf.mxu0
    %v915 = vadd.f32 %v235, %v914
    %v916 = vpop.f32.mrf.mxu0
    %v917 = vadd.f32 %v231, %v916
    %v918 = vpop.f32.mrf.mxu0
    %v919 = vadd.f32 %v235, %v918
    %920 = vdwg.mxu0
    %921 = vmatprep.subr.bf16.mxu0 %v669
    %922 = vmatpush1.bf16.msra.mxu0 %v668
    %923 = vmatprep.subr.bf16.mxu0 %v667
    %924 = vmatpush1.bf16.msra.mxu0 %v666
    %925 = vmatprep.subr.bf16.mxu0 %v665
    %926 = vmatpush1.bf16.msra.mxu0 %v664
    %927 = vmatprep.subr.bf16.mxu0 %v663
    %928 = vmatpush1.bf16.msra.mxu0 %v662
    %929 = vmatprep.subr.bf16.mxu0 %v661
    %930 = vmatpush1.bf16.msra.mxu0 %v660
    %931 = vmatprep.subr.bf16.mxu0 %v659
    %932 = vmatpush1.bf16.msra.mxu0 %v658
    %933 = vmatprep.subr.bf16.mxu0 %v657
    %934 = vmatpush1.bf16.msra.mxu0 %v656
    %935 = vmatprep.subr.bf16.mxu0 %v655
    %936 = vmatpush1.bf16.msra.mxu0 %v654
    %937 = vmatprep.subr.bf16.mxu0 %v685
    %938 = vmatpush2.bf16.msra.mxu0 %v684
    %939 = vmatprep.subr.bf16.mxu0 %v683
    %940 = vmatpush2.bf16.msra.mxu0 %v682
    %941 = vmatprep.subr.bf16.mxu0 %v681
    %942 = vmatpush2.bf16.msra.mxu0 %v680
    %943 = vmatprep.subr.bf16.mxu0 %v679
    %944 = vmatpush2.bf16.msra.mxu0 %v678
    %945 = vmatprep.subr.bf16.mxu0 %v677
    %946 = vmatpush2.bf16.msra.mxu0 %v676
    %947 = vmatprep.subr.bf16.mxu0 %v675
    %948 = vmatpush2.bf16.msra.mxu0 %v674
    %949 = vmatprep.subr.bf16.mxu0 %v673
    %950 = vmatpush2.bf16.msra.mxu0 %v672
    %951 = vmatprep.subr.bf16.mxu0 %v671
    %952 = vmatpush2.bf16.msra.mxu0 %v670
    %953 = vmatprep.mubr.bf16.mxu0 %v93
    %954 = vmatmul.mubr.bf16.gmra.mxu0 %v92
    %v955 = vpop.f32.mrf.mxu0
    %v956 = vadd.f32 %v913, %v955
    %v957 = vpop.f32.mrf.mxu0
    %v958 = vadd.f32 %v915, %v957
    %v959 = vpop.f32.mrf.mxu0
    %v960 = vadd.f32 %v917, %v959
    %v961 = vpop.f32.mrf.mxu0
    %v962 = vadd.f32 %v919, %v961
    %963 = vdwg.mxu0
    %964 = vmatprep.subr.bf16.mxu0 %v701
    %965 = vmatpush1.bf16.msra.mxu0 %v700
    %966 = vmatprep.subr.bf16.mxu0 %v699
    %967 = vmatpush1.bf16.msra.mxu0 %v698
    %968 = vmatprep.subr.bf16.mxu0 %v697
    %969 = vmatpush1.bf16.msra.mxu0 %v696
    %970 = vmatprep.subr.bf16.mxu0 %v695
    %971 = vmatpush1.bf16.msra.mxu0 %v694
    %972 = vmatprep.subr.bf16.mxu0 %v693
    %973 = vmatpush1.bf16.msra.mxu0 %v692
    %974 = vmatprep.subr.bf16.mxu0 %v691
    %975 = vmatpush1.bf16.msra.mxu0 %v690
    %976 = vmatprep.subr.bf16.mxu0 %v689
    %977 = vmatpush1.bf16.msra.mxu0 %v688
    %978 = vmatprep.subr.bf16.mxu0 %v687
    %979 = vmatpush1.bf16.msra.mxu0 %v686
    %980 = vmatprep.subr.bf16.mxu0 %v717
    %981 = vmatpush2.bf16.msra.mxu0 %v716
    %982 = vmatprep.subr.bf16.mxu0 %v715
    %983 = vmatpush2.bf16.msra.mxu0 %v714
    %984 = vmatprep.subr.bf16.mxu0 %v713
    %985 = vmatpush2.bf16.msra.mxu0 %v712
    %986 = vmatprep.subr.bf16.mxu0 %v711
    %987 = vmatpush2.bf16.msra.mxu0 %v710
    %988 = vmatprep.subr.bf16.mxu0 %v709
    %989 = vmatpush2.bf16.msra.mxu0 %v708
    %990 = vmatprep.subr.bf16.mxu0 %v707
    %991 = vmatpush2.bf16.msra.mxu0 %v706
    %992 = vmatprep.subr.bf16.mxu0 %v705
    %993 = vmatpush2.bf16.msra.mxu0 %v704
    %994 = vmatprep.subr.bf16.mxu0 %v703
    %995 = vmatpush2.bf16.msra.mxu0 %v702
    %996 = vmatprep.mubr.bf16.mxu0 %v95
    %997 = vmatmul.mubr.bf16.gmra.mxu0 %v94
    %v998 = vpop.f32.mrf.mxu0
    %v999 = vadd.f32 %v956, %v998
    %v1000 = vpop.f32.mrf.mxu0
    %v1001 = vadd.f32 %v958, %v1000
    %v1002 = vpop.f32.mrf.mxu0
    %v1003 = vadd.f32 %v960, %v1002
    %v1004 = vpop.f32.mrf.mxu0
    %v1005 = vadd.f32 %v962, %v1004
    %1006 = vdwg.mxu0
    %1007 = vmatprep.subr.bf16.mxu0 %v733
    %1008 = vmatpush1.bf16.msra.mxu0 %v732
    %1009 = vmatprep.subr.bf16.mxu0 %v731
    %1010 = vmatpush1.bf16.msra.mxu0 %v730
    %1011 = vmatprep.subr.bf16.mxu0 %v729
    %1012 = vmatpush1.bf16.msra.mxu0 %v728
    %1013 = vmatprep.subr.bf16.mxu0 %v727
    %1014 = vmatpush1.bf16.msra.mxu0 %v726
    %1015 = vmatprep.subr.bf16.mxu0 %v725
    %1016 = vmatpush1.bf16.msra.mxu0 %v724
    %1017 = vmatprep.subr.bf16.mxu0 %v723
    %1018 = vmatpush1.bf16.msra.mxu0 %v722
    %1019 = vmatprep.subr.bf16.mxu0 %v721
    %1020 = vmatpush1.bf16.msra.mxu0 %v720
    %1021 = vmatprep.subr.bf16.mxu0 %v719
    %1022 = vmatpush1.bf16.msra.mxu0 %v718
    %1023 = vmatprep.subr.bf16.mxu0 %v749
    %1024 = vmatpush2.bf16.msra.mxu0 %v748
    %1025 = vmatprep.subr.bf16.mxu0 %v747
    %1026 = vmatpush2.bf16.msra.mxu0 %v746
    %1027 = vmatprep.subr.bf16.mxu0 %v745
    %1028 = vmatpush2.bf16.msra.mxu0 %v744
    %1029 = vmatprep.subr.bf16.mxu0 %v743
    %1030 = vmatpush2.bf16.msra.mxu0 %v742
    %1031 = vmatprep.subr.bf16.mxu0 %v741
    %1032 = vmatpush2.bf16.msra.mxu0 %v740
    %1033 = vmatprep.subr.bf16.mxu0 %v739
    %1034 = vmatpush2.bf16.msra.mxu0 %v738
    %1035 = vmatprep.subr.bf16.mxu0 %v737
    %1036 = vmatpush2.bf16.msra.mxu0 %v736
    %1037 = vmatprep.subr.bf16.mxu0 %v735
    %1038 = vmatpush2.bf16.msra.mxu0 %v734
    %1039 = vmatprep.mubr.bf16.mxu0 %v97
    %1040 = vmatmul.mubr.bf16.gmra.mxu0 %v96
    %v1041 = vpop.f32.mrf.mxu0
    %v1042 = vadd.f32 %v999, %v1041
    %v1043 = vpop.f32.mrf.mxu0
    %v1044 = vadd.f32 %v1001, %v1043
    %v1045 = vpop.f32.mrf.mxu0
    %v1046 = vadd.f32 %v1003, %v1045
    %v1047 = vpop.f32.mrf.mxu0
    %v1048 = vadd.f32 %v1005, %v1047
    %1049 = vdwg.mxu0
    %v1050 = vmax.f32 %v1042, 0.0
    %v1051 = vmax.f32 %v1044, 0.0
    %v1052 = vmax.f32 %v1046, 0.0
    %v1053 = vmax.f32 %v1048, 0.0
    %v1054 = vpack.c.bf16 %v1052, %v1050
    %v1055 = vpack.c.bf16 %v1053, %v1051
    %v1058 = vunpack.c.l.b16 %v1054
    %v1059 = vunpack.c.l.b16 %v1055
    %v1060 = vunpack.c.h.b16 %v1054
    %v1061 = vunpack.c.h.b16 %v1055
    %v1062 = vpack.c.b16 %v1059, %v1058
    %v1063 = vpack.c.b16 %v1061, %v1060
    %1066 = vst [vmem:[%s3] sm:$0xff] %v1062
    %1067 = vst [vmem:[%s3 + $0x8] sm:$0xff] %v1062
    %1068 = vst [vmem:[%s3 + $0x10] sm:$0xff] %v1063
    %1069 = vst [vmem:[%s3 + $0x18] sm:$0xff] %v1063
    // Predicated region
    $region18: #{_lambda_.6} parent=1 // pred_check
      _
    $region19: #{_lambda_.6} parent=1 // pred_check_branch
      %1071 = sbr.rel (0) target = $region21
    $region20: #{_lambda_.6} parent=1 // pred_region
      _
    $region21: #{_lambda_.6} parent=1 // pred_fallthru
      _
    // Predicated region
    $region22: #{_lambda_.6} parent=1 // pred_check
      _
    $region23: #{_lambda_.6} parent=1 // pred_check_branch
      %1073 = sbr.rel (0) target = $region25
    $region24: #{_lambda_.6} parent=1 // pred_region
      _
    $region25: #{_lambda_.6} parent=1 // pred_fallthru
      _
    %1074 = vsyncpa [#allocation3], 1

// kernel: _lambda_.8
$region0: #{_lambda_.8}
  #allocation0 [shape = 'u32[]', space=smem, size = 0x4, offset = 0x4, fixed_abs, tag = 'smem constant byte address 0x4 - core index']
  #allocation1 [shape = 'u32[144,128]{1,0:T(1,128)}', space=vmem, size = 0x12000, scoped, tag = 'internal scratch']
  %s0 = inlined_call_operand.vmem [shape: f32[32,256], index: 0, kind: input, shape index: {}]
  %s1 = inlined_call_operand.vmem [shape: bf16[512,128], index: 1, kind: input, shape index: {}]
  %s2 = inlined_call_operand.vmem [shape: f32[1,128], index: 2, kind: input, shape index: {}]
  %s3 = inlined_call_operand.vmem [shape: bf16[32,256], index: 3, kind: output, shape index: {}]
  %s4 = sld [smem:[#allocation0]]
  $region22: #{_lambda_.8} parent=0
    _
  %s6 = ssub.s32 1, %s4
  %s7 = scalar_select 0, %s6, %s4
  // Predicated region
  $region2: #{_lambda_.8} parent=0 // pred_check
    _
  $region3: #{_lambda_.8} parent=0 // pred_check_branch
    %9 = sbr.rel (0) target = $region5
  $region4: #{_lambda_.8} parent=0 // pred_region
    _
  $region5: #{_lambda_.8} parent=0 // pred_fallthru
    _
  // Predicated region
  $region6: #{_lambda_.8} parent=0 // pred_check
    _
  $region7: #{_lambda_.8} parent=0 // pred_check_branch
    %11 = sbr.rel (0) target = $region9
  $region8: #{_lambda_.8} parent=0 // pred_region
    _
  $region9: #{_lambda_.8} parent=0 // pred_fallthru
    _
  // Predicated region
  $region10: #{_lambda_.8} parent=0 // pred_check
    _
  $region11: #{_lambda_.8} parent=0 // pred_check_branch
    %13 = sbr.rel (0) target = $region13
  $region12: #{_lambda_.8} parent=0 // pred_region
    _
  $region13: #{_lambda_.8} parent=0 // pred_fallthru
    _
  %v15 = vld [vmem:[%s0] sm:$0xff]
  %v16 = vld [vmem:[%s0 + $0x8] sm:$0xff]
  %v17 = vld [vmem:[%s0 + $0x10] sm:$0xff]
  %v18 = vld [vmem:[%s0 + $0x18] sm:$0xff]
  %v19 = vld [vmem:[%s0 + $0x20] sm:$0xff]
  %v20 = vld [vmem:[%s0 + $0x28] sm:$0xff]
  %v21 = vld [vmem:[%s0 + $0x30] sm:$0xff]
  %v22 = vld [vmem:[%s0 + $0x38] sm:$0xff]
  %v23 = vrot.slane %v15, 1
  %v24 = vrot.slane %v16, 1
  %v25 = vrot.slane %v17, 1
  %v26 = vrot.slane %v18, 1
  %v27 = vrot.slane %v19, 1
  %v28 = vrot.slane %v20, 1
  %v29 = vrot.slane %v21, 1
  %v30 = vrot.slane %v22, 1
  %v31 = vlaneseq
  %v32 = vshrl.u32 %v31, 7
  %vm33 = vcmp.lt.s32.totalorder %v32, 7
  %v34 = vsel %vm33, %v27, %v29
  %v35 = vsel %vm33, %v28, %v30
  %v36 = vsel %vm33, %v25, %v27
  %v37 = vsel %vm33, %v26, %v28
  %v38 = vsel %vm33, %v23, %v25
  %v39 = vsel %vm33, %v24, %v26
  %v40 = vsel %vm33, %v29, %v23
  %v41 = vsel %vm33, %v30, %v24
  %v42 = vadd.s32 %v32, 8
  %v43 = vadd.s32 %v32, 16
  %v44 = vadd.s32 %v32, 24
  %vm45 = vcmp.lt.s32.totalorder %v32, 0
  %v46 = vsub.s32 0, %v32
  %v47 = vsel %vm45, %v46, %v32
  %v48 = vshrl.u32 %v47, 4
  %v49 = vand.u32 %v47, 15
  %v50 = vsub.s32 0, %v49
  %v51 = vsel %vm45, %v50, %v49
  %vm52 = vcmp.lt.s32.totalorder %v42, 0
  %v53 = vsub.s32 0, %v42
  %v54 = vsel %vm52, %v53, %v42
  %v55 = vshrl.u32 %v54, 4
  %v56 = vand.u32 %v54, 15
  %v57 = vsub.s32 0, %v56
  %v58 = vsel %vm52, %v57, %v56
  %vm59 = vcmp.lt.s32.totalorder %v43, 0
  %v60 = vsub.s32 0, %v43
  %v61 = vsel %vm59, %v60, %v43
  %v62 = vshrl.u32 %v61, 4
  %v63 = vand.u32 %v61, 15
  %v64 = vsub.s32 0, %v63
  %v65 = vsel %vm59, %v64, %v63
  %vm66 = vcmp.lt.s32.totalorder %v44, 0
  %v67 = vsub.s32 0, %v44
  %v68 = vsel %vm66, %v67, %v44
  %v69 = vshrl.u32 %v68, 4
  %v70 = vand.u32 %v68, 15
  %v71 = vsub.s32 0, %v70
  %v72 = vsel %vm66, %v71, %v70
  %vm73 = vcmp.ne.s32.totalorder %v51, 0
  %vm74 = vcmp.ne.s32.totalorder %v58, 0
  %vm75 = vcmp.ne.s32.totalorder %v65, 0
  %vm76 = vcmp.ne.s32.totalorder %v72, 0
  %vm77 = vcmp.lt.s32.totalorder %v51, 0
  %vm78 = vcmp.lt.s32.totalorder %v58, 0
  %vm79 = vcmp.lt.s32.totalorder %v65, 0
  %vm80 = vcmp.lt.s32.totalorder %v72, 0
  %vm81 = vmand %vm77, %vm73
  %vm82 = vmand %vm78, %vm74
  %vm83 = vmand %vm79, %vm75
  %vm84 = vmand %vm80, %vm76
  %v85 = vadd.s32 %v51, 16
  %v86 = vadd.s32 %v58, 16
  %v87 = vadd.s32 %v65, 16
  %v88 = vadd.s32 %v72, 16
  %v89 = vsel %vm81, %v85, %v51
  %v90 = vsel %vm82, %v86, %v58
  %v91 = vsel %vm83, %v87, %v65
  %v92 = vsel %vm84, %v88, %v72
  %vm93 = vcmp.eq.s32.totalorder %v89, 15
  %vm94 = vcmp.eq.s32.totalorder %v90, 15
  %vm95 = vcmp.eq.s32.totalorder %v91, 15
  %vm96 = vcmp.eq.s32.totalorder %v92, 15
  %v97 = vsel %vm93, 0.0, %v38
  %v98 = vsel %vm93, 0.0, %v39
  %v99 = vsel %vm94, 0.0, %v36
  %v100 = vsel %vm94, 0.0, %v37
  %v101 = vsel %vm95, 0.0, %v34
  %v102 = vsel %vm95, 0.0, %v35
  %v103 = vsel %vm96, 0.0, %v40
  %v104 = vsel %vm96, 0.0, %v41
  %v105 = vpack.c.bf16 %v17, %v15
  %v106 = vpack.c.bf16 %v18, %v16
  %v107 = vpack.c.bf16 %v99, %v97
  %v108 = vpack.c.bf16 %v100, %v98
  %v109 = vpack.c.bf16 %v21, %v19
  %v110 = vpack.c.bf16 %v22, %v20
  %v111 = vpack.c.bf16 %v103, %v101
  %v112 = vpack.c.bf16 %v104, %v102
  %v113 = vld [vmem:[%s1] sm:$0xf]
  %v114 = vld [vmem:[%s1 + $0x4] sm:$0xf]
  %v115 = vld [vmem:[%s1 + $0x8] sm:$0xf]
  %v116 = vld [vmem:[%s1 + $0xc] sm:$0xf]
  %v117 = vld [vmem:[%s1 + $0x10] sm:$0xf]
  %v118 = vld [vmem:[%s1 + $0x14] sm:$0xf]
  %v119 = vld [vmem:[%s1 + $0x18] sm:$0xf]
  %v120 = vld [vmem:[%s1 + $0x1c] sm:$0xf]
  %v121 = vld [vmem:[%s1 + $0x20] sm:$0xf]
  %v122 = vld [vmem:[%s1 + $0x24] sm:$0xf]
  %v123 = vld [vmem:[%s1 + $0x28] sm:$0xf]
  %v124 = vld [vmem:[%s1 + $0x2c] sm:$0xf]
  %v125 = vld [vmem:[%s1 + $0x30] sm:$0xf]
  %v126 = vld [vmem:[%s1 + $0x34] sm:$0xf]
  %v127 = vld [vmem:[%s1 + $0x38] sm:$0xf]
  %v128 = vld [vmem:[%s1 + $0x3c] sm:$0xf]
  %v129 = vld [vmem:[%s1 + $0x40] sm:$0xf]
  %v130 = vld [vmem:[%s1 + $0x44] sm:$0xf]
  %v131 = vld [vmem:[%s1 + $0x48] sm:$0xf]
  %v132 = vld [vmem:[%s1 + $0x4c] sm:$0xf]
  %v133 = vld [vmem:[%s1 + $0x50] sm:$0xf]
  %v134 = vld [vmem:[%s1 + $0x54] sm:$0xf]
  %v135 = vld [vmem:[%s1 + $0x58] sm:$0xf]
  %v136 = vld [vmem:[%s1 + $0x5c] sm:$0xf]
  %v137 = vld [vmem:[%s1 + $0x60] sm:$0xf]
  %v138 = vld [vmem:[%s1 + $0x64] sm:$0xf]
  %v139 = vld [vmem:[%s1 + $0x68] sm:$0xf]
  %v140 = vld [vmem:[%s1 + $0x6c] sm:$0xf]
  %v141 = vld [vmem:[%s1 + $0x70] sm:$0xf]
  %v142 = vld [vmem:[%s1 + $0x74] sm:$0xf]
  %v143 = vld [vmem:[%s1 + $0x78] sm:$0xf]
  %v144 = vld [vmem:[%s1 + $0x7c] sm:$0xf]
  %v145 = vld [vmem:[%s1 + $0x80] sm:$0xf]
  %v146 = vld [vmem:[%s1 + $0x84] sm:$0xf]
  %v147 = vld [vmem:[%s1 + $0x88] sm:$0xf]
  %v148 = vld [vmem:[%s1 + $0x8c] sm:$0xf]
  %v149 = vld [vmem:[%s1 + $0x90] sm:$0xf]
  %v150 = vld [vmem:[%s1 + $0x94] sm:$0xf]
  %v151 = vld [vmem:[%s1 + $0x98] sm:$0xf]
  %v152 = vld [vmem:[%s1 + $0x9c] sm:$0xf]
  %v153 = vld [vmem:[%s1 + $0xa0] sm:$0xf]
  %v154 = vld [vmem:[%s1 + $0xa4] sm:$0xf]
  %v155 = vld [vmem:[%s1 + $0xa8] sm:$0xf]
  %v156 = vld [vmem:[%s1 + $0xac] sm:$0xf]
  %v157 = vld [vmem:[%s1 + $0xb0] sm:$0xf]
  %v158 = vld [vmem:[%s1 + $0xb4] sm:$0xf]
  %v159 = vld [vmem:[%s1 + $0xb8] sm:$0xf]
  %v160 = vld [vmem:[%s1 + $0xbc] sm:$0xf]
  %v161 = vld [vmem:[%s1 + $0xc0] sm:$0xf]
  %v162 = vld [vmem:[%s1 + $0xc4] sm:$0xf]
  %v163 = vld [vmem:[%s1 + $0xc8] sm:$0xf]
  %v164 = vld [vmem:[%s1 + $0xcc] sm:$0xf]
  %v165 = vld [vmem:[%s1 + $0xd0] sm:$0xf]
  %v166 = vld [vmem:[%s1 + $0xd4] sm:$0xf]
  %v167 = vld [vmem:[%s1 + $0xd8] sm:$0xf]
  %v168 = vld [vmem:[%s1 + $0xdc] sm:$0xf]
  %v169 = vld [vmem:[%s1 + $0xe0] sm:$0xf]
  %v170 = vld [vmem:[%s1 + $0xe4] sm:$0xf]
  %v171 = vld [vmem:[%s1 + $0xe8] sm:$0xf]
  %v172 = vld [vmem:[%s1 + $0xec] sm:$0xf]
  %v173 = vld [vmem:[%s1 + $0xf0] sm:$0xf]
  %v174 = vld [vmem:[%s1 + $0xf4] sm:$0xf]
  %v175 = vld [vmem:[%s1 + $0xf8] sm:$0xf]
  %v176 = vld [vmem:[%s1 + $0xfc] sm:$0xf]
  %v177 = vld [vmem:[%s2] sm:$0x1]
  %v179 = vlaneseq
  %v180 = vshrl.u32 %v179, 7
  %v181 = vsub.s32 0, %v180
  %v182 = vrot.slane %v177, %v181
  %v248 = vunpack.c.l.b16 %v113
  %v249 = vunpack.c.l.b16 %v114
  %v250 = vunpack.c.l.b16 %v115
  %v251 = vunpack.c.l.b16 %v116
  %v252 = vunpack.c.l.b16 %v117
  %v253 = vunpack.c.l.b16 %v118
  %v254 = vunpack.c.l.b16 %v119
  %v255 = vunpack.c.l.b16 %v120
  %v256 = vunpack.c.l.b16 %v121
  %v257 = vunpack.c.l.b16 %v122
  %v258 = vunpack.c.l.b16 %v123
  %v259 = vunpack.c.l.b16 %v124
  %v260 = vunpack.c.l.b16 %v125
  %v261 = vunpack.c.l.b16 %v126
  %v262 = vunpack.c.l.b16 %v127
  %v263 = vunpack.c.l.b16 %v128
  %v264 = vunpack.c.l.b16 %v129
  %v265 = vunpack.c.l.b16 %v130
  %v266 = vunpack.c.l.b16 %v131
  %v267 = vunpack.c.l.b16 %v132
  %v268 = vunpack.c.l.b16 %v133
  %v269 = vunpack.c.l.b16 %v134
  %v270 = vunpack.c.l.b16 %v135
  %v271 = vunpack.c.l.b16 %v136
  %v272 = vunpack.c.l.b16 %v137
  %v273 = vunpack.c.l.b16 %v138
  %v274 = vunpack.c.l.b16 %v139
  %v275 = vunpack.c.l.b16 %v140
  %v276 = vunpack.c.l.b16 %v141
  %v277 = vunpack.c.l.b16 %v142
  %v278 = vunpack.c.l.b16 %v143
  %v279 = vunpack.c.l.b16 %v144
  %v280 = vunpack.c.l.b16 %v145
  %v281 = vunpack.c.l.b16 %v146
  %v282 = vunpack.c.l.b16 %v147
  %v283 = vunpack.c.l.b16 %v148
  %v284 = vunpack.c.l.b16 %v149
  %v285 = vunpack.c.l.b16 %v150
  %v286 = vunpack.c.l.b16 %v151
  %v287 = vunpack.c.l.b16 %v152
  %v288 = vunpack.c.l.b16 %v153
  %v289 = vunpack.c.l.b16 %v154
  %v290 = vunpack.c.l.b16 %v155
  %v291 = vunpack.c.l.b16 %v156
  %v292 = vunpack.c.l.b16 %v157
  %v293 = vunpack.c.l.b16 %v158
  %v294 = vunpack.c.l.b16 %v159
  %v295 = vunpack.c.l.b16 %v160
  %v296 = vunpack.c.l.b16 %v161
  %v297 = vunpack.c.l.b16 %v162
  %v298 = vunpack.c.l.b16 %v163
  %v299 = vunpack.c.l.b16 %v164
  %v300 = vunpack.c.l.b16 %v165
  %v301 = vunpack.c.l.b16 %v166
  %v302 = vunpack.c.l.b16 %v167
  %v303 = vunpack.c.l.b16 %v168
  %v304 = vunpack.c.l.b16 %v169
  %v305 = vunpack.c.l.b16 %v170
  %v306 = vunpack.c.l.b16 %v171
  %v307 = vunpack.c.l.b16 %v172
  %v308 = vunpack.c.l.b16 %v173
  %v309 = vunpack.c.l.b16 %v174
  %v310 = vunpack.c.l.b16 %v175
  %v311 = vunpack.c.l.b16 %v176
  %v312 = vpack.c.b16 %v249, %v248
  %v313 = vpack.c.b16 %v251, %v250
  %v314 = vpack.c.b16 %v253, %v252
  %v315 = vpack.c.b16 %v255, %v254
  %v316 = vpack.c.b16 %v257, %v256
  %v317 = vpack.c.b16 %v259, %v258
  %v318 = vpack.c.b16 %v261, %v260
  %v319 = vpack.c.b16 %v263, %v262
  %v320 = vpack.c.b16 %v265, %v264
  %v321 = vpack.c.b16 %v267, %v266
  %v322 = vpack.c.b16 %v269, %v268
  %v323 = vpack.c.b16 %v271, %v270
  %v324 = vpack.c.b16 %v273, %v272
  %v325 = vpack.c.b16 %v275, %v274
  %v326 = vpack.c.b16 %v277, %v276
  %v327 = vpack.c.b16 %v279, %v278
  %v328 = vpack.c.b16 %v281, %v280
  %v329 = vpack.c.b16 %v283, %v282
  %v330 = vpack.c.b16 %v285, %v284
  %v331 = vpack.c.b16 %v287, %v286
  %v332 = vpack.c.b16 %v289, %v288
  %v333 = vpack.c.b16 %v291, %v290
  %v334 = vpack.c.b16 %v293, %v292
  %v335 = vpack.c.b16 %v295, %v294
  %v336 = vpack.c.b16 %v297, %v296
  %v337 = vpack.c.b16 %v299, %v298
  %v338 = vpack.c.b16 %v301, %v300
  %v339 = vpack.c.b16 %v303, %v302
  %v340 = vpack.c.b16 %v305, %v304
  %v341 = vpack.c.b16 %v307, %v306
  %v342 = vpack.c.b16 %v309, %v308
  %v343 = vpack.c.b16 %v311, %v310
  %376 = vmatprep.subr.bf16.mxu0 0
  %377 = vmatpush1.bf16.msra.mxu0 %v319
  %378 = vmatprep.subr.bf16.mxu0 0
  %379 = vmatpush1.bf16.msra.mxu0 %v318
  %380 = vmatprep.subr.bf16.mxu0 0
  %381 = vmatpush1.bf16.msra.mxu0 %v317
  %382 = vmatprep.subr.bf16.mxu0 0
  %383 = vmatpush1.bf16.msra.mxu0 %v316
  %384 = vmatprep.subr.bf16.mxu0 0
  %385 = vmatpush1.bf16.msra.mxu0 %v315
  %386 = vmatprep.subr.bf16.mxu0 0
  %387 = vmatpush1.bf16.msra.mxu0 %v314
  %388 = vmatprep.subr.bf16.mxu0 0
  %389 = vmatpush1.bf16.msra.mxu0 %v313
  %390 = vmatprep.subr.bf16.mxu0 0
  %391 = vmatpush1.bf16.msra.mxu0 %v312
  %392 = vmatprep.subr.bf16.mxu0 0
  %393 = vmatpush2.bf16.msra.mxu0 %v327
  %394 = vmatprep.subr.bf16.mxu0 0
  %395 = vmatpush2.bf16.msra.mxu0 %v326
  %396 = vmatprep.subr.bf16.mxu0 0
  %397 = vmatpush2.bf16.msra.mxu0 %v325
  %398 = vmatprep.subr.bf16.mxu0 0
  %399 = vmatpush2.bf16.msra.mxu0 %v324
  %400 = vmatprep.subr.bf16.mxu0 0
  %401 = vmatpush2.bf16.msra.mxu0 %v323
  %402 = vmatprep.subr.bf16.mxu0 0
  %403 = vmatpush2.bf16.msra.mxu0 %v322
  %404 = vmatprep.subr.bf16.mxu0 0
  %405 = vmatpush2.bf16.msra.mxu0 %v321
  %406 = vmatprep.subr.bf16.mxu0 0
  %407 = vmatpush2.bf16.msra.mxu0 %v320
  %408 = vmatprep.mubr.bf16.mxu0 %v106
  %409 = vmatmul.mubr.bf16.gmra.mxu0 %v105
  %v410 = vpop.f32.mrf.mxu0
  %v411 = vadd.f32 %v182, %v410
  %v412 = vpop.f32.mrf.mxu0
  %v413 = vpop.f32.mrf.mxu0
  %v414 = vadd.f32 %v182, %v413
  %v415 = vpop.f32.mrf.mxu0
  %416 = vmatprep.mubr.bf16.mxu0 %v110
  %417 = vmatmul.mubr.bf16.gmra.mxu0 %v109
  %v418 = vpop.f32.mrf.mxu0
  %v419 = vadd.f32 %v182, %v418
  %v420 = vpop.f32.mrf.mxu0
  %v421 = vpop.f32.mrf.mxu0
  %v422 = vadd.f32 %v182, %v421
  %v423 = vpop.f32.mrf.mxu0
  %424 = vdwg.mxu0
  %425 = vmatprep.subr.bf16.mxu0 0
  %426 = vmatpush1.bf16.msra.mxu0 %v335
  %427 = vmatprep.subr.bf16.mxu0 0
  %428 = vmatpush1.bf16.msra.mxu0 %v334
  %429 = vmatprep.subr.bf16.mxu0 0
  %430 = vmatpush1.bf16.msra.mxu0 %v333
  %431 = vmatprep.subr.bf16.mxu0 0
  %432 = vmatpush1.bf16.msra.mxu0 %v332
  %433 = vmatprep.subr.bf16.mxu0 0
  %434 = vmatpush1.bf16.msra.mxu0 %v331
  %435 = vmatprep.subr.bf16.mxu0 0
  %436 = vmatpush1.bf16.msra.mxu0 %v330
  %437 = vmatprep.subr.bf16.mxu0 0
  %438 = vmatpush1.bf16.msra.mxu0 %v329
  %439 = vmatprep.subr.bf16.mxu0 0
  %440 = vmatpush1.bf16.msra.mxu0 %v328
  %441 = vmatprep.subr.bf16.mxu0 0
  %442 = vmatpush2.bf16.msra.mxu0 %v343
  %443 = vmatprep.subr.bf16.mxu0 0
  %444 = vmatpush2.bf16.msra.mxu0 %v342
  %445 = vmatprep.subr.bf16.mxu0 0
  %446 = vmatpush2.bf16.msra.mxu0 %v341
  %447 = vmatprep.subr.bf16.mxu0 0
  %448 = vmatpush2.bf16.msra.mxu0 %v340
  %449 = vmatprep.subr.bf16.mxu0 0
  %450 = vmatpush2.bf16.msra.mxu0 %v339
  %451 = vmatprep.subr.bf16.mxu0 0
  %452 = vmatpush2.bf16.msra.mxu0 %v338
  %453 = vmatprep.subr.bf16.mxu0 0
  %454 = vmatpush2.bf16.msra.mxu0 %v337
  %455 = vmatprep.subr.bf16.mxu0 0
  %456 = vmatpush2.bf16.msra.mxu0 %v336
  %457 = vmatprep.mubr.bf16.mxu0 %v108
  %458 = vmatmul.mubr.bf16.gmra.mxu0 %v107
  %v459 = vpop.f32.mrf.mxu0
  %v460 = vadd.f32 %v411, %v459
  %v461 = vpop.f32.mrf.mxu0
  %v462 = vpop.f32.mrf.mxu0
  %v463 = vadd.f32 %v414, %v462
  %v464 = vpop.f32.mrf.mxu0
  %465 = vmatprep.mubr.bf16.mxu0 %v112
  %466 = vmatmul.mubr.bf16.gmra.mxu0 %v111
  %v467 = vpop.f32.mrf.mxu0
  %v468 = vadd.f32 %v419, %v467
  %v469 = vpop.f32.mrf.mxu0
  %v470 = vpop.f32.mrf.mxu0
  %v471 = vadd.f32 %v422, %v470
  %v472 = vpop.f32.mrf.mxu0
  %473 = vdwg.mxu0
  %v474 = vmax.f32 %v460, 0.0
  %v475 = vmax.f32 %v463, 0.0
  %v476 = vmax.f32 %v468, 0.0
  %v477 = vmax.f32 %v471, 0.0
  %v478 = vpack.c.bf16 %v475, %v474
  %v479 = vpack.c.bf16 %v477, %v476
  %v482 = vunpack.c.l.b16 %v478
  %v483 = vunpack.c.h.b16 %v478
  %v484 = vunpack.c.l.b16 %v479
  %v485 = vunpack.c.h.b16 %v479
  %v486 = vpack.c.b16 %v482, %v482
  %v487 = vpack.c.b16 %v483, %v483
  %v488 = vpack.c.b16 %v484, %v484
  %v489 = vpack.c.b16 %v485, %v485
  %494 = vst [vmem:[%s3] sm:$0xff] %v486
  %495 = vst [vmem:[%s3 + $0x8] sm:$0xff] %v487
  %496 = vst [vmem:[%s3 + $0x10] sm:$0xff] %v488
  %497 = vst [vmem:[%s3 + $0x18] sm:$0xff] %v489
  // Predicated region
  $region14: #{_lambda_.8} parent=0 // pred_check
    _
  $region15: #{_lambda_.8} parent=0 // pred_check_branch
    %499 = sbr.rel (0) target = $region17
  $region16: #{_lambda_.8} parent=0 // pred_region
    _
  $region17: #{_lambda_.8} parent=0 // pred_fallthru
    _
  // Predicated region
  $region18: #{_lambda_.8} parent=0 // pred_check
    _
  $region19: #{_lambda_.8} parent=0 // pred_check_branch
    %501 = sbr.rel (0) target = $region21
  $region20: #{_lambda_.8} parent=0 // pred_region
    _
  $region21: #{_lambda_.8} parent=0 // pred_fallthru
    _

// kernel: _lambda_.7
$region0: #{_lambda_.7}
  #allocation0 [shape = 'u32[]', space=smem, size = 0x4, offset = 0x4, fixed_abs, tag = 'smem constant byte address 0x4 - core index']
  #allocation1 [shape = 'u32[144,128]{1,0:T(1,128)}', space=vmem, size = 0x12000, scoped, tag = 'internal scratch']
  %s0 = inlined_call_operand.vmem [shape: bf16[32,256], index: 0, kind: input, shape index: {}]
  %s1 = inlined_call_operand.vmem [shape: f32[32,256], index: 1, kind: input, shape index: {}]
  %s2 = inlined_call_operand.vmem [shape: f32[16,256], index: 2, kind: input, shape index: {}]
  %s3 = inlined_call_operand.vmem [shape: bf16[512,128], index: 3, kind: input, shape index: {}]
  %s4 = inlined_call_operand.vmem [shape: bf16[384,128], index: 4, kind: input, shape index: {}]
  %s5 = inlined_call_operand.vmem [shape: bf16[128,256], index: 5, kind: input, shape index: {}]
  %s6 = inlined_call_operand.vmem [shape: bf16[512,256], index: 6, kind: input, shape index: {}]
  %s7 = inlined_call_operand.vmem [shape: bf16[256,128], index: 7, kind: input, shape index: {}]
  %s8 = inlined_call_operand.vmem [shape: f32[32,256], index: 8, kind: output, shape index: {}]
  %s9 = sld [smem:[#allocation0]]
  $region42: #{_lambda_.7} parent=0
    _
  %s11 = ssub.s32 1, %s9
  %s12 = scalar_select 0, %s11, %s9
  // Predicated region
  $region2: #{_lambda_.7} parent=0 // pred_check
    _
  $region3: #{_lambda_.7} parent=0 // pred_check_branch
    %14 = sbr.rel (0) target = $region5
  $region4: #{_lambda_.7} parent=0 // pred_region
    _
  $region5: #{_lambda_.7} parent=0 // pred_fallthru
    _
  // Predicated region
  $region6: #{_lambda_.7} parent=0 // pred_check
    _
  $region7: #{_lambda_.7} parent=0 // pred_check_branch
    %16 = sbr.rel (0) target = $region9
  $region8: #{_lambda_.7} parent=0 // pred_region
    _
  $region9: #{_lambda_.7} parent=0 // pred_fallthru
    _
  // Predicated region
  $region10: #{_lambda_.7} parent=0 // pred_check
    _
  $region11: #{_lambda_.7} parent=0 // pred_check_branch
    %18 = sbr.rel (0) target = $region13
  $region12: #{_lambda_.7} parent=0 // pred_region
    _
  $region13: #{_lambda_.7} parent=0 // pred_fallthru
    _
  // Predicated region
  $region14: #{_lambda_.7} parent=0 // pred_check
    _
  $region15: #{_lambda_.7} parent=0 // pred_check_branch
    %20 = sbr.rel (0) target = $region17
  $region16: #{_lambda_.7} parent=0 // pred_region
    _
  $region17: #{_lambda_.7} parent=0 // pred_fallthru
    _
  // Predicated region
  $region18: #{_lambda_.7} parent=0 // pred_check
    _
  $region19: #{_lambda_.7} parent=0 // pred_check_branch
    %22 = sbr.rel (0) target = $region21
  $region20: #{_lambda_.7} parent=0 // pred_region
    _
  $region21: #{_lambda_.7} parent=0 // pred_fallthru
    _
  // Predicated region
  $region22: #{_lambda_.7} parent=0 // pred_check
    _
  $region23: #{_lambda_.7} parent=0 // pred_check_branch
    %24 = sbr.rel (0) target = $region25
  $region24: #{_lambda_.7} parent=0 // pred_region
    _
  $region25: #{_lambda_.7} parent=0 // pred_fallthru
    _
  // Predicated region
  $region26: #{_lambda_.7} parent=0 // pred_check
    _
  $region27: #{_lambda_.7} parent=0 // pred_check_branch
    %26 = sbr.rel (0) target = $region29
  $region28: #{_lambda_.7} parent=0 // pred_region
    _
  $region29: #{_lambda_.7} parent=0 // pred_fallthru
    _
  // Predicated region
  $region30: #{_lambda_.7} parent=0 // pred_check
    _
  $region31: #{_lambda_.7} parent=0 // pred_check_branch
    %28 = sbr.rel (0) target = $region33
  $region32: #{_lambda_.7} parent=0 // pred_region
    _
  $region33: #{_lambda_.7} parent=0 // pred_fallthru
    _
  %v30 = vld [vmem:[%s0] sm:$0xff]
  %v31 = vld [vmem:[%s0 + $0x8] sm:$0xff]
  %v32 = vld [vmem:[%s0 + $0x10] sm:$0xff]
  %v33 = vld [vmem:[%s0 + $0x18] sm:$0xff]
  %v34 = vunpack.c.l.bf16 %v30
  %v35 = vunpack.c.h.bf16 %v30
  %v36 = vunpack.c.l.bf16 %v31
  %v37 = vunpack.c.h.bf16 %v31
  %v38 = vunpack.c.l.bf16 %v32
  %v39 = vunpack.c.h.bf16 %v32
  %v40 = vunpack.c.l.bf16 %v33
  %v41 = vunpack.c.h.bf16 %v33
  %v42 = vld [vmem:[%s1] sm:$0xff]
  %v43 = vld [vmem:[%s1 + $0x8] sm:$0xff]
  %v44 = vld [vmem:[%s1 + $0x10] sm:$0xff]
  %v45 = vld [vmem:[%s1 + $0x18] sm:$0xff]
  %v46 = vld [vmem:[%s1 + $0x20] sm:$0xff]
  %v47 = vld [vmem:[%s1 + $0x28] sm:$0xff]
  %v48 = vld [vmem:[%s1 + $0x30] sm:$0xff]
  %v49 = vld [vmem:[%s1 + $0x38] sm:$0xff]
  %v50 = vld [vmem:[%s2] sm:$0xff]
  %v51 = vld [vmem:[%s2 + $0x8] sm:$0xff]
  %v52 = vld [vmem:[%s2 + $0x10] sm:$0xff]
  %v53 = vld [vmem:[%s2 + $0x18] sm:$0xff]
  %v54 = vlaneseq
  %v55 = vshrl.u32 %v54, 7
  %v56 = vsub.s32 0, %v55
  %v57 = vrot.slane %v50, %v56
  %v58 = vlaneseq
  %v59 = vshrl.u32 %v58, 7
  %v60 = vsub.s32 0, %v59
  %v61 = vrot.slane %v51, %v60
  %v62 = vmul.f32 %v34, %v57
  %v63 = vmul.f32 %v35, %v61
  %v64 = vmul.f32 %v36, %v57
  %v65 = vmul.f32 %v37, %v61
  %v66 = vmul.f32 %v38, %v57
  %v67 = vmul.f32 %v39, %v61
  %v68 = vmul.f32 %v40, %v57
  %v69 = vmul.f32 %v41, %v61
  %v70 = vlaneseq
  %v71 = vshrl.u32 %v70, 7
  %v72 = vsub.s32 1, %v71
  %v73 = vrot.slane %v50, %v72
  %v74 = vlaneseq
  %v75 = vshrl.u32 %v74, 7
  %v76 = vsub.s32 1, %v75
  %v77 = vrot.slane %v51, %v76
  %v78 = vadd.f32 %v62, %v73
  %v79 = vadd.f32 %v63, %v77
  %v80 = vadd.f32 %v64, %v73
  %v81 = vadd.f32 %v65, %v77
  %v82 = vadd.f32 %v66, %v73
  %v83 = vadd.f32 %v67, %v77
  %v84 = vadd.f32 %v68, %v73
  %v85 = vadd.f32 %v69, %v77
  %v86 = vmax.f32 %v78, 0.0
  %v87 = vmax.f32 %v79, 0.0
  %v88 = vmax.f32 %v80, 0.0
  %v89 = vmax.f32 %v81, 0.0
  %v90 = vmax.f32 %v82, 0.0
  %v91 = vmax.f32 %v83, 0.0
  %v92 = vmax.f32 %v84, 0.0
  %v93 = vmax.f32 %v85, 0.0
  %v94 = vlaneseq
  %v95 = vshrl.u32 %v94, 7
  %v96 = vsub.s32 2, %v95
  %v97 = vrot.slane %v50, %v96
  %v98 = vlaneseq
  %v99 = vshrl.u32 %v98, 7
  %v100 = vsub.s32 2, %v99
  %v101 = vrot.slane %v51, %v100
  %v102 = vmul.f32 %v42, %v97
  %v103 = vmul.f32 %v43, %v101
  %v104 = vmul.f32 %v44, %v97
  %v105 = vmul.f32 %v45, %v101
  %v106 = vmul.f32 %v46, %v97
  %v107 = vmul.f32 %v47, %v101
  %v108 = vmul.f32 %v48, %v97
  %v109 = vmul.f32 %v49, %v101
  %v110 = vlaneseq
  %v111 = vshrl.u32 %v110, 7
  %v112 = vsub.s32 3, %v111
  %v113 = vrot.slane %v50, %v112
  %v114 = vlaneseq
  %v115 = vshrl.u32 %v114, 7
  %v116 = vsub.s32 3, %v115
  %v117 = vrot.slane %v51, %v116
  %v118 = vadd.f32 %v102, %v113
  %v119 = vadd.f32 %v103, %v117
  %v120 = vadd.f32 %v104, %v113
  %v121 = vadd.f32 %v105, %v117
  %v122 = vadd.f32 %v106, %v113
  %v123 = vadd.f32 %v107, %v117
  %v124 = vadd.f32 %v108, %v113
  %v125 = vadd.f32 %v109, %v117
  %v126 = vmax.f32 %v118, 0.0
  %v127 = vmax.f32 %v119, 0.0
  %v128 = vmax.f32 %v120, 0.0
  %v129 = vmax.f32 %v121, 0.0
  %v130 = vmax.f32 %v122, 0.0
  %v131 = vmax.f32 %v123, 0.0
  %v132 = vmax.f32 %v124, 0.0
  %v133 = vmax.f32 %v125, 0.0
  %v134 = vpack.c.bf16 %v88, %v86
  %v135 = vpack.c.bf16 %v89, %v87
  %v136 = vpack.c.bf16 %v128, %v126
  %v137 = vpack.c.bf16 %v129, %v127
  %v138 = vpack.c.bf16 %v92, %v90
  %v139 = vpack.c.bf16 %v93, %v91
  %v140 = vpack.c.bf16 %v132, %v130
  %v141 = vpack.c.bf16 %v133, %v131
  %v142 = vld [vmem:[%s3] sm:$0xf]
  %v143 = vld [vmem:[%s3 + $0x4] sm:$0xf]
  %v144 = vld [vmem:[%s3 + $0x8] sm:$0xf]
  %v145 = vld [vmem:[%s3 + $0xc] sm:$0xf]
  %v146 = vld [vmem:[%s3 + $0x10] sm:$0xf]
  %v147 = vld [vmem:[%s3 + $0x14] sm:$0xf]
  %v148 = vld [vmem:[%s3 + $0x18] sm:$0xf]
  %v149 = vld [vmem:[%s3 + $0x1c] sm:$0xf]
  %v150 = vld [vmem:[%s3 + $0x20] sm:$0xf]
  %v151 = vld [vmem:[%s3 + $0x24] sm:$0xf]
  %v152 = vld [vmem:[%s3 + $0x28] sm:$0xf]
  %v153 = vld [vmem:[%s3 + $0x2c] sm:$0xf]
  %v154 = vld [vmem:[%s3 + $0x30] sm:$0xf]
  %v155 = vld [vmem:[%s3 + $0x34] sm:$0xf]
  %v156 = vld [vmem:[%s3 + $0x38] sm:$0xf]
  %v157 = vld [vmem:[%s3 + $0x3c] sm:$0xf]
  %v158 = vld [vmem:[%s3 + $0x40] sm:$0xf]
  %v159 = vld [vmem:[%s3 + $0x44] sm:$0xf]
  %v160 = vld [vmem:[%s3 + $0x48] sm:$0xf]
  %v161 = vld [vmem:[%s3 + $0x4c] sm:$0xf]
  %v162 = vld [vmem:[%s3 + $0x50] sm:$0xf]
  %v163 = vld [vmem:[%s3 + $0x54] sm:$0xf]
  %v164 = vld [vmem:[%s3 + $0x58] sm:$0xf]
  %v165 = vld [vmem:[%s3 + $0x5c] sm:$0xf]
  %v166 = vld [vmem:[%s3 + $0x60] sm:$0xf]
  %v167 = vld [vmem:[%s3 + $0x64] sm:$0xf]
  %v168 = vld [vmem:[%s3 + $0x68] sm:$0xf]
  %v169 = vld [vmem:[%s3 + $0x6c] sm:$0xf]
  %v170 = vld [vmem:[%s3 + $0x70] sm:$0xf]
  %v171 = vld [vmem:[%s3 + $0x74] sm:$0xf]
  %v172 = vld [vmem:[%s3 + $0x78] sm:$0xf]
  %v173 = vld [vmem:[%s3 + $0x7c] sm:$0xf]
  %v174 = vld [vmem:[%s3 + $0x80] sm:$0xf]
  %v175 = vld [vmem:[%s3 + $0x84] sm:$0xf]
  %v176 = vld [vmem:[%s3 + $0x88] sm:$0xf]
  %v177 = vld [vmem:[%s3 + $0x8c] sm:$0xf]
  %v178 = vld [vmem:[%s3 + $0x90] sm:$0xf]
  %v179 = vld [vmem:[%s3 + $0x94] sm:$0xf]
  %v180 = vld [vmem:[%s3 + $0x98] sm:$0xf]
  %v181 = vld [vmem:[%s3 + $0x9c] sm:$0xf]
  %v182 = vld [vmem:[%s3 + $0xa0] sm:$0xf]
  %v183 = vld [vmem:[%s3 + $0xa4] sm:$0xf]
  %v184 = vld [vmem:[%s3 + $0xa8] sm:$0xf]
  %v185 = vld [vmem:[%s3 + $0xac] sm:$0xf]
  %v186 = vld [vmem:[%s3 + $0xb0] sm:$0xf]
  %v187 = vld [vmem:[%s3 + $0xb4] sm:$0xf]
  %v188 = vld [vmem:[%s3 + $0xb8] sm:$0xf]
  %v189 = vld [vmem:[%s3 + $0xbc] sm:$0xf]
  %v190 = vld [vmem:[%s3 + $0xc0] sm:$0xf]
  %v191 = vld [vmem:[%s3 + $0xc4] sm:$0xf]
  %v192 = vld [vmem:[%s3 + $0xc8] sm:$0xf]
  %v193 = vld [vmem:[%s3 + $0xcc] sm:$0xf]
  %v194 = vld [vmem:[%s3 + $0xd0] sm:$0xf]
  %v195 = vld [vmem:[%s3 + $0xd4] sm:$0xf]
  %v196 = vld [vmem:[%s3 + $0xd8] sm:$0xf]
  %v197 = vld [vmem:[%s3 + $0xdc] sm:$0xf]
  %v198 = vld [vmem:[%s3 + $0xe0] sm:$0xf]
  %v199 = vld [vmem:[%s3 + $0xe4] sm:$0xf]
  %v200 = vld [vmem:[%s3 + $0xe8] sm:$0xf]
  %v201 = vld [vmem:[%s3 + $0xec] sm:$0xf]
  %v202 = vld [vmem:[%s3 + $0xf0] sm:$0xf]
  %v203 = vld [vmem:[%s3 + $0xf4] sm:$0xf]
  %v204 = vld [vmem:[%s3 + $0xf8] sm:$0xf]
  %v205 = vld [vmem:[%s3 + $0xfc] sm:$0xf]
  %v206 = vlaneseq
  %v207 = vshrl.u32 %v206, 7
  %v208 = vsub.s32 0, %v207
  %v209 = vrot.slane %v52, %v208
  %v274 = vunpack.c.l.b16 %v142
  %v275 = vunpack.c.l.b16 %v143
  %v276 = vunpack.c.l.b16 %v144
  %v277 = vunpack.c.l.b16 %v145
  %v278 = vunpack.c.l.b16 %v146
  %v279 = vunpack.c.l.b16 %v147
  %v280 = vunpack.c.l.b16 %v148
  %v281 = vunpack.c.l.b16 %v149
  %v282 = vunpack.c.l.b16 %v150
  %v283 = vunpack.c.l.b16 %v151
  %v284 = vunpack.c.l.b16 %v152
  %v285 = vunpack.c.l.b16 %v153
  %v286 = vunpack.c.l.b16 %v154
  %v287 = vunpack.c.l.b16 %v155
  %v288 = vunpack.c.l.b16 %v156
  %v289 = vunpack.c.l.b16 %v157
  %v290 = vunpack.c.l.b16 %v158
  %v291 = vunpack.c.l.b16 %v159
  %v292 = vunpack.c.l.b16 %v160
  %v293 = vunpack.c.l.b16 %v161
  %v294 = vunpack.c.l.b16 %v162
  %v295 = vunpack.c.l.b16 %v163
  %v296 = vunpack.c.l.b16 %v164
  %v297 = vunpack.c.l.b16 %v165
  %v298 = vunpack.c.l.b16 %v166
  %v299 = vunpack.c.l.b16 %v167
  %v300 = vunpack.c.l.b16 %v168
  %v301 = vunpack.c.l.b16 %v169
  %v302 = vunpack.c.l.b16 %v170
  %v303 = vunpack.c.l.b16 %v171
  %v304 = vunpack.c.l.b16 %v172
  %v305 = vunpack.c.l.b16 %v173
  %v306 = vunpack.c.l.b16 %v174
  %v307 = vunpack.c.l.b16 %v175
  %v308 = vunpack.c.l.b16 %v176
  %v309 = vunpack.c.l.b16 %v177
  %v310 = vunpack.c.l.b16 %v178
  %v311 = vunpack.c.l.b16 %v179
  %v312 = vunpack.c.l.b16 %v180
  %v313 = vunpack.c.l.b16 %v181
  %v314 = vunpack.c.l.b16 %v182
  %v315 = vunpack.c.l.b16 %v183
  %v316 = vunpack.c.l.b16 %v184
  %v317 = vunpack.c.l.b16 %v185
  %v318 = vunpack.c.l.b16 %v186
  %v319 = vunpack.c.l.b16 %v187
  %v320 = vunpack.c.l.b16 %v188
  %v321 = vunpack.c.l.b16 %v189
  %v322 = vunpack.c.l.b16 %v190
  %v323 = vunpack.c.l.b16 %v191
  %v324 = vunpack.c.l.b16 %v192
  %v325 = vunpack.c.l.b16 %v193
  %v326 = vunpack.c.l.b16 %v194
  %v327 = vunpack.c.l.b16 %v195
  %v328 = vunpack.c.l.b16 %v196
  %v329 = vunpack.c.l.b16 %v197
  %v330 = vunpack.c.l.b16 %v198
  %v331 = vunpack.c.l.b16 %v199
  %v332 = vunpack.c.l.b16 %v200
  %v333 = vunpack.c.l.b16 %v201
  %v334 = vunpack.c.l.b16 %v202
  %v335 = vunpack.c.l.b16 %v203
  %v336 = vunpack.c.l.b16 %v204
  %v337 = vunpack.c.l.b16 %v205
  %v338 = vpack.c.b16 %v275, %v274
  %v339 = vpack.c.b16 %v277, %v276
  %v340 = vpack.c.b16 %v279, %v278
  %v341 = vpack.c.b16 %v281, %v280
  %v342 = vpack.c.b16 %v283, %v282
  %v343 = vpack.c.b16 %v285, %v284
  %v344 = vpack.c.b16 %v287, %v286
  %v345 = vpack.c.b16 %v289, %v288
  %v346 = vpack.c.b16 %v291, %v290
  %v347 = vpack.c.b16 %v293, %v292
  %v348 = vpack.c.b16 %v295, %v294
  %v349 = vpack.c.b16 %v297, %v296
  %v350 = vpack.c.b16 %v299, %v298
  %v351 = vpack.c.b16 %v301, %v300
  %v352 = vpack.c.b16 %v303, %v302
  %v353 = vpack.c.b16 %v305, %v304
  %v354 = vpack.c.b16 %v307, %v306
  %v355 = vpack.c.b16 %v309, %v308
  %v356 = vpack.c.b16 %v311, %v310
  %v357 = vpack.c.b16 %v313, %v312
  %v358 = vpack.c.b16 %v315, %v314
  %v359 = vpack.c.b16 %v317, %v316
  %v360 = vpack.c.b16 %v319, %v318
  %v361 = vpack.c.b16 %v321, %v320
  %v362 = vpack.c.b16 %v323, %v322
  %v363 = vpack.c.b16 %v325, %v324
  %v364 = vpack.c.b16 %v327, %v326
  %v365 = vpack.c.b16 %v329, %v328
  %v366 = vpack.c.b16 %v331, %v330
  %v367 = vpack.c.b16 %v333, %v332
  %v368 = vpack.c.b16 %v335, %v334
  %v369 = vpack.c.b16 %v337, %v336
  %402 = vmatprep.subr.bf16.mxu0 0
  %403 = vmatpush1.bf16.msra.mxu0 %v345
  %404 = vmatprep.subr.bf16.mxu0 0
  %405 = vmatpush1.bf16.msra.mxu0 %v344
  %406 = vmatprep.subr.bf16.mxu0 0
  %407 = vmatpush1.bf16.msra.mxu0 %v343
  %408 = vmatprep.subr.bf16.mxu0 0
  %409 = vmatpush1.bf16.msra.mxu0 %v342
  %410 = vmatprep.subr.bf16.mxu0 0
  %411 = vmatpush1.bf16.msra.mxu0 %v341
  %412 = vmatprep.subr.bf16.mxu0 0
  %413 = vmatpush1.bf16.msra.mxu0 %v340
  %414 = vmatprep.subr.bf16.mxu0 0
  %415 = vmatpush1.bf16.msra.mxu0 %v339
  %416 = vmatprep.subr.bf16.mxu0 0
  %417 = vmatpush1.bf16.msra.mxu0 %v338
  %418 = vmatprep.subr.bf16.mxu0 0
  %419 = vmatpush2.bf16.msra.mxu0 %v353
  %420 = vmatprep.subr.bf16.mxu0 0
  %421 = vmatpush2.bf16.msra.mxu0 %v352
  %422 = vmatprep.subr.bf16.mxu0 0
  %423 = vmatpush2.bf16.msra.mxu0 %v351
  %424 = vmatprep.subr.bf16.mxu0 0
  %425 = vmatpush2.bf16.msra.mxu0 %v350
  %426 = vmatprep.subr.bf16.mxu0 0
  %427 = vmatpush2.bf16.msra.mxu0 %v349
  %428 = vmatprep.subr.bf16.mxu0 0
  %429 = vmatpush2.bf16.msra.mxu0 %v348
  %430 = vmatprep.subr.bf16.mxu0 0
  %431 = vmatpush2.bf16.msra.mxu0 %v347
  %432 = vmatprep.subr.bf16.mxu0 0
  %433 = vmatpush2.bf16.msra.mxu0 %v346
  %434 = vmatprep.mubr.bf16.mxu0 %v135
  %435 = vmatmul.mubr.bf16.gmra.mxu0 %v134
  %v436 = vpop.f32.mrf.mxu0
  %v437 = vadd.f32 %v209, %v436
  %v438 = vpop.f32.mrf.mxu0
  %v439 = vpop.f32.mrf.mxu0
  %v440 = vadd.f32 %v209, %v439
  %v441 = vpop.f32.mrf.mxu0
  %442 = vmatprep.mubr.bf16.mxu0 %v139
  %443 = vmatmul.mubr.bf16.gmra.mxu0 %v138
  %v444 = vpop.f32.mrf.mxu0
  %v445 = vadd.f32 %v209, %v444
  %v446 = vpop.f32.mrf.mxu0
  %v447 = vpop.f32.mrf.mxu0
  %v448 = vadd.f32 %v209, %v447
  %v449 = vpop.f32.mrf.mxu0
  %450 = vdwg.mxu0
  %451 = vmatprep.subr.bf16.mxu0 0
  %452 = vmatpush1.bf16.msra.mxu0 %v361
  %453 = vmatprep.subr.bf16.mxu0 0
  %454 = vmatpush1.bf16.msra.mxu0 %v360
  %455 = vmatprep.subr.bf16.mxu0 0
  %456 = vmatpush1.bf16.msra.mxu0 %v359
  %457 = vmatprep.subr.bf16.mxu0 0
  %458 = vmatpush1.bf16.msra.mxu0 %v358
  %459 = vmatprep.subr.bf16.mxu0 0
  %460 = vmatpush1.bf16.msra.mxu0 %v357
  %461 = vmatprep.subr.bf16.mxu0 0
  %462 = vmatpush1.bf16.msra.mxu0 %v356
  %463 = vmatprep.subr.bf16.mxu0 0
  %464 = vmatpush1.bf16.msra.mxu0 %v355
  %465 = vmatprep.subr.bf16.mxu0 0
  %466 = vmatpush1.bf16.msra.mxu0 %v354
  %467 = vmatprep.subr.bf16.mxu0 0
  %468 = vmatpush2.bf16.msra.mxu0 %v369
  %469 = vmatprep.subr.bf16.mxu0 0
  %470 = vmatpush2.bf16.msra.mxu0 %v368
  %471 = vmatprep.subr.bf16.mxu0 0
  %472 = vmatpush2.bf16.msra.mxu0 %v367
  %473 = vmatprep.subr.bf16.mxu0 0
  %474 = vmatpush2.bf16.msra.mxu0 %v366
  %475 = vmatprep.subr.bf16.mxu0 0
  %476 = vmatpush2.bf16.msra.mxu0 %v365
  %477 = vmatprep.subr.bf16.mxu0 0
  %478 = vmatpush2.bf16.msra.mxu0 %v364
  %479 = vmatprep.subr.bf16.mxu0 0
  %480 = vmatpush2.bf16.msra.mxu0 %v363
  %481 = vmatprep.subr.bf16.mxu0 0
  %482 = vmatpush2.bf16.msra.mxu0 %v362
  %483 = vmatprep.mubr.bf16.mxu0 %v137
  %484 = vmatmul.mubr.bf16.gmra.mxu0 %v136
  %v485 = vpop.f32.mrf.mxu0
  %v486 = vadd.f32 %v437, %v485
  %v487 = vpop.f32.mrf.mxu0
  %v488 = vpop.f32.mrf.mxu0
  %v489 = vadd.f32 %v440, %v488
  %v490 = vpop.f32.mrf.mxu0
  %491 = vmatprep.mubr.bf16.mxu0 %v141
  %492 = vmatmul.mubr.bf16.gmra.mxu0 %v140
  %v493 = vpop.f32.mrf.mxu0
  %v494 = vadd.f32 %v445, %v493
  %v495 = vpop.f32.mrf.mxu0
  %v496 = vpop.f32.mrf.mxu0
  %v497 = vadd.f32 %v448, %v496
  %v498 = vpop.f32.mrf.mxu0
  %499 = vdwg.mxu0
  %v500 = vmax.f32 %v486, 0.0
  %v501 = vmax.f32 %v489, 0.0
  %v502 = vmax.f32 %v494, 0.0
  %v503 = vmax.f32 %v497, 0.0
  %v504 = vlaneseq
  %v505 = vshrl.u32 %v504, 7
  %v506 = vadd.s32 %v505, 8
  %v507 = vadd.s32 %v505, 16
  %v508 = vadd.s32 %v505, 24
  %vm509 = vcmp.lt.s32.totalorder %v505, 0
  %v510 = vsub.s32 0, %v505
  %v511 = vsel %vm509, %v510, %v505
  %v512 = vshrl.u32 %v511, 4
  %v513 = vand.u32 %v511, 15
  %v514 = vsub.s32 0, %v513
  %v515 = vsel %vm509, %v514, %v513
  %vm516 = vcmp.lt.s32.totalorder %v506, 0
  %v517 = vsub.s32 0, %v506
  %v518 = vsel %vm516, %v517, %v506
  %v519 = vshrl.u32 %v518, 4
  %v520 = vand.u32 %v518, 15
  %v521 = vsub.s32 0, %v520
  %v522 = vsel %vm516, %v521, %v520
  %vm523 = vcmp.lt.s32.totalorder %v507, 0
  %v524 = vsub.s32 0, %v507
  %v525 = vsel %vm523, %v524, %v507
  %v526 = vshrl.u32 %v525, 4
  %v527 = vand.u32 %v525, 15
  %v528 = vsub.s32 0, %v527
  %v529 = vsel %vm523, %v528, %v527
  %vm530 = vcmp.lt.s32.totalorder %v508, 0
  %v531 = vsub.s32 0, %v508
  %v532 = vsel %vm530, %v531, %v508
  %v533 = vshrl.u32 %v532, 4
  %v534 = vand.u32 %v532, 15
  %v535 = vsub.s32 0, %v534
  %v536 = vsel %vm530, %v535, %v534
  %vm537 = vcmp.ne.s32.totalorder %v515, 0
  %vm538 = vcmp.ne.s32.totalorder %v522, 0
  %vm539 = vcmp.ne.s32.totalorder %v529, 0
  %vm540 = vcmp.ne.s32.totalorder %v536, 0
  %vm541 = vcmp.lt.s32.totalorder %v515, 0
  %vm542 = vcmp.lt.s32.totalorder %v522, 0
  %vm543 = vcmp.lt.s32.totalorder %v529, 0
  %vm544 = vcmp.lt.s32.totalorder %v536, 0
  %vm545 = vmand %vm541, %vm537
  %vm546 = vmand %vm542, %vm538
  %vm547 = vmand %vm543, %vm539
  %vm548 = vmand %vm544, %vm540
  %v549 = vadd.s32 %v515, 16
  %v550 = vadd.s32 %v522, 16
  %v551 = vadd.s32 %v529, 16
  %v552 = vadd.s32 %v536, 16
  %v553 = vsel %vm545, %v549, %v515
  %v554 = vsel %vm546, %v550, %v522
  %v555 = vsel %vm547, %v551, %v529
  %v556 = vsel %vm548, %v552, %v536
  %vm557 = vcmp.eq.s32.totalorder %v553, 0
  %vm558 = vcmp.eq.s32.totalorder %v554, 0
  %vm559 = vcmp.eq.s32.totalorder %v555, 0
  %vm560 = vcmp.eq.s32.totalorder %v556, 0
  %v561 = vrot.slane %v500, 7
  %v562 = vrot.slane %v501, 7
  %v563 = vrot.slane %v502, 7
  %v564 = vrot.slane %v503, 7
  %vm565 = vcmp.lt.s32.totalorder %v505, 1
  %v566 = vsel %vm565, %v563, %v564
  %v567 = vsel %vm565, %v562, %v563
  %v568 = vsel %vm565, %v561, %v562
  %v569 = vsel %vm565, %v564, %v561
  %v570 = vsel %vm557, 0.0, %v569
  %v571 = vsel %vm558, 0.0, %v568
  %v572 = vsel %vm559, 0.0, %v567
  %v573 = vsel %vm560, 0.0, %v566
  %vm574 = vcmp.eq.s32.totalorder %v553, 15
  %vm575 = vcmp.eq.s32.totalorder %v554, 15
  %vm576 = vcmp.eq.s32.totalorder %v555, 15
  %vm577 = vcmp.eq.s32.totalorder %v556, 15
  %v578 = vrot.slane %v500, 1
  %v579 = vrot.slane %v501, 1
  %v580 = vrot.slane %v502, 1
  %v581 = vrot.slane %v503, 1
  %vm582 = vcmp.lt.s32.totalorder %v505, 7
  %v583 = vsel %vm582, %v580, %v581
  %v584 = vsel %vm582, %v579, %v580
  %v585 = vsel %vm582, %v578, %v579
  %v586 = vsel %vm582, %v581, %v578
  %v587 = vsel %vm574, 0.0, %v585
  %v588 = vsel %vm575, 0.0, %v584
  %v589 = vsel %vm576, 0.0, %v583
  %v590 = vsel %vm577, 0.0, %v586
  %v591 = vpack.c.bf16 %v571, %v570
  %v592 = vpack.c.bf16 %v501, %v500
  %v593 = vpack.c.bf16 %v588, %v587
  %v594 = vpack.c.bf16 %v573, %v572
  %v595 = vpack.c.bf16 %v503, %v502
  %v596 = vpack.c.bf16 %v590, %v589
  %v597 = vld [vmem:[%s4] sm:$0xf]
  %v598 = vld [vmem:[%s4 + $0x4] sm:$0xf]
  %v599 = vld [vmem:[%s4 + $0x8] sm:$0xf]
  %v600 = vld [vmem:[%s4 + $0xc] sm:$0xf]
  %v601 = vld [vmem:[%s4 + $0x10] sm:$0xf]
  %v602 = vld [vmem:[%s4 + $0x14] sm:$0xf]
  %v603 = vld [vmem:[%s4 + $0x18] sm:$0xf]
  %v604 = vld [vmem:[%s4 + $0x1c] sm:$0xf]
  %v605 = vld [vmem:[%s4 + $0x20] sm:$0xf]
  %v606 = vld [vmem:[%s4 + $0x24] sm:$0xf]
  %v607 = vld [vmem:[%s4 + $0x28] sm:$0xf]
  %v608 = vld [vmem:[%s4 + $0x2c] sm:$0xf]
  %v609 = vld [vmem:[%s4 + $0x30] sm:$0xf]
  %v610 = vld [vmem:[%s4 + $0x34] sm:$0xf]
  %v611 = vld [vmem:[%s4 + $0x38] sm:$0xf]
  %v612 = vld [vmem:[%s4 + $0x3c] sm:$0xf]
  %v613 = vld [vmem:[%s4 + $0x40] sm:$0xf]
  %v614 = vld [vmem:[%s4 + $0x44] sm:$0xf]
  %v615 = vld [vmem:[%s4 + $0x48] sm:$0xf]
  %v616 = vld [vmem:[%s4 + $0x4c] sm:$0xf]
  %v617 = vld [vmem:[%s4 + $0x50] sm:$0xf]
  %v618 = vld [vmem:[%s4 + $0x54] sm:$0xf]
  %v619 = vld [vmem:[%s4 + $0x58] sm:$0xf]
  %v620 = vld [vmem:[%s4 + $0x5c] sm:$0xf]
  %v621 = vld [vmem:[%s4 + $0x60] sm:$0xf]
  %v622 = vld [vmem:[%s4 + $0x64] sm:$0xf]
  %v623 = vld [vmem:[%s4 + $0x68] sm:$0xf]
  %v624 = vld [vmem:[%s4 + $0x6c] sm:$0xf]
  %v625 = vld [vmem:[%s4 + $0x70] sm:$0xf]
  %v626 = vld [vmem:[%s4 + $0x74] sm:$0xf]
  %v627 = vld [vmem:[%s4 + $0x78] sm:$0xf]
  %v628 = vld [vmem:[%s4 + $0x7c] sm:$0xf]
  %v629 = vld [vmem:[%s4 + $0x80] sm:$0xf]
  %v630 = vld [vmem:[%s4 + $0x84] sm:$0xf]
  %v631 = vld [vmem:[%s4 + $0x88] sm:$0xf]
  %v632 = vld [vmem:[%s4 + $0x8c] sm:$0xf]
  %v633 = vld [vmem:[%s4 + $0x90] sm:$0xf]
  %v634 = vld [vmem:[%s4 + $0x94] sm:$0xf]
  %v635 = vld [vmem:[%s4 + $0x98] sm:$0xf]
  %v636 = vld [vmem:[%s4 + $0x9c] sm:$0xf]
  %v637 = vld [vmem:[%s4 + $0xa0] sm:$0xf]
  %v638 = vld [vmem:[%s4 + $0xa4] sm:$0xf]
  %v639 = vld [vmem:[%s4 + $0xa8] sm:$0xf]
  %v640 = vld [vmem:[%s4 + $0xac] sm:$0xf]
  %v641 = vld [vmem:[%s4 + $0xb0] sm:$0xf]
  %v642 = vld [vmem:[%s4 + $0xb4] sm:$0xf]
  %v643 = vld [vmem:[%s4 + $0xb8] sm:$0xf]
  %v644 = vld [vmem:[%s4 + $0xbc] sm:$0xf]
  %v645 = vlaneseq
  %v646 = vshrl.u32 %v645, 7
  %v647 = vsub.s32 0, %v646
  %v648 = vrot.slane %v53, %v647
  %v697 = vunpack.c.l.b16 %v597
  %v698 = vunpack.c.l.b16 %v598
  %v699 = vunpack.c.l.b16 %v599
  %v700 = vunpack.c.l.b16 %v600
  %v701 = vunpack.c.l.b16 %v601
  %v702 = vunpack.c.l.b16 %v602
  %v703 = vunpack.c.l.b16 %v603
  %v704 = vunpack.c.l.b16 %v604
  %v705 = vunpack.c.l.b16 %v605
  %v706 = vunpack.c.l.b16 %v606
  %v707 = vunpack.c.l.b16 %v607
  %v708 = vunpack.c.l.b16 %v608
  %v709 = vunpack.c.l.b16 %v609
  %v710 = vunpack.c.l.b16 %v610
  %v711 = vunpack.c.l.b16 %v611
  %v712 = vunpack.c.l.b16 %v612
  %v713 = vunpack.c.l.b16 %v613
  %v714 = vunpack.c.l.b16 %v614
  %v715 = vunpack.c.l.b16 %v615
  %v716 = vunpack.c.l.b16 %v616
  %v717 = vunpack.c.l.b16 %v617
  %v718 = vunpack.c.l.b16 %v618
  %v719 = vunpack.c.l.b16 %v619
  %v720 = vunpack.c.l.b16 %v620
  %v721 = vunpack.c.l.b16 %v621
  %v722 = vunpack.c.l.b16 %v622
  %v723 = vunpack.c.l.b16 %v623
  %v724 = vunpack.c.l.b16 %v624
  %v725 = vunpack.c.l.b16 %v625
  %v726 = vunpack.c.l.b16 %v626
  %v727 = vunpack.c.l.b16 %v627
  %v728 = vunpack.c.l.b16 %v628
  %v729 = vunpack.c.l.b16 %v629
  %v730 = vunpack.c.l.b16 %v630
  %v731 = vunpack.c.l.b16 %v631
  %v732 = vunpack.c.l.b16 %v632
  %v733 = vunpack.c.l.b16 %v633
  %v734 = vunpack.c.l.b16 %v634
  %v735 = vunpack.c.l.b16 %v635
  %v736 = vunpack.c.l.b16 %v636
  %v737 = vunpack.c.l.b16 %v637
  %v738 = vunpack.c.l.b16 %v638
  %v739 = vunpack.c.l.b16 %v639
  %v740 = vunpack.c.l.b16 %v640
  %v741 = vunpack.c.l.b16 %v641
  %v742 = vunpack.c.l.b16 %v642
  %v743 = vunpack.c.l.b16 %v643
  %v744 = vunpack.c.l.b16 %v644
  %v745 = vpack.c.b16 %v698, %v697
  %v746 = vpack.c.b16 %v700, %v699
  %v747 = vpack.c.b16 %v702, %v701
  %v748 = vpack.c.b16 %v704, %v703
  %v749 = vpack.c.b16 %v706, %v705
  %v750 = vpack.c.b16 %v708, %v707
  %v751 = vpack.c.b16 %v710, %v709
  %v752 = vpack.c.b16 %v712, %v711
  %v753 = vpack.c.b16 %v714, %v713
  %v754 = vpack.c.b16 %v716, %v715
  %v755 = vpack.c.b16 %v718, %v717
  %v756 = vpack.c.b16 %v720, %v719
  %v757 = vpack.c.b16 %v722, %v721
  %v758 = vpack.c.b16 %v724, %v723
  %v759 = vpack.c.b16 %v726, %v725
  %v760 = vpack.c.b16 %v728, %v727
  %v761 = vpack.c.b16 %v730, %v729
  %v762 = vpack.c.b16 %v732, %v731
  %v763 = vpack.c.b16 %v734, %v733
  %v764 = vpack.c.b16 %v736, %v735
  %v765 = vpack.c.b16 %v738, %v737
  %v766 = vpack.c.b16 %v740, %v739
  %v767 = vpack.c.b16 %v742, %v741
  %v768 = vpack.c.b16 %v744, %v743
  %793 = vmatprep.subr.bf16.mxu0 0
  %794 = vmatpush1.bf16.msra.mxu0 %v752
  %795 = vmatprep.subr.bf16.mxu0 0
  %796 = vmatpush1.bf16.msra.mxu0 %v751
  %797 = vmatprep.subr.bf16.mxu0 0
  %798 = vmatpush1.bf16.msra.mxu0 %v750
  %799 = vmatprep.subr.bf16.mxu0 0
  %800 = vmatpush1.bf16.msra.mxu0 %v749
  %801 = vmatprep.subr.bf16.mxu0 0
  %802 = vmatpush1.bf16.msra.mxu0 %v748
  %803 = vmatprep.subr.bf16.mxu0 0
  %804 = vmatpush1.bf16.msra.mxu0 %v747
  %805 = vmatprep.subr.bf16.mxu0 0
  %806 = vmatpush1.bf16.msra.mxu0 %v746
  %807 = vmatprep.subr.bf16.mxu0 0
  %808 = vmatpush1.bf16.msra.mxu0 %v745
  %809 = vmatprep.subr.bf16.mxu0 0
  %810 = vmatpush2.bf16.msra.mxu0 %v760
  %811 = vmatprep.subr.bf16.mxu0 0
  %812 = vmatpush2.bf16.msra.mxu0 %v759
  %813 = vmatprep.subr.bf16.mxu0 0
  %814 = vmatpush2.bf16.msra.mxu0 %v758
  %815 = vmatprep.subr.bf16.mxu0 0
  %816 = vmatpush2.bf16.msra.mxu0 %v757
  %817 = vmatprep.subr.bf16.mxu0 0
  %818 = vmatpush2.bf16.msra.mxu0 %v756
  %819 = vmatprep.subr.bf16.mxu0 0
  %820 = vmatpush2.bf16.msra.mxu0 %v755
  %821 = vmatprep.subr.bf16.mxu0 0
  %822 = vmatpush2.bf16.msra.mxu0 %v754
  %823 = vmatprep.subr.bf16.mxu0 0
  %824 = vmatpush2.bf16.msra.mxu0 %v753
  %825 = vmatprep.mubr.bf16.mxu0 %v592
  %826 = vmatmul.mubr.bf16.gmra.mxu0 %v591
  %v827 = vpop.f32.mrf.mxu0
  %v828 = vadd.f32 %v648, %v827
  %v829 = vpop.f32.mrf.mxu0
  %v830 = vpop.f32.mrf.mxu0
  %v831 = vadd.f32 %v648, %v830
  %v832 = vpop.f32.mrf.mxu0
  %833 = vmatprep.mubr.bf16.mxu0 %v595
  %834 = vmatmul.mubr.bf16.gmra.mxu0 %v594
  %v835 = vpop.f32.mrf.mxu0
  %v836 = vadd.f32 %v648, %v835
  %v837 = vpop.f32.mrf.mxu0
  %v838 = vpop.f32.mrf.mxu0
  %v839 = vadd.f32 %v648, %v838
  %v840 = vpop.f32.mrf.mxu0
  %841 = vdwg.mxu0
  %842 = vmatprep.subr.bf16.mxu0 0
  %843 = vmatpush1.bf16.msra.mxu0 %v768
  %844 = vmatprep.subr.bf16.mxu0 0
  %845 = vmatpush1.bf16.msra.mxu0 %v767
  %846 = vmatprep.subr.bf16.mxu0 0
  %847 = vmatpush1.bf16.msra.mxu0 %v766
  %848 = vmatprep.subr.bf16.mxu0 0
  %849 = vmatpush1.bf16.msra.mxu0 %v765
  %850 = vmatprep.subr.bf16.mxu0 0
  %851 = vmatpush1.bf16.msra.mxu0 %v764
  %852 = vmatprep.subr.bf16.mxu0 0
  %853 = vmatpush1.bf16.msra.mxu0 %v763
  %854 = vmatprep.subr.bf16.mxu0 0
  %855 = vmatpush1.bf16.msra.mxu0 %v762
  %856 = vmatprep.subr.bf16.mxu0 0
  %857 = vmatpush1.bf16.msra.mxu0 %v761
  %858 = vmatprep.subr.bf16.mxu0 0
  %859 = vmatpush2.bf16.msra.mxu0 0
  %860 = vmatprep.subr.bf16.mxu0 0
  %861 = vmatpush2.bf16.msra.mxu0 0
  %862 = vmatprep.subr.bf16.mxu0 0
  %863 = vmatpush2.bf16.msra.mxu0 0
  %864 = vmatprep.subr.bf16.mxu0 0
  %865 = vmatpush2.bf16.msra.mxu0 0
  %866 = vmatprep.subr.bf16.mxu0 0
  %867 = vmatpush2.bf16.msra.mxu0 0
  %868 = vmatprep.subr.bf16.mxu0 0
  %869 = vmatpush2.bf16.msra.mxu0 0
  %870 = vmatprep.subr.bf16.mxu0 0
  %871 = vmatpush2.bf16.msra.mxu0 0
  %872 = vmatprep.subr.bf16.mxu0 0
  %873 = vmatpush2.bf16.msra.mxu0 0
  %874 = vmatprep.mubr.bf16.mxu0 0
  %875 = vmatmul.mubr.bf16.gmra.mxu0 %v593
  %v876 = vpop.f32.mrf.mxu0
  %v877 = vadd.f32 %v828, %v876
  %v878 = vpop.f32.mrf.mxu0
  %v879 = vpop.f32.mrf.mxu0
  %v880 = vadd.f32 %v831, %v879
  %v881 = vpop.f32.mrf.mxu0
  %882 = vmatprep.mubr.bf16.mxu0 0
  %883 = vmatmul.mubr.bf16.gmra.mxu0 %v596
  %v884 = vpop.f32.mrf.mxu0
  %v885 = vadd.f32 %v836, %v884
  %v886 = vpop.f32.mrf.mxu0
  %v887 = vpop.f32.mrf.mxu0
  %v888 = vadd.f32 %v839, %v887
  %v889 = vpop.f32.mrf.mxu0
  %890 = vdwg.mxu0
  %v891 = vmax.f32 %v877, 0.0
  %v892 = vmax.f32 %v880, 0.0
  %v893 = vmax.f32 %v885, 0.0
  %v894 = vmax.f32 %v888, 0.0
  %v895 = vpack.c.bf16 %v892, %v891
  %v896 = vpack.c.bf16 %v894, %v893
  %v897 = vld [vmem:[%s5] sm:$0xff]
  %v898 = vld [vmem:[%s5 + $0x8] sm:$0xff]
  %v899 = vld [vmem:[%s5 + $0x10] sm:$0xff]
  %v900 = vld [vmem:[%s5 + $0x18] sm:$0xff]
  %v901 = vld [vmem:[%s5 + $0x20] sm:$0xff]
  %v902 = vld [vmem:[%s5 + $0x28] sm:$0xff]
  %v903 = vld [vmem:[%s5 + $0x30] sm:$0xff]
  %v904 = vld [vmem:[%s5 + $0x38] sm:$0xff]
  %v905 = vld [vmem:[%s5 + $0x40] sm:$0xff]
  %v906 = vld [vmem:[%s5 + $0x48] sm:$0xff]
  %v907 = vld [vmem:[%s5 + $0x50] sm:$0xff]
  %v908 = vld [vmem:[%s5 + $0x58] sm:$0xff]
  %v909 = vld [vmem:[%s5 + $0x60] sm:$0xff]
  %v910 = vld [vmem:[%s5 + $0x68] sm:$0xff]
  %v911 = vld [vmem:[%s5 + $0x70] sm:$0xff]
  %v912 = vld [vmem:[%s5 + $0x78] sm:$0xff]
  %v913 = vlaneseq
  %v914 = vshrl.u32 %v913, 7
  %v915 = vsub.s32 4, %v914
  %v916 = vrot.slane %v50, %v915
  %v917 = vlaneseq
  %v918 = vshrl.u32 %v917, 7
  %v919 = vsub.s32 4, %v918
  %v920 = vrot.slane %v51, %v919
  %v921 = vmul.f32 %v34, %v916
  %v922 = vmul.f32 %v35, %v920
  %v923 = vmul.f32 %v36, %v916
  %v924 = vmul.f32 %v37, %v920
  %v925 = vmul.f32 %v38, %v916
  %v926 = vmul.f32 %v39, %v920
  %v927 = vmul.f32 %v40, %v916
  %v928 = vmul.f32 %v41, %v920
  %v929 = vlaneseq
  %v930 = vshrl.u32 %v929, 7
  %v931 = vsub.s32 5, %v930
  %v932 = vrot.slane %v50, %v931
  %v933 = vlaneseq
  %v934 = vshrl.u32 %v933, 7
  %v935 = vsub.s32 5, %v934
  %v936 = vrot.slane %v51, %v935
  %v937 = vadd.f32 %v921, %v932
  %v938 = vadd.f32 %v922, %v936
  %v939 = vadd.f32 %v923, %v932
  %v940 = vadd.f32 %v924, %v936
  %v941 = vadd.f32 %v925, %v932
  %v942 = vadd.f32 %v926, %v936
  %v943 = vadd.f32 %v927, %v932
  %v944 = vadd.f32 %v928, %v936
  %v945 = vmax.f32 %v937, 0.0
  %v946 = vmax.f32 %v938, 0.0
  %v947 = vmax.f32 %v939, 0.0
  %v948 = vmax.f32 %v940, 0.0
  %v949 = vmax.f32 %v941, 0.0
  %v950 = vmax.f32 %v942, 0.0
  %v951 = vmax.f32 %v943, 0.0
  %v952 = vmax.f32 %v944, 0.0
  %v953 = vlaneseq
  %v954 = vshrl.u32 %v953, 7
  %v955 = vsub.s32 6, %v954
  %v956 = vrot.slane %v50, %v955
  %v957 = vlaneseq
  %v958 = vshrl.u32 %v957, 7
  %v959 = vsub.s32 6, %v958
  %v960 = vrot.slane %v51, %v959
  %v961 = vmul.f32 %v42, %v956
  %v962 = vmul.f32 %v43, %v960
  %v963 = vmul.f32 %v44, %v956
  %v964 = vmul.f32 %v45, %v960
  %v965 = vmul.f32 %v46, %v956
  %v966 = vmul.f32 %v47, %v960
  %v967 = vmul.f32 %v48, %v956
  %v968 = vmul.f32 %v49, %v960
  %v969 = vlaneseq
  %v970 = vshrl.u32 %v969, 7
  %v971 = vsub.s32 7, %v970
  %v972 = vrot.slane %v50, %v971
  %v973 = vlaneseq
  %v974 = vshrl.u32 %v973, 7
  %v975 = vsub.s32 7, %v974
  %v976 = vrot.slane %v51, %v975
  %v977 = vadd.f32 %v961, %v972
  %v978 = vadd.f32 %v962, %v976
  %v979 = vadd.f32 %v963, %v972
  %v980 = vadd.f32 %v964, %v976
  %v981 = vadd.f32 %v965, %v972
  %v982 = vadd.f32 %v966, %v976
  %v983 = vadd.f32 %v967, %v972
  %v984 = vadd.f32 %v968, %v976
  %v985 = vmax.f32 %v977, 0.0
  %v986 = vmax.f32 %v978, 0.0
  %v987 = vmax.f32 %v979, 0.0
  %v988 = vmax.f32 %v980, 0.0
  %v989 = vmax.f32 %v981, 0.0
  %v990 = vmax.f32 %v982, 0.0
  %v991 = vmax.f32 %v983, 0.0
  %v992 = vmax.f32 %v984, 0.0
  %v993 = vpack.c.bf16 %v947, %v945
  %v994 = vpack.c.bf16 %v948, %v946
  %v995 = vpack.c.bf16 %v987, %v985
  %v996 = vpack.c.bf16 %v988, %v986
  %v997 = vpack.c.bf16 %v951, %v949
  %v998 = vpack.c.bf16 %v952, %v950
  %v999 = vpack.c.bf16 %v991, %v989
  %v1000 = vpack.c.bf16 %v992, %v990
  %v1001 = vld [vmem:[%s6] sm:$0xff]
  %v1002 = vld [vmem:[%s6 + $0x8] sm:$0xff]
  %v1003 = vld [vmem:[%s6 + $0x10] sm:$0xff]
  %v1004 = vld [vmem:[%s6 + $0x18] sm:$0xff]
  %v1005 = vld [vmem:[%s6 + $0x20] sm:$0xff]
  %v1006 = vld [vmem:[%s6 + $0x28] sm:$0xff]
  %v1007 = vld [vmem:[%s6 + $0x30] sm:$0xff]
  %v1008 = vld [vmem:[%s6 + $0x38] sm:$0xff]
  %v1009 = vld [vmem:[%s6 + $0x40] sm:$0xff]
  %v1010 = vld [vmem:[%s6 + $0x48] sm:$0xff]
  %v1011 = vld [vmem:[%s6 + $0x50] sm:$0xff]
  %v1012 = vld [vmem:[%s6 + $0x58] sm:$0xff]
  %v1013 = vld [vmem:[%s6 + $0x60] sm:$0xff]
  %v1014 = vld [vmem:[%s6 + $0x68] sm:$0xff]
  %v1015 = vld [vmem:[%s6 + $0x70] sm:$0xff]
  %v1016 = vld [vmem:[%s6 + $0x78] sm:$0xff]
  %v1017 = vld [vmem:[%s6 + $0x80] sm:$0xff]
  %v1018 = vld [vmem:[%s6 + $0x88] sm:$0xff]
  %v1019 = vld [vmem:[%s6 + $0x90] sm:$0xff]
  %v1020 = vld [vmem:[%s6 + $0x98] sm:$0xff]
  %v1021 = vld [vmem:[%s6 + $0xa0] sm:$0xff]
  %v1022 = vld [vmem:[%s6 + $0xa8] sm:$0xff]
  %v1023 = vld [vmem:[%s6 + $0xb0] sm:$0xff]
  %v1024 = vld [vmem:[%s6 + $0xb8] sm:$0xff]
  %v1025 = vld [vmem:[%s6 + $0xc0] sm:$0xff]
  %v1026 = vld [vmem:[%s6 + $0xc8] sm:$0xff]
  %v1027 = vld [vmem:[%s6 + $0xd0] sm:$0xff]
  %v1028 = vld [vmem:[%s6 + $0xd8] sm:$0xff]
  %v1029 = vld [vmem:[%s6 + $0xe0] sm:$0xff]
  %v1030 = vld [vmem:[%s6 + $0xe8] sm:$0xff]
  %v1031 = vld [vmem:[%s6 + $0xf0] sm:$0xff]
  %v1032 = vld [vmem:[%s6 + $0xf8] sm:$0xff]
  %v1033 = vld [vmem:[%s6 + $0x100] sm:$0xff]
  %v1034 = vld [vmem:[%s6 + $0x108] sm:$0xff]
  %v1035 = vld [vmem:[%s6 + $0x110] sm:$0xff]
  %v1036 = vld [vmem:[%s6 + $0x118] sm:$0xff]
  %v1037 = vld [vmem:[%s6 + $0x120] sm:$0xff]
  %v1038 = vld [vmem:[%s6 + $0x128] sm:$0xff]
  %v1039 = vld [vmem:[%s6 + $0x130] sm:$0xff]
  %v1040 = vld [vmem:[%s6 + $0x138] sm:$0xff]
  %v1041 = vld [vmem:[%s6 + $0x140] sm:$0xff]
  %v1042 = vld [vmem:[%s6 + $0x148] sm:$0xff]
  %v1043 = vld [vmem:[%s6 + $0x150] sm:$0xff]
  %v1044 = vld [vmem:[%s6 + $0x158] sm:$0xff]
  %v1045 = vld [vmem:[%s6 + $0x160] sm:$0xff]
  %v1046 = vld [vmem:[%s6 + $0x168] sm:$0xff]
  %v1047 = vld [vmem:[%s6 + $0x170] sm:$0xff]
  %v1048 = vld [vmem:[%s6 + $0x178] sm:$0xff]
  %v1049 = vld [vmem:[%s6 + $0x180] sm:$0xff]
  %v1050 = vld [vmem:[%s6 + $0x188] sm:$0xff]
  %v1051 = vld [vmem:[%s6 + $0x190] sm:$0xff]
  %v1052 = vld [vmem:[%s6 + $0x198] sm:$0xff]
  %v1053 = vld [vmem:[%s6 + $0x1a0] sm:$0xff]
  %v1054 = vld [vmem:[%s6 + $0x1a8] sm:$0xff]
  %v1055 = vld [vmem:[%s6 + $0x1b0] sm:$0xff]
  %v1056 = vld [vmem:[%s6 + $0x1b8] sm:$0xff]
  %v1057 = vld [vmem:[%s6 + $0x1c0] sm:$0xff]
  %v1058 = vld [vmem:[%s6 + $0x1c8] sm:$0xff]
  %v1059 = vld [vmem:[%s6 + $0x1d0] sm:$0xff]
  %v1060 = vld [vmem:[%s6 + $0x1d8] sm:$0xff]
  %v1061 = vld [vmem:[%s6 + $0x1e0] sm:$0xff]
  %v1062 = vld [vmem:[%s6 + $0x1e8] sm:$0xff]
  %v1063 = vld [vmem:[%s6 + $0x1f0] sm:$0xff]
  %v1064 = vld [vmem:[%s6 + $0x1f8] sm:$0xff]
  %v1129 = vunpack.c.l.b16 %v1001
  %v1130 = vunpack.c.h.b16 %v1001
  %v1131 = vunpack.c.l.b16 %v1002
  %v1132 = vunpack.c.h.b16 %v1002
  %v1133 = vunpack.c.l.b16 %v1003
  %v1134 = vunpack.c.h.b16 %v1003
  %v1135 = vunpack.c.l.b16 %v1004
  %v1136 = vunpack.c.h.b16 %v1004
  %v1137 = vunpack.c.l.b16 %v1005
  %v1138 = vunpack.c.h.b16 %v1005
  %v1139 = vunpack.c.l.b16 %v1006
  %v1140 = vunpack.c.h.b16 %v1006
  %v1141 = vunpack.c.l.b16 %v1007
  %v1142 = vunpack.c.h.b16 %v1007
  %v1143 = vunpack.c.l.b16 %v1008
  %v1144 = vunpack.c.h.b16 %v1008
  %v1145 = vunpack.c.l.b16 %v1009
  %v1146 = vunpack.c.h.b16 %v1009
  %v1147 = vunpack.c.l.b16 %v1010
  %v1148 = vunpack.c.h.b16 %v1010
  %v1149 = vunpack.c.l.b16 %v1011
  %v1150 = vunpack.c.h.b16 %v1011
  %v1151 = vunpack.c.l.b16 %v1012
  %v1152 = vunpack.c.h.b16 %v1012
  %v1153 = vunpack.c.l.b16 %v1013
  %v1154 = vunpack.c.h.b16 %v1013
  %v1155 = vunpack.c.l.b16 %v1014
  %v1156 = vunpack.c.h.b16 %v1014
  %v1157 = vunpack.c.l.b16 %v1015
  %v1158 = vunpack.c.h.b16 %v1015
  %v1159 = vunpack.c.l.b16 %v1016
  %v1160 = vunpack.c.h.b16 %v1016
  %v1161 = vunpack.c.l.b16 %v1017
  %v1162 = vunpack.c.h.b16 %v1017
  %v1163 = vunpack.c.l.b16 %v1018
  %v1164 = vunpack.c.h.b16 %v1018
  %v1165 = vunpack.c.l.b16 %v1019
  %v1166 = vunpack.c.h.b16 %v1019
  %v1167 = vunpack.c.l.b16 %v1020
  %v1168 = vunpack.c.h.b16 %v1020
  %v1169 = vunpack.c.l.b16 %v1021
  %v1170 = vunpack.c.h.b16 %v1021
  %v1171 = vunpack.c.l.b16 %v1022
  %v1172 = vunpack.c.h.b16 %v1022
  %v1173 = vunpack.c.l.b16 %v1023
  %v1174 = vunpack.c.h.b16 %v1023
  %v1175 = vunpack.c.l.b16 %v1024
  %v1176 = vunpack.c.h.b16 %v1024
  %v1177 = vunpack.c.l.b16 %v1025
  %v1178 = vunpack.c.h.b16 %v1025
  %v1179 = vunpack.c.l.b16 %v1026
  %v1180 = vunpack.c.h.b16 %v1026
  %v1181 = vunpack.c.l.b16 %v1027
  %v1182 = vunpack.c.h.b16 %v1027
  %v1183 = vunpack.c.l.b16 %v1028
  %v1184 = vunpack.c.h.b16 %v1028
  %v1185 = vunpack.c.l.b16 %v1029
  %v1186 = vunpack.c.h.b16 %v1029
  %v1187 = vunpack.c.l.b16 %v1030
  %v1188 = vunpack.c.h.b16 %v1030
  %v1189 = vunpack.c.l.b16 %v1031
  %v1190 = vunpack.c.h.b16 %v1031
  %v1191 = vunpack.c.l.b16 %v1032
  %v1192 = vunpack.c.h.b16 %v1032
  %v1193 = vunpack.c.l.b16 %v1033
  %v1194 = vunpack.c.h.b16 %v1033
  %v1195 = vunpack.c.l.b16 %v1034
  %v1196 = vunpack.c.h.b16 %v1034
  %v1197 = vunpack.c.l.b16 %v1035
  %v1198 = vunpack.c.h.b16 %v1035
  %v1199 = vunpack.c.l.b16 %v1036
  %v1200 = vunpack.c.h.b16 %v1036
  %v1201 = vunpack.c.l.b16 %v1037
  %v1202 = vunpack.c.h.b16 %v1037
  %v1203 = vunpack.c.l.b16 %v1038
  %v1204 = vunpack.c.h.b16 %v1038
  %v1205 = vunpack.c.l.b16 %v1039
  %v1206 = vunpack.c.h.b16 %v1039
  %v1207 = vunpack.c.l.b16 %v1040
  %v1208 = vunpack.c.h.b16 %v1040
  %v1209 = vunpack.c.l.b16 %v1041
  %v1210 = vunpack.c.h.b16 %v1041
  %v1211 = vunpack.c.l.b16 %v1042
  %v1212 = vunpack.c.h.b16 %v1042
  %v1213 = vunpack.c.l.b16 %v1043
  %v1214 = vunpack.c.h.b16 %v1043
  %v1215 = vunpack.c.l.b16 %v1044
  %v1216 = vunpack.c.h.b16 %v1044
  %v1217 = vunpack.c.l.b16 %v1045
  %v1218 = vunpack.c.h.b16 %v1045
  %v1219 = vunpack.c.l.b16 %v1046
  %v1220 = vunpack.c.h.b16 %v1046
  %v1221 = vunpack.c.l.b16 %v1047
  %v1222 = vunpack.c.h.b16 %v1047
  %v1223 = vunpack.c.l.b16 %v1048
  %v1224 = vunpack.c.h.b16 %v1048
  %v1225 = vunpack.c.l.b16 %v1049
  %v1226 = vunpack.c.h.b16 %v1049
  %v1227 = vunpack.c.l.b16 %v1050
  %v1228 = vunpack.c.h.b16 %v1050
  %v1229 = vunpack.c.l.b16 %v1051
  %v1230 = vunpack.c.h.b16 %v1051
  %v1231 = vunpack.c.l.b16 %v1052
  %v1232 = vunpack.c.h.b16 %v1052
  %v1233 = vunpack.c.l.b16 %v1053
  %v1234 = vunpack.c.h.b16 %v1053
  %v1235 = vunpack.c.l.b16 %v1054
  %v1236 = vunpack.c.h.b16 %v1054
  %v1237 = vunpack.c.l.b16 %v1055
  %v1238 = vunpack.c.h.b16 %v1055
  %v1239 = vunpack.c.l.b16 %v1056
  %v1240 = vunpack.c.h.b16 %v1056
  %v1241 = vunpack.c.l.b16 %v1057
  %v1242 = vunpack.c.h.b16 %v1057
  %v1243 = vunpack.c.l.b16 %v1058
  %v1244 = vunpack.c.h.b16 %v1058
  %v1245 = vunpack.c.l.b16 %v1059
  %v1246 = vunpack.c.h.b16 %v1059
  %v1247 = vunpack.c.l.b16 %v1060
  %v1248 = vunpack.c.h.b16 %v1060
  %v1249 = vunpack.c.l.b16 %v1061
  %v1250 = vunpack.c.h.b16 %v1061
  %v1251 = vunpack.c.l.b16 %v1062
  %v1252 = vunpack.c.h.b16 %v1062
  %v1253 = vunpack.c.l.b16 %v1063
  %v1254 = vunpack.c.h.b16 %v1063
  %v1255 = vunpack.c.l.b16 %v1064
  %v1256 = vunpack.c.h.b16 %v1064
  %v1257 = vpack.c.b16 %v1131, %v1129
  %v1258 = vpack.c.b16 %v1132, %v1130
  %v1259 = vpack.c.b16 %v1135, %v1133
  %v1260 = vpack.c.b16 %v1136, %v1134
  %v1261 = vpack.c.b16 %v1139, %v1137
  %v1262 = vpack.c.b16 %v1140, %v1138
  %v1263 = vpack.c.b16 %v1143, %v1141
  %v1264 = vpack.c.b16 %v1144, %v1142
  %v1265 = vpack.c.b16 %v1147, %v1145
  %v1266 = vpack.c.b16 %v1148, %v1146
  %v1267 = vpack.c.b16 %v1151, %v1149
  %v1268 = vpack.c.b16 %v1152, %v1150
  %v1269 = vpack.c.b16 %v1155, %v1153
  %v1270 = vpack.c.b16 %v1156, %v1154
  %v1271 = vpack.c.b16 %v1159, %v1157
  %v1272 = vpack.c.b16 %v1160, %v1158
  %v1273 = vpack.c.b16 %v1163, %v1161
  %v1274 = vpack.c.b16 %v1164, %v1162
  %v1275 = vpack.c.b16 %v1167, %v1165
  %v1276 = vpack.c.b16 %v1168, %v1166
  %v1277 = vpack.c.b16 %v1171, %v1169
  %v1278 = vpack.c.b16 %v1172, %v1170
  %v1279 = vpack.c.b16 %v1175, %v1173
  %v1280 = vpack.c.b16 %v1176, %v1174
  %v1281 = vpack.c.b16 %v1179, %v1177
  %v1282 = vpack.c.b16 %v1180, %v1178
  %v1283 = vpack.c.b16 %v1183, %v1181
  %v1284 = vpack.c.b16 %v1184, %v1182
  %v1285 = vpack.c.b16 %v1187, %v1185
  %v1286 = vpack.c.b16 %v1188, %v1186
  %v1287 = vpack.c.b16 %v1191, %v1189
  %v1288 = vpack.c.b16 %v1192, %v1190
  %v1289 = vpack.c.b16 %v1195, %v1193
  %v1290 = vpack.c.b16 %v1196, %v1194
  %v1291 = vpack.c.b16 %v1199, %v1197
  %v1292 = vpack.c.b16 %v1200, %v1198
  %v1293 = vpack.c.b16 %v1203, %v1201
  %v1294 = vpack.c.b16 %v1204, %v1202
  %v1295 = vpack.c.b16 %v1207, %v1205
  %v1296 = vpack.c.b16 %v1208, %v1206
  %v1297 = vpack.c.b16 %v1211, %v1209
  %v1298 = vpack.c.b16 %v1212, %v1210
  %v1299 = vpack.c.b16 %v1215, %v1213
  %v1300 = vpack.c.b16 %v1216, %v1214
  %v1301 = vpack.c.b16 %v1219, %v1217
  %v1302 = vpack.c.b16 %v1220, %v1218
  %v1303 = vpack.c.b16 %v1223, %v1221
  %v1304 = vpack.c.b16 %v1224, %v1222
  %v1305 = vpack.c.b16 %v1227, %v1225
  %v1306 = vpack.c.b16 %v1228, %v1226
  %v1307 = vpack.c.b16 %v1231, %v1229
  %v1308 = vpack.c.b16 %v1232, %v1230
  %v1309 = vpack.c.b16 %v1235, %v1233
  %v1310 = vpack.c.b16 %v1236, %v1234
  %v1311 = vpack.c.b16 %v1239, %v1237
  %v1312 = vpack.c.b16 %v1240, %v1238
  %v1313 = vpack.c.b16 %v1243, %v1241
  %v1314 = vpack.c.b16 %v1244, %v1242
  %v1315 = vpack.c.b16 %v1247, %v1245
  %v1316 = vpack.c.b16 %v1248, %v1246
  %v1317 = vpack.c.b16 %v1251, %v1249
  %v1318 = vpack.c.b16 %v1252, %v1250
  %v1319 = vpack.c.b16 %v1255, %v1253
  %v1320 = vpack.c.b16 %v1256, %v1254
  %1385 = vmatprep.subr.bf16.mxu0 %v1272
  %1386 = vmatpush1.bf16.msra.mxu0 %v1271
  %1387 = vmatprep.subr.bf16.mxu0 %v1270
  %1388 = vmatpush1.bf16.msra.mxu0 %v1269
  %1389 = vmatprep.subr.bf16.mxu0 %v1268
  %1390 = vmatpush1.bf16.msra.mxu0 %v1267
  %1391 = vmatprep.subr.bf16.mxu0 %v1266
  %1392 = vmatpush1.bf16.msra.mxu0 %v1265
  %1393 = vmatprep.subr.bf16.mxu0 %v1264
  %1394 = vmatpush1.bf16.msra.mxu0 %v1263
  %1395 = vmatprep.subr.bf16.mxu0 %v1262
  %1396 = vmatpush1.bf16.msra.mxu0 %v1261
  %1397 = vmatprep.subr.bf16.mxu0 %v1260
  %1398 = vmatpush1.bf16.msra.mxu0 %v1259
  %1399 = vmatprep.subr.bf16.mxu0 %v1258
  %1400 = vmatpush1.bf16.msra.mxu0 %v1257
  %1401 = vmatprep.subr.bf16.mxu0 %v1288
  %1402 = vmatpush2.bf16.msra.mxu0 %v1287
  %1403 = vmatprep.subr.bf16.mxu0 %v1286
  %1404 = vmatpush2.bf16.msra.mxu0 %v1285
  %1405 = vmatprep.subr.bf16.mxu0 %v1284
  %1406 = vmatpush2.bf16.msra.mxu0 %v1283
  %1407 = vmatprep.subr.bf16.mxu0 %v1282
  %1408 = vmatpush2.bf16.msra.mxu0 %v1281
  %1409 = vmatprep.subr.bf16.mxu0 %v1280
  %1410 = vmatpush2.bf16.msra.mxu0 %v1279
  %1411 = vmatprep.subr.bf16.mxu0 %v1278
  %1412 = vmatpush2.bf16.msra.mxu0 %v1277
  %1413 = vmatprep.subr.bf16.mxu0 %v1276
  %1414 = vmatpush2.bf16.msra.mxu0 %v1275
  %1415 = vmatprep.subr.bf16.mxu0 %v1274
  %1416 = vmatpush2.bf16.msra.mxu0 %v1273
  %1417 = vmatprep.mubr.bf16.mxu0 %v994
  %1418 = vmatmul.mubr.bf16.gmra.mxu0 %v993
  %v1419 = vpop.f32.mrf.mxu0
  %v1420 = vadd.f32 0.0, %v1419
  %v1421 = vpop.f32.mrf.mxu0
  %v1422 = vadd.f32 0.0, %v1421
  %v1423 = vpop.f32.mrf.mxu0
  %v1424 = vadd.f32 0.0, %v1423
  %v1425 = vpop.f32.mrf.mxu0
  %v1426 = vadd.f32 0.0, %v1425
  %1427 = vmatprep.mubr.bf16.mxu0 %v998
  %1428 = vmatmul.mubr.bf16.gmra.mxu0 %v997
  %v1429 = vpop.f32.mrf.mxu0
  %v1430 = vadd.f32 0.0, %v1429
  %v1431 = vpop.f32.mrf.mxu0
  %v1432 = vadd.f32 0.0, %v1431
  %v1433 = vpop.f32.mrf.mxu0
  %v1434 = vadd.f32 0.0, %v1433
  %v1435 = vpop.f32.mrf.mxu0
  %v1436 = vadd.f32 0.0, %v1435
  %1437 = vdwg.mxu0
  %1438 = vmatprep.subr.bf16.mxu0 %v1304
  %1439 = vmatpush1.bf16.msra.mxu0 %v1303
  %1440 = vmatprep.subr.bf16.mxu0 %v1302
  %1441 = vmatpush1.bf16.msra.mxu0 %v1301
  %1442 = vmatprep.subr.bf16.mxu0 %v1300
  %1443 = vmatpush1.bf16.msra.mxu0 %v1299
  %1444 = vmatprep.subr.bf16.mxu0 %v1298
  %1445 = vmatpush1.bf16.msra.mxu0 %v1297
  %1446 = vmatprep.subr.bf16.mxu0 %v1296
  %1447 = vmatpush1.bf16.msra.mxu0 %v1295
  %1448 = vmatprep.subr.bf16.mxu0 %v1294
  %1449 = vmatpush1.bf16.msra.mxu0 %v1293
  %1450 = vmatprep.subr.bf16.mxu0 %v1292
  %1451 = vmatpush1.bf16.msra.mxu0 %v1291
  %1452 = vmatprep.subr.bf16.mxu0 %v1290
  %1453 = vmatpush1.bf16.msra.mxu0 %v1289
  %1454 = vmatprep.subr.bf16.mxu0 %v1320
  %1455 = vmatpush2.bf16.msra.mxu0 %v1319
  %1456 = vmatprep.subr.bf16.mxu0 %v1318
  %1457 = vmatpush2.bf16.msra.mxu0 %v1317
  %1458 = vmatprep.subr.bf16.mxu0 %v1316
  %1459 = vmatpush2.bf16.msra.mxu0 %v1315
  %1460 = vmatprep.subr.bf16.mxu0 %v1314
  %1461 = vmatpush2.bf16.msra.mxu0 %v1313
  %1462 = vmatprep.subr.bf16.mxu0 %v1312
  %1463 = vmatpush2.bf16.msra.mxu0 %v1311
  %1464 = vmatprep.subr.bf16.mxu0 %v1310
  %1465 = vmatpush2.bf16.msra.mxu0 %v1309
  %1466 = vmatprep.subr.bf16.mxu0 %v1308
  %1467 = vmatpush2.bf16.msra.mxu0 %v1307
  %1468 = vmatprep.subr.bf16.mxu0 %v1306
  %1469 = vmatpush2.bf16.msra.mxu0 %v1305
  %1470 = vmatprep.mubr.bf16.mxu0 %v996
  %1471 = vmatmul.mubr.bf16.gmra.mxu0 %v995
  %v1472 = vpop.f32.mrf.mxu0
  %v1473 = vadd.f32 %v1420, %v1472
  %v1474 = vpop.f32.mrf.mxu0
  %v1475 = vadd.f32 %v1422, %v1474
  %v1476 = vpop.f32.mrf.mxu0
  %v1477 = vadd.f32 %v1424, %v1476
  %v1478 = vpop.f32.mrf.mxu0
  %v1479 = vadd.f32 %v1426, %v1478
  %1480 = vmatprep.mubr.bf16.mxu0 %v1000
  %1481 = vmatmul.mubr.bf16.gmra.mxu0 %v999
  %v1482 = vpop.f32.mrf.mxu0
  %v1483 = vadd.f32 %v1430, %v1482
  %v1484 = vpop.f32.mrf.mxu0
  %v1485 = vadd.f32 %v1432, %v1484
  %v1486 = vpop.f32.mrf.mxu0
  %v1487 = vadd.f32 %v1434, %v1486
  %v1488 = vpop.f32.mrf.mxu0
  %v1489 = vadd.f32 %v1436, %v1488
  %1490 = vdwg.mxu0
  %v1507 = vunpack.c.l.b16 %v897
  %v1508 = vunpack.c.h.b16 %v897
  %v1509 = vunpack.c.l.b16 %v898
  %v1510 = vunpack.c.h.b16 %v898
  %v1511 = vunpack.c.l.b16 %v899
  %v1512 = vunpack.c.h.b16 %v899
  %v1513 = vunpack.c.l.b16 %v900
  %v1514 = vunpack.c.h.b16 %v900
  %v1515 = vunpack.c.l.b16 %v901
  %v1516 = vunpack.c.h.b16 %v901
  %v1517 = vunpack.c.l.b16 %v902
  %v1518 = vunpack.c.h.b16 %v902
  %v1519 = vunpack.c.l.b16 %v903
  %v1520 = vunpack.c.h.b16 %v903
  %v1521 = vunpack.c.l.b16 %v904
  %v1522 = vunpack.c.h.b16 %v904
  %v1523 = vunpack.c.l.b16 %v905
  %v1524 = vunpack.c.h.b16 %v905
  %v1525 = vunpack.c.l.b16 %v906
  %v1526 = vunpack.c.h.b16 %v906
  %v1527 = vunpack.c.l.b16 %v907
  %v1528 = vunpack.c.h.b16 %v907
  %v1529 = vunpack.c.l.b16 %v908
  %v1530 = vunpack.c.h.b16 %v908
  %v1531 = vunpack.c.l.b16 %v909
  %v1532 = vunpack.c.h.b16 %v909
  %v1533 = vunpack.c.l.b16 %v910
  %v1534 = vunpack.c.h.b16 %v910
  %v1535 = vunpack.c.l.b16 %v911
  %v1536 = vunpack.c.h.b16 %v911
  %v1537 = vunpack.c.l.b16 %v912
  %v1538 = vunpack.c.h.b16 %v912
  %v1539 = vpack.c.b16 %v1509, %v1507
  %v1540 = vpack.c.b16 %v1510, %v1508
  %v1541 = vpack.c.b16 %v1513, %v1511
  %v1542 = vpack.c.b16 %v1514, %v1512
  %v1543 = vpack.c.b16 %v1517, %v1515
  %v1544 = vpack.c.b16 %v1518, %v1516
  %v1545 = vpack.c.b16 %v1521, %v1519
  %v1546 = vpack.c.b16 %v1522, %v1520
  %v1547 = vpack.c.b16 %v1525, %v1523
  %v1548 = vpack.c.b16 %v1526, %v1524
  %v1549 = vpack.c.b16 %v1529, %v1527
  %v1550 = vpack.c.b16 %v1530, %v1528
  %v1551 = vpack.c.b16 %v1533, %v1531
  %v1552 = vpack.c.b16 %v1534, %v1532
  %v1553 = vpack.c.b16 %v1537, %v1535
  %v1554 = vpack.c.b16 %v1538, %v1536
  %1571 = vmatprep.subr.bf16.mxu0 %v1554
  %1572 = vmatpush1.bf16.msra.mxu0 %v1553
  %1573 = vmatprep.subr.bf16.mxu0 %v1552
  %1574 = vmatpush1.bf16.msra.mxu0 %v1551
  %1575 = vmatprep.subr.bf16.mxu0 %v1550
  %1576 = vmatpush1.bf16.msra.mxu0 %v1549
  %1577 = vmatprep.subr.bf16.mxu0 %v1548
  %1578 = vmatpush1.bf16.msra.mxu0 %v1547
  %1579 = vmatprep.subr.bf16.mxu0 %v1546
  %1580 = vmatpush1.bf16.msra.mxu0 %v1545
  %1581 = vmatprep.subr.bf16.mxu0 %v1544
  %1582 = vmatpush1.bf16.msra.mxu0 %v1543
  %1583 = vmatprep.subr.bf16.mxu0 %v1542
  %1584 = vmatpush1.bf16.msra.mxu0 %v1541
  %1585 = vmatprep.subr.bf16.mxu0 %v1540
  %1586 = vmatpush1.bf16.msra.mxu0 %v1539
  %1587 = vmatprep.subr.bf16.mxu0 0
  %1588 = vmatpush2.bf16.msra.mxu0 0
  %1589 = vmatprep.subr.bf16.mxu0 0
  %1590 = vmatpush2.bf16.msra.mxu0 0
  %1591 = vmatprep.subr.bf16.mxu0 0
  %1592 = vmatpush2.bf16.msra.mxu0 0
  %1593 = vmatprep.subr.bf16.mxu0 0
  %1594 = vmatpush2.bf16.msra.mxu0 0
  %1595 = vmatprep.subr.bf16.mxu0 0
  %1596 = vmatpush2.bf16.msra.mxu0 0
  %1597 = vmatprep.subr.bf16.mxu0 0
  %1598 = vmatpush2.bf16.msra.mxu0 0
  %1599 = vmatprep.subr.bf16.mxu0 0
  %1600 = vmatpush2.bf16.msra.mxu0 0
  %1601 = vmatprep.subr.bf16.mxu0 0
  %1602 = vmatpush2.bf16.msra.mxu0 0
  %1603 = vmatprep.mubr.bf16.mxu0 0
  %1604 = vmatmul.mubr.bf16.gmra.mxu0 %v895
  %v1605 = vpop.f32.mrf.mxu0
  %v1606 = vadd.f32 %v1473, %v1605
  %v1607 = vpop.f32.mrf.mxu0
  %v1608 = vadd.f32 %v1475, %v1607
  %v1609 = vpop.f32.mrf.mxu0
  %v1610 = vadd.f32 %v1477, %v1609
  %v1611 = vpop.f32.mrf.mxu0
  %v1612 = vadd.f32 %v1479, %v1611
  %1613 = vmatprep.mubr.bf16.mxu0 0
  %1614 = vmatmul.mubr.bf16.gmra.mxu0 %v896
  %v1615 = vpop.f32.mrf.mxu0
  %v1616 = vadd.f32 %v1483, %v1615
  %v1617 = vpop.f32.mrf.mxu0
  %v1618 = vadd.f32 %v1485, %v1617
  %v1619 = vpop.f32.mrf.mxu0
  %v1620 = vadd.f32 %v1487, %v1619
  %v1621 = vpop.f32.mrf.mxu0
  %v1622 = vadd.f32 %v1489, %v1621
  %1623 = vdwg.mxu0
  %v1624 = vld [vmem:[%s7] sm:$0xf]
  %v1625 = vld [vmem:[%s7 + $0x4] sm:$0xf]
  %v1626 = vld [vmem:[%s7 + $0x8] sm:$0xf]
  %v1627 = vld [vmem:[%s7 + $0xc] sm:$0xf]
  %v1628 = vld [vmem:[%s7 + $0x10] sm:$0xf]
  %v1629 = vld [vmem:[%s7 + $0x14] sm:$0xf]
  %v1630 = vld [vmem:[%s7 + $0x18] sm:$0xf]
  %v1631 = vld [vmem:[%s7 + $0x1c] sm:$0xf]
  %v1632 = vld [vmem:[%s7 + $0x20] sm:$0xf]
  %v1633 = vld [vmem:[%s7 + $0x24] sm:$0xf]
  %v1634 = vld [vmem:[%s7 + $0x28] sm:$0xf]
  %v1635 = vld [vmem:[%s7 + $0x2c] sm:$0xf]
  %v1636 = vld [vmem:[%s7 + $0x30] sm:$0xf]
  %v1637 = vld [vmem:[%s7 + $0x34] sm:$0xf]
  %v1638 = vld [vmem:[%s7 + $0x38] sm:$0xf]
  %v1639 = vld [vmem:[%s7 + $0x3c] sm:$0xf]
  %v1640 = vld [vmem:[%s7 + $0x40] sm:$0xf]
  %v1641 = vld [vmem:[%s7 + $0x44] sm:$0xf]
  %v1642 = vld [vmem:[%s7 + $0x48] sm:$0xf]
  %v1643 = vld [vmem:[%s7 + $0x4c] sm:$0xf]
  %v1644 = vld [vmem:[%s7 + $0x50] sm:$0xf]
  %v1645 = vld [vmem:[%s7 + $0x54] sm:$0xf]
  %v1646 = vld [vmem:[%s7 + $0x58] sm:$0xf]
  %v1647 = vld [vmem:[%s7 + $0x5c] sm:$0xf]
  %v1648 = vld [vmem:[%s7 + $0x60] sm:$0xf]
  %v1649 = vld [vmem:[%s7 + $0x64] sm:$0xf]
  %v1650 = vld [vmem:[%s7 + $0x68] sm:$0xf]
  %v1651 = vld [vmem:[%s7 + $0x6c] sm:$0xf]
  %v1652 = vld [vmem:[%s7 + $0x70] sm:$0xf]
  %v1653 = vld [vmem:[%s7 + $0x74] sm:$0xf]
  %v1654 = vld [vmem:[%s7 + $0x78] sm:$0xf]
  %v1655 = vld [vmem:[%s7 + $0x7c] sm:$0xf]
  %v1660 = vunpack.c.l.b16 %v30
  %v1661 = vunpack.c.h.b16 %v30
  %v1662 = vunpack.c.l.b16 %v31
  %v1663 = vunpack.c.h.b16 %v31
  %v1664 = vunpack.c.l.b16 %v32
  %v1665 = vunpack.c.h.b16 %v32
  %v1666 = vunpack.c.l.b16 %v33
  %v1667 = vunpack.c.h.b16 %v33
  %v1668 = vpack.c.b16 %v1662, %v1660
  %v1669 = vpack.c.b16 %v1663, %v1661
  %v1670 = vpack.c.b16 %v1666, %v1664
  %v1671 = vpack.c.b16 %v1667, %v1665
  %v1708 = vunpack.c.l.b16 %v1624
  %v1709 = vunpack.c.l.b16 %v1625
  %v1710 = vunpack.c.l.b16 %v1626
  %v1711 = vunpack.c.l.b16 %v1627
  %v1712 = vunpack.c.l.b16 %v1628
  %v1713 = vunpack.c.l.b16 %v1629
  %v1714 = vunpack.c.l.b16 %v1630
  %v1715 = vunpack.c.l.b16 %v1631
  %v1716 = vunpack.c.l.b16 %v1632
  %v1717 = vunpack.c.l.b16 %v1633
  %v1718 = vunpack.c.l.b16 %v1634
  %v1719 = vunpack.c.l.b16 %v1635
  %v1720 = vunpack.c.l.b16 %v1636
  %v1721 = vunpack.c.l.b16 %v1637
  %v1722 = vunpack.c.l.b16 %v1638
  %v1723 = vunpack.c.l.b16 %v1639
  %v1724 = vunpack.c.l.b16 %v1640
  %v1725 = vunpack.c.l.b16 %v1641
  %v1726 = vunpack.c.l.b16 %v1642
  %v1727 = vunpack.c.l.b16 %v1643
  %v1728 = vunpack.c.l.b16 %v1644
  %v1729 = vunpack.c.l.b16 %v1645
  %v1730 = vunpack.c.l.b16 %v1646
  %v1731 = vunpack.c.l.b16 %v1647
  %v1732 = vunpack.c.l.b16 %v1648
  %v1733 = vunpack.c.l.b16 %v1649
  %v1734 = vunpack.c.l.b16 %v1650
  %v1735 = vunpack.c.l.b16 %v1651
  %v1736 = vunpack.c.l.b16 %v1652
  %v1737 = vunpack.c.l.b16 %v1653
  %v1738 = vunpack.c.l.b16 %v1654
  %v1739 = vunpack.c.l.b16 %v1655
  %v1740 = vpack.c.b16 %v1709, %v1708
  %v1741 = vpack.c.b16 %v1711, %v1710
  %v1742 = vpack.c.b16 %v1713, %v1712
  %v1743 = vpack.c.b16 %v1715, %v1714
  %v1744 = vpack.c.b16 %v1717, %v1716
  %v1745 = vpack.c.b16 %v1719, %v1718
  %v1746 = vpack.c.b16 %v1721, %v1720
  %v1747 = vpack.c.b16 %v1723, %v1722
  %v1748 = vpack.c.b16 %v1725, %v1724
  %v1749 = vpack.c.b16 %v1727, %v1726
  %v1750 = vpack.c.b16 %v1729, %v1728
  %v1751 = vpack.c.b16 %v1731, %v1730
  %v1752 = vpack.c.b16 %v1733, %v1732
  %v1753 = vpack.c.b16 %v1735, %v1734
  %v1754 = vpack.c.b16 %v1737, %v1736
  %v1755 = vpack.c.b16 %v1739, %v1738
  %1772 = vmatprep.subr.bf16.mxu0 0
  %1773 = vmatpush1.bf16.msra.mxu0 %v1747
  %1774 = vmatprep.subr.bf16.mxu0 0
  %1775 = vmatpush1.bf16.msra.mxu0 %v1746
  %1776 = vmatprep.subr.bf16.mxu0 0
  %1777 = vmatpush1.bf16.msra.mxu0 %v1745
  %1778 = vmatprep.subr.bf16.mxu0 0
  %1779 = vmatpush1.bf16.msra.mxu0 %v1744
  %1780 = vmatprep.subr.bf16.mxu0 0
  %1781 = vmatpush1.bf16.msra.mxu0 %v1743
  %1782 = vmatprep.subr.bf16.mxu0 0
  %1783 = vmatpush1.bf16.msra.mxu0 %v1742
  %1784 = vmatprep.subr.bf16.mxu0 0
  %1785 = vmatpush1.bf16.msra.mxu0 %v1741
  %1786 = vmatprep.subr.bf16.mxu0 0
  %1787 = vmatpush1.bf16.msra.mxu0 %v1740
  %1788 = vmatprep.subr.bf16.mxu0 0
  %1789 = vmatpush2.bf16.msra.mxu0 %v1755
  %1790 = vmatprep.subr.bf16.mxu0 0
  %1791 = vmatpush2.bf16.msra.mxu0 %v1754
  %1792 = vmatprep.subr.bf16.mxu0 0
  %1793 = vmatpush2.bf16.msra.mxu0 %v1753
  %1794 = vmatprep.subr.bf16.mxu0 0
  %1795 = vmatpush2.bf16.msra.mxu0 %v1752
  %1796 = vmatprep.subr.bf16.mxu0 0
  %1797 = vmatpush2.bf16.msra.mxu0 %v1751
  %1798 = vmatprep.subr.bf16.mxu0 0
  %1799 = vmatpush2.bf16.msra.mxu0 %v1750
  %1800 = vmatprep.subr.bf16.mxu0 0
  %1801 = vmatpush2.bf16.msra.mxu0 %v1749
  %1802 = vmatprep.subr.bf16.mxu0 0
  %1803 = vmatpush2.bf16.msra.mxu0 %v1748
  %1804 = vmatprep.mubr.bf16.mxu0 %v1669
  %1805 = vmatmul.mubr.bf16.gmra.mxu0 %v1668
  %v1806 = vpop.f32.mrf.mxu0
  %v1807 = vadd.f32 0.0, %v1806
  %v1808 = vpop.f32.mrf.mxu0
  %v1809 = vpop.f32.mrf.mxu0
  %v1810 = vadd.f32 0.0, %v1809
  %v1811 = vpop.f32.mrf.mxu0
  %1812 = vmatprep.mubr.bf16.mxu0 %v1671
  %1813 = vmatmul.mubr.bf16.gmra.mxu0 %v1670
  %v1814 = vpop.f32.mrf.mxu0
  %v1815 = vadd.f32 0.0, %v1814
  %v1816 = vpop.f32.mrf.mxu0
  %v1817 = vpop.f32.mrf.mxu0
  %v1818 = vadd.f32 0.0, %v1817
  %v1819 = vpop.f32.mrf.mxu0
  %1820 = vdwg.mxu0
  %v1821 = vpack.c.bf16 %v44, %v42
  %v1822 = vpack.c.bf16 %v45, %v43
  %v1823 = vpack.c.bf16 %v48, %v46
  %v1824 = vpack.c.bf16 %v49, %v47
  %1825 = vmatprep.subr.bf16.mxu0 0
  %1826 = vmatpush1.bf16.msra.mxu0 %v1747
  %1827 = vmatprep.subr.bf16.mxu0 0
  %1828 = vmatpush1.bf16.msra.mxu0 %v1746
  %1829 = vmatprep.subr.bf16.mxu0 0
  %1830 = vmatpush1.bf16.msra.mxu0 %v1745
  %1831 = vmatprep.subr.bf16.mxu0 0
  %1832 = vmatpush1.bf16.msra.mxu0 %v1744
  %1833 = vmatprep.subr.bf16.mxu0 0
  %1834 = vmatpush1.bf16.msra.mxu0 %v1743
  %1835 = vmatprep.subr.bf16.mxu0 0
  %1836 = vmatpush1.bf16.msra.mxu0 %v1742
  %1837 = vmatprep.subr.bf16.mxu0 0
  %1838 = vmatpush1.bf16.msra.mxu0 %v1741
  %1839 = vmatprep.subr.bf16.mxu0 0
  %1840 = vmatpush1.bf16.msra.mxu0 %v1740
  %1841 = vmatprep.subr.bf16.mxu0 0
  %1842 = vmatpush2.bf16.msra.mxu0 %v1755
  %1843 = vmatprep.subr.bf16.mxu0 0
  %1844 = vmatpush2.bf16.msra.mxu0 %v1754
  %1845 = vmatprep.subr.bf16.mxu0 0
  %1846 = vmatpush2.bf16.msra.mxu0 %v1753
  %1847 = vmatprep.subr.bf16.mxu0 0
  %1848 = vmatpush2.bf16.msra.mxu0 %v1752
  %1849 = vmatprep.subr.bf16.mxu0 0
  %1850 = vmatpush2.bf16.msra.mxu0 %v1751
  %1851 = vmatprep.subr.bf16.mxu0 0
  %1852 = vmatpush2.bf16.msra.mxu0 %v1750
  %1853 = vmatprep.subr.bf16.mxu0 0
  %1854 = vmatpush2.bf16.msra.mxu0 %v1749
  %1855 = vmatprep.subr.bf16.mxu0 0
  %1856 = vmatpush2.bf16.msra.mxu0 %v1748
  %1857 = vmatprep.mubr.bf16.mxu0 %v1822
  %1858 = vmatmul.mubr.bf16.gmra.mxu0 %v1821
  %v1859 = vpop.f32.mrf.mxu0
  %v1860 = vadd.f32 0.0, %v1859
  %v1861 = vpop.f32.mrf.mxu0
  %v1862 = vpop.f32.mrf.mxu0
  %v1863 = vadd.f32 0.0, %v1862
  %v1864 = vpop.f32.mrf.mxu0
  %1865 = vmatprep.mubr.bf16.mxu0 %v1824
  %1866 = vmatmul.mubr.bf16.gmra.mxu0 %v1823
  %v1867 = vpop.f32.mrf.mxu0
  %v1868 = vadd.f32 0.0, %v1867
  %v1869 = vpop.f32.mrf.mxu0
  %v1870 = vpop.f32.mrf.mxu0
  %v1871 = vadd.f32 0.0, %v1870
  %v1872 = vpop.f32.mrf.mxu0
  %1873 = vdwg.mxu0
  %v1874 = vlaneseq
  %v1875 = vshrl.u32 %v1874, 7
  %v1876 = vsub.s32 1, %v1875
  %v1877 = vrot.slane %v52, %v1876
  %v1878 = vlaneseq
  %v1879 = vshrl.u32 %v1878, 7
  %v1880 = vsub.s32 1, %v1879
  %v1881 = vrot.slane %v53, %v1880
  %v1882 = vmul.f32 %v1807, %v1877
  %v1883 = vmul.f32 %v1860, %v1881
  %v1884 = vmul.f32 %v1810, %v1877
  %v1885 = vmul.f32 %v1863, %v1881
  %v1886 = vmul.f32 %v1815, %v1877
  %v1887 = vmul.f32 %v1868, %v1881
  %v1888 = vmul.f32 %v1818, %v1877
  %v1889 = vmul.f32 %v1871, %v1881
  %v1890 = vadd.f32 %v1606, %v1882
  %v1891 = vadd.f32 %v1608, %v1883
  %v1892 = vadd.f32 %v1610, %v1884
  %v1893 = vadd.f32 %v1612, %v1885
  %v1894 = vadd.f32 %v1616, %v1886
  %v1895 = vadd.f32 %v1618, %v1887
  %v1896 = vadd.f32 %v1620, %v1888
  %v1897 = vadd.f32 %v1622, %v1889
  %v1898 = vlaneseq
  %v1899 = vshrl.u32 %v1898, 7
  %v1900 = vsub.s32 2, %v1899
  %v1901 = vrot.slane %v52, %v1900
  %v1902 = vlaneseq
  %v1903 = vshrl.u32 %v1902, 7
  %v1904 = vsub.s32 2, %v1903
  %v1905 = vrot.slane %v53, %v1904
  %v1906 = vadd.f32 %v1890, %v1901
  %v1907 = vadd.f32 %v1891, %v1905
  %v1908 = vadd.f32 %v1892, %v1901
  %v1909 = vadd.f32 %v1893, %v1905
  %v1910 = vadd.f32 %v1894, %v1901
  %v1911 = vadd.f32 %v1895, %v1905
  %v1912 = vadd.f32 %v1896, %v1901
  %v1913 = vadd.f32 %v1897, %v1905
  %1914 = vst [vmem:[%s8] sm:$0xff] %v1906
  %1915 = vst [vmem:[%s8 + $0x8] sm:$0xff] %v1907
  %1916 = vst [vmem:[%s8 + $0x10] sm:$0xff] %v1908
  %1917 = vst [vmem:[%s8 + $0x18] sm:$0xff] %v1909
  %1918 = vst [vmem:[%s8 + $0x20] sm:$0xff] %v1910
  %1919 = vst [vmem:[%s8 + $0x28] sm:$0xff] %v1911
  %1920 = vst [vmem:[%s8 + $0x30] sm:$0xff] %v1912
  %1921 = vst [vmem:[%s8 + $0x38] sm:$0xff] %v1913
  // Predicated region
  $region34: #{_lambda_.7} parent=0 // pred_check
    _
  $region35: #{_lambda_.7} parent=0 // pred_check_branch
    %1923 = sbr.rel (0) target = $region37
  $region36: #{_lambda_.7} parent=0 // pred_region
    _
  $region37: #{_lambda_.7} parent=0 // pred_fallthru
    _
  // Predicated region
  $region38: #{_lambda_.7} parent=0 // pred_check
    _
  $region39: #{_lambda_.7} parent=0 // pred_check_branch
    %1925 = sbr.rel (0) target = $region41
  $region40: #{_lambda_.7} parent=0 // pred_region
    _
  $region41: #{_lambda_.7} parent=0 // pred_fallthru
    _

// kernel: _lambda_.9
$region0: #{_lambda_.9}
  #allocation0 [shape = 'u32[]', space=smem, size = 0x4, offset = 0x4, fixed_abs, tag = 'smem constant byte address 0x4 - core index']
  #allocation1 [shape = 'u32[144,128]{1,0:T(1,128)}', space=vmem, size = 0x12000, scoped, tag = 'internal scratch']
  %s0 = inlined_call_operand.vmem [shape: bf16[64,128], index: 0, kind: input, shape index: {}]
  %s1 = inlined_call_operand.vmem [shape: f32[64,128], index: 1, kind: input, shape index: {}]
  %s2 = inlined_call_operand.vmem [shape: f32[16,128], index: 2, kind: input, shape index: {}]
  %s3 = inlined_call_operand.vmem [shape: bf16[256,64], index: 3, kind: input, shape index: {}]
  %s4 = inlined_call_operand.vmem [shape: bf16[192,64], index: 4, kind: input, shape index: {}]
  %s5 = inlined_call_operand.vmem [shape: bf16[64,128], index: 5, kind: input, shape index: {}]
  %s6 = inlined_call_operand.vmem [shape: bf16[256,128], index: 6, kind: input, shape index: {}]
  %s7 = inlined_call_operand.vmem [shape: bf16[128,64], index: 7, kind: input, shape index: {}]
  %s8 = inlined_call_operand.vmem [shape: f32[64,128], index: 8, kind: output, shape index: {}]
  %s9 = sld [smem:[#allocation0]]
  $region42: #{_lambda_.9} parent=0
    _
  %s11 = ssub.s32 1, %s9
  %s12 = scalar_select 0, %s11, %s9
  // Predicated region
  $region2: #{_lambda_.9} parent=0 // pred_check
    _
  $region3: #{_lambda_.9} parent=0 // pred_check_branch
    %14 = sbr.rel (0) target = $region5
  $region4: #{_lambda_.9} parent=0 // pred_region
    _
  $region5: #{_lambda_.9} parent=0 // pred_fallthru
    _
  // Predicated region
  $region6: #{_lambda_.9} parent=0 // pred_check
    _
  $region7: #{_lambda_.9} parent=0 // pred_check_branch
    %16 = sbr.rel (0) target = $region9
  $region8: #{_lambda_.9} parent=0 // pred_region
    _
  $region9: #{_lambda_.9} parent=0 // pred_fallthru
    _
  // Predicated region
  $region10: #{_lambda_.9} parent=0 // pred_check
    _
  $region11: #{_lambda_.9} parent=0 // pred_check_branch
    %18 = sbr.rel (0) target = $region13
  $region12: #{_lambda_.9} parent=0 // pred_region
    _
  $region13: #{_lambda_.9} parent=0 // pred_fallthru
    _
  // Predicated region
  $region14: #{_lambda_.9} parent=0 // pred_check
    _
  $region15: #{_lambda_.9} parent=0 // pred_check_branch
    %20 = sbr.rel (0) target = $region17
  $region16: #{_lambda_.9} parent=0 // pred_region
    _
  $region17: #{_lambda_.9} parent=0 // pred_fallthru
    _
  // Predicated region
  $region18: #{_lambda_.9} parent=0 // pred_check
    _
  $region19: #{_lambda_.9} parent=0 // pred_check_branch
    %22 = sbr.rel (0) target = $region21
  $region20: #{_lambda_.9} parent=0 // pred_region
    _
  $region21: #{_lambda_.9} parent=0 // pred_fallthru
    _
  // Predicated region
  $region22: #{_lambda_.9} parent=0 // pred_check
    _
  $region23: #{_lambda_.9} parent=0 // pred_check_branch
    %24 = sbr.rel (0) target = $region25
  $region24: #{_lambda_.9} parent=0 // pred_region
    _
  $region25: #{_lambda_.9} parent=0 // pred_fallthru
    _
  // Predicated region
  $region26: #{_lambda_.9} parent=0 // pred_check
    _
  $region27: #{_lambda_.9} parent=0 // pred_check_branch
    %26 = sbr.rel (0) target = $region29
  $region28: #{_lambda_.9} parent=0 // pred_region
    _
  $region29: #{_lambda_.9} parent=0 // pred_fallthru
    _
  // Predicated region
  $region30: #{_lambda_.9} parent=0 // pred_check
    _
  $region31: #{_lambda_.9} parent=0 // pred_check_branch
    %28 = sbr.rel (0) target = $region33
  $region32: #{_lambda_.9} parent=0 // pred_region
    _
  $region33: #{_lambda_.9} parent=0 // pred_fallthru
    _
  %v30 = vld [vmem:[%s0] sm:$0xf]
  %v31 = vld [vmem:[%s0 + $0x4] sm:$0xf]
  %v32 = vld [vmem:[%s0 + $0x8] sm:$0xf]
  %v33 = vld [vmem:[%s0 + $0xc] sm:$0xf]
  %v34 = vld [vmem:[%s0 + $0x10] sm:$0xf]
  %v35 = vld [vmem:[%s0 + $0x14] sm:$0xf]
  %v36 = vld [vmem:[%s0 + $0x18] sm:$0xf]
  %v37 = vld [vmem:[%s0 + $0x1c] sm:$0xf]
  %v38 = vunpack.c.l.bf16 %v30
  %v39 = vunpack.c.l.bf16 %v31
  %v40 = vunpack.c.l.bf16 %v32
  %v41 = vunpack.c.l.bf16 %v33
  %v42 = vunpack.c.l.bf16 %v34
  %v43 = vunpack.c.l.bf16 %v35
  %v44 = vunpack.c.l.bf16 %v36
  %v45 = vunpack.c.l.bf16 %v37
  %v46 = vld [vmem:[%s1] sm:$0xff]
  %v47 = vld [vmem:[%s1 + $0x8] sm:$0xff]
  %v48 = vld [vmem:[%s1 + $0x10] sm:$0xff]
  %v49 = vld [vmem:[%s1 + $0x18] sm:$0xff]
  %v50 = vld [vmem:[%s1 + $0x20] sm:$0xff]
  %v51 = vld [vmem:[%s1 + $0x28] sm:$0xff]
  %v52 = vld [vmem:[%s1 + $0x30] sm:$0xff]
  %v53 = vld [vmem:[%s1 + $0x38] sm:$0xff]
  %v54 = vld [vmem:[%s2] sm:$0xff]
  %v55 = vld [vmem:[%s2 + $0x8] sm:$0xff]
  %v56 = vlaneseq
  %v57 = vshrl.u32 %v56, 7
  %v58 = vsub.s32 0, %v57
  %v59 = vrot.slane %v54, %v58
  %v60 = vmul.f32 %v38, %v59
  %v61 = vmul.f32 %v39, %v59
  %v62 = vmul.f32 %v40, %v59
  %v63 = vmul.f32 %v41, %v59
  %v64 = vmul.f32 %v42, %v59
  %v65 = vmul.f32 %v43, %v59
  %v66 = vmul.f32 %v44, %v59
  %v67 = vmul.f32 %v45, %v59
  %v68 = vlaneseq
  %v69 = vshrl.u32 %v68, 7
  %v70 = vsub.s32 1, %v69
  %v71 = vrot.slane %v54, %v70
  %v72 = vadd.f32 %v60, %v71
  %v73 = vadd.f32 %v61, %v71
  %v74 = vadd.f32 %v62, %v71
  %v75 = vadd.f32 %v63, %v71
  %v76 = vadd.f32 %v64, %v71
  %v77 = vadd.f32 %v65, %v71
  %v78 = vadd.f32 %v66, %v71
  %v79 = vadd.f32 %v67, %v71
  %v80 = vmax.f32 %v72, 0.0
  %v81 = vmax.f32 %v73, 0.0
  %v82 = vmax.f32 %v74, 0.0
  %v83 = vmax.f32 %v75, 0.0
  %v84 = vmax.f32 %v76, 0.0
  %v85 = vmax.f32 %v77, 0.0
  %v86 = vmax.f32 %v78, 0.0
  %v87 = vmax.f32 %v79, 0.0
  %v88 = vlaneseq
  %v89 = vshrl.u32 %v88, 7
  %v90 = vsub.s32 2, %v89
  %v91 = vrot.slane %v54, %v90
  %v92 = vmul.f32 %v46, %v91
  %v93 = vmul.f32 %v47, %v91
  %v94 = vmul.f32 %v48, %v91
  %v95 = vmul.f32 %v49, %v91
  %v96 = vmul.f32 %v50, %v91
  %v97 = vmul.f32 %v51, %v91
  %v98 = vmul.f32 %v52, %v91
  %v99 = vmul.f32 %v53, %v91
  %v100 = vlaneseq
  %v101 = vshrl.u32 %v100, 7
  %v102 = vsub.s32 3, %v101
  %v103 = vrot.slane %v54, %v102
  %v104 = vadd.f32 %v92, %v103
  %v105 = vadd.f32 %v93, %v103
  %v106 = vadd.f32 %v94, %v103
  %v107 = vadd.f32 %v95, %v103
  %v108 = vadd.f32 %v96, %v103
  %v109 = vadd.f32 %v97, %v103
  %v110 = vadd.f32 %v98, %v103
  %v111 = vadd.f32 %v99, %v103
  %v112 = vmax.f32 %v104, 0.0
  %v113 = vmax.f32 %v105, 0.0
  %v114 = vmax.f32 %v106, 0.0
  %v115 = vmax.f32 %v107, 0.0
  %v116 = vmax.f32 %v108, 0.0
  %v117 = vmax.f32 %v109, 0.0
  %v118 = vmax.f32 %v110, 0.0
  %v119 = vmax.f32 %v111, 0.0
  %v120 = vpack.c.bf16 %v81, %v80
  %v121 = vpack.c.bf16 %v113, %v112
  %v122 = vpack.c.bf16 %v83, %v82
  %v123 = vpack.c.bf16 %v115, %v114
  %v124 = vpack.c.bf16 %v85, %v84
  %v125 = vpack.c.bf16 %v117, %v116
  %v126 = vpack.c.bf16 %v87, %v86
  %v127 = vpack.c.bf16 %v119, %v118
  %v128 = vld [vmem:[%s3] sm:$0xf]
  %v129 = vld [vmem:[%s3 + $0x4] sm:$0xf]
  %v130 = vld [vmem:[%s3 + $0x8] sm:$0xf]
  %v131 = vld [vmem:[%s3 + $0xc] sm:$0xf]
  %v132 = vld [vmem:[%s3 + $0x10] sm:$0xf]
  %v133 = vld [vmem:[%s3 + $0x14] sm:$0xf]
  %v134 = vld [vmem:[%s3 + $0x18] sm:$0xf]
  %v135 = vld [vmem:[%s3 + $0x1c] sm:$0xf]
  %v136 = vld [vmem:[%s3 + $0x20] sm:$0xf]
  %v137 = vld [vmem:[%s3 + $0x24] sm:$0xf]
  %v138 = vld [vmem:[%s3 + $0x28] sm:$0xf]
  %v139 = vld [vmem:[%s3 + $0x2c] sm:$0xf]
  %v140 = vld [vmem:[%s3 + $0x30] sm:$0xf]
  %v141 = vld [vmem:[%s3 + $0x34] sm:$0xf]
  %v142 = vld [vmem:[%s3 + $0x38] sm:$0xf]
  %v143 = vld [vmem:[%s3 + $0x3c] sm:$0xf]
  %v144 = vld [vmem:[%s3 + $0x40] sm:$0xf]
  %v145 = vld [vmem:[%s3 + $0x44] sm:$0xf]
  %v146 = vld [vmem:[%s3 + $0x48] sm:$0xf]
  %v147 = vld [vmem:[%s3 + $0x4c] sm:$0xf]
  %v148 = vld [vmem:[%s3 + $0x50] sm:$0xf]
  %v149 = vld [vmem:[%s3 + $0x54] sm:$0xf]
  %v150 = vld [vmem:[%s3 + $0x58] sm:$0xf]
  %v151 = vld [vmem:[%s3 + $0x5c] sm:$0xf]
  %v152 = vld [vmem:[%s3 + $0x60] sm:$0xf]
  %v153 = vld [vmem:[%s3 + $0x64] sm:$0xf]
  %v154 = vld [vmem:[%s3 + $0x68] sm:$0xf]
  %v155 = vld [vmem:[%s3 + $0x6c] sm:$0xf]
  %v156 = vld [vmem:[%s3 + $0x70] sm:$0xf]
  %v157 = vld [vmem:[%s3 + $0x74] sm:$0xf]
  %v158 = vld [vmem:[%s3 + $0x78] sm:$0xf]
  %v159 = vld [vmem:[%s3 + $0x7c] sm:$0xf]
  %v160 = vlaneseq
  %v161 = vshrl.u32 %v160, 7
  %v162 = vsub.s32 0, %v161
  %v163 = vrot.slane %v55, %v162
  %v196 = vunpack.c.l.b16 %v128
  %v197 = vunpack.c.l.b16 %v129
  %v198 = vunpack.c.l.b16 %v130
  %v199 = vunpack.c.l.b16 %v131
  %v200 = vunpack.c.l.b16 %v132
  %v201 = vunpack.c.l.b16 %v133
  %v202 = vunpack.c.l.b16 %v134
  %v203 = vunpack.c.l.b16 %v135
  %v204 = vunpack.c.l.b16 %v136
  %v205 = vunpack.c.l.b16 %v137
  %v206 = vunpack.c.l.b16 %v138
  %v207 = vunpack.c.l.b16 %v139
  %v208 = vunpack.c.l.b16 %v140
  %v209 = vunpack.c.l.b16 %v141
  %v210 = vunpack.c.l.b16 %v142
  %v211 = vunpack.c.l.b16 %v143
  %v212 = vunpack.c.l.b16 %v144
  %v213 = vunpack.c.l.b16 %v145
  %v214 = vunpack.c.l.b16 %v146
  %v215 = vunpack.c.l.b16 %v147
  %v216 = vunpack.c.l.b16 %v148
  %v217 = vunpack.c.l.b16 %v149
  %v218 = vunpack.c.l.b16 %v150
  %v219 = vunpack.c.l.b16 %v151
  %v220 = vunpack.c.l.b16 %v152
  %v221 = vunpack.c.l.b16 %v153
  %v222 = vunpack.c.l.b16 %v154
  %v223 = vunpack.c.l.b16 %v155
  %v224 = vunpack.c.l.b16 %v156
  %v225 = vunpack.c.l.b16 %v157
  %v226 = vunpack.c.l.b16 %v158
  %v227 = vunpack.c.l.b16 %v159
  %v228 = vpack.c.b16 %v197, %v196
  %v229 = vpack.c.b16 %v199, %v198
  %v230 = vpack.c.b16 %v201, %v200
  %v231 = vpack.c.b16 %v203, %v202
  %v232 = vpack.c.b16 %v205, %v204
  %v233 = vpack.c.b16 %v207, %v206
  %v234 = vpack.c.b16 %v209, %v208
  %v235 = vpack.c.b16 %v211, %v210
  %v236 = vpack.c.b16 %v213, %v212
  %v237 = vpack.c.b16 %v215, %v214
  %v238 = vpack.c.b16 %v217, %v216
  %v239 = vpack.c.b16 %v219, %v218
  %v240 = vpack.c.b16 %v221, %v220
  %v241 = vpack.c.b16 %v223, %v222
  %v242 = vpack.c.b16 %v225, %v224
  %v243 = vpack.c.b16 %v227, %v226
  %260 = vmatprep.subr.bf16.mxu0 0
  %261 = vmatpush1.bf16.msra.mxu0 %v235
  %262 = vmatprep.subr.bf16.mxu0 0
  %263 = vmatpush1.bf16.msra.mxu0 %v234
  %264 = vmatprep.subr.bf16.mxu0 0
  %265 = vmatpush1.bf16.msra.mxu0 %v233
  %266 = vmatprep.subr.bf16.mxu0 0
  %267 = vmatpush1.bf16.msra.mxu0 %v232
  %268 = vmatprep.subr.bf16.mxu0 0
  %269 = vmatpush1.bf16.msra.mxu0 %v231
  %270 = vmatprep.subr.bf16.mxu0 0
  %271 = vmatpush1.bf16.msra.mxu0 %v230
  %272 = vmatprep.subr.bf16.mxu0 0
  %273 = vmatpush1.bf16.msra.mxu0 %v229
  %274 = vmatprep.subr.bf16.mxu0 0
  %275 = vmatpush1.bf16.msra.mxu0 %v228
  %276 = vmatprep.subr.bf16.mxu0 0
  %277 = vmatpush2.bf16.msra.mxu0 %v243
  %278 = vmatprep.subr.bf16.mxu0 0
  %279 = vmatpush2.bf16.msra.mxu0 %v242
  %280 = vmatprep.subr.bf16.mxu0 0
  %281 = vmatpush2.bf16.msra.mxu0 %v241
  %282 = vmatprep.subr.bf16.mxu0 0
  %283 = vmatpush2.bf16.msra.mxu0 %v240
  %284 = vmatprep.subr.bf16.mxu0 0
  %285 = vmatpush2.bf16.msra.mxu0 %v239
  %286 = vmatprep.subr.bf16.mxu0 0
  %287 = vmatpush2.bf16.msra.mxu0 %v238
  %288 = vmatprep.subr.bf16.mxu0 0
  %289 = vmatpush2.bf16.msra.mxu0 %v237
  %290 = vmatprep.subr.bf16.mxu0 0
  %291 = vmatpush2.bf16.msra.mxu0 %v236
  %292 = vmatprep.mubr.bf16.mxu0 %v121
  %293 = vmatmul.mubr.bf16.gmra.mxu0 %v120
  %v294 = vpop.f32.mrf.mxu0
  %v295 = vadd.f32 %v163, %v294
  %v296 = vpop.f32.mrf.mxu0
  %v297 = vpop.f32.mrf.mxu0
  %v298 = vadd.f32 %v163, %v297
  %v299 = vpop.f32.mrf.mxu0
  %300 = vmatprep.mubr.bf16.mxu0 %v123
  %301 = vmatmul.mubr.bf16.gmra.mxu0 %v122
  %v302 = vpop.f32.mrf.mxu0
  %v303 = vadd.f32 %v163, %v302
  %v304 = vpop.f32.mrf.mxu0
  %v305 = vpop.f32.mrf.mxu0
  %v306 = vadd.f32 %v163, %v305
  %v307 = vpop.f32.mrf.mxu0
  %308 = vmatprep.mubr.bf16.mxu0 %v125
  %309 = vmatmul.mubr.bf16.gmra.mxu0 %v124
  %v310 = vpop.f32.mrf.mxu0
  %v311 = vadd.f32 %v163, %v310
  %v312 = vpop.f32.mrf.mxu0
  %v313 = vpop.f32.mrf.mxu0
  %v314 = vadd.f32 %v163, %v313
  %v315 = vpop.f32.mrf.mxu0
  %316 = vmatprep.mubr.bf16.mxu0 %v127
  %317 = vmatmul.mubr.bf16.gmra.mxu0 %v126
  %v318 = vpop.f32.mrf.mxu0
  %v319 = vadd.f32 %v163, %v318
  %v320 = vpop.f32.mrf.mxu0
  %v321 = vpop.f32.mrf.mxu0
  %v322 = vadd.f32 %v163, %v321
  %v323 = vpop.f32.mrf.mxu0
  %324 = vdwg.mxu0
  %v325 = vmax.f32 %v295, 0.0
  %v326 = vmax.f32 %v298, 0.0
  %v327 = vmax.f32 %v303, 0.0
  %v328 = vmax.f32 %v306, 0.0
  %v329 = vmax.f32 %v311, 0.0
  %v330 = vmax.f32 %v314, 0.0
  %v331 = vmax.f32 %v319, 0.0
  %v332 = vmax.f32 %v322, 0.0
  %v333 = vlaneseq
  %v334 = vshrl.u32 %v333, 7
  %v335 = vadd.s32 %v334, 8
  %v336 = vadd.s32 %v334, 16
  %v337 = vadd.s32 %v334, 24
  %v338 = vadd.s32 %v334, 32
  %v339 = vadd.s32 %v334, 40
  %v340 = vadd.s32 %v334, 48
  %v341 = vadd.s32 %v334, 56
  %vm342 = vcmp.lt.s32.totalorder %v334, 0
  %v343 = vsub.s32 0, %v334
  %v344 = vsel %vm342, %v343, %v334
  %v345 = vshrl.u32 %v344, 5
  %v346 = vand.u32 %v344, 31
  %v347 = vsub.s32 0, %v346
  %v348 = vsel %vm342, %v347, %v346
  %vm349 = vcmp.lt.s32.totalorder %v335, 0
  %v350 = vsub.s32 0, %v335
  %v351 = vsel %vm349, %v350, %v335
  %v352 = vshrl.u32 %v351, 5
  %v353 = vand.u32 %v351, 31
  %v354 = vsub.s32 0, %v353
  %v355 = vsel %vm349, %v354, %v353
  %vm356 = vcmp.lt.s32.totalorder %v336, 0
  %v357 = vsub.s32 0, %v336
  %v358 = vsel %vm356, %v357, %v336
  %v359 = vshrl.u32 %v358, 5
  %v360 = vand.u32 %v358, 31
  %v361 = vsub.s32 0, %v360
  %v362 = vsel %vm356, %v361, %v360
  %vm363 = vcmp.lt.s32.totalorder %v337, 0
  %v364 = vsub.s32 0, %v337
  %v365 = vsel %vm363, %v364, %v337
  %v366 = vshrl.u32 %v365, 5
  %v367 = vand.u32 %v365, 31
  %v368 = vsub.s32 0, %v367
  %v369 = vsel %vm363, %v368, %v367
  %vm370 = vcmp.lt.s32.totalorder %v338, 0
  %v371 = vsub.s32 0, %v338
  %v372 = vsel %vm370, %v371, %v338
  %v373 = vshrl.u32 %v372, 5
  %v374 = vand.u32 %v372, 31
  %v375 = vsub.s32 0, %v374
  %v376 = vsel %vm370, %v375, %v374
  %vm377 = vcmp.lt.s32.totalorder %v339, 0
  %v378 = vsub.s32 0, %v339
  %v379 = vsel %vm377, %v378, %v339
  %v380 = vshrl.u32 %v379, 5
  %v381 = vand.u32 %v379, 31
  %v382 = vsub.s32 0, %v381
  %v383 = vsel %vm377, %v382, %v381
  %vm384 = vcmp.lt.s32.totalorder %v340, 0
  %v385 = vsub.s32 0, %v340
  %v386 = vsel %vm384, %v385, %v340
  %v387 = vshrl.u32 %v386, 5
  %v388 = vand.u32 %v386, 31
  %v389 = vsub.s32 0, %v388
  %v390 = vsel %vm384, %v389, %v388
  %vm391 = vcmp.lt.s32.totalorder %v341, 0
  %v392 = vsub.s32 0, %v341
  %v393 = vsel %vm391, %v392, %v341
  %v394 = vshrl.u32 %v393, 5
  %v395 = vand.u32 %v393, 31
  %v396 = vsub.s32 0, %v395
  %v397 = vsel %vm391, %v396, %v395
  %vm398 = vcmp.ne.s32.totalorder %v348, 0
  %vm399 = vcmp.ne.s32.totalorder %v355, 0
  %vm400 = vcmp.ne.s32.totalorder %v362, 0
  %vm401 = vcmp.ne.s32.totalorder %v369, 0
  %vm402 = vcmp.ne.s32.totalorder %v376, 0
  %vm403 = vcmp.ne.s32.totalorder %v383, 0
  %vm404 = vcmp.ne.s32.totalorder %v390, 0
  %vm405 = vcmp.ne.s32.totalorder %v397, 0
  %vm406 = vcmp.lt.s32.totalorder %v348, 0
  %vm407 = vcmp.lt.s32.totalorder %v355, 0
  %vm408 = vcmp.lt.s32.totalorder %v362, 0
  %vm409 = vcmp.lt.s32.totalorder %v369, 0
  %vm410 = vcmp.lt.s32.totalorder %v376, 0
  %vm411 = vcmp.lt.s32.totalorder %v383, 0
  %vm412 = vcmp.lt.s32.totalorder %v390, 0
  %vm413 = vcmp.lt.s32.totalorder %v397, 0
  %vm414 = vmand %vm406, %vm398
  %vm415 = vmand %vm407, %vm399
  %vm416 = vmand %vm408, %vm400
  %vm417 = vmand %vm409, %vm401
  %vm418 = vmand %vm410, %vm402
  %vm419 = vmand %vm411, %vm403
  %vm420 = vmand %vm412, %vm404
  %vm421 = vmand %vm413, %vm405
  %v422 = vadd.s32 %v348, 32
  %v423 = vadd.s32 %v355, 32
  %v424 = vadd.s32 %v362, 32
  %v425 = vadd.s32 %v369, 32
  %v426 = vadd.s32 %v376, 32
  %v427 = vadd.s32 %v383, 32
  %v428 = vadd.s32 %v390, 32
  %v429 = vadd.s32 %v397, 32
  %v430 = vsel %vm414, %v422, %v348
  %v431 = vsel %vm415, %v423, %v355
  %v432 = vsel %vm416, %v424, %v362
  %v433 = vsel %vm417, %v425, %v369
  %v434 = vsel %vm418, %v426, %v376
  %v435 = vsel %vm419, %v427, %v383
  %v436 = vsel %vm420, %v428, %v390
  %v437 = vsel %vm421, %v429, %v397
  %vm438 = vcmp.eq.s32.totalorder %v430, 0
  %vm439 = vcmp.eq.s32.totalorder %v431, 0
  %vm440 = vcmp.eq.s32.totalorder %v432, 0
  %vm441 = vcmp.eq.s32.totalorder %v433, 0
  %vm442 = vcmp.eq.s32.totalorder %v434, 0
  %vm443 = vcmp.eq.s32.totalorder %v435, 0
  %vm444 = vcmp.eq.s32.totalorder %v436, 0
  %vm445 = vcmp.eq.s32.totalorder %v437, 0
  %v446 = vrot.slane %v325, 7
  %v447 = vrot.slane %v326, 7
  %v448 = vrot.slane %v327, 7
  %v449 = vrot.slane %v328, 7
  %v450 = vrot.slane %v329, 7
  %v451 = vrot.slane %v330, 7
  %v452 = vrot.slane %v331, 7
  %v453 = vrot.slane %v332, 7
  %vm454 = vcmp.lt.s32.totalorder %v334, 1
  %v455 = vsel %vm454, %v452, %v453
  %v456 = vsel %vm454, %v451, %v452
  %v457 = vsel %vm454, %v450, %v451
  %v458 = vsel %vm454, %v449, %v450
  %v459 = vsel %vm454, %v448, %v449
  %v460 = vsel %vm454, %v447, %v448
  %v461 = vsel %vm454, %v446, %v447
  %v462 = vsel %vm454, %v453, %v446
  %v463 = vsel %vm438, 0.0, %v462
  %v464 = vsel %vm439, 0.0, %v461
  %v465 = vsel %vm440, 0.0, %v460
  %v466 = vsel %vm441, 0.0, %v459
  %v467 = vsel %vm442, 0.0, %v458
  %v468 = vsel %vm443, 0.0, %v457
  %v469 = vsel %vm444, 0.0, %v456
  %v470 = vsel %vm445, 0.0, %v455
  %vm471 = vcmp.eq.s32.totalorder %v430, 31
  %vm472 = vcmp.eq.s32.totalorder %v431, 31
  %vm473 = vcmp.eq.s32.totalorder %v432, 31
  %vm474 = vcmp.eq.s32.totalorder %v433, 31
  %vm475 = vcmp.eq.s32.totalorder %v434, 31
  %vm476 = vcmp.eq.s32.totalorder %v435, 31
  %vm477 = vcmp.eq.s32.totalorder %v436, 31
  %vm478 = vcmp.eq.s32.totalorder %v437, 31
  %v479 = vrot.slane %v325, 1
  %v480 = vrot.slane %v326, 1
  %v481 = vrot.slane %v327, 1
  %v482 = vrot.slane %v328, 1
  %v483 = vrot.slane %v329, 1
  %v484 = vrot.slane %v330, 1
  %v485 = vrot.slane %v331, 1
  %v486 = vrot.slane %v332, 1
  %vm487 = vcmp.lt.s32.totalorder %v334, 7
  %v488 = vsel %vm487, %v485, %v486
  %v489 = vsel %vm487, %v484, %v485
  %v490 = vsel %vm487, %v483, %v484
  %v491 = vsel %vm487, %v482, %v483
  %v492 = vsel %vm487, %v481, %v482
  %v493 = vsel %vm487, %v480, %v481
  %v494 = vsel %vm487, %v479, %v480
  %v495 = vsel %vm487, %v486, %v479
  %v496 = vsel %vm471, 0.0, %v494
  %v497 = vsel %vm472, 0.0, %v493
  %v498 = vsel %vm473, 0.0, %v492
  %v499 = vsel %vm474, 0.0, %v491
  %v500 = vsel %vm475, 0.0, %v490
  %v501 = vsel %vm476, 0.0, %v489
  %v502 = vsel %vm477, 0.0, %v488
  %v503 = vsel %vm478, 0.0, %v495
  %512 = vrot.lane.b32.xlu0 %v325, 64
  %v513 = vpop.permute.xlu0 %512
  %514 = vrot.lane.b32.xlu0 %v326, 64
  %v515 = vpop.permute.xlu0 %514
  %516 = vrot.lane.b32.xlu0 %v327, 64
  %v517 = vpop.permute.xlu0 %516
  %518 = vrot.lane.b32.xlu0 %v328, 64
  %v519 = vpop.permute.xlu0 %518
  %520 = vrot.lane.b32.xlu0 %v329, 64
  %v521 = vpop.permute.xlu0 %520
  %522 = vrot.lane.b32.xlu0 %v330, 64
  %v523 = vpop.permute.xlu0 %522
  %524 = vrot.lane.b32.xlu0 %v331, 64
  %v525 = vpop.permute.xlu0 %524
  %526 = vrot.lane.b32.xlu0 %v332, 64
  %v527 = vpop.permute.xlu0 %526
  %vm536 = vcmask 523264
  %v537 = vsel %vm536, %v463, %v513
  %v538 = vsel %vm536, %v464, %v515
  %v539 = vsel %vm536, %v465, %v517
  %v540 = vsel %vm536, %v466, %v519
  %v541 = vsel %vm536, %v467, %v521
  %v542 = vsel %vm536, %v468, %v523
  %v543 = vsel %vm536, %v469, %v525
  %v544 = vsel %vm536, %v470, %v527
  %v545 = vpack.c.bf16 %v538, %v537
  %v546 = vpack.c.bf16 %v497, %v496
  %v547 = vpack.c.bf16 %v540, %v539
  %v548 = vpack.c.bf16 %v499, %v498
  %v549 = vpack.c.bf16 %v542, %v541
  %v550 = vpack.c.bf16 %v501, %v500
  %v551 = vpack.c.bf16 %v544, %v543
  %v552 = vpack.c.bf16 %v503, %v502
  %v553 = vld [vmem:[%s4] sm:$0xf]
  %v554 = vld [vmem:[%s4 + $0x4] sm:$0xf]
  %v555 = vld [vmem:[%s4 + $0x8] sm:$0xf]
  %v556 = vld [vmem:[%s4 + $0xc] sm:$0xf]
  %v557 = vld [vmem:[%s4 + $0x10] sm:$0xf]
  %v558 = vld [vmem:[%s4 + $0x14] sm:$0xf]
  %v559 = vld [vmem:[%s4 + $0x18] sm:$0xf]
  %v560 = vld [vmem:[%s4 + $0x1c] sm:$0xf]
  %v561 = vld [vmem:[%s4 + $0x20] sm:$0xf]
  %v562 = vld [vmem:[%s4 + $0x24] sm:$0xf]
  %v563 = vld [vmem:[%s4 + $0x28] sm:$0xf]
  %v564 = vld [vmem:[%s4 + $0x2c] sm:$0xf]
  %v565 = vld [vmem:[%s4 + $0x30] sm:$0xf]
  %v566 = vld [vmem:[%s4 + $0x34] sm:$0xf]
  %v567 = vld [vmem:[%s4 + $0x38] sm:$0xf]
  %v568 = vld [vmem:[%s4 + $0x3c] sm:$0xf]
  %v569 = vld [vmem:[%s4 + $0x40] sm:$0xf]
  %v570 = vld [vmem:[%s4 + $0x44] sm:$0xf]
  %v571 = vld [vmem:[%s4 + $0x48] sm:$0xf]
  %v572 = vld [vmem:[%s4 + $0x4c] sm:$0xf]
  %v573 = vld [vmem:[%s4 + $0x50] sm:$0xf]
  %v574 = vld [vmem:[%s4 + $0x54] sm:$0xf]
  %v575 = vld [vmem:[%s4 + $0x58] sm:$0xf]
  %v576 = vld [vmem:[%s4 + $0x5c] sm:$0xf]
  %v601 = vunpack.c.l.b16 %v553
  %v602 = vunpack.c.l.b16 %v554
  %v603 = vunpack.c.l.b16 %v555
  %v604 = vunpack.c.l.b16 %v556
  %v605 = vunpack.c.l.b16 %v557
  %v606 = vunpack.c.l.b16 %v558
  %v607 = vunpack.c.l.b16 %v559
  %v608 = vunpack.c.l.b16 %v560
  %v609 = vunpack.c.l.b16 %v561
  %v610 = vunpack.c.l.b16 %v562
  %v611 = vunpack.c.l.b16 %v563
  %v612 = vunpack.c.l.b16 %v564
  %v613 = vunpack.c.l.b16 %v565
  %v614 = vunpack.c.l.b16 %v566
  %v615 = vunpack.c.l.b16 %v567
  %v616 = vunpack.c.l.b16 %v568
  %v617 = vunpack.c.l.b16 %v569
  %v618 = vunpack.c.l.b16 %v570
  %v619 = vunpack.c.l.b16 %v571
  %v620 = vunpack.c.l.b16 %v572
  %v621 = vunpack.c.l.b16 %v573
  %v622 = vunpack.c.l.b16 %v574
  %v623 = vunpack.c.l.b16 %v575
  %v624 = vunpack.c.l.b16 %v576
  %v625 = vpack.c.b16 %v602, %v601
  %v626 = vpack.c.b16 %v604, %v603
  %v627 = vpack.c.b16 %v606, %v605
  %v628 = vpack.c.b16 %v608, %v607
  %v629 = vpack.c.b16 %v610, %v609
  %v630 = vpack.c.b16 %v612, %v611
  %v631 = vpack.c.b16 %v614, %v613
  %v632 = vpack.c.b16 %v616, %v615
  %v633 = vpack.c.b16 %v618, %v617
  %v634 = vpack.c.b16 %v620, %v619
  %v635 = vpack.c.b16 %v622, %v621
  %v636 = vpack.c.b16 %v624, %v623
  %650 = vrot.lane.b32.xlu0 %v163, 64
  %v651 = vpop.permute.xlu0 %650
  %v654 = vsel %vm536, %v546, 0
  %v657 = vsel %vm536, %v548, 0
  %v660 = vsel %vm536, %v550, 0
  %v663 = vsel %vm536, %v552, 0
  %665 = vmatprep.subr.bf16.mxu0 0
  %666 = vmatpush1.bf16.msra.mxu0 %v632
  %667 = vmatprep.subr.bf16.mxu0 0
  %668 = vmatpush1.bf16.msra.mxu0 %v631
  %669 = vmatprep.subr.bf16.mxu0 0
  %670 = vmatpush1.bf16.msra.mxu0 %v630
  %671 = vmatprep.subr.bf16.mxu0 0
  %672 = vmatpush1.bf16.msra.mxu0 %v629
  %673 = vmatprep.subr.bf16.mxu0 0
  %674 = vmatpush1.bf16.msra.mxu0 %v628
  %675 = vmatprep.subr.bf16.mxu0 0
  %676 = vmatpush1.bf16.msra.mxu0 %v627
  %677 = vmatprep.subr.bf16.mxu0 0
  %678 = vmatpush1.bf16.msra.mxu0 %v626
  %679 = vmatprep.subr.bf16.mxu0 0
  %680 = vmatpush1.bf16.msra.mxu0 %v625
  %681 = vmatprep.subr.bf16.mxu0 0
  %682 = vmatpush2.bf16.msra.mxu0 0
  %683 = vmatprep.subr.bf16.mxu0 0
  %684 = vmatpush2.bf16.msra.mxu0 0
  %685 = vmatprep.subr.bf16.mxu0 0
  %686 = vmatpush2.bf16.msra.mxu0 0
  %687 = vmatprep.subr.bf16.mxu0 0
  %688 = vmatpush2.bf16.msra.mxu0 0
  %689 = vmatprep.subr.bf16.mxu0 0
  %690 = vmatpush2.bf16.msra.mxu0 %v636
  %691 = vmatprep.subr.bf16.mxu0 0
  %692 = vmatpush2.bf16.msra.mxu0 %v635
  %693 = vmatprep.subr.bf16.mxu0 0
  %694 = vmatpush2.bf16.msra.mxu0 %v634
  %695 = vmatprep.subr.bf16.mxu0 0
  %696 = vmatpush2.bf16.msra.mxu0 %v633
  %697 = vmatprep.mubr.bf16.mxu0 %v654
  %698 = vmatmul.mubr.bf16.gmra.mxu0 %v545
  %v699 = vpop.f32.mrf.mxu0
  %v700 = vadd.f32 %v651, %v699
  %v701 = vpop.f32.mrf.mxu0
  %v702 = vpop.f32.mrf.mxu0
  %v703 = vadd.f32 %v651, %v702
  %v704 = vpop.f32.mrf.mxu0
  %705 = vmatprep.mubr.bf16.mxu0 %v657
  %706 = vmatmul.mubr.bf16.gmra.mxu0 %v547
  %v707 = vpop.f32.mrf.mxu0
  %v708 = vadd.f32 %v651, %v707
  %v709 = vpop.f32.mrf.mxu0
  %v710 = vpop.f32.mrf.mxu0
  %v711 = vadd.f32 %v651, %v710
  %v712 = vpop.f32.mrf.mxu0
  %713 = vmatprep.mubr.bf16.mxu0 %v660
  %714 = vmatmul.mubr.bf16.gmra.mxu0 %v549
  %v715 = vpop.f32.mrf.mxu0
  %v716 = vadd.f32 %v651, %v715
  %v717 = vpop.f32.mrf.mxu0
  %v718 = vpop.f32.mrf.mxu0
  %v719 = vadd.f32 %v651, %v718
  %v720 = vpop.f32.mrf.mxu0
  %721 = vmatprep.mubr.bf16.mxu0 %v663
  %722 = vmatmul.mubr.bf16.gmra.mxu0 %v551
  %v723 = vpop.f32.mrf.mxu0
  %v724 = vadd.f32 %v651, %v723
  %v725 = vpop.f32.mrf.mxu0
  %v726 = vpop.f32.mrf.mxu0
  %v727 = vadd.f32 %v651, %v726
  %v728 = vpop.f32.mrf.mxu0
  %729 = vdwg.mxu0
  %v730 = vmax.f32 %v700, 0.0
  %v731 = vmax.f32 %v703, 0.0
  %v732 = vmax.f32 %v708, 0.0
  %v733 = vmax.f32 %v711, 0.0
  %v734 = vmax.f32 %v716, 0.0
  %v735 = vmax.f32 %v719, 0.0
  %v736 = vmax.f32 %v724, 0.0
  %v737 = vmax.f32 %v727, 0.0
  %v738 = vpack.c.bf16 %v731, %v730
  %v739 = vpack.c.bf16 %v733, %v732
  %v740 = vpack.c.bf16 %v735, %v734
  %v741 = vpack.c.bf16 %v737, %v736
  %v742 = vld [vmem:[%s5] sm:$0xf]
  %v743 = vld [vmem:[%s5 + $0x4] sm:$0xf]
  %v744 = vld [vmem:[%s5 + $0x8] sm:$0xf]
  %v745 = vld [vmem:[%s5 + $0xc] sm:$0xf]
  %v746 = vld [vmem:[%s5 + $0x10] sm:$0xf]
  %v747 = vld [vmem:[%s5 + $0x14] sm:$0xf]
  %v748 = vld [vmem:[%s5 + $0x18] sm:$0xf]
  %v749 = vld [vmem:[%s5 + $0x1c] sm:$0xf]
  %v750 = vlaneseq
  %v751 = vshrl.u32 %v750, 7
  %v752 = vsub.s32 4, %v751
  %v753 = vrot.slane %v54, %v752
  %v754 = vmul.f32 %v38, %v753
  %v755 = vmul.f32 %v39, %v753
  %v756 = vmul.f32 %v40, %v753
  %v757 = vmul.f32 %v41, %v753
  %v758 = vmul.f32 %v42, %v753
  %v759 = vmul.f32 %v43, %v753
  %v760 = vmul.f32 %v44, %v753
  %v761 = vmul.f32 %v45, %v753
  %v762 = vlaneseq
  %v763 = vshrl.u32 %v762, 7
  %v764 = vsub.s32 5, %v763
  %v765 = vrot.slane %v54, %v764
  %v766 = vadd.f32 %v754, %v765
  %v767 = vadd.f32 %v755, %v765
  %v768 = vadd.f32 %v756, %v765
  %v769 = vadd.f32 %v757, %v765
  %v770 = vadd.f32 %v758, %v765
  %v771 = vadd.f32 %v759, %v765
  %v772 = vadd.f32 %v760, %v765
  %v773 = vadd.f32 %v761, %v765
  %v774 = vmax.f32 %v766, 0.0
  %v775 = vmax.f32 %v767, 0.0
  %v776 = vmax.f32 %v768, 0.0
  %v777 = vmax.f32 %v769, 0.0
  %v778 = vmax.f32 %v770, 0.0
  %v779 = vmax.f32 %v771, 0.0
  %v780 = vmax.f32 %v772, 0.0
  %v781 = vmax.f32 %v773, 0.0
  %v782 = vlaneseq
  %v783 = vshrl.u32 %v782, 7
  %v784 = vsub.s32 6, %v783
  %v785 = vrot.slane %v54, %v784
  %v786 = vmul.f32 %v46, %v785
  %v787 = vmul.f32 %v47, %v785
  %v788 = vmul.f32 %v48, %v785
  %v789 = vmul.f32 %v49, %v785
  %v790 = vmul.f32 %v50, %v785
  %v791 = vmul.f32 %v51, %v785
  %v792 = vmul.f32 %v52, %v785
  %v793 = vmul.f32 %v53, %v785
  %v794 = vlaneseq
  %v795 = vshrl.u32 %v794, 7
  %v796 = vsub.s32 7, %v795
  %v797 = vrot.slane %v54, %v796
  %v798 = vadd.f32 %v786, %v797
  %v799 = vadd.f32 %v787, %v797
  %v800 = vadd.f32 %v788, %v797
  %v801 = vadd.f32 %v789, %v797
  %v802 = vadd.f32 %v790, %v797
  %v803 = vadd.f32 %v791, %v797
  %v804 = vadd.f32 %v792, %v797
  %v805 = vadd.f32 %v793, %v797
  %v806 = vmax.f32 %v798, 0.0
  %v807 = vmax.f32 %v799, 0.0
  %v808 = vmax.f32 %v800, 0.0
  %v809 = vmax.f32 %v801, 0.0
  %v810 = vmax.f32 %v802, 0.0
  %v811 = vmax.f32 %v803, 0.0
  %v812 = vmax.f32 %v804, 0.0
  %v813 = vmax.f32 %v805, 0.0
  %v814 = vpack.c.bf16 %v775, %v774
  %v815 = vpack.c.bf16 %v807, %v806
  %v816 = vpack.c.bf16 %v777, %v776
  %v817 = vpack.c.bf16 %v809, %v808
  %v818 = vpack.c.bf16 %v779, %v778
  %v819 = vpack.c.bf16 %v811, %v810
  %v820 = vpack.c.bf16 %v781, %v780
  %v821 = vpack.c.bf16 %v813, %v812
  %v822 = vld [vmem:[%s6] sm:$0xf]
  %v823 = vld [vmem:[%s6 + $0x4] sm:$0xf]
  %v824 = vld [vmem:[%s6 + $0x8] sm:$0xf]
  %v825 = vld [vmem:[%s6 + $0xc] sm:$0xf]
  %v826 = vld [vmem:[%s6 + $0x10] sm:$0xf]
  %v827 = vld [vmem:[%s6 + $0x14] sm:$0xf]
  %v828 = vld [vmem:[%s6 + $0x18] sm:$0xf]
  %v829 = vld [vmem:[%s6 + $0x1c] sm:$0xf]
  %v830 = vld [vmem:[%s6 + $0x20] sm:$0xf]
  %v831 = vld [vmem:[%s6 + $0x24] sm:$0xf]
  %v832 = vld [vmem:[%s6 + $0x28] sm:$0xf]
  %v833 = vld [vmem:[%s6 + $0x2c] sm:$0xf]
  %v834 = vld [vmem:[%s6 + $0x30] sm:$0xf]
  %v835 = vld [vmem:[%s6 + $0x34] sm:$0xf]
  %v836 = vld [vmem:[%s6 + $0x38] sm:$0xf]
  %v837 = vld [vmem:[%s6 + $0x3c] sm:$0xf]
  %v838 = vld [vmem:[%s6 + $0x40] sm:$0xf]
  %v839 = vld [vmem:[%s6 + $0x44] sm:$0xf]
  %v840 = vld [vmem:[%s6 + $0x48] sm:$0xf]
  %v841 = vld [vmem:[%s6 + $0x4c] sm:$0xf]
  %v842 = vld [vmem:[%s6 + $0x50] sm:$0xf]
  %v843 = vld [vmem:[%s6 + $0x54] sm:$0xf]
  %v844 = vld [vmem:[%s6 + $0x58] sm:$0xf]
  %v845 = vld [vmem:[%s6 + $0x5c] sm:$0xf]
  %v846 = vld [vmem:[%s6 + $0x60] sm:$0xf]
  %v847 = vld [vmem:[%s6 + $0x64] sm:$0xf]
  %v848 = vld [vmem:[%s6 + $0x68] sm:$0xf]
  %v849 = vld [vmem:[%s6 + $0x6c] sm:$0xf]
  %v850 = vld [vmem:[%s6 + $0x70] sm:$0xf]
  %v851 = vld [vmem:[%s6 + $0x74] sm:$0xf]
  %v852 = vld [vmem:[%s6 + $0x78] sm:$0xf]
  %v853 = vld [vmem:[%s6 + $0x7c] sm:$0xf]
  %v886 = vunpack.c.l.b16 %v822
  %v887 = vunpack.c.l.b16 %v823
  %v888 = vunpack.c.l.b16 %v824
  %v889 = vunpack.c.l.b16 %v825
  %v890 = vunpack.c.l.b16 %v826
  %v891 = vunpack.c.l.b16 %v827
  %v892 = vunpack.c.l.b16 %v828
  %v893 = vunpack.c.l.b16 %v829
  %v894 = vunpack.c.l.b16 %v830
  %v895 = vunpack.c.l.b16 %v831
  %v896 = vunpack.c.l.b16 %v832
  %v897 = vunpack.c.l.b16 %v833
  %v898 = vunpack.c.l.b16 %v834
  %v899 = vunpack.c.l.b16 %v835
  %v900 = vunpack.c.l.b16 %v836
  %v901 = vunpack.c.l.b16 %v837
  %v902 = vunpack.c.l.b16 %v838
  %v903 = vunpack.c.l.b16 %v839
  %v904 = vunpack.c.l.b16 %v840
  %v905 = vunpack.c.l.b16 %v841
  %v906 = vunpack.c.l.b16 %v842
  %v907 = vunpack.c.l.b16 %v843
  %v908 = vunpack.c.l.b16 %v844
  %v909 = vunpack.c.l.b16 %v845
  %v910 = vunpack.c.l.b16 %v846
  %v911 = vunpack.c.l.b16 %v847
  %v912 = vunpack.c.l.b16 %v848
  %v913 = vunpack.c.l.b16 %v849
  %v914 = vunpack.c.l.b16 %v850
  %v915 = vunpack.c.l.b16 %v851
  %v916 = vunpack.c.l.b16 %v852
  %v917 = vunpack.c.l.b16 %v853
  %v918 = vpack.c.b16 %v887, %v886
  %v919 = vpack.c.b16 %v889, %v888
  %v920 = vpack.c.b16 %v891, %v890
  %v921 = vpack.c.b16 %v893, %v892
  %v922 = vpack.c.b16 %v895, %v894
  %v923 = vpack.c.b16 %v897, %v896
  %v924 = vpack.c.b16 %v899, %v898
  %v925 = vpack.c.b16 %v901, %v900
  %v926 = vpack.c.b16 %v903, %v902
  %v927 = vpack.c.b16 %v905, %v904
  %v928 = vpack.c.b16 %v907, %v906
  %v929 = vpack.c.b16 %v909, %v908
  %v930 = vpack.c.b16 %v911, %v910
  %v931 = vpack.c.b16 %v913, %v912
  %v932 = vpack.c.b16 %v915, %v914
  %v933 = vpack.c.b16 %v917, %v916
  %950 = vmatprep.subr.bf16.mxu0 0
  %951 = vmatpush1.bf16.msra.mxu0 %v925
  %952 = vmatprep.subr.bf16.mxu0 0
  %953 = vmatpush1.bf16.msra.mxu0 %v924
  %954 = vmatprep.subr.bf16.mxu0 0
  %955 = vmatpush1.bf16.msra.mxu0 %v923
  %956 = vmatprep.subr.bf16.mxu0 0
  %957 = vmatpush1.bf16.msra.mxu0 %v922
  %958 = vmatprep.subr.bf16.mxu0 0
  %959 = vmatpush1.bf16.msra.mxu0 %v921
  %960 = vmatprep.subr.bf16.mxu0 0
  %961 = vmatpush1.bf16.msra.mxu0 %v920
  %962 = vmatprep.subr.bf16.mxu0 0
  %963 = vmatpush1.bf16.msra.mxu0 %v919
  %964 = vmatprep.subr.bf16.mxu0 0
  %965 = vmatpush1.bf16.msra.mxu0 %v918
  %966 = vmatprep.subr.bf16.mxu0 0
  %967 = vmatpush2.bf16.msra.mxu0 %v933
  %968 = vmatprep.subr.bf16.mxu0 0
  %969 = vmatpush2.bf16.msra.mxu0 %v932
  %970 = vmatprep.subr.bf16.mxu0 0
  %971 = vmatpush2.bf16.msra.mxu0 %v931
  %972 = vmatprep.subr.bf16.mxu0 0
  %973 = vmatpush2.bf16.msra.mxu0 %v930
  %974 = vmatprep.subr.bf16.mxu0 0
  %975 = vmatpush2.bf16.msra.mxu0 %v929
  %976 = vmatprep.subr.bf16.mxu0 0
  %977 = vmatpush2.bf16.msra.mxu0 %v928
  %978 = vmatprep.subr.bf16.mxu0 0
  %979 = vmatpush2.bf16.msra.mxu0 %v927
  %980 = vmatprep.subr.bf16.mxu0 0
  %981 = vmatpush2.bf16.msra.mxu0 %v926
  %982 = vmatprep.mubr.bf16.mxu0 %v815
  %983 = vmatmul.mubr.bf16.gmra.mxu0 %v814
  %v984 = vpop.f32.mrf.mxu0
  %v985 = vadd.f32 0.0, %v984
  %v986 = vpop.f32.mrf.mxu0
  %v987 = vpop.f32.mrf.mxu0
  %v988 = vadd.f32 0.0, %v987
  %v989 = vpop.f32.mrf.mxu0
  %990 = vmatprep.mubr.bf16.mxu0 %v817
  %991 = vmatmul.mubr.bf16.gmra.mxu0 %v816
  %v992 = vpop.f32.mrf.mxu0
  %v993 = vadd.f32 0.0, %v992
  %v994 = vpop.f32.mrf.mxu0
  %v995 = vpop.f32.mrf.mxu0
  %v996 = vadd.f32 0.0, %v995
  %v997 = vpop.f32.mrf.mxu0
  %998 = vmatprep.mubr.bf16.mxu0 %v819
  %999 = vmatmul.mubr.bf16.gmra.mxu0 %v818
  %v1000 = vpop.f32.mrf.mxu0
  %v1001 = vadd.f32 0.0, %v1000
  %v1002 = vpop.f32.mrf.mxu0
  %v1003 = vpop.f32.mrf.mxu0
  %v1004 = vadd.f32 0.0, %v1003
  %v1005 = vpop.f32.mrf.mxu0
  %1006 = vmatprep.mubr.bf16.mxu0 %v821
  %1007 = vmatmul.mubr.bf16.gmra.mxu0 %v820
  %v1008 = vpop.f32.mrf.mxu0
  %v1009 = vadd.f32 0.0, %v1008
  %v1010 = vpop.f32.mrf.mxu0
  %v1011 = vpop.f32.mrf.mxu0
  %v1012 = vadd.f32 0.0, %v1011
  %v1013 = vpop.f32.mrf.mxu0
  %1014 = vdwg.mxu0
  %v1023 = vunpack.c.l.b16 %v742
  %v1024 = vunpack.c.l.b16 %v743
  %v1025 = vunpack.c.l.b16 %v744
  %v1026 = vunpack.c.l.b16 %v745
  %v1027 = vunpack.c.l.b16 %v746
  %v1028 = vunpack.c.l.b16 %v747
  %v1029 = vunpack.c.l.b16 %v748
  %v1030 = vunpack.c.l.b16 %v749
  %v1031 = vpack.c.b16 %v1024, %v1023
  %v1032 = vpack.c.b16 %v1026, %v1025
  %v1033 = vpack.c.b16 %v1028, %v1027
  %v1034 = vpack.c.b16 %v1030, %v1029
  %v1040 = vsel %vm536, %v738, 0
  %v1043 = vsel %vm536, %v739, 0
  %v1046 = vsel %vm536, %v740, 0
  %v1049 = vsel %vm536, %v741, 0
  %1051 = vmatprep.subr.bf16.mxu0 0
  %1052 = vmatpush1.bf16.msra.mxu0 0
  %1053 = vmatprep.subr.bf16.mxu0 0
  %1054 = vmatpush1.bf16.msra.mxu0 0
  %1055 = vmatprep.subr.bf16.mxu0 0
  %1056 = vmatpush1.bf16.msra.mxu0 0
  %1057 = vmatprep.subr.bf16.mxu0 0
  %1058 = vmatpush1.bf16.msra.mxu0 0
  %1059 = vmatprep.subr.bf16.mxu0 0
  %1060 = vmatpush1.bf16.msra.mxu0 %v1034
  %1061 = vmatprep.subr.bf16.mxu0 0
  %1062 = vmatpush1.bf16.msra.mxu0 %v1033
  %1063 = vmatprep.subr.bf16.mxu0 0
  %1064 = vmatpush1.bf16.msra.mxu0 %v1032
  %1065 = vmatprep.subr.bf16.mxu0 0
  %1066 = vmatpush1.bf16.msra.mxu0 %v1031
  %1067 = vmatprep.subr.bf16.mxu0 0
  %1068 = vmatpush2.bf16.msra.mxu0 0
  %1069 = vmatprep.subr.bf16.mxu0 0
  %1070 = vmatpush2.bf16.msra.mxu0 0
  %1071 = vmatprep.subr.bf16.mxu0 0
  %1072 = vmatpush2.bf16.msra.mxu0 0
  %1073 = vmatprep.subr.bf16.mxu0 0
  %1074 = vmatpush2.bf16.msra.mxu0 0
  %1075 = vmatprep.subr.bf16.mxu0 0
  %1076 = vmatpush2.bf16.msra.mxu0 0
  %1077 = vmatprep.subr.bf16.mxu0 0
  %1078 = vmatpush2.bf16.msra.mxu0 0
  %1079 = vmatprep.subr.bf16.mxu0 0
  %1080 = vmatpush2.bf16.msra.mxu0 0
  %1081 = vmatprep.subr.bf16.mxu0 0
  %1082 = vmatpush2.bf16.msra.mxu0 0
  %1083 = vmatprep.mubr.bf16.mxu0 0
  %1084 = vmatmul.mubr.bf16.gmra.mxu0 %v1040
  %v1085 = vpop.f32.mrf.mxu0
  %v1086 = vadd.f32 %v985, %v1085
  %v1087 = vpop.f32.mrf.mxu0
  %v1088 = vpop.f32.mrf.mxu0
  %v1089 = vadd.f32 %v988, %v1088
  %v1090 = vpop.f32.mrf.mxu0
  %1091 = vmatprep.mubr.bf16.mxu0 0
  %1092 = vmatmul.mubr.bf16.gmra.mxu0 %v1043
  %v1093 = vpop.f32.mrf.mxu0
  %v1094 = vadd.f32 %v993, %v1093
  %v1095 = vpop.f32.mrf.mxu0
  %v1096 = vpop.f32.mrf.mxu0
  %v1097 = vadd.f32 %v996, %v1096
  %v1098 = vpop.f32.mrf.mxu0
  %1099 = vmatprep.mubr.bf16.mxu0 0
  %1100 = vmatmul.mubr.bf16.gmra.mxu0 %v1046
  %v1101 = vpop.f32.mrf.mxu0
  %v1102 = vadd.f32 %v1001, %v1101
  %v1103 = vpop.f32.mrf.mxu0
  %v1104 = vpop.f32.mrf.mxu0
  %v1105 = vadd.f32 %v1004, %v1104
  %v1106 = vpop.f32.mrf.mxu0
  %1107 = vmatprep.mubr.bf16.mxu0 0
  %1108 = vmatmul.mubr.bf16.gmra.mxu0 %v1049
  %v1109 = vpop.f32.mrf.mxu0
  %v1110 = vadd.f32 %v1009, %v1109
  %v1111 = vpop.f32.mrf.mxu0
  %v1112 = vpop.f32.mrf.mxu0
  %v1113 = vadd.f32 %v1012, %v1112
  %v1114 = vpop.f32.mrf.mxu0
  %1115 = vdwg.mxu0
  %v1116 = vld [vmem:[%s7] sm:$0xf]
  %v1117 = vld [vmem:[%s7 + $0x4] sm:$0xf]
  %v1118 = vld [vmem:[%s7 + $0x8] sm:$0xf]
  %v1119 = vld [vmem:[%s7 + $0xc] sm:$0xf]
  %v1120 = vld [vmem:[%s7 + $0x10] sm:$0xf]
  %v1121 = vld [vmem:[%s7 + $0x14] sm:$0xf]
  %v1122 = vld [vmem:[%s7 + $0x18] sm:$0xf]
  %v1123 = vld [vmem:[%s7 + $0x1c] sm:$0xf]
  %v1124 = vld [vmem:[%s7 + $0x20] sm:$0xf]
  %v1125 = vld [vmem:[%s7 + $0x24] sm:$0xf]
  %v1126 = vld [vmem:[%s7 + $0x28] sm:$0xf]
  %v1127 = vld [vmem:[%s7 + $0x2c] sm:$0xf]
  %v1128 = vld [vmem:[%s7 + $0x30] sm:$0xf]
  %v1129 = vld [vmem:[%s7 + $0x34] sm:$0xf]
  %v1130 = vld [vmem:[%s7 + $0x38] sm:$0xf]
  %v1131 = vld [vmem:[%s7 + $0x3c] sm:$0xf]
  %v1140 = vunpack.c.l.b16 %v30
  %v1141 = vunpack.c.l.b16 %v31
  %v1142 = vunpack.c.l.b16 %v32
  %v1143 = vunpack.c.l.b16 %v33
  %v1144 = vunpack.c.l.b16 %v34
  %v1145 = vunpack.c.l.b16 %v35
  %v1146 = vunpack.c.l.b16 %v36
  %v1147 = vunpack.c.l.b16 %v37
  %v1148 = vpack.c.b16 %v1141, %v1140
  %v1149 = vpack.c.b16 %v1143, %v1142
  %v1150 = vpack.c.b16 %v1145, %v1144
  %v1151 = vpack.c.b16 %v1147, %v1146
  %v1172 = vunpack.c.l.b16 %v1116
  %v1173 = vunpack.c.l.b16 %v1117
  %v1174 = vunpack.c.l.b16 %v1118
  %v1175 = vunpack.c.l.b16 %v1119
  %v1176 = vunpack.c.l.b16 %v1120
  %v1177 = vunpack.c.l.b16 %v1121
  %v1178 = vunpack.c.l.b16 %v1122
  %v1179 = vunpack.c.l.b16 %v1123
  %v1180 = vunpack.c.l.b16 %v1124
  %v1181 = vunpack.c.l.b16 %v1125
  %v1182 = vunpack.c.l.b16 %v1126
  %v1183 = vunpack.c.l.b16 %v1127
  %v1184 = vunpack.c.l.b16 %v1128
  %v1185 = vunpack.c.l.b16 %v1129
  %v1186 = vunpack.c.l.b16 %v1130
  %v1187 = vunpack.c.l.b16 %v1131
  %v1188 = vpack.c.b16 %v1173, %v1172
  %v1189 = vpack.c.b16 %v1175, %v1174
  %v1190 = vpack.c.b16 %v1177, %v1176
  %v1191 = vpack.c.b16 %v1179, %v1178
  %v1192 = vpack.c.b16 %v1181, %v1180
  %v1193 = vpack.c.b16 %v1183, %v1182
  %v1194 = vpack.c.b16 %v1185, %v1184
  %v1195 = vpack.c.b16 %v1187, %v1186
  %1204 = vmatprep.subr.bf16.mxu0 0
  %1205 = vmatpush1.bf16.msra.mxu0 %v1195
  %1206 = vmatprep.subr.bf16.mxu0 0
  %1207 = vmatpush1.bf16.msra.mxu0 %v1194
  %1208 = vmatprep.subr.bf16.mxu0 0
  %1209 = vmatpush1.bf16.msra.mxu0 %v1193
  %1210 = vmatprep.subr.bf16.mxu0 0
  %1211 = vmatpush1.bf16.msra.mxu0 %v1192
  %1212 = vmatprep.subr.bf16.mxu0 0
  %1213 = vmatpush1.bf16.msra.mxu0 %v1191
  %1214 = vmatprep.subr.bf16.mxu0 0
  %1215 = vmatpush1.bf16.msra.mxu0 %v1190
  %1216 = vmatprep.subr.bf16.mxu0 0
  %1217 = vmatpush1.bf16.msra.mxu0 %v1189
  %1218 = vmatprep.subr.bf16.mxu0 0
  %1219 = vmatpush1.bf16.msra.mxu0 %v1188
  %1220 = vmatprep.subr.bf16.mxu0 0
  %1221 = vmatpush2.bf16.msra.mxu0 0
  %1222 = vmatprep.subr.bf16.mxu0 0
  %1223 = vmatpush2.bf16.msra.mxu0 0
  %1224 = vmatprep.subr.bf16.mxu0 0
  %1225 = vmatpush2.bf16.msra.mxu0 0
  %1226 = vmatprep.subr.bf16.mxu0 0
  %1227 = vmatpush2.bf16.msra.mxu0 0
  %1228 = vmatprep.subr.bf16.mxu0 0
  %1229 = vmatpush2.bf16.msra.mxu0 0
  %1230 = vmatprep.subr.bf16.mxu0 0
  %1231 = vmatpush2.bf16.msra.mxu0 0
  %1232 = vmatprep.subr.bf16.mxu0 0
  %1233 = vmatpush2.bf16.msra.mxu0 0
  %1234 = vmatprep.subr.bf16.mxu0 0
  %1235 = vmatpush2.bf16.msra.mxu0 0
  %1236 = vmatprep.mubr.bf16.mxu0 0
  %1237 = vmatmul.mubr.bf16.gmra.mxu0 %v1148
  %v1238 = vpop.f32.mrf.mxu0
  %v1239 = vadd.f32 0.0, %v1238
  %v1240 = vpop.f32.mrf.mxu0
  %v1241 = vpop.f32.mrf.mxu0
  %v1242 = vadd.f32 0.0, %v1241
  %v1243 = vpop.f32.mrf.mxu0
  %1244 = vmatprep.mubr.bf16.mxu0 0
  %1245 = vmatmul.mubr.bf16.gmra.mxu0 %v1149
  %v1246 = vpop.f32.mrf.mxu0
  %v1247 = vadd.f32 0.0, %v1246
  %v1248 = vpop.f32.mrf.mxu0
  %v1249 = vpop.f32.mrf.mxu0
  %v1250 = vadd.f32 0.0, %v1249
  %v1251 = vpop.f32.mrf.mxu0
  %1252 = vmatprep.mubr.bf16.mxu0 0
  %1253 = vmatmul.mubr.bf16.gmra.mxu0 %v1150
  %v1254 = vpop.f32.mrf.mxu0
  %v1255 = vadd.f32 0.0, %v1254
  %v1256 = vpop.f32.mrf.mxu0
  %v1257 = vpop.f32.mrf.mxu0
  %v1258 = vadd.f32 0.0, %v1257
  %v1259 = vpop.f32.mrf.mxu0
  %1260 = vmatprep.mubr.bf16.mxu0 0
  %1261 = vmatmul.mubr.bf16.gmra.mxu0 %v1151
  %v1262 = vpop.f32.mrf.mxu0
  %v1263 = vadd.f32 0.0, %v1262
  %v1264 = vpop.f32.mrf.mxu0
  %v1265 = vpop.f32.mrf.mxu0
  %v1266 = vadd.f32 0.0, %v1265
  %v1267 = vpop.f32.mrf.mxu0
  %1268 = vdwg.mxu0
  %v1269 = vpack.c.bf16 %v47, %v46
  %v1270 = vpack.c.bf16 %v49, %v48
  %v1271 = vpack.c.bf16 %v51, %v50
  %v1272 = vpack.c.bf16 %v53, %v52
  %1273 = vmatprep.subr.bf16.mxu0 0
  %1274 = vmatpush1.bf16.msra.mxu0 %v1195
  %1275 = vmatprep.subr.bf16.mxu0 0
  %1276 = vmatpush1.bf16.msra.mxu0 %v1194
  %1277 = vmatprep.subr.bf16.mxu0 0
  %1278 = vmatpush1.bf16.msra.mxu0 %v1193
  %1279 = vmatprep.subr.bf16.mxu0 0
  %1280 = vmatpush1.bf16.msra.mxu0 %v1192
  %1281 = vmatprep.subr.bf16.mxu0 0
  %1282 = vmatpush1.bf16.msra.mxu0 %v1191
  %1283 = vmatprep.subr.bf16.mxu0 0
  %1284 = vmatpush1.bf16.msra.mxu0 %v1190
  %1285 = vmatprep.subr.bf16.mxu0 0
  %1286 = vmatpush1.bf16.msra.mxu0 %v1189
  %1287 = vmatprep.subr.bf16.mxu0 0
  %1288 = vmatpush1.bf16.msra.mxu0 %v1188
  %1289 = vmatprep.subr.bf16.mxu0 0
  %1290 = vmatpush2.bf16.msra.mxu0 0
  %1291 = vmatprep.subr.bf16.mxu0 0
  %1292 = vmatpush2.bf16.msra.mxu0 0
  %1293 = vmatprep.subr.bf16.mxu0 0
  %1294 = vmatpush2.bf16.msra.mxu0 0
  %1295 = vmatprep.subr.bf16.mxu0 0
  %1296 = vmatpush2.bf16.msra.mxu0 0
  %1297 = vmatprep.subr.bf16.mxu0 0
  %1298 = vmatpush2.bf16.msra.mxu0 0
  %1299 = vmatprep.subr.bf16.mxu0 0
  %1300 = vmatpush2.bf16.msra.mxu0 0
  %1301 = vmatprep.subr.bf16.mxu0 0
  %1302 = vmatpush2.bf16.msra.mxu0 0
  %1303 = vmatprep.subr.bf16.mxu0 0
  %1304 = vmatpush2.bf16.msra.mxu0 0
  %1305 = vmatprep.mubr.bf16.mxu0 0
  %1306 = vmatmul.mubr.bf16.gmra.mxu0 %v1269
  %v1307 = vpop.f32.mrf.mxu0
  %v1308 = vadd.f32 0.0, %v1307
  %v1309 = vpop.f32.mrf.mxu0
  %v1310 = vpop.f32.mrf.mxu0
  %v1311 = vadd.f32 0.0, %v1310
  %v1312 = vpop.f32.mrf.mxu0
  %1313 = vmatprep.mubr.bf16.mxu0 0
  %1314 = vmatmul.mubr.bf16.gmra.mxu0 %v1270
  %v1315 = vpop.f32.mrf.mxu0
  %v1316 = vadd.f32 0.0, %v1315
  %v1317 = vpop.f32.mrf.mxu0
  %v1318 = vpop.f32.mrf.mxu0
  %v1319 = vadd.f32 0.0, %v1318
  %v1320 = vpop.f32.mrf.mxu0
  %1321 = vmatprep.mubr.bf16.mxu0 0
  %1322 = vmatmul.mubr.bf16.gmra.mxu0 %v1271
  %v1323 = vpop.f32.mrf.mxu0
  %v1324 = vadd.f32 0.0, %v1323
  %v1325 = vpop.f32.mrf.mxu0
  %v1326 = vpop.f32.mrf.mxu0
  %v1327 = vadd.f32 0.0, %v1326
  %v1328 = vpop.f32.mrf.mxu0
  %1329 = vmatprep.mubr.bf16.mxu0 0
  %1330 = vmatmul.mubr.bf16.gmra.mxu0 %v1272
  %v1331 = vpop.f32.mrf.mxu0
  %v1332 = vadd.f32 0.0, %v1331
  %v1333 = vpop.f32.mrf.mxu0
  %v1334 = vpop.f32.mrf.mxu0
  %v1335 = vadd.f32 0.0, %v1334
  %v1336 = vpop.f32.mrf.mxu0
  %1337 = vdwg.mxu0
  %1346 = vrot.lane.b32.xlu0 %v1308, 64
  %v1347 = vpop.permute.xlu0 %1346
  %1348 = vrot.lane.b32.xlu0 %v1311, 64
  %v1349 = vpop.permute.xlu0 %1348
  %1350 = vrot.lane.b32.xlu0 %v1316, 64
  %v1351 = vpop.permute.xlu0 %1350
  %1352 = vrot.lane.b32.xlu0 %v1319, 64
  %v1353 = vpop.permute.xlu0 %1352
  %1354 = vrot.lane.b32.xlu0 %v1324, 64
  %v1355 = vpop.permute.xlu0 %1354
  %1356 = vrot.lane.b32.xlu0 %v1327, 64
  %v1357 = vpop.permute.xlu0 %1356
  %1358 = vrot.lane.b32.xlu0 %v1332, 64
  %v1359 = vpop.permute.xlu0 %1358
  %1360 = vrot.lane.b32.xlu0 %v1335, 64
  %v1361 = vpop.permute.xlu0 %1360
  %v1370 = vsel %vm536, %v1239, %v1347
  %v1371 = vsel %vm536, %v1242, %v1349
  %v1372 = vsel %vm536, %v1247, %v1351
  %v1373 = vsel %vm536, %v1250, %v1353
  %v1374 = vsel %vm536, %v1255, %v1355
  %v1375 = vsel %vm536, %v1258, %v1357
  %v1376 = vsel %vm536, %v1263, %v1359
  %v1377 = vsel %vm536, %v1266, %v1361
  %v1378 = vlaneseq
  %v1379 = vshrl.u32 %v1378, 7
  %v1380 = vsub.s32 1, %v1379
  %v1381 = vrot.slane %v55, %v1380
  %v1382 = vmul.f32 %v1370, %v1381
  %v1383 = vmul.f32 %v1371, %v1381
  %v1384 = vmul.f32 %v1372, %v1381
  %v1385 = vmul.f32 %v1373, %v1381
  %v1386 = vmul.f32 %v1374, %v1381
  %v1387 = vmul.f32 %v1375, %v1381
  %v1388 = vmul.f32 %v1376, %v1381
  %v1389 = vmul.f32 %v1377, %v1381
  %v1390 = vadd.f32 %v1086, %v1382
  %v1391 = vadd.f32 %v1089, %v1383
  %v1392 = vadd.f32 %v1094, %v1384
  %v1393 = vadd.f32 %v1097, %v1385
  %v1394 = vadd.f32 %v1102, %v1386
  %v1395 = vadd.f32 %v1105, %v1387
  %v1396 = vadd.f32 %v1110, %v1388
  %v1397 = vadd.f32 %v1113, %v1389
  %v1398 = vlaneseq
  %v1399 = vshrl.u32 %v1398, 7
  %v1400 = vsub.s32 2, %v1399
  %v1401 = vrot.slane %v55, %v1400
  %v1402 = vadd.f32 %v1390, %v1401
  %v1403 = vadd.f32 %v1391, %v1401
  %v1404 = vadd.f32 %v1392, %v1401
  %v1405 = vadd.f32 %v1393, %v1401
  %v1406 = vadd.f32 %v1394, %v1401
  %v1407 = vadd.f32 %v1395, %v1401
  %v1408 = vadd.f32 %v1396, %v1401
  %v1409 = vadd.f32 %v1397, %v1401
  %1410 = vst [vmem:[%s8] sm:$0xff] %v1402
  %1411 = vst [vmem:[%s8 + $0x8] sm:$0xff] %v1403
  %1412 = vst [vmem:[%s8 + $0x10] sm:$0xff] %v1404
  %1413 = vst [vmem:[%s8 + $0x18] sm:$0xff] %v1405
  %1414 = vst [vmem:[%s8 + $0x20] sm:$0xff] %v1406
  %1415 = vst [vmem:[%s8 + $0x28] sm:$0xff] %v1407
  %1416 = vst [vmem:[%s8 + $0x30] sm:$0xff] %v1408
  %1417 = vst [vmem:[%s8 + $0x38] sm:$0xff] %v1409
  // Predicated region
  $region34: #{_lambda_.9} parent=0 // pred_check
    _
  $region35: #{_lambda_.9} parent=0 // pred_check_branch
    %1419 = sbr.rel (0) target = $region37
  $region36: #{_lambda_.9} parent=0 // pred_region
    _
  $region37: #{_lambda_.9} parent=0 // pred_fallthru
    _
  // Predicated region
  $region38: #{_lambda_.9} parent=0 // pred_check
    _
  $region39: #{_lambda_.9} parent=0 // pred_check_branch
    %1421 = sbr.rel (0) target = $region41
  $region40: #{_lambda_.9} parent=0 // pred_region
    _
  $region41: #{_lambda_.9} parent=0 // pred_fallthru
    _

// kernel: _lambda_.10
$region0: #{_lambda_.10}
  #allocation0 [shape = 'u32[]', space=smem, size = 0x4, offset = 0x4, fixed_abs, tag = 'smem constant byte address 0x4 - core index']
  #allocation1 [shape = 'u32[144,128]{1,0:T(1,128)}', space=vmem, size = 0x12000, scoped, tag = 'internal scratch']
  %s0 = inlined_call_operand.vmem [shape: f32[64,128], index: 0, kind: input, shape index: {}]
  %s1 = inlined_call_operand.vmem [shape: bf16[256,64], index: 1, kind: input, shape index: {}]
  %s2 = inlined_call_operand.vmem [shape: f32[1,64], index: 2, kind: input, shape index: {}]
  %s3 = inlined_call_operand.vmem [shape: bf16[64,128], index: 3, kind: output, shape index: {}]
  %s4 = sld [smem:[#allocation0]]
  $region22: #{_lambda_.10} parent=0
    _
  %s6 = ssub.s32 1, %s4
  %s7 = scalar_select 0, %s6, %s4
  // Predicated region
  $region2: #{_lambda_.10} parent=0 // pred_check
    _
  $region3: #{_lambda_.10} parent=0 // pred_check_branch
    %9 = sbr.rel (0) target = $region5
  $region4: #{_lambda_.10} parent=0 // pred_region
    _
  $region5: #{_lambda_.10} parent=0 // pred_fallthru
    _
  // Predicated region
  $region6: #{_lambda_.10} parent=0 // pred_check
    _
  $region7: #{_lambda_.10} parent=0 // pred_check_branch
    %11 = sbr.rel (0) target = $region9
  $region8: #{_lambda_.10} parent=0 // pred_region
    _
  $region9: #{_lambda_.10} parent=0 // pred_fallthru
    _
  // Predicated region
  $region10: #{_lambda_.10} parent=0 // pred_check
    _
  $region11: #{_lambda_.10} parent=0 // pred_check_branch
    %13 = sbr.rel (0) target = $region13
  $region12: #{_lambda_.10} parent=0 // pred_region
    _
  $region13: #{_lambda_.10} parent=0 // pred_fallthru
    _
  %v15 = vld [vmem:[%s0] sm:$0xff]
  %v16 = vld [vmem:[%s0 + $0x8] sm:$0xff]
  %v17 = vld [vmem:[%s0 + $0x10] sm:$0xff]
  %v18 = vld [vmem:[%s0 + $0x18] sm:$0xff]
  %v19 = vld [vmem:[%s0 + $0x20] sm:$0xff]
  %v20 = vld [vmem:[%s0 + $0x28] sm:$0xff]
  %v21 = vld [vmem:[%s0 + $0x30] sm:$0xff]
  %v22 = vld [vmem:[%s0 + $0x38] sm:$0xff]
  %v23 = vrot.slane %v15, 1
  %v24 = vrot.slane %v16, 1
  %v25 = vrot.slane %v17, 1
  %v26 = vrot.slane %v18, 1
  %v27 = vrot.slane %v19, 1
  %v28 = vrot.slane %v20, 1
  %v29 = vrot.slane %v21, 1
  %v30 = vrot.slane %v22, 1
  %v31 = vlaneseq
  %v32 = vshrl.u32 %v31, 7
  %vm33 = vcmp.lt.s32.totalorder %v32, 7
  %v34 = vsel %vm33, %v29, %v30
  %v35 = vsel %vm33, %v28, %v29
  %v36 = vsel %vm33, %v27, %v28
  %v37 = vsel %vm33, %v26, %v27
  %v38 = vsel %vm33, %v25, %v26
  %v39 = vsel %vm33, %v24, %v25
  %v40 = vsel %vm33, %v23, %v24
  %v41 = vsel %vm33, %v30, %v23
  %v42 = vadd.s32 %v32, 8
  %v43 = vadd.s32 %v32, 16
  %v44 = vadd.s32 %v32, 24
  %v45 = vadd.s32 %v32, 32
  %v46 = vadd.s32 %v32, 40
  %v47 = vadd.s32 %v32, 48
  %v48 = vadd.s32 %v32, 56
  %vm49 = vcmp.lt.s32.totalorder %v32, 0
  %v50 = vsub.s32 0, %v32
  %v51 = vsel %vm49, %v50, %v32
  %v52 = vshrl.u32 %v51, 5
  %v53 = vand.u32 %v51, 31
  %v54 = vsub.s32 0, %v53
  %v55 = vsel %vm49, %v54, %v53
  %vm56 = vcmp.lt.s32.totalorder %v42, 0
  %v57 = vsub.s32 0, %v42
  %v58 = vsel %vm56, %v57, %v42
  %v59 = vshrl.u32 %v58, 5
  %v60 = vand.u32 %v58, 31
  %v61 = vsub.s32 0, %v60
  %v62 = vsel %vm56, %v61, %v60
  %vm63 = vcmp.lt.s32.totalorder %v43, 0
  %v64 = vsub.s32 0, %v43
  %v65 = vsel %vm63, %v64, %v43
  %v66 = vshrl.u32 %v65, 5
  %v67 = vand.u32 %v65, 31
  %v68 = vsub.s32 0, %v67
  %v69 = vsel %vm63, %v68, %v67
  %vm70 = vcmp.lt.s32.totalorder %v44, 0
  %v71 = vsub.s32 0, %v44
  %v72 = vsel %vm70, %v71, %v44
  %v73 = vshrl.u32 %v72, 5
  %v74 = vand.u32 %v72, 31
  %v75 = vsub.s32 0, %v74
  %v76 = vsel %vm70, %v75, %v74
  %vm77 = vcmp.lt.s32.totalorder %v45, 0
  %v78 = vsub.s32 0, %v45
  %v79 = vsel %vm77, %v78, %v45
  %v80 = vshrl.u32 %v79, 5
  %v81 = vand.u32 %v79, 31
  %v82 = vsub.s32 0, %v81
  %v83 = vsel %vm77, %v82, %v81
  %vm84 = vcmp.lt.s32.totalorder %v46, 0
  %v85 = vsub.s32 0, %v46
  %v86 = vsel %vm84, %v85, %v46
  %v87 = vshrl.u32 %v86, 5
  %v88 = vand.u32 %v86, 31
  %v89 = vsub.s32 0, %v88
  %v90 = vsel %vm84, %v89, %v88
  %vm91 = vcmp.lt.s32.totalorder %v47, 0
  %v92 = vsub.s32 0, %v47
  %v93 = vsel %vm91, %v92, %v47
  %v94 = vshrl.u32 %v93, 5
  %v95 = vand.u32 %v93, 31
  %v96 = vsub.s32 0, %v95
  %v97 = vsel %vm91, %v96, %v95
  %vm98 = vcmp.lt.s32.totalorder %v48, 0
  %v99 = vsub.s32 0, %v48
  %v100 = vsel %vm98, %v99, %v48
  %v101 = vshrl.u32 %v100, 5
  %v102 = vand.u32 %v100, 31
  %v103 = vsub.s32 0, %v102
  %v104 = vsel %vm98, %v103, %v102
  %vm105 = vcmp.ne.s32.totalorder %v55, 0
  %vm106 = vcmp.ne.s32.totalorder %v62, 0
  %vm107 = vcmp.ne.s32.totalorder %v69, 0
  %vm108 = vcmp.ne.s32.totalorder %v76, 0
  %vm109 = vcmp.ne.s32.totalorder %v83, 0
  %vm110 = vcmp.ne.s32.totalorder %v90, 0
  %vm111 = vcmp.ne.s32.totalorder %v97, 0
  %vm112 = vcmp.ne.s32.totalorder %v104, 0
  %vm113 = vcmp.lt.s32.totalorder %v55, 0
  %vm114 = vcmp.lt.s32.totalorder %v62, 0
  %vm115 = vcmp.lt.s32.totalorder %v69, 0
  %vm116 = vcmp.lt.s32.totalorder %v76, 0
  %vm117 = vcmp.lt.s32.totalorder %v83, 0
  %vm118 = vcmp.lt.s32.totalorder %v90, 0
  %vm119 = vcmp.lt.s32.totalorder %v97, 0
  %vm120 = vcmp.lt.s32.totalorder %v104, 0
  %vm121 = vmand %vm113, %vm105
  %vm122 = vmand %vm114, %vm106
  %vm123 = vmand %vm115, %vm107
  %vm124 = vmand %vm116, %vm108
  %vm125 = vmand %vm117, %vm109
  %vm126 = vmand %vm118, %vm110
  %vm127 = vmand %vm119, %vm111
  %vm128 = vmand %vm120, %vm112
  %v129 = vadd.s32 %v55, 32
  %v130 = vadd.s32 %v62, 32
  %v131 = vadd.s32 %v69, 32
  %v132 = vadd.s32 %v76, 32
  %v133 = vadd.s32 %v83, 32
  %v134 = vadd.s32 %v90, 32
  %v135 = vadd.s32 %v97, 32
  %v136 = vadd.s32 %v104, 32
  %v137 = vsel %vm121, %v129, %v55
  %v138 = vsel %vm122, %v130, %v62
  %v139 = vsel %vm123, %v131, %v69
  %v140 = vsel %vm124, %v132, %v76
  %v141 = vsel %vm125, %v133, %v83
  %v142 = vsel %vm126, %v134, %v90
  %v143 = vsel %vm127, %v135, %v97
  %v144 = vsel %vm128, %v136, %v104
  %vm145 = vcmp.eq.s32.totalorder %v137, 31
  %vm146 = vcmp.eq.s32.totalorder %v138, 31
  %vm147 = vcmp.eq.s32.totalorder %v139, 31
  %vm148 = vcmp.eq.s32.totalorder %v140, 31
  %vm149 = vcmp.eq.s32.totalorder %v141, 31
  %vm150 = vcmp.eq.s32.totalorder %v142, 31
  %vm151 = vcmp.eq.s32.totalorder %v143, 31
  %vm152 = vcmp.eq.s32.totalorder %v144, 31
  %v153 = vsel %vm145, 0.0, %v40
  %v154 = vsel %vm146, 0.0, %v39
  %v155 = vsel %vm147, 0.0, %v38
  %v156 = vsel %vm148, 0.0, %v37
  %v157 = vsel %vm149, 0.0, %v36
  %v158 = vsel %vm150, 0.0, %v35
  %v159 = vsel %vm151, 0.0, %v34
  %v160 = vsel %vm152, 0.0, %v41
  %v161 = vpack.c.bf16 %v16, %v15
  %v162 = vpack.c.bf16 %v154, %v153
  %v163 = vpack.c.bf16 %v18, %v17
  %v164 = vpack.c.bf16 %v156, %v155
  %v165 = vpack.c.bf16 %v20, %v19
  %v166 = vpack.c.bf16 %v158, %v157
  %v167 = vpack.c.bf16 %v22, %v21
  %v168 = vpack.c.bf16 %v160, %v159
  %v169 = vld [vmem:[%s1] sm:$0xf]
  %v170 = vld [vmem:[%s1 + $0x4] sm:$0xf]
  %v171 = vld [vmem:[%s1 + $0x8] sm:$0xf]
  %v172 = vld [vmem:[%s1 + $0xc] sm:$0xf]
  %v173 = vld [vmem:[%s1 + $0x10] sm:$0xf]
  %v174 = vld [vmem:[%s1 + $0x14] sm:$0xf]
  %v175 = vld [vmem:[%s1 + $0x18] sm:$0xf]
  %v176 = vld [vmem:[%s1 + $0x1c] sm:$0xf]
  %v177 = vld [vmem:[%s1 + $0x20] sm:$0xf]
  %v178 = vld [vmem:[%s1 + $0x24] sm:$0xf]
  %v179 = vld [vmem:[%s1 + $0x28] sm:$0xf]
  %v180 = vld [vmem:[%s1 + $0x2c] sm:$0xf]
  %v181 = vld [vmem:[%s1 + $0x30] sm:$0xf]
  %v182 = vld [vmem:[%s1 + $0x34] sm:$0xf]
  %v183 = vld [vmem:[%s1 + $0x38] sm:$0xf]
  %v184 = vld [vmem:[%s1 + $0x3c] sm:$0xf]
  %v185 = vld [vmem:[%s1 + $0x40] sm:$0xf]
  %v186 = vld [vmem:[%s1 + $0x44] sm:$0xf]
  %v187 = vld [vmem:[%s1 + $0x48] sm:$0xf]
  %v188 = vld [vmem:[%s1 + $0x4c] sm:$0xf]
  %v189 = vld [vmem:[%s1 + $0x50] sm:$0xf]
  %v190 = vld [vmem:[%s1 + $0x54] sm:$0xf]
  %v191 = vld [vmem:[%s1 + $0x58] sm:$0xf]
  %v192 = vld [vmem:[%s1 + $0x5c] sm:$0xf]
  %v193 = vld [vmem:[%s1 + $0x60] sm:$0xf]
  %v194 = vld [vmem:[%s1 + $0x64] sm:$0xf]
  %v195 = vld [vmem:[%s1 + $0x68] sm:$0xf]
  %v196 = vld [vmem:[%s1 + $0x6c] sm:$0xf]
  %v197 = vld [vmem:[%s1 + $0x70] sm:$0xf]
  %v198 = vld [vmem:[%s1 + $0x74] sm:$0xf]
  %v199 = vld [vmem:[%s1 + $0x78] sm:$0xf]
  %v200 = vld [vmem:[%s1 + $0x7c] sm:$0xf]
  %v201 = vld [vmem:[%s2] sm:$0x1]
  %v203 = vlaneseq
  %v204 = vshrl.u32 %v203, 7
  %v205 = vsub.s32 0, %v204
  %v206 = vrot.slane %v201, %v205
  %v240 = vunpack.c.l.b16 %v169
  %v241 = vunpack.c.l.b16 %v170
  %v242 = vunpack.c.l.b16 %v171
  %v243 = vunpack.c.l.b16 %v172
  %v244 = vunpack.c.l.b16 %v173
  %v245 = vunpack.c.l.b16 %v174
  %v246 = vunpack.c.l.b16 %v175
  %v247 = vunpack.c.l.b16 %v176
  %v248 = vunpack.c.l.b16 %v177
  %v249 = vunpack.c.l.b16 %v178
  %v250 = vunpack.c.l.b16 %v179
  %v251 = vunpack.c.l.b16 %v180
  %v252 = vunpack.c.l.b16 %v181
  %v253 = vunpack.c.l.b16 %v182
  %v254 = vunpack.c.l.b16 %v183
  %v255 = vunpack.c.l.b16 %v184
  %v256 = vunpack.c.l.b16 %v185
  %v257 = vunpack.c.l.b16 %v186
  %v258 = vunpack.c.l.b16 %v187
  %v259 = vunpack.c.l.b16 %v188
  %v260 = vunpack.c.l.b16 %v189
  %v261 = vunpack.c.l.b16 %v190
  %v262 = vunpack.c.l.b16 %v191
  %v263 = vunpack.c.l.b16 %v192
  %v264 = vunpack.c.l.b16 %v193
  %v265 = vunpack.c.l.b16 %v194
  %v266 = vunpack.c.l.b16 %v195
  %v267 = vunpack.c.l.b16 %v196
  %v268 = vunpack.c.l.b16 %v197
  %v269 = vunpack.c.l.b16 %v198
  %v270 = vunpack.c.l.b16 %v199
  %v271 = vunpack.c.l.b16 %v200
  %v272 = vpack.c.b16 %v241, %v240
  %v273 = vpack.c.b16 %v243, %v242
  %v274 = vpack.c.b16 %v245, %v244
  %v275 = vpack.c.b16 %v247, %v246
  %v276 = vpack.c.b16 %v249, %v248
  %v277 = vpack.c.b16 %v251, %v250
  %v278 = vpack.c.b16 %v253, %v252
  %v279 = vpack.c.b16 %v255, %v254
  %v280 = vpack.c.b16 %v257, %v256
  %v281 = vpack.c.b16 %v259, %v258
  %v282 = vpack.c.b16 %v261, %v260
  %v283 = vpack.c.b16 %v263, %v262
  %v284 = vpack.c.b16 %v265, %v264
  %v285 = vpack.c.b16 %v267, %v266
  %v286 = vpack.c.b16 %v269, %v268
  %v287 = vpack.c.b16 %v271, %v270
  %304 = vmatprep.subr.bf16.mxu0 0
  %305 = vmatpush1.bf16.msra.mxu0 %v279
  %306 = vmatprep.subr.bf16.mxu0 0
  %307 = vmatpush1.bf16.msra.mxu0 %v278
  %308 = vmatprep.subr.bf16.mxu0 0
  %309 = vmatpush1.bf16.msra.mxu0 %v277
  %310 = vmatprep.subr.bf16.mxu0 0
  %311 = vmatpush1.bf16.msra.mxu0 %v276
  %312 = vmatprep.subr.bf16.mxu0 0
  %313 = vmatpush1.bf16.msra.mxu0 %v275
  %314 = vmatprep.subr.bf16.mxu0 0
  %315 = vmatpush1.bf16.msra.mxu0 %v274
  %316 = vmatprep.subr.bf16.mxu0 0
  %317 = vmatpush1.bf16.msra.mxu0 %v273
  %318 = vmatprep.subr.bf16.mxu0 0
  %319 = vmatpush1.bf16.msra.mxu0 %v272
  %320 = vmatprep.subr.bf16.mxu0 0
  %321 = vmatpush2.bf16.msra.mxu0 %v287
  %322 = vmatprep.subr.bf16.mxu0 0
  %323 = vmatpush2.bf16.msra.mxu0 %v286
  %324 = vmatprep.subr.bf16.mxu0 0
  %325 = vmatpush2.bf16.msra.mxu0 %v285
  %326 = vmatprep.subr.bf16.mxu0 0
  %327 = vmatpush2.bf16.msra.mxu0 %v284
  %328 = vmatprep.subr.bf16.mxu0 0
  %329 = vmatpush2.bf16.msra.mxu0 %v283
  %330 = vmatprep.subr.bf16.mxu0 0
  %331 = vmatpush2.bf16.msra.mxu0 %v282
  %332 = vmatprep.subr.bf16.mxu0 0
  %333 = vmatpush2.bf16.msra.mxu0 %v281
  %334 = vmatprep.subr.bf16.mxu0 0
  %335 = vmatpush2.bf16.msra.mxu0 %v280
  %336 = vmatprep.mubr.bf16.mxu0 %v162
  %337 = vmatmul.mubr.bf16.gmra.mxu0 %v161
  %v338 = vpop.f32.mrf.mxu0
  %v339 = vadd.f32 %v206, %v338
  %v340 = vpop.f32.mrf.mxu0
  %v341 = vpop.f32.mrf.mxu0
  %v342 = vadd.f32 %v206, %v341
  %v343 = vpop.f32.mrf.mxu0
  %344 = vmatprep.mubr.bf16.mxu0 %v164
  %345 = vmatmul.mubr.bf16.gmra.mxu0 %v163
  %v346 = vpop.f32.mrf.mxu0
  %v347 = vadd.f32 %v206, %v346
  %v348 = vpop.f32.mrf.mxu0
  %v349 = vpop.f32.mrf.mxu0
  %v350 = vadd.f32 %v206, %v349
  %v351 = vpop.f32.mrf.mxu0
  %352 = vmatprep.mubr.bf16.mxu0 %v166
  %353 = vmatmul.mubr.bf16.gmra.mxu0 %v165
  %v354 = vpop.f32.mrf.mxu0
  %v355 = vadd.f32 %v206, %v354
  %v356 = vpop.f32.mrf.mxu0
  %v357 = vpop.f32.mrf.mxu0
  %v358 = vadd.f32 %v206, %v357
  %v359 = vpop.f32.mrf.mxu0
  %360 = vmatprep.mubr.bf16.mxu0 %v168
  %361 = vmatmul.mubr.bf16.gmra.mxu0 %v167
  %v362 = vpop.f32.mrf.mxu0
  %v363 = vadd.f32 %v206, %v362
  %v364 = vpop.f32.mrf.mxu0
  %v365 = vpop.f32.mrf.mxu0
  %v366 = vadd.f32 %v206, %v365
  %v367 = vpop.f32.mrf.mxu0
  %368 = vdwg.mxu0
  %v369 = vmax.f32 %v339, 0.0
  %v370 = vmax.f32 %v342, 0.0
  %v371 = vmax.f32 %v347, 0.0
  %v372 = vmax.f32 %v350, 0.0
  %v373 = vmax.f32 %v355, 0.0
  %v374 = vmax.f32 %v358, 0.0
  %v375 = vmax.f32 %v363, 0.0
  %v376 = vmax.f32 %v366, 0.0
  %v377 = vpack.c.bf16 %v370, %v369
  %v378 = vpack.c.bf16 %v372, %v371
  %v379 = vpack.c.bf16 %v374, %v373
  %v380 = vpack.c.bf16 %v376, %v375
  %385 = vrot.lane.b32.xlu0 %v377, 64
  %v386 = vpop.permute.xlu0 %385
  %387 = vrot.lane.b32.xlu0 %v378, 64
  %v388 = vpop.permute.xlu0 %387
  %389 = vrot.lane.b32.xlu0 %v379, 64
  %v390 = vpop.permute.xlu0 %389
  %391 = vrot.lane.b32.xlu0 %v380, 64
  %v392 = vpop.permute.xlu0 %391
  %vm393 = vcmask 523264
  %v396 = vsel %vm393, %v377, %v386
  %v399 = vsel %vm393, %v378, %v388
  %v402 = vsel %vm393, %v379, %v390
  %v405 = vsel %vm393, %v380, %v392
  %v410 = vunpack.c.l.b16 %v396
  %v411 = vunpack.c.h.b16 %v396
  %v412 = vunpack.c.l.b16 %v399
  %v413 = vunpack.c.h.b16 %v399
  %v414 = vunpack.c.l.b16 %v402
  %v415 = vunpack.c.h.b16 %v402
  %v416 = vunpack.c.l.b16 %v405
  %v417 = vunpack.c.h.b16 %v405
  %v418 = vpack.c.b16 %v410, %v410
  %v419 = vpack.c.b16 %v411, %v411
  %v420 = vpack.c.b16 %v412, %v412
  %v421 = vpack.c.b16 %v413, %v413
  %v422 = vpack.c.b16 %v414, %v414
  %v423 = vpack.c.b16 %v415, %v415
  %v424 = vpack.c.b16 %v416, %v416
  %v425 = vpack.c.b16 %v417, %v417
  %434 = vst [vmem:[%s3] sm:$0xf] %v418
  %435 = vst [vmem:[%s3 + $0x4] sm:$0xf] %v419
  %436 = vst [vmem:[%s3 + $0x8] sm:$0xf] %v420
  %437 = vst [vmem:[%s3 + $0xc] sm:$0xf] %v421
  %438 = vst [vmem:[%s3 + $0x10] sm:$0xf] %v422
  %439 = vst [vmem:[%s3 + $0x14] sm:$0xf] %v423
  %440 = vst [vmem:[%s3 + $0x18] sm:$0xf] %v424
  %441 = vst [vmem:[%s3 + $0x1c] sm:$0xf] %v425
  // Predicated region
  $region14: #{_lambda_.10} parent=0 // pred_check
    _
  $region15: #{_lambda_.10} parent=0 // pred_check_branch
    %443 = sbr.rel (0) target = $region17
  $region16: #{_lambda_.10} parent=0 // pred_region
    _
  $region17: #{_lambda_.10} parent=0 // pred_fallthru
    _
  // Predicated region
  $region18: #{_lambda_.10} parent=0 // pred_check
    _
  $region19: #{_lambda_.10} parent=0 // pred_check_branch
    %445 = sbr.rel (0) target = $region21
  $region20: #{_lambda_.10} parent=0 // pred_region
    _
  $region21: #{_lambda_.10} parent=0 // pred_fallthru
    _

// kernel: _lambda_.11
$region0: #{_lambda_.11}
  #allocation0 [shape = 'u32[]', space=smem, size = 0x4, offset = 0x4, fixed_abs, tag = 'smem constant byte address 0x4 - core index']
  #allocation1 [shape = 'u32[144,128]{1,0:T(1,128)}', space=vmem, size = 0x12000, scoped, tag = 'internal scratch']
  %s0 = inlined_call_operand.vmem [shape: bf16[128,64], index: 0, kind: input, shape index: {}]
  %s1 = inlined_call_operand.vmem [shape: f32[128,64], index: 1, kind: input, shape index: {}]
  %s2 = inlined_call_operand.vmem [shape: f32[16,64], index: 2, kind: input, shape index: {}]
  %s3 = inlined_call_operand.vmem [shape: bf16[128,32], index: 3, kind: input, shape index: {}]
  %s4 = inlined_call_operand.vmem [shape: bf16[96,32], index: 4, kind: input, shape index: {}]
  %s5 = inlined_call_operand.vmem [shape: bf16[32,64], index: 5, kind: input, shape index: {}]
  %s6 = inlined_call_operand.vmem [shape: bf16[128,64], index: 6, kind: input, shape index: {}]
  %s7 = inlined_call_operand.vmem [shape: bf16[64,32], index: 7, kind: input, shape index: {}]
  %s8 = inlined_call_operand.vmem [shape: f32[128,64], index: 8, kind: output, shape index: {}]
  %s9 = sld [smem:[#allocation0]]
  $region42: #{_lambda_.11} parent=0
    _
  %s11 = ssub.s32 1, %s9
  %s12 = scalar_select 0, %s11, %s9
  // Predicated region
  $region2: #{_lambda_.11} parent=0 // pred_check
    _
  $region3: #{_lambda_.11} parent=0 // pred_check_branch
    %14 = sbr.rel (0) target = $region5
  $region4: #{_lambda_.11} parent=0 // pred_region
    _
  $region5: #{_lambda_.11} parent=0 // pred_fallthru
    _
  // Predicated region
  $region6: #{_lambda_.11} parent=0 // pred_check
    _
  $region7: #{_lambda_.11} parent=0 // pred_check_branch
    %16 = sbr.rel (0) target = $region9
  $region8: #{_lambda_.11} parent=0 // pred_region
    _
  $region9: #{_lambda_.11} parent=0 // pred_fallthru
    _
  // Predicated region
  $region10: #{_lambda_.11} parent=0 // pred_check
    _
  $region11: #{_lambda_.11} parent=0 // pred_check_branch
    %18 = sbr.rel (0) target = $region13
  $region12: #{_lambda_.11} parent=0 // pred_region
    _
  $region13: #{_lambda_.11} parent=0 // pred_fallthru
    _
  // Predicated region
  $region14: #{_lambda_.11} parent=0 // pred_check
    _
  $region15: #{_lambda_.11} parent=0 // pred_check_branch
    %20 = sbr.rel (0) target = $region17
  $region16: #{_lambda_.11} parent=0 // pred_region
    _
  $region17: #{_lambda_.11} parent=0 // pred_fallthru
    _
  // Predicated region
  $region18: #{_lambda_.11} parent=0 // pred_check
    _
  $region19: #{_lambda_.11} parent=0 // pred_check_branch
    %22 = sbr.rel (0) target = $region21
  $region20: #{_lambda_.11} parent=0 // pred_region
    _
  $region21: #{_lambda_.11} parent=0 // pred_fallthru
    _
  // Predicated region
  $region22: #{_lambda_.11} parent=0 // pred_check
    _
  $region23: #{_lambda_.11} parent=0 // pred_check_branch
    %24 = sbr.rel (0) target = $region25
  $region24: #{_lambda_.11} parent=0 // pred_region
    _
  $region25: #{_lambda_.11} parent=0 // pred_fallthru
    _
  // Predicated region
  $region26: #{_lambda_.11} parent=0 // pred_check
    _
  $region27: #{_lambda_.11} parent=0 // pred_check_branch
    %26 = sbr.rel (0) target = $region29
  $region28: #{_lambda_.11} parent=0 // pred_region
    _
  $region29: #{_lambda_.11} parent=0 // pred_fallthru
    _
  // Predicated region
  $region30: #{_lambda_.11} parent=0 // pred_check
    _
  $region31: #{_lambda_.11} parent=0 // pred_check_branch
    %28 = sbr.rel (0) target = $region33
  $region32: #{_lambda_.11} parent=0 // pred_region
    _
  $region33: #{_lambda_.11} parent=0 // pred_fallthru
    _
  %v30 = vld [vmem:[%s0] sm:$0xf]
  %v31 = vld [vmem:[%s0 + $0x4] sm:$0xf]
  %v32 = vld [vmem:[%s0 + $0x8] sm:$0xf]
  %v33 = vld [vmem:[%s0 + $0xc] sm:$0xf]
  %v34 = vld [vmem:[%s0 + $0x10] sm:$0xf]
  %v35 = vld [vmem:[%s0 + $0x14] sm:$0xf]
  %v36 = vld [vmem:[%s0 + $0x18] sm:$0xf]
  %v37 = vld [vmem:[%s0 + $0x1c] sm:$0xf]
  %v38 = vld [vmem:[%s0 + $0x20] sm:$0xf]
  %v39 = vld [vmem:[%s0 + $0x24] sm:$0xf]
  %v40 = vld [vmem:[%s0 + $0x28] sm:$0xf]
  %v41 = vld [vmem:[%s0 + $0x2c] sm:$0xf]
  %v42 = vld [vmem:[%s0 + $0x30] sm:$0xf]
  %v43 = vld [vmem:[%s0 + $0x34] sm:$0xf]
  %v44 = vld [vmem:[%s0 + $0x38] sm:$0xf]
  %v45 = vld [vmem:[%s0 + $0x3c] sm:$0xf]
  %v46 = vunpack.c.l.bf16 %v30
  %v47 = vunpack.c.l.bf16 %v31
  %v48 = vunpack.c.l.bf16 %v32
  %v49 = vunpack.c.l.bf16 %v33
  %v50 = vunpack.c.l.bf16 %v34
  %v51 = vunpack.c.l.bf16 %v35
  %v52 = vunpack.c.l.bf16 %v36
  %v53 = vunpack.c.l.bf16 %v37
  %v54 = vunpack.c.l.bf16 %v38
  %v55 = vunpack.c.l.bf16 %v39
  %v56 = vunpack.c.l.bf16 %v40
  %v57 = vunpack.c.l.bf16 %v41
  %v58 = vunpack.c.l.bf16 %v42
  %v59 = vunpack.c.l.bf16 %v43
  %v60 = vunpack.c.l.bf16 %v44
  %v61 = vunpack.c.l.bf16 %v45
  %v62 = vld [vmem:[%s1] sm:$0xff]
  %v63 = vld [vmem:[%s1 + $0x8] sm:$0xff]
  %v64 = vld [vmem:[%s1 + $0x10] sm:$0xff]
  %v65 = vld [vmem:[%s1 + $0x18] sm:$0xff]
  %v66 = vld [vmem:[%s1 + $0x20] sm:$0xff]
  %v67 = vld [vmem:[%s1 + $0x28] sm:$0xff]
  %v68 = vld [vmem:[%s1 + $0x30] sm:$0xff]
  %v69 = vld [vmem:[%s1 + $0x38] sm:$0xff]
  %v70 = vld [vmem:[%s1 + $0x40] sm:$0xff]
  %v71 = vld [vmem:[%s1 + $0x48] sm:$0xff]
  %v72 = vld [vmem:[%s1 + $0x50] sm:$0xff]
  %v73 = vld [vmem:[%s1 + $0x58] sm:$0xff]
  %v74 = vld [vmem:[%s1 + $0x60] sm:$0xff]
  %v75 = vld [vmem:[%s1 + $0x68] sm:$0xff]
  %v76 = vld [vmem:[%s1 + $0x70] sm:$0xff]
  %v77 = vld [vmem:[%s1 + $0x78] sm:$0xff]
  %v78 = vld [vmem:[%s2] sm:$0xff]
  %v79 = vld [vmem:[%s2 + $0x8] sm:$0xff]
  %v80 = vlaneseq
  %v81 = vshrl.u32 %v80, 7
  %v82 = vsub.s32 0, %v81
  %v83 = vrot.slane %v78, %v82
  %v84 = vmul.f32 %v46, %v83
  %v85 = vmul.f32 %v47, %v83
  %v86 = vmul.f32 %v48, %v83
  %v87 = vmul.f32 %v49, %v83
  %v88 = vmul.f32 %v50, %v83
  %v89 = vmul.f32 %v51, %v83
  %v90 = vmul.f32 %v52, %v83
  %v91 = vmul.f32 %v53, %v83
  %v92 = vmul.f32 %v54, %v83
  %v93 = vmul.f32 %v55, %v83
  %v94 = vmul.f32 %v56, %v83
  %v95 = vmul.f32 %v57, %v83
  %v96 = vmul.f32 %v58, %v83
  %v97 = vmul.f32 %v59, %v83
  %v98 = vmul.f32 %v60, %v83
  %v99 = vmul.f32 %v61, %v83
  %v100 = vlaneseq
  %v101 = vshrl.u32 %v100, 7
  %v102 = vsub.s32 1, %v101
  %v103 = vrot.slane %v78, %v102
  %v104 = vadd.f32 %v84, %v103
  %v105 = vadd.f32 %v85, %v103
  %v106 = vadd.f32 %v86, %v103
  %v107 = vadd.f32 %v87, %v103
  %v108 = vadd.f32 %v88, %v103
  %v109 = vadd.f32 %v89, %v103
  %v110 = vadd.f32 %v90, %v103
  %v111 = vadd.f32 %v91, %v103
  %v112 = vadd.f32 %v92, %v103
  %v113 = vadd.f32 %v93, %v103
  %v114 = vadd.f32 %v94, %v103
  %v115 = vadd.f32 %v95, %v103
  %v116 = vadd.f32 %v96, %v103
  %v117 = vadd.f32 %v97, %v103
  %v118 = vadd.f32 %v98, %v103
  %v119 = vadd.f32 %v99, %v103
  %v120 = vmax.f32 %v104, 0.0
  %v121 = vmax.f32 %v105, 0.0
  %v122 = vmax.f32 %v106, 0.0
  %v123 = vmax.f32 %v107, 0.0
  %v124 = vmax.f32 %v108, 0.0
  %v125 = vmax.f32 %v109, 0.0
  %v126 = vmax.f32 %v110, 0.0
  %v127 = vmax.f32 %v111, 0.0
  %v128 = vmax.f32 %v112, 0.0
  %v129 = vmax.f32 %v113, 0.0
  %v130 = vmax.f32 %v114, 0.0
  %v131 = vmax.f32 %v115, 0.0
  %v132 = vmax.f32 %v116, 0.0
  %v133 = vmax.f32 %v117, 0.0
  %v134 = vmax.f32 %v118, 0.0
  %v135 = vmax.f32 %v119, 0.0
  %v136 = vlaneseq
  %v137 = vshrl.u32 %v136, 7
  %v138 = vsub.s32 2, %v137
  %v139 = vrot.slane %v78, %v138
  %v140 = vmul.f32 %v62, %v139
  %v141 = vmul.f32 %v63, %v139
  %v142 = vmul.f32 %v64, %v139
  %v143 = vmul.f32 %v65, %v139
  %v144 = vmul.f32 %v66, %v139
  %v145 = vmul.f32 %v67, %v139
  %v146 = vmul.f32 %v68, %v139
  %v147 = vmul.f32 %v69, %v139
  %v148 = vmul.f32 %v70, %v139
  %v149 = vmul.f32 %v71, %v139
  %v150 = vmul.f32 %v72, %v139
  %v151 = vmul.f32 %v73, %v139
  %v152 = vmul.f32 %v74, %v139
  %v153 = vmul.f32 %v75, %v139
  %v154 = vmul.f32 %v76, %v139
  %v155 = vmul.f32 %v77, %v139
  %v156 = vlaneseq
  %v157 = vshrl.u32 %v156, 7
  %v158 = vsub.s32 3, %v157
  %v159 = vrot.slane %v78, %v158
  %v160 = vadd.f32 %v140, %v159
  %v161 = vadd.f32 %v141, %v159
  %v162 = vadd.f32 %v142, %v159
  %v163 = vadd.f32 %v143, %v159
  %v164 = vadd.f32 %v144, %v159
  %v165 = vadd.f32 %v145, %v159
  %v166 = vadd.f32 %v146, %v159
  %v167 = vadd.f32 %v147, %v159
  %v168 = vadd.f32 %v148, %v159
  %v169 = vadd.f32 %v149, %v159
  %v170 = vadd.f32 %v150, %v159
  %v171 = vadd.f32 %v151, %v159
  %v172 = vadd.f32 %v152, %v159
  %v173 = vadd.f32 %v153, %v159
  %v174 = vadd.f32 %v154, %v159
  %v175 = vadd.f32 %v155, %v159
  %v176 = vmax.f32 %v160, 0.0
  %v177 = vmax.f32 %v161, 0.0
  %v178 = vmax.f32 %v162, 0.0
  %v179 = vmax.f32 %v163, 0.0
  %v180 = vmax.f32 %v164, 0.0
  %v181 = vmax.f32 %v165, 0.0
  %v182 = vmax.f32 %v166, 0.0
  %v183 = vmax.f32 %v167, 0.0
  %v184 = vmax.f32 %v168, 0.0
  %v185 = vmax.f32 %v169, 0.0
  %v186 = vmax.f32 %v170, 0.0
  %v187 = vmax.f32 %v171, 0.0
  %v188 = vmax.f32 %v172, 0.0
  %v189 = vmax.f32 %v173, 0.0
  %v190 = vmax.f32 %v174, 0.0
  %v191 = vmax.f32 %v175, 0.0
  %208 = vrot.lane.b32.xlu0 %v176, 64
  %v209 = vpop.permute.xlu0 %208
  %210 = vrot.lane.b32.xlu0 %v177, 64
  %v211 = vpop.permute.xlu0 %210
  %212 = vrot.lane.b32.xlu0 %v178, 64
  %v213 = vpop.permute.xlu0 %212
  %214 = vrot.lane.b32.xlu0 %v179, 64
  %v215 = vpop.permute.xlu0 %214
  %216 = vrot.lane.b32.xlu0 %v180, 64
  %v217 = vpop.permute.xlu0 %216
  %218 = vrot.lane.b32.xlu0 %v181, 64
  %v219 = vpop.permute.xlu0 %218
  %220 = vrot.lane.b32.xlu0 %v182, 64
  %v221 = vpop.permute.xlu0 %220
  %222 = vrot.lane.b32.xlu0 %v183, 64
  %v223 = vpop.permute.xlu0 %222
  %224 = vrot.lane.b32.xlu0 %v184, 64
  %v225 = vpop.permute.xlu0 %224
  %226 = vrot.lane.b32.xlu0 %v185, 64
  %v227 = vpop.permute.xlu0 %226
  %228 = vrot.lane.b32.xlu0 %v186, 64
  %v229 = vpop.permute.xlu0 %228
  %230 = vrot.lane.b32.xlu0 %v187, 64
  %v231 = vpop.permute.xlu0 %230
  %232 = vrot.lane.b32.xlu0 %v188, 64
  %v233 = vpop.permute.xlu0 %232
  %234 = vrot.lane.b32.xlu0 %v189, 64
  %v235 = vpop.permute.xlu0 %234
  %236 = vrot.lane.b32.xlu0 %v190, 64
  %v237 = vpop.permute.xlu0 %236
  %238 = vrot.lane.b32.xlu0 %v191, 64
  %v239 = vpop.permute.xlu0 %238
  %vm256 = vcmask 523264
  %v257 = vsel %vm256, %v120, %v209
  %v258 = vsel %vm256, %v121, %v211
  %v259 = vsel %vm256, %v122, %v213
  %v260 = vsel %vm256, %v123, %v215
  %v261 = vsel %vm256, %v124, %v217
  %v262 = vsel %vm256, %v125, %v219
  %v263 = vsel %vm256, %v126, %v221
  %v264 = vsel %vm256, %v127, %v223
  %v265 = vsel %vm256, %v128, %v225
  %v266 = vsel %vm256, %v129, %v227
  %v267 = vsel %vm256, %v130, %v229
  %v268 = vsel %vm256, %v131, %v231
  %v269 = vsel %vm256, %v132, %v233
  %v270 = vsel %vm256, %v133, %v235
  %v271 = vsel %vm256, %v134, %v237
  %v272 = vsel %vm256, %v135, %v239
  %v273 = vpack.c.bf16 %v258, %v257
  %v274 = vpack.c.bf16 %v260, %v259
  %v275 = vpack.c.bf16 %v262, %v261
  %v276 = vpack.c.bf16 %v264, %v263
  %v277 = vpack.c.bf16 %v266, %v265
  %v278 = vpack.c.bf16 %v268, %v267
  %v279 = vpack.c.bf16 %v270, %v269
  %v280 = vpack.c.bf16 %v272, %v271
  %v281 = vld [vmem:[%s3] sm:$0xf]
  %v282 = vld [vmem:[%s3 + $0x4] sm:$0xf]
  %v283 = vld [vmem:[%s3 + $0x8] sm:$0xf]
  %v284 = vld [vmem:[%s3 + $0xc] sm:$0xf]
  %v285 = vld [vmem:[%s3 + $0x10] sm:$0xf]
  %v286 = vld [vmem:[%s3 + $0x14] sm:$0xf]
  %v287 = vld [vmem:[%s3 + $0x18] sm:$0xf]
  %v288 = vld [vmem:[%s3 + $0x1c] sm:$0xf]
  %v289 = vld [vmem:[%s3 + $0x20] sm:$0xf]
  %v290 = vld [vmem:[%s3 + $0x24] sm:$0xf]
  %v291 = vld [vmem:[%s3 + $0x28] sm:$0xf]
  %v292 = vld [vmem:[%s3 + $0x2c] sm:$0xf]
  %v293 = vld [vmem:[%s3 + $0x30] sm:$0xf]
  %v294 = vld [vmem:[%s3 + $0x34] sm:$0xf]
  %v295 = vld [vmem:[%s3 + $0x38] sm:$0xf]
  %v296 = vld [vmem:[%s3 + $0x3c] sm:$0xf]
  %v297 = vlaneseq
  %v298 = vshrl.u32 %v297, 7
  %v299 = vsub.s32 0, %v298
  %v300 = vrot.slane %v79, %v299
  %v317 = vunpack.c.l.b16 %v281
  %v318 = vunpack.c.l.b16 %v282
  %v319 = vunpack.c.l.b16 %v283
  %v320 = vunpack.c.l.b16 %v284
  %v321 = vunpack.c.l.b16 %v285
  %v322 = vunpack.c.l.b16 %v286
  %v323 = vunpack.c.l.b16 %v287
  %v324 = vunpack.c.l.b16 %v288
  %v325 = vunpack.c.l.b16 %v289
  %v326 = vunpack.c.l.b16 %v290
  %v327 = vunpack.c.l.b16 %v291
  %v328 = vunpack.c.l.b16 %v292
  %v329 = vunpack.c.l.b16 %v293
  %v330 = vunpack.c.l.b16 %v294
  %v331 = vunpack.c.l.b16 %v295
  %v332 = vunpack.c.l.b16 %v296
  %v333 = vpack.c.b16 %v318, %v317
  %v334 = vpack.c.b16 %v320, %v319
  %v335 = vpack.c.b16 %v322, %v321
  %v336 = vpack.c.b16 %v324, %v323
  %v337 = vpack.c.b16 %v326, %v325
  %v338 = vpack.c.b16 %v328, %v327
  %v339 = vpack.c.b16 %v330, %v329
  %v340 = vpack.c.b16 %v332, %v331
  %349 = vmatprep.subr.bf16.mxu0 0
  %350 = vmatpush1.bf16.msra.mxu0 %v340
  %351 = vmatprep.subr.bf16.mxu0 0
  %352 = vmatpush1.bf16.msra.mxu0 %v339
  %353 = vmatprep.subr.bf16.mxu0 0
  %354 = vmatpush1.bf16.msra.mxu0 %v338
  %355 = vmatprep.subr.bf16.mxu0 0
  %356 = vmatpush1.bf16.msra.mxu0 %v337
  %357 = vmatprep.subr.bf16.mxu0 0
  %358 = vmatpush1.bf16.msra.mxu0 %v336
  %359 = vmatprep.subr.bf16.mxu0 0
  %360 = vmatpush1.bf16.msra.mxu0 %v335
  %361 = vmatprep.subr.bf16.mxu0 0
  %362 = vmatpush1.bf16.msra.mxu0 %v334
  %363 = vmatprep.subr.bf16.mxu0 0
  %364 = vmatpush1.bf16.msra.mxu0 %v333
  %365 = vmatprep.subr.bf16.mxu0 0
  %366 = vmatpush2.bf16.msra.mxu0 0
  %367 = vmatprep.subr.bf16.mxu0 0
  %368 = vmatpush2.bf16.msra.mxu0 0
  %369 = vmatprep.subr.bf16.mxu0 0
  %370 = vmatpush2.bf16.msra.mxu0 0
  %371 = vmatprep.subr.bf16.mxu0 0
  %372 = vmatpush2.bf16.msra.mxu0 0
  %373 = vmatprep.subr.bf16.mxu0 0
  %374 = vmatpush2.bf16.msra.mxu0 0
  %375 = vmatprep.subr.bf16.mxu0 0
  %376 = vmatpush2.bf16.msra.mxu0 0
  %377 = vmatprep.subr.bf16.mxu0 0
  %378 = vmatpush2.bf16.msra.mxu0 0
  %379 = vmatprep.subr.bf16.mxu0 0
  %380 = vmatpush2.bf16.msra.mxu0 0
  %381 = vmatprep.mubr.bf16.mxu0 0
  %382 = vmatmul.mubr.bf16.gmra.mxu0 %v273
  %v383 = vpop.f32.mrf.mxu0
  %v384 = vadd.f32 %v300, %v383
  %v385 = vpop.f32.mrf.mxu0
  %v386 = vpop.f32.mrf.mxu0
  %v387 = vadd.f32 %v300, %v386
  %v388 = vpop.f32.mrf.mxu0
  %389 = vmatprep.mubr.bf16.mxu0 0
  %390 = vmatmul.mubr.bf16.gmra.mxu0 %v274
  %v391 = vpop.f32.mrf.mxu0
  %v392 = vadd.f32 %v300, %v391
  %v393 = vpop.f32.mrf.mxu0
  %v394 = vpop.f32.mrf.mxu0
  %v395 = vadd.f32 %v300, %v394
  %v396 = vpop.f32.mrf.mxu0
  %397 = vmatprep.mubr.bf16.mxu0 0
  %398 = vmatmul.mubr.bf16.gmra.mxu0 %v275
  %v399 = vpop.f32.mrf.mxu0
  %v400 = vadd.f32 %v300, %v399
  %v401 = vpop.f32.mrf.mxu0
  %v402 = vpop.f32.mrf.mxu0
  %v403 = vadd.f32 %v300, %v402
  %v404 = vpop.f32.mrf.mxu0
  %405 = vmatprep.mubr.bf16.mxu0 0
  %406 = vmatmul.mubr.bf16.gmra.mxu0 %v276
  %v407 = vpop.f32.mrf.mxu0
  %v408 = vadd.f32 %v300, %v407
  %v409 = vpop.f32.mrf.mxu0
  %v410 = vpop.f32.mrf.mxu0
  %v411 = vadd.f32 %v300, %v410
  %v412 = vpop.f32.mrf.mxu0
  %413 = vmatprep.mubr.bf16.mxu0 0
  %414 = vmatmul.mubr.bf16.gmra.mxu0 %v277
  %v415 = vpop.f32.mrf.mxu0
  %v416 = vadd.f32 %v300, %v415
  %v417 = vpop.f32.mrf.mxu0
  %v418 = vpop.f32.mrf.mxu0
  %v419 = vadd.f32 %v300, %v418
  %v420 = vpop.f32.mrf.mxu0
  %421 = vmatprep.mubr.bf16.mxu0 0
  %422 = vmatmul.mubr.bf16.gmra.mxu0 %v278
  %v423 = vpop.f32.mrf.mxu0
  %v424 = vadd.f32 %v300, %v423
  %v425 = vpop.f32.mrf.mxu0
  %v426 = vpop.f32.mrf.mxu0
  %v427 = vadd.f32 %v300, %v426
  %v428 = vpop.f32.mrf.mxu0
  %429 = vmatprep.mubr.bf16.mxu0 0
  %430 = vmatmul.mubr.bf16.gmra.mxu0 %v279
  %v431 = vpop.f32.mrf.mxu0
  %v432 = vadd.f32 %v300, %v431
  %v433 = vpop.f32.mrf.mxu0
  %v434 = vpop.f32.mrf.mxu0
  %v435 = vadd.f32 %v300, %v434
  %v436 = vpop.f32.mrf.mxu0
  %437 = vmatprep.mubr.bf16.mxu0 0
  %438 = vmatmul.mubr.bf16.gmra.mxu0 %v280
  %v439 = vpop.f32.mrf.mxu0
  %v440 = vadd.f32 %v300, %v439
  %v441 = vpop.f32.mrf.mxu0
  %v442 = vpop.f32.mrf.mxu0
  %v443 = vadd.f32 %v300, %v442
  %v444 = vpop.f32.mrf.mxu0
  %445 = vdwg.mxu0
  %v446 = vmax.f32 %v384, 0.0
  %v447 = vmax.f32 %v387, 0.0
  %v448 = vmax.f32 %v392, 0.0
  %v449 = vmax.f32 %v395, 0.0
  %v450 = vmax.f32 %v400, 0.0
  %v451 = vmax.f32 %v403, 0.0
  %v452 = vmax.f32 %v408, 0.0
  %v453 = vmax.f32 %v411, 0.0
  %v454 = vmax.f32 %v416, 0.0
  %v455 = vmax.f32 %v419, 0.0
  %v456 = vmax.f32 %v424, 0.0
  %v457 = vmax.f32 %v427, 0.0
  %v458 = vmax.f32 %v432, 0.0
  %v459 = vmax.f32 %v435, 0.0
  %v460 = vmax.f32 %v440, 0.0
  %v461 = vmax.f32 %v443, 0.0
  %v462 = vlaneseq
  %v463 = vshrl.u32 %v462, 7
  %v464 = vadd.s32 %v463, 8
  %v465 = vadd.s32 %v463, 16
  %v466 = vadd.s32 %v463, 24
  %v467 = vadd.s32 %v463, 32
  %v468 = vadd.s32 %v463, 40
  %v469 = vadd.s32 %v463, 48
  %v470 = vadd.s32 %v463, 56
  %v471 = vadd.s32 %v463, 64
  %v472 = vadd.s32 %v463, 72
  %v473 = vadd.s32 %v463, 80
  %v474 = vadd.s32 %v463, 88
  %v475 = vadd.s32 %v463, 96
  %v476 = vadd.s32 %v463, 104
  %v477 = vadd.s32 %v463, 112
  %v478 = vadd.s32 %v463, 120
  %vm479 = vcmp.lt.s32.totalorder %v463, 0
  %v480 = vsub.s32 0, %v463
  %v481 = vsel %vm479, %v480, %v463
  %v482 = vshrl.u32 %v481, 6
  %v483 = vand.u32 %v481, 63
  %v484 = vsub.s32 0, %v483
  %v485 = vsel %vm479, %v484, %v483
  %vm486 = vcmp.lt.s32.totalorder %v464, 0
  %v487 = vsub.s32 0, %v464
  %v488 = vsel %vm486, %v487, %v464
  %v489 = vshrl.u32 %v488, 6
  %v490 = vand.u32 %v488, 63
  %v491 = vsub.s32 0, %v490
  %v492 = vsel %vm486, %v491, %v490
  %vm493 = vcmp.lt.s32.totalorder %v465, 0
  %v494 = vsub.s32 0, %v465
  %v495 = vsel %vm493, %v494, %v465
  %v496 = vshrl.u32 %v495, 6
  %v497 = vand.u32 %v495, 63
  %v498 = vsub.s32 0, %v497
  %v499 = vsel %vm493, %v498, %v497
  %vm500 = vcmp.lt.s32.totalorder %v466, 0
  %v501 = vsub.s32 0, %v466
  %v502 = vsel %vm500, %v501, %v466
  %v503 = vshrl.u32 %v502, 6
  %v504 = vand.u32 %v502, 63
  %v505 = vsub.s32 0, %v504
  %v506 = vsel %vm500, %v505, %v504
  %vm507 = vcmp.lt.s32.totalorder %v467, 0
  %v508 = vsub.s32 0, %v467
  %v509 = vsel %vm507, %v508, %v467
  %v510 = vshrl.u32 %v509, 6
  %v511 = vand.u32 %v509, 63
  %v512 = vsub.s32 0, %v511
  %v513 = vsel %vm507, %v512, %v511
  %vm514 = vcmp.lt.s32.totalorder %v468, 0
  %v515 = vsub.s32 0, %v468
  %v516 = vsel %vm514, %v515, %v468
  %v517 = vshrl.u32 %v516, 6
  %v518 = vand.u32 %v516, 63
  %v519 = vsub.s32 0, %v518
  %v520 = vsel %vm514, %v519, %v518
  %vm521 = vcmp.lt.s32.totalorder %v469, 0
  %v522 = vsub.s32 0, %v469
  %v523 = vsel %vm521, %v522, %v469
  %v524 = vshrl.u32 %v523, 6
  %v525 = vand.u32 %v523, 63
  %v526 = vsub.s32 0, %v525
  %v527 = vsel %vm521, %v526, %v525
  %vm528 = vcmp.lt.s32.totalorder %v470, 0
  %v529 = vsub.s32 0, %v470
  %v530 = vsel %vm528, %v529, %v470
  %v531 = vshrl.u32 %v530, 6
  %v532 = vand.u32 %v530, 63
  %v533 = vsub.s32 0, %v532
  %v534 = vsel %vm528, %v533, %v532
  %vm535 = vcmp.lt.s32.totalorder %v471, 0
  %v536 = vsub.s32 0, %v471
  %v537 = vsel %vm535, %v536, %v471
  %v538 = vshrl.u32 %v537, 6
  %v539 = vand.u32 %v537, 63
  %v540 = vsub.s32 0, %v539
  %v541 = vsel %vm535, %v540, %v539
  %vm542 = vcmp.lt.s32.totalorder %v472, 0
  %v543 = vsub.s32 0, %v472
  %v544 = vsel %vm542, %v543, %v472
  %v545 = vshrl.u32 %v544, 6
  %v546 = vand.u32 %v544, 63
  %v547 = vsub.s32 0, %v546
  %v548 = vsel %vm542, %v547, %v546
  %vm549 = vcmp.lt.s32.totalorder %v473, 0
  %v550 = vsub.s32 0, %v473
  %v551 = vsel %vm549, %v550, %v473
  %v552 = vshrl.u32 %v551, 6
  %v553 = vand.u32 %v551, 63
  %v554 = vsub.s32 0, %v553
  %v555 = vsel %vm549, %v554, %v553
  %vm556 = vcmp.lt.s32.totalorder %v474, 0
  %v557 = vsub.s32 0, %v474
  %v558 = vsel %vm556, %v557, %v474
  %v559 = vshrl.u32 %v558, 6
  %v560 = vand.u32 %v558, 63
  %v561 = vsub.s32 0, %v560
  %v562 = vsel %vm556, %v561, %v560
  %vm563 = vcmp.lt.s32.totalorder %v475, 0
  %v564 = vsub.s32 0, %v475
  %v565 = vsel %vm563, %v564, %v475
  %v566 = vshrl.u32 %v565, 6
  %v567 = vand.u32 %v565, 63
  %v568 = vsub.s32 0, %v567
  %v569 = vsel %vm563, %v568, %v567
  %vm570 = vcmp.lt.s32.totalorder %v476, 0
  %v571 = vsub.s32 0, %v476
  %v572 = vsel %vm570, %v571, %v476
  %v573 = vshrl.u32 %v572, 6
  %v574 = vand.u32 %v572, 63
  %v575 = vsub.s32 0, %v574
  %v576 = vsel %vm570, %v575, %v574
  %vm577 = vcmp.lt.s32.totalorder %v477, 0
  %v578 = vsub.s32 0, %v477
  %v579 = vsel %vm577, %v578, %v477
  %v580 = vshrl.u32 %v579, 6
  %v581 = vand.u32 %v579, 63
  %v582 = vsub.s32 0, %v581
  %v583 = vsel %vm577, %v582, %v581
  %vm584 = vcmp.lt.s32.totalorder %v478, 0
  %v585 = vsub.s32 0, %v478
  %v586 = vsel %vm584, %v585, %v478
  %v587 = vshrl.u32 %v586, 6
  %v588 = vand.u32 %v586, 63
  %v589 = vsub.s32 0, %v588
  %v590 = vsel %vm584, %v589, %v588
  %vm591 = vcmp.ne.s32.totalorder %v485, 0
  %vm592 = vcmp.ne.s32.totalorder %v492, 0
  %vm593 = vcmp.ne.s32.totalorder %v499, 0
  %vm594 = vcmp.ne.s32.totalorder %v506, 0
  %vm595 = vcmp.ne.s32.totalorder %v513, 0
  %vm596 = vcmp.ne.s32.totalorder %v520, 0
  %vm597 = vcmp.ne.s32.totalorder %v527, 0
  %vm598 = vcmp.ne.s32.totalorder %v534, 0
  %vm599 = vcmp.ne.s32.totalorder %v541, 0
  %vm600 = vcmp.ne.s32.totalorder %v548, 0
  %vm601 = vcmp.ne.s32.totalorder %v555, 0
  %vm602 = vcmp.ne.s32.totalorder %v562, 0
  %vm603 = vcmp.ne.s32.totalorder %v569, 0
  %vm604 = vcmp.ne.s32.totalorder %v576, 0
  %vm605 = vcmp.ne.s32.totalorder %v583, 0
  %vm606 = vcmp.ne.s32.totalorder %v590, 0
  %vm607 = vcmp.lt.s32.totalorder %v485, 0
  %vm608 = vcmp.lt.s32.totalorder %v492, 0
  %vm609 = vcmp.lt.s32.totalorder %v499, 0
  %vm610 = vcmp.lt.s32.totalorder %v506, 0
  %vm611 = vcmp.lt.s32.totalorder %v513, 0
  %vm612 = vcmp.lt.s32.totalorder %v520, 0
  %vm613 = vcmp.lt.s32.totalorder %v527, 0
  %vm614 = vcmp.lt.s32.totalorder %v534, 0
  %vm615 = vcmp.lt.s32.totalorder %v541, 0
  %vm616 = vcmp.lt.s32.totalorder %v548, 0
  %vm617 = vcmp.lt.s32.totalorder %v555, 0
  %vm618 = vcmp.lt.s32.totalorder %v562, 0
  %vm619 = vcmp.lt.s32.totalorder %v569, 0
  %vm620 = vcmp.lt.s32.totalorder %v576, 0
  %vm621 = vcmp.lt.s32.totalorder %v583, 0
  %vm622 = vcmp.lt.s32.totalorder %v590, 0
  %vm623 = vmand %vm607, %vm591
  %vm624 = vmand %vm608, %vm592
  %vm625 = vmand %vm609, %vm593
  %vm626 = vmand %vm610, %vm594
  %vm627 = vmand %vm611, %vm595
  %vm628 = vmand %vm612, %vm596
  %vm629 = vmand %vm613, %vm597
  %vm630 = vmand %vm614, %vm598
  %vm631 = vmand %vm615, %vm599
  %vm632 = vmand %vm616, %vm600
  %vm633 = vmand %vm617, %vm601
  %vm634 = vmand %vm618, %vm602
  %vm635 = vmand %vm619, %vm603
  %vm636 = vmand %vm620, %vm604
  %vm637 = vmand %vm621, %vm605
  %vm638 = vmand %vm622, %vm606
  %v639 = vadd.s32 %v485, 64
  %v640 = vadd.s32 %v492, 64
  %v641 = vadd.s32 %v499, 64
  %v642 = vadd.s32 %v506, 64
  %v643 = vadd.s32 %v513, 64
  %v644 = vadd.s32 %v520, 64
  %v645 = vadd.s32 %v527, 64
  %v646 = vadd.s32 %v534, 64
  %v647 = vadd.s32 %v541, 64
  %v648 = vadd.s32 %v548, 64
  %v649 = vadd.s32 %v555, 64
  %v650 = vadd.s32 %v562, 64
  %v651 = vadd.s32 %v569, 64
  %v652 = vadd.s32 %v576, 64
  %v653 = vadd.s32 %v583, 64
  %v654 = vadd.s32 %v590, 64
  %v655 = vsel %vm623, %v639, %v485
  %v656 = vsel %vm624, %v640, %v492
  %v657 = vsel %vm625, %v641, %v499
  %v658 = vsel %vm626, %v642, %v506
  %v659 = vsel %vm627, %v643, %v513
  %v660 = vsel %vm628, %v644, %v520
  %v661 = vsel %vm629, %v645, %v527
  %v662 = vsel %vm630, %v646, %v534
  %v663 = vsel %vm631, %v647, %v541
  %v664 = vsel %vm632, %v648, %v548
  %v665 = vsel %vm633, %v649, %v555
  %v666 = vsel %vm634, %v650, %v562
  %v667 = vsel %vm635, %v651, %v569
  %v668 = vsel %vm636, %v652, %v576
  %v669 = vsel %vm637, %v653, %v583
  %v670 = vsel %vm638, %v654, %v590
  %vm671 = vcmp.eq.s32.totalorder %v655, 0
  %vm672 = vcmp.eq.s32.totalorder %v656, 0
  %vm673 = vcmp.eq.s32.totalorder %v657, 0
  %vm674 = vcmp.eq.s32.totalorder %v658, 0
  %vm675 = vcmp.eq.s32.totalorder %v659, 0
  %vm676 = vcmp.eq.s32.totalorder %v660, 0
  %vm677 = vcmp.eq.s32.totalorder %v661, 0
  %vm678 = vcmp.eq.s32.totalorder %v662, 0
  %vm679 = vcmp.eq.s32.totalorder %v663, 0
  %vm680 = vcmp.eq.s32.totalorder %v664, 0
  %vm681 = vcmp.eq.s32.totalorder %v665, 0
  %vm682 = vcmp.eq.s32.totalorder %v666, 0
  %vm683 = vcmp.eq.s32.totalorder %v667, 0
  %vm684 = vcmp.eq.s32.totalorder %v668, 0
  %vm685 = vcmp.eq.s32.totalorder %v669, 0
  %vm686 = vcmp.eq.s32.totalorder %v670, 0
  %v687 = vrot.slane %v446, 7
  %v688 = vrot.slane %v447, 7
  %v689 = vrot.slane %v448, 7
  %v690 = vrot.slane %v449, 7
  %v691 = vrot.slane %v450, 7
  %v692 = vrot.slane %v451, 7
  %v693 = vrot.slane %v452, 7
  %v694 = vrot.slane %v453, 7
  %v695 = vrot.slane %v454, 7
  %v696 = vrot.slane %v455, 7
  %v697 = vrot.slane %v456, 7
  %v698 = vrot.slane %v457, 7
  %v699 = vrot.slane %v458, 7
  %v700 = vrot.slane %v459, 7
  %v701 = vrot.slane %v460, 7
  %v702 = vrot.slane %v461, 7
  %vm703 = vcmp.lt.s32.totalorder %v463, 1
  %v704 = vsel %vm703, %v701, %v702
  %v705 = vsel %vm703, %v700, %v701
  %v706 = vsel %vm703, %v699, %v700
  %v707 = vsel %vm703, %v698, %v699
  %v708 = vsel %vm703, %v697, %v698
  %v709 = vsel %vm703, %v696, %v697
  %v710 = vsel %vm703, %v695, %v696
  %v711 = vsel %vm703, %v694, %v695
  %v712 = vsel %vm703, %v693, %v694
  %v713 = vsel %vm703, %v692, %v693
  %v714 = vsel %vm703, %v691, %v692
  %v715 = vsel %vm703, %v690, %v691
  %v716 = vsel %vm703, %v689, %v690
  %v717 = vsel %vm703, %v688, %v689
  %v718 = vsel %vm703, %v687, %v688
  %v719 = vsel %vm703, %v702, %v687
  %v720 = vsel %vm671, 0.0, %v719
  %v721 = vsel %vm672, 0.0, %v718
  %v722 = vsel %vm673, 0.0, %v717
  %v723 = vsel %vm674, 0.0, %v716
  %v724 = vsel %vm675, 0.0, %v715
  %v725 = vsel %vm676, 0.0, %v714
  %v726 = vsel %vm677, 0.0, %v713
  %v727 = vsel %vm678, 0.0, %v712
  %v728 = vsel %vm679, 0.0, %v711
  %v729 = vsel %vm680, 0.0, %v710
  %v730 = vsel %vm681, 0.0, %v709
  %v731 = vsel %vm682, 0.0, %v708
  %v732 = vsel %vm683, 0.0, %v707
  %v733 = vsel %vm684, 0.0, %v706
  %v734 = vsel %vm685, 0.0, %v705
  %v735 = vsel %vm686, 0.0, %v704
  %vm736 = vcmp.eq.s32.totalorder %v655, 63
  %vm737 = vcmp.eq.s32.totalorder %v656, 63
  %vm738 = vcmp.eq.s32.totalorder %v657, 63
  %vm739 = vcmp.eq.s32.totalorder %v658, 63
  %vm740 = vcmp.eq.s32.totalorder %v659, 63
  %vm741 = vcmp.eq.s32.totalorder %v660, 63
  %vm742 = vcmp.eq.s32.totalorder %v661, 63
  %vm743 = vcmp.eq.s32.totalorder %v662, 63
  %vm744 = vcmp.eq.s32.totalorder %v663, 63
  %vm745 = vcmp.eq.s32.totalorder %v664, 63
  %vm746 = vcmp.eq.s32.totalorder %v665, 63
  %vm747 = vcmp.eq.s32.totalorder %v666, 63
  %vm748 = vcmp.eq.s32.totalorder %v667, 63
  %vm749 = vcmp.eq.s32.totalorder %v668, 63
  %vm750 = vcmp.eq.s32.totalorder %v669, 63
  %vm751 = vcmp.eq.s32.totalorder %v670, 63
  %v752 = vrot.slane %v446, 1
  %v753 = vrot.slane %v447, 1
  %v754 = vrot.slane %v448, 1
  %v755 = vrot.slane %v449, 1
  %v756 = vrot.slane %v450, 1
  %v757 = vrot.slane %v451, 1
  %v758 = vrot.slane %v452, 1
  %v759 = vrot.slane %v453, 1
  %v760 = vrot.slane %v454, 1
  %v761 = vrot.slane %v455, 1
  %v762 = vrot.slane %v456, 1
  %v763 = vrot.slane %v457, 1
  %v764 = vrot.slane %v458, 1
  %v765 = vrot.slane %v459, 1
  %v766 = vrot.slane %v460, 1
  %v767 = vrot.slane %v461, 1
  %vm768 = vcmp.lt.s32.totalorder %v463, 7
  %v769 = vsel %vm768, %v766, %v767
  %v770 = vsel %vm768, %v765, %v766
  %v771 = vsel %vm768, %v764, %v765
  %v772 = vsel %vm768, %v763, %v764
  %v773 = vsel %vm768, %v762, %v763
  %v774 = vsel %vm768, %v761, %v762
  %v775 = vsel %vm768, %v760, %v761
  %v776 = vsel %vm768, %v759, %v760
  %v777 = vsel %vm768, %v758, %v759
  %v778 = vsel %vm768, %v757, %v758
  %v779 = vsel %vm768, %v756, %v757
  %v780 = vsel %vm768, %v755, %v756
  %v781 = vsel %vm768, %v754, %v755
  %v782 = vsel %vm768, %v753, %v754
  %v783 = vsel %vm768, %v752, %v753
  %v784 = vsel %vm768, %v767, %v752
  %v785 = vsel %vm736, 0.0, %v783
  %v786 = vsel %vm737, 0.0, %v782
  %v787 = vsel %vm738, 0.0, %v781
  %v788 = vsel %vm739, 0.0, %v780
  %v789 = vsel %vm740, 0.0, %v779
  %v790 = vsel %vm741, 0.0, %v778
  %v791 = vsel %vm742, 0.0, %v777
  %v792 = vsel %vm743, 0.0, %v776
  %v793 = vsel %vm744, 0.0, %v775
  %v794 = vsel %vm745, 0.0, %v774
  %v795 = vsel %vm746, 0.0, %v773
  %v796 = vsel %vm747, 0.0, %v772
  %v797 = vsel %vm748, 0.0, %v771
  %v798 = vsel %vm749, 0.0, %v770
  %v799 = vsel %vm750, 0.0, %v769
  %v800 = vsel %vm751, 0.0, %v784
  %817 = vrot.lane.b32.xlu0 %v446, 32
  %v818 = vpop.permute.xlu0 %817
  %819 = vrot.lane.b32.xlu0 %v447, 32
  %v820 = vpop.permute.xlu0 %819
  %821 = vrot.lane.b32.xlu0 %v448, 32
  %v822 = vpop.permute.xlu0 %821
  %823 = vrot.lane.b32.xlu0 %v449, 32
  %v824 = vpop.permute.xlu0 %823
  %825 = vrot.lane.b32.xlu0 %v450, 32
  %v826 = vpop.permute.xlu0 %825
  %827 = vrot.lane.b32.xlu0 %v451, 32
  %v828 = vpop.permute.xlu0 %827
  %829 = vrot.lane.b32.xlu0 %v452, 32
  %v830 = vpop.permute.xlu0 %829
  %831 = vrot.lane.b32.xlu0 %v453, 32
  %v832 = vpop.permute.xlu0 %831
  %833 = vrot.lane.b32.xlu0 %v454, 32
  %v834 = vpop.permute.xlu0 %833
  %835 = vrot.lane.b32.xlu0 %v455, 32
  %v836 = vpop.permute.xlu0 %835
  %837 = vrot.lane.b32.xlu0 %v456, 32
  %v838 = vpop.permute.xlu0 %837
  %839 = vrot.lane.b32.xlu0 %v457, 32
  %v840 = vpop.permute.xlu0 %839
  %841 = vrot.lane.b32.xlu0 %v458, 32
  %v842 = vpop.permute.xlu0 %841
  %843 = vrot.lane.b32.xlu0 %v459, 32
  %v844 = vpop.permute.xlu0 %843
  %845 = vrot.lane.b32.xlu0 %v460, 32
  %v846 = vpop.permute.xlu0 %845
  %847 = vrot.lane.b32.xlu0 %v461, 32
  %v848 = vpop.permute.xlu0 %847
  %881 = vrot.lane.b32.xlu0 %v785, 64
  %v882 = vpop.permute.xlu0 %881
  %883 = vrot.lane.b32.xlu0 %v786, 64
  %v884 = vpop.permute.xlu0 %883
  %885 = vrot.lane.b32.xlu0 %v787, 64
  %v886 = vpop.permute.xlu0 %885
  %887 = vrot.lane.b32.xlu0 %v788, 64
  %v888 = vpop.permute.xlu0 %887
  %889 = vrot.lane.b32.xlu0 %v789, 64
  %v890 = vpop.permute.xlu0 %889
  %891 = vrot.lane.b32.xlu0 %v790, 64
  %v892 = vpop.permute.xlu0 %891
  %893 = vrot.lane.b32.xlu0 %v791, 64
  %v894 = vpop.permute.xlu0 %893
  %895 = vrot.lane.b32.xlu0 %v792, 64
  %v896 = vpop.permute.xlu0 %895
  %897 = vrot.lane.b32.xlu0 %v793, 64
  %v898 = vpop.permute.xlu0 %897
  %899 = vrot.lane.b32.xlu0 %v794, 64
  %v900 = vpop.permute.xlu0 %899
  %901 = vrot.lane.b32.xlu0 %v795, 64
  %v902 = vpop.permute.xlu0 %901
  %903 = vrot.lane.b32.xlu0 %v796, 64
  %v904 = vpop.permute.xlu0 %903
  %905 = vrot.lane.b32.xlu0 %v797, 64
  %v906 = vpop.permute.xlu0 %905
  %907 = vrot.lane.b32.xlu0 %v798, 64
  %v908 = vpop.permute.xlu0 %907
  %909 = vrot.lane.b32.xlu0 %v799, 64
  %v910 = vpop.permute.xlu0 %909
  %911 = vrot.lane.b32.xlu0 %v800, 64
  %v912 = vpop.permute.xlu0 %911
  %vm929 = vcmask 261120
  %v930 = vsel %vm929, %v720, %v818
  %v931 = vsel %vm929, %v721, %v820
  %v932 = vsel %vm929, %v722, %v822
  %v933 = vsel %vm929, %v723, %v824
  %v934 = vsel %vm929, %v724, %v826
  %v935 = vsel %vm929, %v725, %v828
  %v936 = vsel %vm929, %v726, %v830
  %v937 = vsel %vm929, %v727, %v832
  %v938 = vsel %vm929, %v728, %v834
  %v939 = vsel %vm929, %v729, %v836
  %v940 = vsel %vm929, %v730, %v838
  %v941 = vsel %vm929, %v731, %v840
  %v942 = vsel %vm929, %v732, %v842
  %v943 = vsel %vm929, %v733, %v844
  %v944 = vsel %vm929, %v734, %v846
  %v945 = vsel %vm929, %v735, %v848
  %v946 = vsel %vm256, %v930, %v882
  %v947 = vsel %vm256, %v931, %v884
  %v948 = vsel %vm256, %v932, %v886
  %v949 = vsel %vm256, %v933, %v888
  %v950 = vsel %vm256, %v934, %v890
  %v951 = vsel %vm256, %v935, %v892
  %v952 = vsel %vm256, %v936, %v894
  %v953 = vsel %vm256, %v937, %v896
  %v954 = vsel %vm256, %v938, %v898
  %v955 = vsel %vm256, %v939, %v900
  %v956 = vsel %vm256, %v940, %v902
  %v957 = vsel %vm256, %v941, %v904
  %v958 = vsel %vm256, %v942, %v906
  %v959 = vsel %vm256, %v943, %v908
  %v960 = vsel %vm256, %v944, %v910
  %v961 = vsel %vm256, %v945, %v912
  %v962 = vpack.c.bf16 %v947, %v946
  %v963 = vpack.c.bf16 %v949, %v948
  %v964 = vpack.c.bf16 %v951, %v950
  %v965 = vpack.c.bf16 %v953, %v952
  %v966 = vpack.c.bf16 %v955, %v954
  %v967 = vpack.c.bf16 %v957, %v956
  %v968 = vpack.c.bf16 %v959, %v958
  %v969 = vpack.c.bf16 %v961, %v960
  %v970 = vld [vmem:[%s4] sm:$0xf]
  %v971 = vld [vmem:[%s4 + $0x4] sm:$0xf]
  %v972 = vld [vmem:[%s4 + $0x8] sm:$0xf]
  %v973 = vld [vmem:[%s4 + $0xc] sm:$0xf]
  %v974 = vld [vmem:[%s4 + $0x10] sm:$0xf]
  %v975 = vld [vmem:[%s4 + $0x14] sm:$0xf]
  %v976 = vld [vmem:[%s4 + $0x18] sm:$0xf]
  %v977 = vld [vmem:[%s4 + $0x1c] sm:$0xf]
  %v978 = vld [vmem:[%s4 + $0x20] sm:$0xf]
  %v979 = vld [vmem:[%s4 + $0x24] sm:$0xf]
  %v980 = vld [vmem:[%s4 + $0x28] sm:$0xf]
  %v981 = vld [vmem:[%s4 + $0x2c] sm:$0xf]
  %v994 = vunpack.c.l.b16 %v970
  %v995 = vunpack.c.l.b16 %v971
  %v996 = vunpack.c.l.b16 %v972
  %v997 = vunpack.c.l.b16 %v973
  %v998 = vunpack.c.l.b16 %v974
  %v999 = vunpack.c.l.b16 %v975
  %v1000 = vunpack.c.l.b16 %v976
  %v1001 = vunpack.c.l.b16 %v977
  %v1002 = vunpack.c.l.b16 %v978
  %v1003 = vunpack.c.l.b16 %v979
  %v1004 = vunpack.c.l.b16 %v980
  %v1005 = vunpack.c.l.b16 %v981
  %v1006 = vpack.c.b16 %v995, %v994
  %v1007 = vpack.c.b16 %v997, %v996
  %v1008 = vpack.c.b16 %v999, %v998
  %v1009 = vpack.c.b16 %v1001, %v1000
  %v1010 = vpack.c.b16 %v1003, %v1002
  %v1011 = vpack.c.b16 %v1005, %v1004
  %1019 = vrot.lane.b32.xlu0 %v300, 96
  %v1020 = vpop.permute.xlu0 %1019
  %vm1022 = vcmask 785408
  %v1024 = vsel %vm1022, %v962, 0
  %v1027 = vsel %vm1022, %v963, 0
  %v1030 = vsel %vm1022, %v964, 0
  %v1033 = vsel %vm1022, %v965, 0
  %v1036 = vsel %vm1022, %v966, 0
  %v1039 = vsel %vm1022, %v967, 0
  %v1042 = vsel %vm1022, %v968, 0
  %v1045 = vsel %vm1022, %v969, 0
  %1047 = vmatprep.subr.bf16.mxu0 0
  %1048 = vmatpush1.bf16.msra.mxu0 0
  %1049 = vmatprep.subr.bf16.mxu0 0
  %1050 = vmatpush1.bf16.msra.mxu0 0
  %1051 = vmatprep.subr.bf16.mxu0 0
  %1052 = vmatpush1.bf16.msra.mxu0 %v1011
  %1053 = vmatprep.subr.bf16.mxu0 0
  %1054 = vmatpush1.bf16.msra.mxu0 %v1010
  %1055 = vmatprep.subr.bf16.mxu0 0
  %1056 = vmatpush1.bf16.msra.mxu0 %v1009
  %1057 = vmatprep.subr.bf16.mxu0 0
  %1058 = vmatpush1.bf16.msra.mxu0 %v1008
  %1059 = vmatprep.subr.bf16.mxu0 0
  %1060 = vmatpush1.bf16.msra.mxu0 %v1007
  %1061 = vmatprep.subr.bf16.mxu0 0
  %1062 = vmatpush1.bf16.msra.mxu0 %v1006
  %1063 = vmatprep.subr.bf16.mxu0 0
  %1064 = vmatpush2.bf16.msra.mxu0 0
  %1065 = vmatprep.subr.bf16.mxu0 0
  %1066 = vmatpush2.bf16.msra.mxu0 0
  %1067 = vmatprep.subr.bf16.mxu0 0
  %1068 = vmatpush2.bf16.msra.mxu0 0
  %1069 = vmatprep.subr.bf16.mxu0 0
  %1070 = vmatpush2.bf16.msra.mxu0 0
  %1071 = vmatprep.subr.bf16.mxu0 0
  %1072 = vmatpush2.bf16.msra.mxu0 0
  %1073 = vmatprep.subr.bf16.mxu0 0
  %1074 = vmatpush2.bf16.msra.mxu0 0
  %1075 = vmatprep.subr.bf16.mxu0 0
  %1076 = vmatpush2.bf16.msra.mxu0 0
  %1077 = vmatprep.subr.bf16.mxu0 0
  %1078 = vmatpush2.bf16.msra.mxu0 0
  %1079 = vmatprep.mubr.bf16.mxu0 0
  %1080 = vmatmul.mubr.bf16.gmra.mxu0 %v1024
  %v1081 = vpop.f32.mrf.mxu0
  %v1082 = vadd.f32 %v1020, %v1081
  %v1083 = vpop.f32.mrf.mxu0
  %v1084 = vpop.f32.mrf.mxu0
  %v1085 = vadd.f32 %v1020, %v1084
  %v1086 = vpop.f32.mrf.mxu0
  %1087 = vmatprep.mubr.bf16.mxu0 0
  %1088 = vmatmul.mubr.bf16.gmra.mxu0 %v1027
  %v1089 = vpop.f32.mrf.mxu0
  %v1090 = vadd.f32 %v1020, %v1089
  %v1091 = vpop.f32.mrf.mxu0
  %v1092 = vpop.f32.mrf.mxu0
  %v1093 = vadd.f32 %v1020, %v1092
  %v1094 = vpop.f32.mrf.mxu0
  %1095 = vmatprep.mubr.bf16.mxu0 0
  %1096 = vmatmul.mubr.bf16.gmra.mxu0 %v1030
  %v1097 = vpop.f32.mrf.mxu0
  %v1098 = vadd.f32 %v1020, %v1097
  %v1099 = vpop.f32.mrf.mxu0
  %v1100 = vpop.f32.mrf.mxu0
  %v1101 = vadd.f32 %v1020, %v1100
  %v1102 = vpop.f32.mrf.mxu0
  %1103 = vmatprep.mubr.bf16.mxu0 0
  %1104 = vmatmul.mubr.bf16.gmra.mxu0 %v1033
  %v1105 = vpop.f32.mrf.mxu0
  %v1106 = vadd.f32 %v1020, %v1105
  %v1107 = vpop.f32.mrf.mxu0
  %v1108 = vpop.f32.mrf.mxu0
  %v1109 = vadd.f32 %v1020, %v1108
  %v1110 = vpop.f32.mrf.mxu0
  %1111 = vmatprep.mubr.bf16.mxu0 0
  %1112 = vmatmul.mubr.bf16.gmra.mxu0 %v1036
  %v1113 = vpop.f32.mrf.mxu0
  %v1114 = vadd.f32 %v1020, %v1113
  %v1115 = vpop.f32.mrf.mxu0
  %v1116 = vpop.f32.mrf.mxu0
  %v1117 = vadd.f32 %v1020, %v1116
  %v1118 = vpop.f32.mrf.mxu0
  %1119 = vmatprep.mubr.bf16.mxu0 0
  %1120 = vmatmul.mubr.bf16.gmra.mxu0 %v1039
  %v1121 = vpop.f32.mrf.mxu0
  %v1122 = vadd.f32 %v1020, %v1121
  %v1123 = vpop.f32.mrf.mxu0
  %v1124 = vpop.f32.mrf.mxu0
  %v1125 = vadd.f32 %v1020, %v1124
  %v1126 = vpop.f32.mrf.mxu0
  %1127 = vmatprep.mubr.bf16.mxu0 0
  %1128 = vmatmul.mubr.bf16.gmra.mxu0 %v1042
  %v1129 = vpop.f32.mrf.mxu0
  %v1130 = vadd.f32 %v1020, %v1129
  %v1131 = vpop.f32.mrf.mxu0
  %v1132 = vpop.f32.mrf.mxu0
  %v1133 = vadd.f32 %v1020, %v1132
  %v1134 = vpop.f32.mrf.mxu0
  %1135 = vmatprep.mubr.bf16.mxu0 0
  %1136 = vmatmul.mubr.bf16.gmra.mxu0 %v1045
  %v1137 = vpop.f32.mrf.mxu0
  %v1138 = vadd.f32 %v1020, %v1137
  %v1139 = vpop.f32.mrf.mxu0
  %v1140 = vpop.f32.mrf.mxu0
  %v1141 = vadd.f32 %v1020, %v1140
  %v1142 = vpop.f32.mrf.mxu0
  %1143 = vdwg.mxu0
  %v1144 = vmax.f32 %v1082, 0.0
  %v1145 = vmax.f32 %v1085, 0.0
  %v1146 = vmax.f32 %v1090, 0.0
  %v1147 = vmax.f32 %v1093, 0.0
  %v1148 = vmax.f32 %v1098, 0.0
  %v1149 = vmax.f32 %v1101, 0.0
  %v1150 = vmax.f32 %v1106, 0.0
  %v1151 = vmax.f32 %v1109, 0.0
  %v1152 = vmax.f32 %v1114, 0.0
  %v1153 = vmax.f32 %v1117, 0.0
  %v1154 = vmax.f32 %v1122, 0.0
  %v1155 = vmax.f32 %v1125, 0.0
  %v1156 = vmax.f32 %v1130, 0.0
  %v1157 = vmax.f32 %v1133, 0.0
  %v1158 = vmax.f32 %v1138, 0.0
  %v1159 = vmax.f32 %v1141, 0.0
  %v1160 = vpack.c.bf16 %v1145, %v1144
  %v1161 = vpack.c.bf16 %v1147, %v1146
  %v1162 = vpack.c.bf16 %v1149, %v1148
  %v1163 = vpack.c.bf16 %v1151, %v1150
  %v1164 = vpack.c.bf16 %v1153, %v1152
  %v1165 = vpack.c.bf16 %v1155, %v1154
  %v1166 = vpack.c.bf16 %v1157, %v1156
  %v1167 = vpack.c.bf16 %v1159, %v1158
  %v1168 = vld [vmem:[%s5] sm:$0xf]
  %v1169 = vld [vmem:[%s5 + $0x4] sm:$0xf]
  %v1170 = vld [vmem:[%s5 + $0x8] sm:$0xf]
  %v1171 = vld [vmem:[%s5 + $0xc] sm:$0xf]
  %v1172 = vlaneseq
  %v1173 = vshrl.u32 %v1172, 7
  %v1174 = vsub.s32 4, %v1173
  %v1175 = vrot.slane %v78, %v1174
  %v1176 = vmul.f32 %v46, %v1175
  %v1177 = vmul.f32 %v47, %v1175
  %v1178 = vmul.f32 %v48, %v1175
  %v1179 = vmul.f32 %v49, %v1175
  %v1180 = vmul.f32 %v50, %v1175
  %v1181 = vmul.f32 %v51, %v1175
  %v1182 = vmul.f32 %v52, %v1175
  %v1183 = vmul.f32 %v53, %v1175
  %v1184 = vmul.f32 %v54, %v1175
  %v1185 = vmul.f32 %v55, %v1175
  %v1186 = vmul.f32 %v56, %v1175
  %v1187 = vmul.f32 %v57, %v1175
  %v1188 = vmul.f32 %v58, %v1175
  %v1189 = vmul.f32 %v59, %v1175
  %v1190 = vmul.f32 %v60, %v1175
  %v1191 = vmul.f32 %v61, %v1175
  %v1192 = vlaneseq
  %v1193 = vshrl.u32 %v1192, 7
  %v1194 = vsub.s32 5, %v1193
  %v1195 = vrot.slane %v78, %v1194
  %v1196 = vadd.f32 %v1176, %v1195
  %v1197 = vadd.f32 %v1177, %v1195
  %v1198 = vadd.f32 %v1178, %v1195
  %v1199 = vadd.f32 %v1179, %v1195
  %v1200 = vadd.f32 %v1180, %v1195
  %v1201 = vadd.f32 %v1181, %v1195
  %v1202 = vadd.f32 %v1182, %v1195
  %v1203 = vadd.f32 %v1183, %v1195
  %v1204 = vadd.f32 %v1184, %v1195
  %v1205 = vadd.f32 %v1185, %v1195
  %v1206 = vadd.f32 %v1186, %v1195
  %v1207 = vadd.f32 %v1187, %v1195
  %v1208 = vadd.f32 %v1188, %v1195
  %v1209 = vadd.f32 %v1189, %v1195
  %v1210 = vadd.f32 %v1190, %v1195
  %v1211 = vadd.f32 %v1191, %v1195
  %v1212 = vmax.f32 %v1196, 0.0
  %v1213 = vmax.f32 %v1197, 0.0
  %v1214 = vmax.f32 %v1198, 0.0
  %v1215 = vmax.f32 %v1199, 0.0
  %v1216 = vmax.f32 %v1200, 0.0
  %v1217 = vmax.f32 %v1201, 0.0
  %v1218 = vmax.f32 %v1202, 0.0
  %v1219 = vmax.f32 %v1203, 0.0
  %v1220 = vmax.f32 %v1204, 0.0
  %v1221 = vmax.f32 %v1205, 0.0
  %v1222 = vmax.f32 %v1206, 0.0
  %v1223 = vmax.f32 %v1207, 0.0
  %v1224 = vmax.f32 %v1208, 0.0
  %v1225 = vmax.f32 %v1209, 0.0
  %v1226 = vmax.f32 %v1210, 0.0
  %v1227 = vmax.f32 %v1211, 0.0
  %v1228 = vlaneseq
  %v1229 = vshrl.u32 %v1228, 7
  %v1230 = vsub.s32 6, %v1229
  %v1231 = vrot.slane %v78, %v1230
  %v1232 = vmul.f32 %v62, %v1231
  %v1233 = vmul.f32 %v63, %v1231
  %v1234 = vmul.f32 %v64, %v1231
  %v1235 = vmul.f32 %v65, %v1231
  %v1236 = vmul.f32 %v66, %v1231
  %v1237 = vmul.f32 %v67, %v1231
  %v1238 = vmul.f32 %v68, %v1231
  %v1239 = vmul.f32 %v69, %v1231
  %v1240 = vmul.f32 %v70, %v1231
  %v1241 = vmul.f32 %v71, %v1231
  %v1242 = vmul.f32 %v72, %v1231
  %v1243 = vmul.f32 %v73, %v1231
  %v1244 = vmul.f32 %v74, %v1231
  %v1245 = vmul.f32 %v75, %v1231
  %v1246 = vmul.f32 %v76, %v1231
  %v1247 = vmul.f32 %v77, %v1231
  %v1248 = vlaneseq
  %v1249 = vshrl.u32 %v1248, 7
  %v1250 = vsub.s32 7, %v1249
  %v1251 = vrot.slane %v78, %v1250
  %v1252 = vadd.f32 %v1232, %v1251
  %v1253 = vadd.f32 %v1233, %v1251
  %v1254 = vadd.f32 %v1234, %v1251
  %v1255 = vadd.f32 %v1235, %v1251
  %v1256 = vadd.f32 %v1236, %v1251
  %v1257 = vadd.f32 %v1237, %v1251
  %v1258 = vadd.f32 %v1238, %v1251
  %v1259 = vadd.f32 %v1239, %v1251
  %v1260 = vadd.f32 %v1240, %v1251
  %v1261 = vadd.f32 %v1241, %v1251
  %v1262 = vadd.f32 %v1242, %v1251
  %v1263 = vadd.f32 %v1243, %v1251
  %v1264 = vadd.f32 %v1244, %v1251
  %v1265 = vadd.f32 %v1245, %v1251
  %v1266 = vadd.f32 %v1246, %v1251
  %v1267 = vadd.f32 %v1247, %v1251
  %v1268 = vmax.f32 %v1252, 0.0
  %v1269 = vmax.f32 %v1253, 0.0
  %v1270 = vmax.f32 %v1254, 0.0
  %v1271 = vmax.f32 %v1255, 0.0
  %v1272 = vmax.f32 %v1256, 0.0
  %v1273 = vmax.f32 %v1257, 0.0
  %v1274 = vmax.f32 %v1258, 0.0
  %v1275 = vmax.f32 %v1259, 0.0
  %v1276 = vmax.f32 %v1260, 0.0
  %v1277 = vmax.f32 %v1261, 0.0
  %v1278 = vmax.f32 %v1262, 0.0
  %v1279 = vmax.f32 %v1263, 0.0
  %v1280 = vmax.f32 %v1264, 0.0
  %v1281 = vmax.f32 %v1265, 0.0
  %v1282 = vmax.f32 %v1266, 0.0
  %v1283 = vmax.f32 %v1267, 0.0
  %1300 = vrot.lane.b32.xlu0 %v1268, 64
  %v1301 = vpop.permute.xlu0 %1300
  %1302 = vrot.lane.b32.xlu0 %v1269, 64
  %v1303 = vpop.permute.xlu0 %1302
  %1304 = vrot.lane.b32.xlu0 %v1270, 64
  %v1305 = vpop.permute.xlu0 %1304
  %1306 = vrot.lane.b32.xlu0 %v1271, 64
  %v1307 = vpop.permute.xlu0 %1306
  %1308 = vrot.lane.b32.xlu0 %v1272, 64
  %v1309 = vpop.permute.xlu0 %1308
  %1310 = vrot.lane.b32.xlu0 %v1273, 64
  %v1311 = vpop.permute.xlu0 %1310
  %1312 = vrot.lane.b32.xlu0 %v1274, 64
  %v1313 = vpop.permute.xlu0 %1312
  %1314 = vrot.lane.b32.xlu0 %v1275, 64
  %v1315 = vpop.permute.xlu0 %1314
  %1316 = vrot.lane.b32.xlu0 %v1276, 64
  %v1317 = vpop.permute.xlu0 %1316
  %1318 = vrot.lane.b32.xlu0 %v1277, 64
  %v1319 = vpop.permute.xlu0 %1318
  %1320 = vrot.lane.b32.xlu0 %v1278, 64
  %v1321 = vpop.permute.xlu0 %1320
  %1322 = vrot.lane.b32.xlu0 %v1279, 64
  %v1323 = vpop.permute.xlu0 %1322
  %1324 = vrot.lane.b32.xlu0 %v1280, 64
  %v1325 = vpop.permute.xlu0 %1324
  %1326 = vrot.lane.b32.xlu0 %v1281, 64
  %v1327 = vpop.permute.xlu0 %1326
  %1328 = vrot.lane.b32.xlu0 %v1282, 64
  %v1329 = vpop.permute.xlu0 %1328
  %1330 = vrot.lane.b32.xlu0 %v1283, 64
  %v1331 = vpop.permute.xlu0 %1330
  %v1348 = vsel %vm256, %v1212, %v1301
  %v1349 = vsel %vm256, %v1213, %v1303
  %v1350 = vsel %vm256, %v1214, %v1305
  %v1351 = vsel %vm256, %v1215, %v1307
  %v1352 = vsel %vm256, %v1216, %v1309
  %v1353 = vsel %vm256, %v1217, %v1311
  %v1354 = vsel %vm256, %v1218, %v1313
  %v1355 = vsel %vm256, %v1219, %v1315
  %v1356 = vsel %vm256, %v1220, %v1317
  %v1357 = vsel %vm256, %v1221, %v1319
  %v1358 = vsel %vm256, %v1222, %v1321
  %v1359 = vsel %vm256, %v1223, %v1323
  %v1360 = vsel %vm256, %v1224, %v1325
  %v1361 = vsel %vm256, %v1225, %v1327
  %v1362 = vsel %vm256, %v1226, %v1329
  %v1363 = vsel %vm256, %v1227, %v1331
  %v1364 = vpack.c.bf16 %v1349, %v1348
  %v1365 = vpack.c.bf16 %v1351, %v1350
  %v1366 = vpack.c.bf16 %v1353, %v1352
  %v1367 = vpack.c.bf16 %v1355, %v1354
  %v1368 = vpack.c.bf16 %v1357, %v1356
  %v1369 = vpack.c.bf16 %v1359, %v1358
  %v1370 = vpack.c.bf16 %v1361, %v1360
  %v1371 = vpack.c.bf16 %v1363, %v1362
  %v1372 = vld [vmem:[%s6] sm:$0xf]
  %v1373 = vld [vmem:[%s6 + $0x4] sm:$0xf]
  %v1374 = vld [vmem:[%s6 + $0x8] sm:$0xf]
  %v1375 = vld [vmem:[%s6 + $0xc] sm:$0xf]
  %v1376 = vld [vmem:[%s6 + $0x10] sm:$0xf]
  %v1377 = vld [vmem:[%s6 + $0x14] sm:$0xf]
  %v1378 = vld [vmem:[%s6 + $0x18] sm:$0xf]
  %v1379 = vld [vmem:[%s6 + $0x1c] sm:$0xf]
  %v1380 = vld [vmem:[%s6 + $0x20] sm:$0xf]
  %v1381 = vld [vmem:[%s6 + $0x24] sm:$0xf]
  %v1382 = vld [vmem:[%s6 + $0x28] sm:$0xf]
  %v1383 = vld [vmem:[%s6 + $0x2c] sm:$0xf]
  %v1384 = vld [vmem:[%s6 + $0x30] sm:$0xf]
  %v1385 = vld [vmem:[%s6 + $0x34] sm:$0xf]
  %v1386 = vld [vmem:[%s6 + $0x38] sm:$0xf]
  %v1387 = vld [vmem:[%s6 + $0x3c] sm:$0xf]
  %v1404 = vunpack.c.l.b16 %v1372
  %v1405 = vunpack.c.l.b16 %v1373
  %v1406 = vunpack.c.l.b16 %v1374
  %v1407 = vunpack.c.l.b16 %v1375
  %v1408 = vunpack.c.l.b16 %v1376
  %v1409 = vunpack.c.l.b16 %v1377
  %v1410 = vunpack.c.l.b16 %v1378
  %v1411 = vunpack.c.l.b16 %v1379
  %v1412 = vunpack.c.l.b16 %v1380
  %v1413 = vunpack.c.l.b16 %v1381
  %v1414 = vunpack.c.l.b16 %v1382
  %v1415 = vunpack.c.l.b16 %v1383
  %v1416 = vunpack.c.l.b16 %v1384
  %v1417 = vunpack.c.l.b16 %v1385
  %v1418 = vunpack.c.l.b16 %v1386
  %v1419 = vunpack.c.l.b16 %v1387
  %v1420 = vpack.c.b16 %v1405, %v1404
  %v1421 = vpack.c.b16 %v1407, %v1406
  %v1422 = vpack.c.b16 %v1409, %v1408
  %v1423 = vpack.c.b16 %v1411, %v1410
  %v1424 = vpack.c.b16 %v1413, %v1412
  %v1425 = vpack.c.b16 %v1415, %v1414
  %v1426 = vpack.c.b16 %v1417, %v1416
  %v1427 = vpack.c.b16 %v1419, %v1418
  %1436 = vmatprep.subr.bf16.mxu0 0
  %1437 = vmatpush1.bf16.msra.mxu0 %v1427
  %1438 = vmatprep.subr.bf16.mxu0 0
  %1439 = vmatpush1.bf16.msra.mxu0 %v1426
  %1440 = vmatprep.subr.bf16.mxu0 0
  %1441 = vmatpush1.bf16.msra.mxu0 %v1425
  %1442 = vmatprep.subr.bf16.mxu0 0
  %1443 = vmatpush1.bf16.msra.mxu0 %v1424
  %1444 = vmatprep.subr.bf16.mxu0 0
  %1445 = vmatpush1.bf16.msra.mxu0 %v1423
  %1446 = vmatprep.subr.bf16.mxu0 0
  %1447 = vmatpush1.bf16.msra.mxu0 %v1422
  %1448 = vmatprep.subr.bf16.mxu0 0
  %1449 = vmatpush1.bf16.msra.mxu0 %v1421
  %1450 = vmatprep.subr.bf16.mxu0 0
  %1451 = vmatpush1.bf16.msra.mxu0 %v1420
  %1452 = vmatprep.subr.bf16.mxu0 0
  %1453 = vmatpush2.bf16.msra.mxu0 0
  %1454 = vmatprep.subr.bf16.mxu0 0
  %1455 = vmatpush2.bf16.msra.mxu0 0
  %1456 = vmatprep.subr.bf16.mxu0 0
  %1457 = vmatpush2.bf16.msra.mxu0 0
  %1458 = vmatprep.subr.bf16.mxu0 0
  %1459 = vmatpush2.bf16.msra.mxu0 0
  %1460 = vmatprep.subr.bf16.mxu0 0
  %1461 = vmatpush2.bf16.msra.mxu0 0
  %1462 = vmatprep.subr.bf16.mxu0 0
  %1463 = vmatpush2.bf16.msra.mxu0 0
  %1464 = vmatprep.subr.bf16.mxu0 0
  %1465 = vmatpush2.bf16.msra.mxu0 0
  %1466 = vmatprep.subr.bf16.mxu0 0
  %1467 = vmatpush2.bf16.msra.mxu0 0
  %1468 = vmatprep.mubr.bf16.mxu0 0
  %1469 = vmatmul.mubr.bf16.gmra.mxu0 %v1364
  %v1470 = vpop.f32.mrf.mxu0
  %v1471 = vadd.f32 0.0, %v1470
  %v1472 = vpop.f32.mrf.mxu0
  %v1473 = vpop.f32.mrf.mxu0
  %v1474 = vadd.f32 0.0, %v1473
  %v1475 = vpop.f32.mrf.mxu0
  %1476 = vmatprep.mubr.bf16.mxu0 0
  %1477 = vmatmul.mubr.bf16.gmra.mxu0 %v1365
  %v1478 = vpop.f32.mrf.mxu0
  %v1479 = vadd.f32 0.0, %v1478
  %v1480 = vpop.f32.mrf.mxu0
  %v1481 = vpop.f32.mrf.mxu0
  %v1482 = vadd.f32 0.0, %v1481
  %v1483 = vpop.f32.mrf.mxu0
  %1484 = vmatprep.mubr.bf16.mxu0 0
  %1485 = vmatmul.mubr.bf16.gmra.mxu0 %v1366
  %v1486 = vpop.f32.mrf.mxu0
  %v1487 = vadd.f32 0.0, %v1486
  %v1488 = vpop.f32.mrf.mxu0
  %v1489 = vpop.f32.mrf.mxu0
  %v1490 = vadd.f32 0.0, %v1489
  %v1491 = vpop.f32.mrf.mxu0
  %1492 = vmatprep.mubr.bf16.mxu0 0
  %1493 = vmatmul.mubr.bf16.gmra.mxu0 %v1367
  %v1494 = vpop.f32.mrf.mxu0
  %v1495 = vadd.f32 0.0, %v1494
  %v1496 = vpop.f32.mrf.mxu0
  %v1497 = vpop.f32.mrf.mxu0
  %v1498 = vadd.f32 0.0, %v1497
  %v1499 = vpop.f32.mrf.mxu0
  %1500 = vmatprep.mubr.bf16.mxu0 0
  %1501 = vmatmul.mubr.bf16.gmra.mxu0 %v1368
  %v1502 = vpop.f32.mrf.mxu0
  %v1503 = vadd.f32 0.0, %v1502
  %v1504 = vpop.f32.mrf.mxu0
  %v1505 = vpop.f32.mrf.mxu0
  %v1506 = vadd.f32 0.0, %v1505
  %v1507 = vpop.f32.mrf.mxu0
  %1508 = vmatprep.mubr.bf16.mxu0 0
  %1509 = vmatmul.mubr.bf16.gmra.mxu0 %v1369
  %v1510 = vpop.f32.mrf.mxu0
  %v1511 = vadd.f32 0.0, %v1510
  %v1512 = vpop.f32.mrf.mxu0
  %v1513 = vpop.f32.mrf.mxu0
  %v1514 = vadd.f32 0.0, %v1513
  %v1515 = vpop.f32.mrf.mxu0
  %1516 = vmatprep.mubr.bf16.mxu0 0
  %1517 = vmatmul.mubr.bf16.gmra.mxu0 %v1370
  %v1518 = vpop.f32.mrf.mxu0
  %v1519 = vadd.f32 0.0, %v1518
  %v1520 = vpop.f32.mrf.mxu0
  %v1521 = vpop.f32.mrf.mxu0
  %v1522 = vadd.f32 0.0, %v1521
  %v1523 = vpop.f32.mrf.mxu0
  %1524 = vmatprep.mubr.bf16.mxu0 0
  %1525 = vmatmul.mubr.bf16.gmra.mxu0 %v1371
  %v1526 = vpop.f32.mrf.mxu0
  %v1527 = vadd.f32 0.0, %v1526
  %v1528 = vpop.f32.mrf.mxu0
  %v1529 = vpop.f32.mrf.mxu0
  %v1530 = vadd.f32 0.0, %v1529
  %v1531 = vpop.f32.mrf.mxu0
  %1532 = vdwg.mxu0
  %v1537 = vunpack.c.l.b16 %v1168
  %v1538 = vunpack.c.l.b16 %v1169
  %v1539 = vunpack.c.l.b16 %v1170
  %v1540 = vunpack.c.l.b16 %v1171
  %v1541 = vpack.c.b16 %v1538, %v1537
  %v1542 = vpack.c.b16 %v1540, %v1539
  %v1546 = vsel %vm929, %v1160, 0
  %v1549 = vsel %vm929, %v1161, 0
  %v1552 = vsel %vm929, %v1162, 0
  %v1555 = vsel %vm929, %v1163, 0
  %v1558 = vsel %vm929, %v1164, 0
  %v1561 = vsel %vm929, %v1165, 0
  %v1564 = vsel %vm929, %v1166, 0
  %v1567 = vsel %vm929, %v1167, 0
  %1569 = vmatprep.subr.bf16.mxu0 0
  %1570 = vmatpush1.bf16.msra.mxu0 0
  %1571 = vmatprep.subr.bf16.mxu0 0
  %1572 = vmatpush1.bf16.msra.mxu0 0
  %1573 = vmatprep.subr.bf16.mxu0 0
  %1574 = vmatpush1.bf16.msra.mxu0 0
  %1575 = vmatprep.subr.bf16.mxu0 0
  %1576 = vmatpush1.bf16.msra.mxu0 0
  %1577 = vmatprep.subr.bf16.mxu0 0
  %1578 = vmatpush1.bf16.msra.mxu0 0
  %1579 = vmatprep.subr.bf16.mxu0 0
  %1580 = vmatpush1.bf16.msra.mxu0 0
  %1581 = vmatprep.subr.bf16.mxu0 0
  %1582 = vmatpush1.bf16.msra.mxu0 %v1542
  %1583 = vmatprep.subr.bf16.mxu0 0
  %1584 = vmatpush1.bf16.msra.mxu0 %v1541
  %1585 = vmatprep.subr.bf16.mxu0 0
  %1586 = vmatpush2.bf16.msra.mxu0 0
  %1587 = vmatprep.subr.bf16.mxu0 0
  %1588 = vmatpush2.bf16.msra.mxu0 0
  %1589 = vmatprep.subr.bf16.mxu0 0
  %1590 = vmatpush2.bf16.msra.mxu0 0
  %1591 = vmatprep.subr.bf16.mxu0 0
  %1592 = vmatpush2.bf16.msra.mxu0 0
  %1593 = vmatprep.subr.bf16.mxu0 0
  %1594 = vmatpush2.bf16.msra.mxu0 0
  %1595 = vmatprep.subr.bf16.mxu0 0
  %1596 = vmatpush2.bf16.msra.mxu0 0
  %1597 = vmatprep.subr.bf16.mxu0 0
  %1598 = vmatpush2.bf16.msra.mxu0 0
  %1599 = vmatprep.subr.bf16.mxu0 0
  %1600 = vmatpush2.bf16.msra.mxu0 0
  %1601 = vmatprep.mubr.bf16.mxu0 0
  %1602 = vmatmul.mubr.bf16.gmra.mxu0 %v1546
  %v1603 = vpop.f32.mrf.mxu0
  %v1604 = vadd.f32 %v1471, %v1603
  %v1605 = vpop.f32.mrf.mxu0
  %v1606 = vpop.f32.mrf.mxu0
  %v1607 = vadd.f32 %v1474, %v1606
  %v1608 = vpop.f32.mrf.mxu0
  %1609 = vmatprep.mubr.bf16.mxu0 0
  %1610 = vmatmul.mubr.bf16.gmra.mxu0 %v1549
  %v1611 = vpop.f32.mrf.mxu0
  %v1612 = vadd.f32 %v1479, %v1611
  %v1613 = vpop.f32.mrf.mxu0
  %v1614 = vpop.f32.mrf.mxu0
  %v1615 = vadd.f32 %v1482, %v1614
  %v1616 = vpop.f32.mrf.mxu0
  %1617 = vmatprep.mubr.bf16.mxu0 0
  %1618 = vmatmul.mubr.bf16.gmra.mxu0 %v1552
  %v1619 = vpop.f32.mrf.mxu0
  %v1620 = vadd.f32 %v1487, %v1619
  %v1621 = vpop.f32.mrf.mxu0
  %v1622 = vpop.f32.mrf.mxu0
  %v1623 = vadd.f32 %v1490, %v1622
  %v1624 = vpop.f32.mrf.mxu0
  %1625 = vmatprep.mubr.bf16.mxu0 0
  %1626 = vmatmul.mubr.bf16.gmra.mxu0 %v1555
  %v1627 = vpop.f32.mrf.mxu0
  %v1628 = vadd.f32 %v1495, %v1627
  %v1629 = vpop.f32.mrf.mxu0
  %v1630 = vpop.f32.mrf.mxu0
  %v1631 = vadd.f32 %v1498, %v1630
  %v1632 = vpop.f32.mrf.mxu0
  %1633 = vmatprep.mubr.bf16.mxu0 0
  %1634 = vmatmul.mubr.bf16.gmra.mxu0 %v1558
  %v1635 = vpop.f32.mrf.mxu0
  %v1636 = vadd.f32 %v1503, %v1635
  %v1637 = vpop.f32.mrf.mxu0
  %v1638 = vpop.f32.mrf.mxu0
  %v1639 = vadd.f32 %v1506, %v1638
  %v1640 = vpop.f32.mrf.mxu0
  %1641 = vmatprep.mubr.bf16.mxu0 0
  %1642 = vmatmul.mubr.bf16.gmra.mxu0 %v1561
  %v1643 = vpop.f32.mrf.mxu0
  %v1644 = vadd.f32 %v1511, %v1643
  %v1645 = vpop.f32.mrf.mxu0
  %v1646 = vpop.f32.mrf.mxu0
  %v1647 = vadd.f32 %v1514, %v1646
  %v1648 = vpop.f32.mrf.mxu0
  %1649 = vmatprep.mubr.bf16.mxu0 0
  %1650 = vmatmul.mubr.bf16.gmra.mxu0 %v1564
  %v1651 = vpop.f32.mrf.mxu0
  %v1652 = vadd.f32 %v1519, %v1651
  %v1653 = vpop.f32.mrf.mxu0
  %v1654 = vpop.f32.mrf.mxu0
  %v1655 = vadd.f32 %v1522, %v1654
  %v1656 = vpop.f32.mrf.mxu0
  %1657 = vmatprep.mubr.bf16.mxu0 0
  %1658 = vmatmul.mubr.bf16.gmra.mxu0 %v1567
  %v1659 = vpop.f32.mrf.mxu0
  %v1660 = vadd.f32 %v1527, %v1659
  %v1661 = vpop.f32.mrf.mxu0
  %v1662 = vpop.f32.mrf.mxu0
  %v1663 = vadd.f32 %v1530, %v1662
  %v1664 = vpop.f32.mrf.mxu0
  %1665 = vdwg.mxu0
  %v1666 = vld [vmem:[%s7] sm:$0xf]
  %v1667 = vld [vmem:[%s7 + $0x4] sm:$0xf]
  %v1668 = vld [vmem:[%s7 + $0x8] sm:$0xf]
  %v1669 = vld [vmem:[%s7 + $0xc] sm:$0xf]
  %v1670 = vld [vmem:[%s7 + $0x10] sm:$0xf]
  %v1671 = vld [vmem:[%s7 + $0x14] sm:$0xf]
  %v1672 = vld [vmem:[%s7 + $0x18] sm:$0xf]
  %v1673 = vld [vmem:[%s7 + $0x1c] sm:$0xf]
  %v1690 = vunpack.c.l.b16 %v30
  %v1691 = vunpack.c.l.b16 %v31
  %v1692 = vunpack.c.l.b16 %v32
  %v1693 = vunpack.c.l.b16 %v33
  %v1694 = vunpack.c.l.b16 %v34
  %v1695 = vunpack.c.l.b16 %v35
  %v1696 = vunpack.c.l.b16 %v36
  %v1697 = vunpack.c.l.b16 %v37
  %v1698 = vunpack.c.l.b16 %v38
  %v1699 = vunpack.c.l.b16 %v39
  %v1700 = vunpack.c.l.b16 %v40
  %v1701 = vunpack.c.l.b16 %v41
  %v1702 = vunpack.c.l.b16 %v42
  %v1703 = vunpack.c.l.b16 %v43
  %v1704 = vunpack.c.l.b16 %v44
  %v1705 = vunpack.c.l.b16 %v45
  %v1706 = vpack.c.b16 %v1691, %v1690
  %v1707 = vpack.c.b16 %v1693, %v1692
  %v1708 = vpack.c.b16 %v1695, %v1694
  %v1709 = vpack.c.b16 %v1697, %v1696
  %v1710 = vpack.c.b16 %v1699, %v1698
  %v1711 = vpack.c.b16 %v1701, %v1700
  %v1712 = vpack.c.b16 %v1703, %v1702
  %v1713 = vpack.c.b16 %v1705, %v1704
  %v1722 = vunpack.c.l.b16 %v1666
  %v1723 = vunpack.c.l.b16 %v1667
  %v1724 = vunpack.c.l.b16 %v1668
  %v1725 = vunpack.c.l.b16 %v1669
  %v1726 = vunpack.c.l.b16 %v1670
  %v1727 = vunpack.c.l.b16 %v1671
  %v1728 = vunpack.c.l.b16 %v1672
  %v1729 = vunpack.c.l.b16 %v1673
  %v1730 = vpack.c.b16 %v1723, %v1722
  %v1731 = vpack.c.b16 %v1725, %v1724
  %v1732 = vpack.c.b16 %v1727, %v1726
  %v1733 = vpack.c.b16 %v1729, %v1728
  %v1739 = vsel %vm256, %v1706, 0
  %v1742 = vsel %vm256, %v1707, 0
  %v1745 = vsel %vm256, %v1708, 0
  %v1748 = vsel %vm256, %v1709, 0
  %v1751 = vsel %vm256, %v1710, 0
  %v1754 = vsel %vm256, %v1711, 0
  %v1757 = vsel %vm256, %v1712, 0
  %v1760 = vsel %vm256, %v1713, 0
  %1762 = vmatprep.subr.bf16.mxu0 0
  %1763 = vmatpush1.bf16.msra.mxu0 0
  %1764 = vmatprep.subr.bf16.mxu0 0
  %1765 = vmatpush1.bf16.msra.mxu0 0
  %1766 = vmatprep.subr.bf16.mxu0 0
  %1767 = vmatpush1.bf16.msra.mxu0 0
  %1768 = vmatprep.subr.bf16.mxu0 0
  %1769 = vmatpush1.bf16.msra.mxu0 0
  %1770 = vmatprep.subr.bf16.mxu0 0
  %1771 = vmatpush1.bf16.msra.mxu0 %v1733
  %1772 = vmatprep.subr.bf16.mxu0 0
  %1773 = vmatpush1.bf16.msra.mxu0 %v1732
  %1774 = vmatprep.subr.bf16.mxu0 0
  %1775 = vmatpush1.bf16.msra.mxu0 %v1731
  %1776 = vmatprep.subr.bf16.mxu0 0
  %1777 = vmatpush1.bf16.msra.mxu0 %v1730
  %1778 = vmatprep.subr.bf16.mxu0 0
  %1779 = vmatpush2.bf16.msra.mxu0 0
  %1780 = vmatprep.subr.bf16.mxu0 0
  %1781 = vmatpush2.bf16.msra.mxu0 0
  %1782 = vmatprep.subr.bf16.mxu0 0
  %1783 = vmatpush2.bf16.msra.mxu0 0
  %1784 = vmatprep.subr.bf16.mxu0 0
  %1785 = vmatpush2.bf16.msra.mxu0 0
  %1786 = vmatprep.subr.bf16.mxu0 0
  %1787 = vmatpush2.bf16.msra.mxu0 0
  %1788 = vmatprep.subr.bf16.mxu0 0
  %1789 = vmatpush2.bf16.msra.mxu0 0
  %1790 = vmatprep.subr.bf16.mxu0 0
  %1791 = vmatpush2.bf16.msra.mxu0 0
  %1792 = vmatprep.subr.bf16.mxu0 0
  %1793 = vmatpush2.bf16.msra.mxu0 0
  %1794 = vmatprep.mubr.bf16.mxu0 0
  %1795 = vmatmul.mubr.bf16.gmra.mxu0 %v1739
  %v1796 = vpop.f32.mrf.mxu0
  %v1797 = vadd.f32 0.0, %v1796
  %v1798 = vpop.f32.mrf.mxu0
  %v1799 = vpop.f32.mrf.mxu0
  %v1800 = vadd.f32 0.0, %v1799
  %v1801 = vpop.f32.mrf.mxu0
  %1802 = vmatprep.mubr.bf16.mxu0 0
  %1803 = vmatmul.mubr.bf16.gmra.mxu0 %v1742
  %v1804 = vpop.f32.mrf.mxu0
  %v1805 = vadd.f32 0.0, %v1804
  %v1806 = vpop.f32.mrf.mxu0
  %v1807 = vpop.f32.mrf.mxu0
  %v1808 = vadd.f32 0.0, %v1807
  %v1809 = vpop.f32.mrf.mxu0
  %1810 = vmatprep.mubr.bf16.mxu0 0
  %1811 = vmatmul.mubr.bf16.gmra.mxu0 %v1745
  %v1812 = vpop.f32.mrf.mxu0
  %v1813 = vadd.f32 0.0, %v1812
  %v1814 = vpop.f32.mrf.mxu0
  %v1815 = vpop.f32.mrf.mxu0
  %v1816 = vadd.f32 0.0, %v1815
  %v1817 = vpop.f32.mrf.mxu0
  %1818 = vmatprep.mubr.bf16.mxu0 0
  %1819 = vmatmul.mubr.bf16.gmra.mxu0 %v1748
  %v1820 = vpop.f32.mrf.mxu0
  %v1821 = vadd.f32 0.0, %v1820
  %v1822 = vpop.f32.mrf.mxu0
  %v1823 = vpop.f32.mrf.mxu0
  %v1824 = vadd.f32 0.0, %v1823
  %v1825 = vpop.f32.mrf.mxu0
  %1826 = vmatprep.mubr.bf16.mxu0 0
  %1827 = vmatmul.mubr.bf16.gmra.mxu0 %v1751
  %v1828 = vpop.f32.mrf.mxu0
  %v1829 = vadd.f32 0.0, %v1828
  %v1830 = vpop.f32.mrf.mxu0
  %v1831 = vpop.f32.mrf.mxu0
  %v1832 = vadd.f32 0.0, %v1831
  %v1833 = vpop.f32.mrf.mxu0
  %1834 = vmatprep.mubr.bf16.mxu0 0
  %1835 = vmatmul.mubr.bf16.gmra.mxu0 %v1754
  %v1836 = vpop.f32.mrf.mxu0
  %v1837 = vadd.f32 0.0, %v1836
  %v1838 = vpop.f32.mrf.mxu0
  %v1839 = vpop.f32.mrf.mxu0
  %v1840 = vadd.f32 0.0, %v1839
  %v1841 = vpop.f32.mrf.mxu0
  %1842 = vmatprep.mubr.bf16.mxu0 0
  %1843 = vmatmul.mubr.bf16.gmra.mxu0 %v1757
  %v1844 = vpop.f32.mrf.mxu0
  %v1845 = vadd.f32 0.0, %v1844
  %v1846 = vpop.f32.mrf.mxu0
  %v1847 = vpop.f32.mrf.mxu0
  %v1848 = vadd.f32 0.0, %v1847
  %v1849 = vpop.f32.mrf.mxu0
  %1850 = vmatprep.mubr.bf16.mxu0 0
  %1851 = vmatmul.mubr.bf16.gmra.mxu0 %v1760
  %v1852 = vpop.f32.mrf.mxu0
  %v1853 = vadd.f32 0.0, %v1852
  %v1854 = vpop.f32.mrf.mxu0
  %v1855 = vpop.f32.mrf.mxu0
  %v1856 = vadd.f32 0.0, %v1855
  %v1857 = vpop.f32.mrf.mxu0
  %1858 = vdwg.mxu0
  %v1859 = vpack.c.bf16 %v63, %v62
  %v1860 = vpack.c.bf16 %v65, %v64
  %v1861 = vpack.c.bf16 %v67, %v66
  %v1862 = vpack.c.bf16 %v69, %v68
  %v1863 = vpack.c.bf16 %v71, %v70
  %v1864 = vpack.c.bf16 %v73, %v72
  %v1865 = vpack.c.bf16 %v75, %v74
  %v1866 = vpack.c.bf16 %v77, %v76
  %v1868 = vsel %vm256, %v1859, 0
  %v1871 = vsel %vm256, %v1860, 0
  %v1874 = vsel %vm256, %v1861, 0
  %v1877 = vsel %vm256, %v1862, 0
  %v1880 = vsel %vm256, %v1863, 0
  %v1883 = vsel %vm256, %v1864, 0
  %v1886 = vsel %vm256, %v1865, 0
  %v1889 = vsel %vm256, %v1866, 0
  %1891 = vmatprep.subr.bf16.mxu0 0
  %1892 = vmatpush1.bf16.msra.mxu0 0
  %1893 = vmatprep.subr.bf16.mxu0 0
  %1894 = vmatpush1.bf16.msra.mxu0 0
  %1895 = vmatprep.subr.bf16.mxu0 0
  %1896 = vmatpush1.bf16.msra.mxu0 0
  %1897 = vmatprep.subr.bf16.mxu0 0
  %1898 = vmatpush1.bf16.msra.mxu0 0
  %1899 = vmatprep.subr.bf16.mxu0 0
  %1900 = vmatpush1.bf16.msra.mxu0 %v1733
  %1901 = vmatprep.subr.bf16.mxu0 0
  %1902 = vmatpush1.bf16.msra.mxu0 %v1732
  %1903 = vmatprep.subr.bf16.mxu0 0
  %1904 = vmatpush1.bf16.msra.mxu0 %v1731
  %1905 = vmatprep.subr.bf16.mxu0 0
  %1906 = vmatpush1.bf16.msra.mxu0 %v1730
  %1907 = vmatprep.subr.bf16.mxu0 0
  %1908 = vmatpush2.bf16.msra.mxu0 0
  %1909 = vmatprep.subr.bf16.mxu0 0
  %1910 = vmatpush2.bf16.msra.mxu0 0
  %1911 = vmatprep.subr.bf16.mxu0 0
  %1912 = vmatpush2.bf16.msra.mxu0 0
  %1913 = vmatprep.subr.bf16.mxu0 0
  %1914 = vmatpush2.bf16.msra.mxu0 0
  %1915 = vmatprep.subr.bf16.mxu0 0
  %1916 = vmatpush2.bf16.msra.mxu0 0
  %1917 = vmatprep.subr.bf16.mxu0 0
  %1918 = vmatpush2.bf16.msra.mxu0 0
  %1919 = vmatprep.subr.bf16.mxu0 0
  %1920 = vmatpush2.bf16.msra.mxu0 0
  %1921 = vmatprep.subr.bf16.mxu0 0
  %1922 = vmatpush2.bf16.msra.mxu0 0
  %1923 = vmatprep.mubr.bf16.mxu0 0
  %1924 = vmatmul.mubr.bf16.gmra.mxu0 %v1868
  %v1925 = vpop.f32.mrf.mxu0
  %v1926 = vadd.f32 0.0, %v1925
  %v1927 = vpop.f32.mrf.mxu0
  %v1928 = vpop.f32.mrf.mxu0
  %v1929 = vadd.f32 0.0, %v1928
  %v1930 = vpop.f32.mrf.mxu0
  %1931 = vmatprep.mubr.bf16.mxu0 0
  %1932 = vmatmul.mubr.bf16.gmra.mxu0 %v1871
  %v1933 = vpop.f32.mrf.mxu0
  %v1934 = vadd.f32 0.0, %v1933
  %v1935 = vpop.f32.mrf.mxu0
  %v1936 = vpop.f32.mrf.mxu0
  %v1937 = vadd.f32 0.0, %v1936
  %v1938 = vpop.f32.mrf.mxu0
  %1939 = vmatprep.mubr.bf16.mxu0 0
  %1940 = vmatmul.mubr.bf16.gmra.mxu0 %v1874
  %v1941 = vpop.f32.mrf.mxu0
  %v1942 = vadd.f32 0.0, %v1941
  %v1943 = vpop.f32.mrf.mxu0
  %v1944 = vpop.f32.mrf.mxu0
  %v1945 = vadd.f32 0.0, %v1944
  %v1946 = vpop.f32.mrf.mxu0
  %1947 = vmatprep.mubr.bf16.mxu0 0
  %1948 = vmatmul.mubr.bf16.gmra.mxu0 %v1877
  %v1949 = vpop.f32.mrf.mxu0
  %v1950 = vadd.f32 0.0, %v1949
  %v1951 = vpop.f32.mrf.mxu0
  %v1952 = vpop.f32.mrf.mxu0
  %v1953 = vadd.f32 0.0, %v1952
  %v1954 = vpop.f32.mrf.mxu0
  %1955 = vmatprep.mubr.bf16.mxu0 0
  %1956 = vmatmul.mubr.bf16.gmra.mxu0 %v1880
  %v1957 = vpop.f32.mrf.mxu0
  %v1958 = vadd.f32 0.0, %v1957
  %v1959 = vpop.f32.mrf.mxu0
  %v1960 = vpop.f32.mrf.mxu0
  %v1961 = vadd.f32 0.0, %v1960
  %v1962 = vpop.f32.mrf.mxu0
  %1963 = vmatprep.mubr.bf16.mxu0 0
  %1964 = vmatmul.mubr.bf16.gmra.mxu0 %v1883
  %v1965 = vpop.f32.mrf.mxu0
  %v1966 = vadd.f32 0.0, %v1965
  %v1967 = vpop.f32.mrf.mxu0
  %v1968 = vpop.f32.mrf.mxu0
  %v1969 = vadd.f32 0.0, %v1968
  %v1970 = vpop.f32.mrf.mxu0
  %1971 = vmatprep.mubr.bf16.mxu0 0
  %1972 = vmatmul.mubr.bf16.gmra.mxu0 %v1886
  %v1973 = vpop.f32.mrf.mxu0
  %v1974 = vadd.f32 0.0, %v1973
  %v1975 = vpop.f32.mrf.mxu0
  %v1976 = vpop.f32.mrf.mxu0
  %v1977 = vadd.f32 0.0, %v1976
  %v1978 = vpop.f32.mrf.mxu0
  %1979 = vmatprep.mubr.bf16.mxu0 0
  %1980 = vmatmul.mubr.bf16.gmra.mxu0 %v1889
  %v1981 = vpop.f32.mrf.mxu0
  %v1982 = vadd.f32 0.0, %v1981
  %v1983 = vpop.f32.mrf.mxu0
  %v1984 = vpop.f32.mrf.mxu0
  %v1985 = vadd.f32 0.0, %v1984
  %v1986 = vpop.f32.mrf.mxu0
  %1987 = vdwg.mxu0
  %2004 = vrot.lane.b32.xlu0 %v1926, 32
  %v2005 = vpop.permute.xlu0 %2004
  %2006 = vrot.lane.b32.xlu0 %v1929, 32
  %v2007 = vpop.permute.xlu0 %2006
  %2008 = vrot.lane.b32.xlu0 %v1934, 32
  %v2009 = vpop.permute.xlu0 %2008
  %2010 = vrot.lane.b32.xlu0 %v1937, 32
  %v2011 = vpop.permute.xlu0 %2010
  %2012 = vrot.lane.b32.xlu0 %v1942, 32
  %v2013 = vpop.permute.xlu0 %2012
  %2014 = vrot.lane.b32.xlu0 %v1945, 32
  %v2015 = vpop.permute.xlu0 %2014
  %2016 = vrot.lane.b32.xlu0 %v1950, 32
  %v2017 = vpop.permute.xlu0 %2016
  %2018 = vrot.lane.b32.xlu0 %v1953, 32
  %v2019 = vpop.permute.xlu0 %2018
  %2020 = vrot.lane.b32.xlu0 %v1958, 32
  %v2021 = vpop.permute.xlu0 %2020
  %2022 = vrot.lane.b32.xlu0 %v1961, 32
  %v2023 = vpop.permute.xlu0 %2022
  %2024 = vrot.lane.b32.xlu0 %v1966, 32
  %v2025 = vpop.permute.xlu0 %2024
  %2026 = vrot.lane.b32.xlu0 %v1969, 32
  %v2027 = vpop.permute.xlu0 %2026
  %2028 = vrot.lane.b32.xlu0 %v1974, 32
  %v2029 = vpop.permute.xlu0 %2028
  %2030 = vrot.lane.b32.xlu0 %v1977, 32
  %v2031 = vpop.permute.xlu0 %2030
  %2032 = vrot.lane.b32.xlu0 %v1982, 32
  %v2033 = vpop.permute.xlu0 %2032
  %2034 = vrot.lane.b32.xlu0 %v1985, 32
  %v2035 = vpop.permute.xlu0 %2034
  %v2052 = vsel %vm929, %v1797, %v2005
  %v2053 = vsel %vm929, %v1800, %v2007
  %v2054 = vsel %vm929, %v1805, %v2009
  %v2055 = vsel %vm929, %v1808, %v2011
  %v2056 = vsel %vm929, %v1813, %v2013
  %v2057 = vsel %vm929, %v1816, %v2015
  %v2058 = vsel %vm929, %v1821, %v2017
  %v2059 = vsel %vm929, %v1824, %v2019
  %v2060 = vsel %vm929, %v1829, %v2021
  %v2061 = vsel %vm929, %v1832, %v2023
  %v2062 = vsel %vm929, %v1837, %v2025
  %v2063 = vsel %vm929, %v1840, %v2027
  %v2064 = vsel %vm929, %v1845, %v2029
  %v2065 = vsel %vm929, %v1848, %v2031
  %v2066 = vsel %vm929, %v1853, %v2033
  %v2067 = vsel %vm929, %v1856, %v2035
  %v2068 = vlaneseq
  %v2069 = vshrl.u32 %v2068, 7
  %v2070 = vsub.s32 1, %v2069
  %v2071 = vrot.slane %v79, %v2070
  %v2072 = vmul.f32 %v2052, %v2071
  %v2073 = vmul.f32 %v2053, %v2071
  %v2074 = vmul.f32 %v2054, %v2071
  %v2075 = vmul.f32 %v2055, %v2071
  %v2076 = vmul.f32 %v2056, %v2071
  %v2077 = vmul.f32 %v2057, %v2071
  %v2078 = vmul.f32 %v2058, %v2071
  %v2079 = vmul.f32 %v2059, %v2071
  %v2080 = vmul.f32 %v2060, %v2071
  %v2081 = vmul.f32 %v2061, %v2071
  %v2082 = vmul.f32 %v2062, %v2071
  %v2083 = vmul.f32 %v2063, %v2071
  %v2084 = vmul.f32 %v2064, %v2071
  %v2085 = vmul.f32 %v2065, %v2071
  %v2086 = vmul.f32 %v2066, %v2071
  %v2087 = vmul.f32 %v2067, %v2071
  %v2088 = vadd.f32 %v1604, %v2072
  %v2089 = vadd.f32 %v1607, %v2073
  %v2090 = vadd.f32 %v1612, %v2074
  %v2091 = vadd.f32 %v1615, %v2075
  %v2092 = vadd.f32 %v1620, %v2076
  %v2093 = vadd.f32 %v1623, %v2077
  %v2094 = vadd.f32 %v1628, %v2078
  %v2095 = vadd.f32 %v1631, %v2079
  %v2096 = vadd.f32 %v1636, %v2080
  %v2097 = vadd.f32 %v1639, %v2081
  %v2098 = vadd.f32 %v1644, %v2082
  %v2099 = vadd.f32 %v1647, %v2083
  %v2100 = vadd.f32 %v1652, %v2084
  %v2101 = vadd.f32 %v1655, %v2085
  %v2102 = vadd.f32 %v1660, %v2086
  %v2103 = vadd.f32 %v1663, %v2087
  %v2104 = vlaneseq
  %v2105 = vshrl.u32 %v2104, 7
  %v2106 = vsub.s32 2, %v2105
  %v2107 = vrot.slane %v79, %v2106
  %v2108 = vadd.f32 %v2088, %v2107
  %v2109 = vadd.f32 %v2089, %v2107
  %v2110 = vadd.f32 %v2090, %v2107
  %v2111 = vadd.f32 %v2091, %v2107
  %v2112 = vadd.f32 %v2092, %v2107
  %v2113 = vadd.f32 %v2093, %v2107
  %v2114 = vadd.f32 %v2094, %v2107
  %v2115 = vadd.f32 %v2095, %v2107
  %v2116 = vadd.f32 %v2096, %v2107
  %v2117 = vadd.f32 %v2097, %v2107
  %v2118 = vadd.f32 %v2098, %v2107
  %v2119 = vadd.f32 %v2099, %v2107
  %v2120 = vadd.f32 %v2100, %v2107
  %v2121 = vadd.f32 %v2101, %v2107
  %v2122 = vadd.f32 %v2102, %v2107
  %v2123 = vadd.f32 %v2103, %v2107
  %2124 = vst.msk [vmem:[%s8] sm:$0xff] %vm256, %v2108
  %2125 = vst.msk [vmem:[%s8 + $0x8] sm:$0xff] %vm256, %v2109
  %2126 = vst.msk [vmem:[%s8 + $0x10] sm:$0xff] %vm256, %v2110
  %2127 = vst.msk [vmem:[%s8 + $0x18] sm:$0xff] %vm256, %v2111
  %2128 = vst.msk [vmem:[%s8 + $0x20] sm:$0xff] %vm256, %v2112
  %2129 = vst.msk [vmem:[%s8 + $0x28] sm:$0xff] %vm256, %v2113
  %2130 = vst.msk [vmem:[%s8 + $0x30] sm:$0xff] %vm256, %v2114
  %2131 = vst.msk [vmem:[%s8 + $0x38] sm:$0xff] %vm256, %v2115
  %2132 = vst.msk [vmem:[%s8 + $0x40] sm:$0xff] %vm256, %v2116
  %2133 = vst.msk [vmem:[%s8 + $0x48] sm:$0xff] %vm256, %v2117
  %2134 = vst.msk [vmem:[%s8 + $0x50] sm:$0xff] %vm256, %v2118
  %2135 = vst.msk [vmem:[%s8 + $0x58] sm:$0xff] %vm256, %v2119
  %2136 = vst.msk [vmem:[%s8 + $0x60] sm:$0xff] %vm256, %v2120
  %2137 = vst.msk [vmem:[%s8 + $0x68] sm:$0xff] %vm256, %v2121
  %2138 = vst.msk [vmem:[%s8 + $0x70] sm:$0xff] %vm256, %v2122
  %2139 = vst.msk [vmem:[%s8 + $0x78] sm:$0xff] %vm256, %v2123
  // Predicated region
  $region34: #{_lambda_.11} parent=0 // pred_check
    _
  $region35: #{_lambda_.11} parent=0 // pred_check_branch
    %2141 = sbr.rel (0) target = $region37
  $region36: #{_lambda_.11} parent=0 // pred_region
    _
  $region37: #{_lambda_.11} parent=0 // pred_fallthru
    _
  // Predicated region
  $region38: #{_lambda_.11} parent=0 // pred_check
    _
  $region39: #{_lambda_.11} parent=0 // pred_check_branch
    %2143 = sbr.rel (0) target = $region41
  $region40: #{_lambda_.11} parent=0 // pred_region
    _
  $region41: #{_lambda_.11} parent=0 // pred_fallthru
    _

</llo_original>
